<compile_context>
chip_gen: v7x
topology: tpu7x:2x2x1
jax: 0.10.0
libtpu: 0.0.40
codegen_flags: <defaults>
</compile_context>

<pallas_src>
import math

import jax
import jax.numpy as jnp
from jax.experimental import pallas as pl
from jax.experimental.pallas import tpu as pltpu


# ---------------------------------------------------------------------------
# Fused kernel
# ---------------------------------------------------------------------------
def _make_fused_kernel(H, W, C, n_layers, slope, op_dtype):
    assert n_layers % 2 == 0, "layer loop processes 2 layers per iteration"
    Hp, Wp = H + 2, W + 2
    HW = H * W

    def write_col(src_ref, col_ref):
        # col[y*W + x, (dy*3 + dx)*C + ci] = src[y + dy, x + dx, ci]
        # src is the zero-halo padded f32 activation (Hp, Wp, C).
        slabs = [src_ref[dy:dy + H, dx:dx + W, :].reshape(HW, C).astype(op_dtype)
                 for dy in range(3) for dx in range(3)]
        # Widened stores: pair 64-lane slabs into 128-lane column blocks.
        for t in range(0, 8, 2):
            col_ref[:, t * C:(t + 2) * C] = jnp.concatenate(
                [slabs[t], slabs[t + 1]], axis=-1)
        col_ref[:, 8 * C:9 * C] = slabs[8]

    def kernel(x_ref, wconv_ref, wdec_ref, o_ref, act0, act1, col_ref):
        # x_ref    : (H, W, C)        f32
        # wconv_ref: (L, 9C, C)       bf16  (im2col tap matrices, one per layer)
        # wdec_ref : (9C, 4C)         bf16  (merged polyphase deconv taps)
        # o_ref    : (H*W, 4C)        bf16  (phase p=2*py+px in cols p*C:(p+1)*C)
        # act0/act1: (Hp, Wp, C)      f32   VMEM ping-pong with zero halo
        # col_ref  : (H*W, 9C)        bf16  VMEM im2col MXU operand

        # Zero the halos (interiors are fully overwritten every layer).  Done
        # every grid step so correctness never depends on scratch persistence
        # under megacore sharding; cost is ~80 masked stores (<0.1 us).
        act0[...] = jnp.zeros_like(act0)
        act1[...] = jnp.zeros_like(act1)
        act0[1:H + 1, 1:W + 1, :] = x_ref[...]

        def conv_layer(src, dst, layer_idx):
            write_col(src, col_ref)
            y = jnp.dot(col_ref[...], wconv_ref[layer_idx],
                        preferred_element_type=jnp.float32)      # (HW, C) f32
            y = jnp.where(y >= 0, y, slope * y)                   # LeakyReLU (f32)
            dst[1:H + 1, 1:W + 1, :] = y.reshape(H, W, C)

        # ---- 10 x (3x3 conv + LeakyReLU); rolled loop, f32 acts in VMEM ----
        def body(i, carry):
            conv_layer(act0, act1, 2 * i)
            conv_layer(act1, act0, 2 * i + 1)
            return carry

        jax.lax.fori_loop(0, n_layers // 2, body, 0)

        # ---- ConvTranspose2d(4,4,s=2,p=1): ONE merged polyphase matmul -----
        # Output pixel (2y+py, 2x+px) reads only 2x2 taps of the padded final
        # activation; those taps live in the same 3x3 im2col, so one
        # (HW,9C)x(9C,4C) dot (zeros for unused taps) produces all 4 phases
        # and is stored lane-dense in a single (256, 256) write.
        write_col(act0, col_ref)
        dec = jnp.dot(col_ref[...], wdec_ref[...],
                      preferred_element_type=jnp.float32)          # (HW, 4C)
        o_ref[...] = dec.astype(o_ref.dtype)

    return kernel


def _conv_block_pallas(x_nhwc, wconv_taps, wdec_taps, *, slope=0.2,
                       op_dtype=jnp.bfloat16):
    N, H, W, C = x_nhwc.shape
    L = wconv_taps.shape[0]
    Hp, Wp = H + 2, W + 2
    HW = H * W
    kernel = _make_fused_kernel(H, W, C, L, slope, op_dtype)

    out = pl.pallas_call(
        kernel,
        out_shape=jax.ShapeDtypeStruct((N, HW, 4 * C), jnp.bfloat16),
        grid=(N,),
        in_specs=[
            pl.BlockSpec((pl.Squeezed(), H, W, C), lambda n: (n, 0, 0, 0)),
            pl.BlockSpec((L, 9 * C, C), lambda n: (0, 0, 0)),
            pl.BlockSpec((9 * C, 4 * C), lambda n: (0, 0)),
        ],
        out_specs=pl.BlockSpec((pl.Squeezed(), HW, 4 * C),
                               lambda n: (n, 0, 0)),
        scratch_shapes=[
            pltpu.VMEM((Hp, Wp, C), jnp.float32),    # ping (f32 activations)
            pltpu.VMEM((Hp, Wp, C), jnp.float32),    # pong
            pltpu.VMEM((HW, 9 * C), op_dtype),       # im2col MXU operand
        ],
        compiler_params=pltpu.CompilerParams(
            dimension_semantics=("parallel",)),
    )(x_nhwc.astype(jnp.float32),
      wconv_taps.astype(op_dtype),
      wdec_taps.astype(op_dtype))

    # (N, H*W, 4C) -> (N, 2H, 2W, C) in bf16: phase column block p = 2*py+px
    # maps to output pixel (2y+py, 2x+px).
    out = out.reshape(N, H, W, 2, 2, C)
    out = jnp.transpose(out, (0, 1, 3, 2, 4, 5)).reshape(N, 2 * H, 2 * W, C)
    return out.astype(jnp.float32)


# ---------------------------------------------------------------------------
# Weight preparation (PyTorch layouts -> tap matrices)
# ---------------------------------------------------------------------------
def prep_conv_taps(conv_ws):
    """Each w: OIHW (Cout, Cin, 3, 3) -> row (ky*3+kx)*Cin + ci of (9*Cin, Cout)."""
    taps = [jnp.transpose(w, (2, 3, 1, 0)).reshape(9 * w.shape[1], w.shape[0])
            for w in conv_ws]
    return jnp.stack(taps, axis=0)                       # (L, 9*Cin, Cout)


def prep_deconv_taps(w_iohw):
    """ConvTranspose2d(4,4,s=2,p=1) weight IOHW (Cin,Cout,4,4) -> (9*Cin, 4*Cout).

    Merged polyphase matrix aligned with the 3x3 im2col of the zero-padded
    final activation.  Row (dy*3+dx)*Cin + ci, column (2*py+px)*Cout + co holds
    w[ci, co, 3 - py - 2*(dy-py), 3 - px - 2*(dx-px)] whenever dy in {py, py+1}
    and dx in {px, px+1}; every other entry is zero.
    """
    Cin, Cout = w_iohw.shape[0], w_iohw.shape[1]
    wd = jnp.zeros((9 * Cin, 4 * Cout), jnp.float32)
    for py in range(2):
        for px in range(2):
            p = 2 * py + px
            for dyi in range(2):
                dy = py + dyi
                ky = 3 - py - 2 * dyi
                for dxi in range(2):
                    dx = px + dxi
                    kx = 3 - px - 2 * dxi
                    r0 = (dy * 3 + dx) * Cin
                    wd = wd.at[r0:r0 + Cin, p * Cout:(p + 1) * Cout].set(
                        w_iohw[:, :, ky, kx])
    return wd


# ---------------------------------------------------------------------------
# Public forward (PyTorch NCHW boundary) and references
# ---------------------------------------------------------------------------
def conv_block_forward(x_nchw, conv_ws, deconv_w, op_dtype=jnp.bfloat16):
    """Matches _Conv_Block.forward. Input/output in PyTorch NCHW, f32."""
    x = jnp.transpose(x_nchw, (0, 2, 3, 1))                    # NCHW -> NHWC
    wconv = prep_conv_taps(conv_ws)
    wdec = prep_deconv_taps(deconv_w)
    y = _conv_block_pallas(x, wconv, wdec, op_dtype=op_dtype)
    return jnp.transpose(y, (0, 3, 1, 2))                      # NHWC -> NCHW


def init_params(key, n_conv=10, C=64):
    """Deterministic synthetic weights with PyTorch layouts.

    (Random deconv weights instead of the bilinear-filter init so that a
    channel-indexing bug cannot cancel out in the self-check.)
    """
    keys = jax.random.split(key, n_conv + 1)
    scale3 = math.sqrt(2.0 / (9 * C))
    conv_ws = [scale3 * jax.random.normal(keys[i], (C, C, 3, 3), jnp.float32)
               for i in range(n_conv)]                          # OIHW
    scale4 = math.sqrt(2.0 / (16 * C))
    deconv_w = scale4 * jax.random.normal(keys[-1], (C, C, 4, 4), jnp.float32)  # IOHW
    return conv_ws, deconv_w


def _reference_forward(x_nchw, conv_ws, deconv_w, dtype=jnp.float32):
    """Pure-JAX (XLA) reference; `dtype` controls matmul operand precision."""
    dn = jax.lax.conv_dimension_numbers(x_nchw.shape, conv_ws[0].shape,
                                        ("NCHW", "OIHW", "NCHW"))
    y = x_nchw
    for w in conv_ws:
        y = jax.lax.conv_general_dilated(
            y.astype(dtype), w.astype(dtype), (1, 1), ((1, 1), (1, 1)),
            dimension_numbers=dn, preferred_element_type=jnp.float32)
        y = jnp.where(y >= 0, y, 0.2 * y)
    # ConvTranspose2d(4,4,s=2,p=1) via input-dilated conv with flipped kernel.
    w_t = jnp.transpose(jnp.flip(deconv_w, axis=(2, 3)), (1, 0, 2, 3))  # OIHW
    y = jax.lax.conv_general_dilated(
        y.astype(dtype), w_t.astype(dtype), (1, 1), ((2, 2), (2, 2)),
        lhs_dilation=(2, 2), dimension_numbers=dn,
        preferred_element_type=jnp.float32)
    return y


if __name__ == "__main__":
    key = jax.random.PRNGKey(0)
    k_x, k_w = jax.random.split(key)

    N, C, H, W = 2, 64, 16, 16
    x = jax.random.normal(k_x, (N, C, H, W), jnp.float32)
    conv_ws, deconv_w = init_params(k_w)

    forward = jax.jit(conv_block_forward)
    out = jax.block_until_ready(forward(x, conv_ws, deconv_w))
    assert out.shape == (N, C, 2 * H, 2 * W), out.shape

    # 1) Check against an XLA reference that applies the same bf16 operand
    #    rounding (validates the im2col / polyphase index math; only
    #    accumulation-order and final-store rounding differ).
    ref_bf16 = jax.block_until_ready(
        _reference_forward(x, conv_ws, deconv_w, dtype=jnp.bfloat16))
    err_b = float(jnp.max(jnp.abs(out - ref_bf16)))
    assert jnp.allclose(out, ref_bf16, rtol=5e-2, atol=5e-2), err_b

    # 2) Fidelity check against the full-f32 reference (bounds the total
    #    bf16-operand rounding across the 11 chained layers; an index bug
    #    would produce O(1) errors).
    ref_f32 = jax.block_until_ready(
        _reference_forward(x, conv_ws, deconv_w, dtype=jnp.float32))
    err_f = float(jnp.max(jnp.abs(out - ref_f32)))
    assert jnp.allclose(out, ref_f32, rtol=1e-1, atol=1e-1), err_f

    print("KERNEL_OK")
</pallas_src>

<mosaic_0001>
module attributes {stable_mosaic.version = 11 : i64} {
  func.func @kernel(%arg0: i32, %arg1: memref<1x16x16x64xf32, #tpu.memory_space<vmem>>, %arg2: memref<10x576x64xbf16, #tpu.memory_space<vmem>>, %arg3: memref<576x256xbf16, #tpu.memory_space<vmem>>, %arg4: memref<1x256x256xbf16, #tpu.memory_space<vmem>>, %arg5: memref<18x18x64xf32, #tpu.memory_space<vmem>>, %arg6: memref<18x18x64xf32, #tpu.memory_space<vmem>>, %arg7: memref<256x576xbf16, #tpu.memory_space<vmem>>) attributes {dimension_semantics = [#tpu.dimension_semantics<parallel>], iteration_bounds = array<i64: 2>, scalar_prefetch = 0 : i64, scratch_operands = 3 : i64, tpu.core_type = #tpu.core_type<tc>, window_params = [{transform_indices = @transform_0, window_bounds = array<i64: 1, 16, 16, 64>}, {pipeline_mode = #tpu.pipeline_mode<synchronous>, transform_indices = @transform_1, window_bounds = array<i64: 10, 576, 64>}, {pipeline_mode = #tpu.pipeline_mode<synchronous>, transform_indices = @transform_2, window_bounds = array<i64: 576, 256>}, {transform_indices = @transform_3, window_bounds = array<i64: 1, 256, 256>}]} {
    %cst = arith.constant 0.000000e+00 : f32
    %0 = vector.broadcast %cst : f32 to vector<18x18x64xf32>
    %c0 = arith.constant 0 : index
    %c0_0 = arith.constant 0 : index
    %c0_1 = arith.constant 0 : index
    %1 = vector.load %arg5[%c0, %c0_0, %c0_1] : memref<18x18x64xf32, #tpu.memory_space<vmem>>, vector<18x18x64xf32>
    tpu.vector_store %arg5[%c0, %c0_0, %c0_1], %0 {strides = array<i32>} : memref<18x18x64xf32, #tpu.memory_space<vmem>>, vector<18x18x64xf32>,
    %cst_2 = arith.constant 0.000000e+00 : f32
    %2 = vector.broadcast %cst_2 : f32 to vector<18x18x64xf32>
    %c0_3 = arith.constant 0 : index
    %c0_4 = arith.constant 0 : index
    %c0_5 = arith.constant 0 : index
    %3 = vector.load %arg6[%c0_3, %c0_4, %c0_5] : memref<18x18x64xf32, #tpu.memory_space<vmem>>, vector<18x18x64xf32>
    tpu.vector_store %arg6[%c0_3, %c0_4, %c0_5], %2 {strides = array<i32>} : memref<18x18x64xf32, #tpu.memory_space<vmem>>, vector<18x18x64xf32>,
    %c0_6 = arith.constant 0 : index
    %c0_7 = arith.constant 0 : index
    %c0_8 = arith.constant 0 : index
    %c0_9 = arith.constant 0 : index
    %4 = vector.load %arg1[%c0_6, %c0_7, %c0_8, %c0_9] : memref<1x16x16x64xf32, #tpu.memory_space<vmem>>, vector<1x16x16x64xf32>
    %5 = vector.shape_cast %4 : vector<1x16x16x64xf32> to vector<16x16x64xf32>
    %c1 = arith.constant 1 : index
    %c1_10 = arith.constant 1 : index
    %c0_11 = arith.constant 0 : index
    %6 = vector.load %arg5[%c1, %c1_10, %c0_11] : memref<18x18x64xf32, #tpu.memory_space<vmem>>, vector<16x16x64xf32>
    tpu.vector_store %arg5[%c1, %c1_10, %c0_11], %5 {strides = array<i32>} : memref<18x18x64xf32, #tpu.memory_space<vmem>>, vector<16x16x64xf32>,
    %c0_i32 = arith.constant 0 : i32
    %c5_i32 = arith.constant 5 : i32
    %7 = arith.addi %c0_i32, %c5_i32 : i32
    %c1_i32 = arith.constant 1 : i32
    scf.for %arg8 = %c0_i32 to %7 step %c1_i32  : i32 {
      %c2_i32 = arith.constant 2 : i32
      %51 = arith.muli %c2_i32, %arg8 : i32
      %c0_53 = arith.constant 0 : index
      %c0_54 = arith.constant 0 : index
      %c0_55 = arith.constant 0 : index
      %52 = vector.load %arg5[%c0_53, %c0_54, %c0_55] : memref<18x18x64xf32, #tpu.memory_space<vmem>>, vector<16x16x64xf32>
      %53 = vector.shape_cast %52 : vector<16x16x64xf32> to vector<256x64xf32>
      %54 = arith.truncf %53 : vector<256x64xf32> to vector<256x64xbf16>
      %c0_56 = arith.constant 0 : index
      %c1_57 = arith.constant 1 : index
      %c0_58 = arith.constant 0 : index
      %55 = vector.load %arg5[%c0_56, %c1_57, %c0_58] : memref<18x18x64xf32, #tpu.memory_space<vmem>>, vector<16x16x64xf32>
      %56 = vector.shape_cast %55 : vector<16x16x64xf32> to vector<256x64xf32>
      %57 = arith.truncf %56 : vector<256x64xf32> to vector<256x64xbf16>
      %c0_59 = arith.constant 0 : index
      %c2_60 = arith.constant 2 : index
      %c0_61 = arith.constant 0 : index
      %58 = vector.load %arg5[%c0_59, %c2_60, %c0_61] : memref<18x18x64xf32, #tpu.memory_space<vmem>>, vector<16x16x64xf32>
      %59 = vector.shape_cast %58 : vector<16x16x64xf32> to vector<256x64xf32>
      %60 = arith.truncf %59 : vector<256x64xf32> to vector<256x64xbf16>
      %c1_62 = arith.constant 1 : index
      %c0_63 = arith.constant 0 : index
      %c0_64 = arith.constant 0 : index
      %61 = vector.load %arg5[%c1_62, %c0_63, %c0_64] : memref<18x18x64xf32, #tpu.memory_space<vmem>>, vector<16x16x64xf32>
      %62 = vector.shape_cast %61 : vector<16x16x64xf32> to vector<256x64xf32>
      %63 = arith.truncf %62 : vector<256x64xf32> to vector<256x64xbf16>
      %c1_65 = arith.constant 1 : index
      %c1_66 = arith.constant 1 : index
      %c0_67 = arith.constant 0 : index
      %64 = vector.load %arg5[%c1_65, %c1_66, %c0_67] : memref<18x18x64xf32, #tpu.memory_space<vmem>>, vector<16x16x64xf32>
      %65 = vector.shape_cast %64 : vector<16x16x64xf32> to vector<256x64xf32>
      %66 = arith.truncf %65 : vector<256x64xf32> to vector<256x64xbf16>
      %c1_68 = arith.constant 1 : index
      %c2_69 = arith.constant 2 : index
      %c0_70 = arith.constant 0 : index
      %67 = vector.load %arg5[%c1_68, %c2_69, %c0_70] : memref<18x18x64xf32, #tpu.memory_space<vmem>>, vector<16x16x64xf32>
      %68 = vector.shape_cast %67 : vector<16x16x64xf32> to vector<256x64xf32>
      %69 = arith.truncf %68 : vector<256x64xf32> to vector<256x64xbf16>
      %c2_71 = arith.constant 2 : index
      %c0_72 = arith.constant 0 : index
      %c0_73 = arith.constant 0 : index
      %70 = vector.load %arg5[%c2_71, %c0_72, %c0_73] : memref<18x18x64xf32, #tpu.memory_space<vmem>>, vector<16x16x64xf32>
      %71 = vector.shape_cast %70 : vector<16x16x64xf32> to vector<256x64xf32>
      %72 = arith.truncf %71 : vector<256x64xf32> to vector<256x64xbf16>
      %c2_74 = arith.constant 2 : index
      %c1_75 = arith.constant 1 : index
      %c0_76 = arith.constant 0 : index
      %73 = vector.load %arg5[%c2_74, %c1_75, %c0_76] : memref<18x18x64xf32, #tpu.memory_space<vmem>>, vector<16x16x64xf32>
      %74 = vector.shape_cast %73 : vector<16x16x64xf32> to vector<256x64xf32>
      %75 = arith.truncf %74 : vector<256x64xf32> to vector<256x64xbf16>
      %c2_77 = arith.constant 2 : index
      %c2_78 = arith.constant 2 : index
      %c0_79 = arith.constant 0 : index
      %76 = vector.load %arg5[%c2_77, %c2_78, %c0_79] : memref<18x18x64xf32, #tpu.memory_space<vmem>>, vector<16x16x64xf32>
      %77 = vector.shape_cast %76 : vector<16x16x64xf32> to vector<256x64xf32>
      %78 = arith.truncf %77 : vector<256x64xf32> to vector<256x64xbf16>
      %79 = tpu.concatenate %54, %57 in 1 : vector<256x64xbf16>, vector<256x64xbf16> -> vector<256x128xbf16>
      %c0_80 = arith.constant 0 : index
      %c0_81 = arith.constant 0 : index
      %80 = vector.load %arg7[%c0_80, %c0_81] : memref<256x576xbf16, #tpu.memory_space<vmem>>, vector<256x128xbf16>
      tpu.vector_store %arg7[%c0_80, %c0_81], %79 {strides = array<i32>} : memref<256x576xbf16, #tpu.memory_space<vmem>>, vector<256x128xbf16>,
      %81 = tpu.concatenate %60, %63 in 1 : vector<256x64xbf16>, vector<256x64xbf16> -> vector<256x128xbf16>
      %c0_82 = arith.constant 0 : index
      %c128_83 = arith.constant 128 : index
      %82 = vector.load %arg7[%c0_82, %c128_83] : memref<256x576xbf16, #tpu.memory_space<vmem>>, vector<256x128xbf16>
      tpu.vector_store %arg7[%c0_82, %c128_83], %81 {strides = array<i32>} : memref<256x576xbf16, #tpu.memory_space<vmem>>, vector<256x128xbf16>,
      %83 = tpu.concatenate %66, %69 in 1 : vector<256x64xbf16>, vector<256x64xbf16> -> vector<256x128xbf16>
      %c0_84 = arith.constant 0 : index
      %c256_85 = arith.constant 256 : index
      %84 = vector.load %arg7[%c0_84, %c256_85] : memref<256x576xbf16, #tpu.memory_space<vmem>>, vector<256x128xbf16>
      tpu.vector_store %arg7[%c0_84, %c256_85], %83 {strides = array<i32>} : memref<256x576xbf16, #tpu.memory_space<vmem>>, vector<256x128xbf16>,
      %85 = tpu.concatenate %72, %75 in 1 : vector<256x64xbf16>, vector<256x64xbf16> -> vector<256x128xbf16>
      %c0_86 = arith.constant 0 : index
      %c384_87 = arith.constant 384 : index
      %86 = vector.load %arg7[%c0_86, %c384_87] : memref<256x576xbf16, #tpu.memory_space<vmem>>, vector<256x128xbf16>
      tpu.vector_store %arg7[%c0_86, %c384_87], %85 {strides = array<i32>} : memref<256x576xbf16, #tpu.memory_space<vmem>>, vector<256x128xbf16>,
      %c0_88 = arith.constant 0 : index
      %c512_89 = arith.constant 512 : index
      %87 = vector.load %arg7[%c0_88, %c512_89] : memref<256x576xbf16, #tpu.memory_space<vmem>>, vector<256x64xbf16>
      tpu.vector_store %arg7[%c0_88, %c512_89], %78 {strides = array<i32>} : memref<256x576xbf16, #tpu.memory_space<vmem>>, vector<256x64xbf16>,
      %c0_90 = arith.constant 0 : index
      %c0_91 = arith.constant 0 : index
      %88 = vector.load %arg7[%c0_90, %c0_91] : memref<256x576xbf16, #tpu.memory_space<vmem>>, vector<256x576xbf16>
      %89 = arith.index_cast %51 : i32 to index
      %c0_92 = arith.constant 0 : index
      %c0_93 = arith.constant 0 : index
      %90 = vector.load %arg2[%89, %c0_92, %c0_93] : memref<10x576x64xbf16, #tpu.memory_space<vmem>>, vector<1x576x64xbf16>
      %91 = vector.shape_cast %90 : vector<1x576x64xbf16> to vector<576x64xbf16>
      %cst_94 = arith.constant dense<0.000000e+00> : vector<256x64xf32>
      %92 = tpu.matmul %88, %91, %cst_94 {dimension_numbers = #tpu.dot_dimension_numbers<[1], [0], [0], [1], [0, 0, 1, 1], [], []>} : vector<256x576xbf16>, vector<576x64xbf16>, vector<256x64xf32> -> vector<256x64xf32>
      %cst_95 = arith.constant 0.000000e+00 : f32
      %93 = vector.broadcast %cst_95 : f32 to vector<256x64xf32>
      %94 = arith.cmpf oge, %92, %93 : vector<256x64xf32>
      %cst_96 = arith.constant 2.000000e-01 : f32
      %95 = vector.broadcast %cst_96 : f32 to vector<256x64xf32>
      %96 = arith.mulf %95, %92 : vector<256x64xf32>
      %97 = arith.select %94, %92, %96 : vector<256x64xi1>, vector<256x64xf32>
      %98 = vector.shape_cast %97 : vector<256x64xf32> to vector<16x16x64xf32>
      %c1_97 = arith.constant 1 : index
      %c1_98 = arith.constant 1 : index
      %c0_99 = arith.constant 0 : index
      %99 = vector.load %arg6[%c1_97, %c1_98, %c0_99] : memref<18x18x64xf32, #tpu.memory_space<vmem>>, vector<16x16x64xf32>
      tpu.vector_store %arg6[%c1_97, %c1_98, %c0_99], %98 {strides = array<i32>} : memref<18x18x64xf32, #tpu.memory_space<vmem>>, vector<16x16x64xf32>,
      %c2_i32_100 = arith.constant 2 : i32
      %100 = arith.muli %c2_i32_100, %arg8 : i32
      %c1_i32_101 = arith.constant 1 : i32
      %101 = arith.addi %100, %c1_i32_101 : i32
      %c0_102 = arith.constant 0 : index
      %c0_103 = arith.constant 0 : index
      %c0_104 = arith.constant 0 : index
      %102 = vector.load %arg6[%c0_102, %c0_103, %c0_104] : memref<18x18x64xf32, #tpu.memory_space<vmem>>, vector<16x16x64xf32>
      %103 = vector.shape_cast %102 : vector<16x16x64xf32> to vector<256x64xf32>
      %104 = arith.truncf %103 : vector<256x64xf32> to vector<256x64xbf16>
      %c0_105 = arith.constant 0 : index
      %c1_106 = arith.constant 1 : index
      %c0_107 = arith.constant 0 : index
      %105 = vector.load %arg6[%c0_105, %c1_106, %c0_107] : memref<18x18x64xf32, #tpu.memory_space<vmem>>, vector<16x16x64xf32>
      %106 = vector.shape_cast %105 : vector<16x16x64xf32> to vector<256x64xf32>
      %107 = arith.truncf %106 : vector<256x64xf32> to vector<256x64xbf16>
      %c0_108 = arith.constant 0 : index
      %c2_109 = arith.constant 2 : index
      %c0_110 = arith.constant 0 : index
      %108 = vector.load %arg6[%c0_108, %c2_109, %c0_110] : memref<18x18x64xf32, #tpu.memory_space<vmem>>, vector<16x16x64xf32>
      %109 = vector.shape_cast %108 : vector<16x16x64xf32> to vector<256x64xf32>
      %110 = arith.truncf %109 : vector<256x64xf32> to vector<256x64xbf16>
      %c1_111 = arith.constant 1 : index
      %c0_112 = arith.constant 0 : index
      %c0_113 = arith.constant 0 : index
      %111 = vector.load %arg6[%c1_111, %c0_112, %c0_113] : memref<18x18x64xf32, #tpu.memory_space<vmem>>, vector<16x16x64xf32>
      %112 = vector.shape_cast %111 : vector<16x16x64xf32> to vector<256x64xf32>
      %113 = arith.truncf %112 : vector<256x64xf32> to vector<256x64xbf16>
      %c1_114 = arith.constant 1 : index
      %c1_115 = arith.constant 1 : index
      %c0_116 = arith.constant 0 : index
      %114 = vector.load %arg6[%c1_114, %c1_115, %c0_116] : memref<18x18x64xf32, #tpu.memory_space<vmem>>, vector<16x16x64xf32>
      %115 = vector.shape_cast %114 : vector<16x16x64xf32> to vector<256x64xf32>
      %116 = arith.truncf %115 : vector<256x64xf32> to vector<256x64xbf16>
      %c1_117 = arith.constant 1 : index
      %c2_118 = arith.constant 2 : index
      %c0_119 = arith.constant 0 : index
      %117 = vector.load %arg6[%c1_117, %c2_118, %c0_119] : memref<18x18x64xf32, #tpu.memory_space<vmem>>, vector<16x16x64xf32>
      %118 = vector.shape_cast %117 : vector<16x16x64xf32> to vector<256x64xf32>
      %119 = arith.truncf %118 : vector<256x64xf32> to vector<256x64xbf16>
      %c2_120 = arith.constant 2 : index
      %c0_121 = arith.constant 0 : index
      %c0_122 = arith.constant 0 : index
      %120 = vector.load %arg6[%c2_120, %c0_121, %c0_122] : memref<18x18x64xf32, #tpu.memory_space<vmem>>, vector<16x16x64xf32>
      %121 = vector.shape_cast %120 : vector<16x16x64xf32> to vector<256x64xf32>
      %122 = arith.truncf %121 : vector<256x64xf32> to vector<256x64xbf16>
      %c2_123 = arith.constant 2 : index
      %c1_124 = arith.constant 1 : index
      %c0_125 = arith.constant 0 : index
      %123 = vector.load %arg6[%c2_123, %c1_124, %c0_125] : memref<18x18x64xf32, #tpu.memory_space<vmem>>, vector<16x16x64xf32>
      %124 = vector.shape_cast %123 : vector<16x16x64xf32> to vector<256x64xf32>
      %125 = arith.truncf %124 : vector<256x64xf32> to vector<256x64xbf16>
      %c2_126 = arith.constant 2 : index
      %c2_127 = arith.constant 2 : index
      %c0_128 = arith.constant 0 : index
      %126 = vector.load %arg6[%c2_126, %c2_127, %c0_128] : memref<18x18x64xf32, #tpu.memory_space<vmem>>, vector<16x16x64xf32>
      %127 = vector.shape_cast %126 : vector<16x16x64xf32> to vector<256x64xf32>
      %128 = arith.truncf %127 : vector<256x64xf32> to vector<256x64xbf16>
      %129 = tpu.concatenate %104, %107 in 1 : vector<256x64xbf16>, vector<256x64xbf16> -> vector<256x128xbf16>
      %c0_129 = arith.constant 0 : index
      %c0_130 = arith.constant 0 : index
      %130 = vector.load %arg7[%c0_129, %c0_130] : memref<256x576xbf16, #tpu.memory_space<vmem>>, vector<256x128xbf16>
      tpu.vector_store %arg7[%c0_129, %c0_130], %129 {strides = array<i32>} : memref<256x576xbf16, #tpu.memory_space<vmem>>, vector<256x128xbf16>,
      %131 = tpu.concatenate %110, %113 in 1 : vector<256x64xbf16>, vector<256x64xbf16> -> vector<256x128xbf16>
      %c0_131 = arith.constant 0 : index
      %c128_132 = arith.constant 128 : index
      %132 = vector.load %arg7[%c0_131, %c128_132] : memref<256x576xbf16, #tpu.memory_space<vmem>>, vector<256x128xbf16>
      tpu.vector_store %arg7[%c0_131, %c128_132], %131 {strides = array<i32>} : memref<256x576xbf16, #tpu.memory_space<vmem>>, vector<256x128xbf16>,
      %133 = tpu.concatenate %116, %119 in 1 : vector<256x64xbf16>, vector<256x64xbf16> -> vector<256x128xbf16>
      %c0_133 = arith.constant 0 : index
      %c256_134 = arith.constant 256 : index
      %134 = vector.load %arg7[%c0_133, %c256_134] : memref<256x576xbf16, #tpu.memory_space<vmem>>, vector<256x128xbf16>
      tpu.vector_store %arg7[%c0_133, %c256_134], %133 {strides = array<i32>} : memref<256x576xbf16, #tpu.memory_space<vmem>>, vector<256x128xbf16>,
      %135 = tpu.concatenate %122, %125 in 1 : vector<256x64xbf16>, vector<256x64xbf16> -> vector<256x128xbf16>
      %c0_135 = arith.constant 0 : index
      %c384_136 = arith.constant 384 : index
      %136 = vector.load %arg7[%c0_135, %c384_136] : memref<256x576xbf16, #tpu.memory_space<vmem>>, vector<256x128xbf16>
      tpu.vector_store %arg7[%c0_135, %c384_136], %135 {strides = array<i32>} : memref<256x576xbf16, #tpu.memory_space<vmem>>, vector<256x128xbf16>,
      %c0_137 = arith.constant 0 : index
      %c512_138 = arith.constant 512 : index
      %137 = vector.load %arg7[%c0_137, %c512_138] : memref<256x576xbf16, #tpu.memory_space<vmem>>, vector<256x64xbf16>
      tpu.vector_store %arg7[%c0_137, %c512_138], %128 {strides = array<i32>} : memref<256x576xbf16, #tpu.memory_space<vmem>>, vector<256x64xbf16>,
      %c0_139 = arith.constant 0 : index
      %c0_140 = arith.constant 0 : index
      %138 = vector.load %arg7[%c0_139, %c0_140] : memref<256x576xbf16, #tpu.memory_space<vmem>>, vector<256x576xbf16>
      %139 = arith.index_cast %101 : i32 to index
      %c0_141 = arith.constant 0 : index
      %c0_142 = arith.constant 0 : index
      %140 = vector.load %arg2[%139, %c0_141, %c0_142] : memref<10x576x64xbf16, #tpu.memory_space<vmem>>, vector<1x576x64xbf16>
      %141 = vector.shape_cast %140 : vector<1x576x64xbf16> to vector<576x64xbf16>
      %cst_143 = arith.constant dense<0.000000e+00> : vector<256x64xf32>
      %142 = tpu.matmul %138, %141, %cst_143 {dimension_numbers = #tpu.dot_dimension_numbers<[1], [0], [0], [1], [0, 0, 1, 1], [], []>} : vector<256x576xbf16>, vector<576x64xbf16>, vector<256x64xf32> -> vector<256x64xf32>
      %cst_144 = arith.constant 0.000000e+00 : f32
      %143 = vector.broadcast %cst_144 : f32 to vector<256x64xf32>
      %144 = arith.cmpf oge, %142, %143 : vector<256x64xf32>
      %cst_145 = arith.constant 2.000000e-01 : f32
      %145 = vector.broadcast %cst_145 : f32 to vector<256x64xf32>
      %146 = arith.mulf %145, %142 : vector<256x64xf32>
      %147 = arith.select %144, %142, %146 : vector<256x64xi1>, vector<256x64xf32>
      %148 = vector.shape_cast %147 : vector<256x64xf32> to vector<16x16x64xf32>
      %c1_146 = arith.constant 1 : index
      %c1_147 = arith.constant 1 : index
      %c0_148 = arith.constant 0 : index
      %149 = vector.load %arg5[%c1_146, %c1_147, %c0_148] : memref<18x18x64xf32, #tpu.memory_space<vmem>>, vector<16x16x64xf32>
      tpu.vector_store %arg5[%c1_146, %c1_147, %c0_148], %148 {strides = array<i32>} : memref<18x18x64xf32, #tpu.memory_space<vmem>>, vector<16x16x64xf32>,
    }
    %c5_i32_12 = arith.constant 5 : i32
    %c0_13 = arith.constant 0 : index
    %c0_14 = arith.constant 0 : index
    %c0_15 = arith.constant 0 : index
    %8 = vector.load %arg5[%c0_13, %c0_14, %c0_15] : memref<18x18x64xf32, #tpu.memory_space<vmem>>, vector<16x16x64xf32>
    %9 = vector.shape_cast %8 : vector<16x16x64xf32> to vector<256x64xf32>
    %10 = arith.truncf %9 : vector<256x64xf32> to vector<256x64xbf16>
    %c0_16 = arith.constant 0 : index
    %c1_17 = arith.constant 1 : index
    %c0_18 = arith.constant 0 : index
    %11 = vector.load %arg5[%c0_16, %c1_17, %c0_18] : memref<18x18x64xf32, #tpu.memory_space<vmem>>, vector<16x16x64xf32>
    %12 = vector.shape_cast %11 : vector<16x16x64xf32> to vector<256x64xf32>
    %13 = arith.truncf %12 : vector<256x64xf32> to vector<256x64xbf16>
    %c0_19 = arith.constant 0 : index
    %c2 = arith.constant 2 : index
    %c0_20 = arith.constant 0 : index
    %14 = vector.load %arg5[%c0_19, %c2, %c0_20] : memref<18x18x64xf32, #tpu.memory_space<vmem>>, vector<16x16x64xf32>
    %15 = vector.shape_cast %14 : vector<16x16x64xf32> to vector<256x64xf32>
    %16 = arith.truncf %15 : vector<256x64xf32> to vector<256x64xbf16>
    %c1_21 = arith.constant 1 : index
    %c0_22 = arith.constant 0 : index
    %c0_23 = arith.constant 0 : index
    %17 = vector.load %arg5[%c1_21, %c0_22, %c0_23] : memref<18x18x64xf32, #tpu.memory_space<vmem>>, vector<16x16x64xf32>
    %18 = vector.shape_cast %17 : vector<16x16x64xf32> to vector<256x64xf32>
    %19 = arith.truncf %18 : vector<256x64xf32> to vector<256x64xbf16>
    %c1_24 = arith.constant 1 : index
    %c1_25 = arith.constant 1 : index
    %c0_26 = arith.constant 0 : index
    %20 = vector.load %arg5[%c1_24, %c1_25, %c0_26] : memref<18x18x64xf32, #tpu.memory_space<vmem>>, vector<16x16x64xf32>
    %21 = vector.shape_cast %20 : vector<16x16x64xf32> to vector<256x64xf32>
    %22 = arith.truncf %21 : vector<256x64xf32> to vector<256x64xbf16>
    %c1_27 = arith.constant 1 : index
    %c2_28 = arith.constant 2 : index
    %c0_29 = arith.constant 0 : index
    %23 = vector.load %arg5[%c1_27, %c2_28, %c0_29] : memref<18x18x64xf32, #tpu.memory_space<vmem>>, vector<16x16x64xf32>
    %24 = vector.shape_cast %23 : vector<16x16x64xf32> to vector<256x64xf32>
    %25 = arith.truncf %24 : vector<256x64xf32> to vector<256x64xbf16>
    %c2_30 = arith.constant 2 : index
    %c0_31 = arith.constant 0 : index
    %c0_32 = arith.constant 0 : index
    %26 = vector.load %arg5[%c2_30, %c0_31, %c0_32] : memref<18x18x64xf32, #tpu.memory_space<vmem>>, vector<16x16x64xf32>
    %27 = vector.shape_cast %26 : vector<16x16x64xf32> to vector<256x64xf32>
    %28 = arith.truncf %27 : vector<256x64xf32> to vector<256x64xbf16>
    %c2_33 = arith.constant 2 : index
    %c1_34 = arith.constant 1 : index
    %c0_35 = arith.constant 0 : index
    %29 = vector.load %arg5[%c2_33, %c1_34, %c0_35] : memref<18x18x64xf32, #tpu.memory_space<vmem>>, vector<16x16x64xf32>
    %30 = vector.shape_cast %29 : vector<16x16x64xf32> to vector<256x64xf32>
    %31 = arith.truncf %30 : vector<256x64xf32> to vector<256x64xbf16>
    %c2_36 = arith.constant 2 : index
    %c2_37 = arith.constant 2 : index
    %c0_38 = arith.constant 0 : index
    %32 = vector.load %arg5[%c2_36, %c2_37, %c0_38] : memref<18x18x64xf32, #tpu.memory_space<vmem>>, vector<16x16x64xf32>
    %33 = vector.shape_cast %32 : vector<16x16x64xf32> to vector<256x64xf32>
    %34 = arith.truncf %33 : vector<256x64xf32> to vector<256x64xbf16>
    %35 = tpu.concatenate %10, %13 in 1 : vector<256x64xbf16>, vector<256x64xbf16> -> vector<256x128xbf16>
    %c0_39 = arith.constant 0 : index
    %c0_40 = arith.constant 0 : index
    %36 = vector.load %arg7[%c0_39, %c0_40] : memref<256x576xbf16, #tpu.memory_space<vmem>>, vector<256x128xbf16>
    tpu.vector_store %arg7[%c0_39, %c0_40], %35 {strides = array<i32>} : memref<256x576xbf16, #tpu.memory_space<vmem>>, vector<256x128xbf16>,
    %37 = tpu.concatenate %16, %19 in 1 : vector<256x64xbf16>, vector<256x64xbf16> -> vector<256x128xbf16>
    %c0_41 = arith.constant 0 : index
    %c128 = arith.constant 128 : index
    %38 = vector.load %arg7[%c0_41, %c128] : memref<256x576xbf16, #tpu.memory_space<vmem>>, vector<256x128xbf16>
    tpu.vector_store %arg7[%c0_41, %c128], %37 {strides = array<i32>} : memref<256x576xbf16, #tpu.memory_space<vmem>>, vector<256x128xbf16>,
    %39 = tpu.concatenate %22, %25 in 1 : vector<256x64xbf16>, vector<256x64xbf16> -> vector<256x128xbf16>
    %c0_42 = arith.constant 0 : index
    %c256 = arith.constant 256 : index
    %40 = vector.load %arg7[%c0_42, %c256] : memref<256x576xbf16, #tpu.memory_space<vmem>>, vector<256x128xbf16>
    tpu.vector_store %arg7[%c0_42, %c256], %39 {strides = array<i32>} : memref<256x576xbf16, #tpu.memory_space<vmem>>, vector<256x128xbf16>,
    %41 = tpu.concatenate %28, %31 in 1 : vector<256x64xbf16>, vector<256x64xbf16> -> vector<256x128xbf16>
    %c0_43 = arith.constant 0 : index
    %c384 = arith.constant 384 : index
    %42 = vector.load %arg7[%c0_43, %c384] : memref<256x576xbf16, #tpu.memory_space<vmem>>, vector<256x128xbf16>
    tpu.vector_store %arg7[%c0_43, %c384], %41 {strides = array<i32>} : memref<256x576xbf16, #tpu.memory_space<vmem>>, vector<256x128xbf16>,
    %c0_44 = arith.constant 0 : index
    %c512 = arith.constant 512 : index
    %43 = vector.load %arg7[%c0_44, %c512] : memref<256x576xbf16, #tpu.memory_space<vmem>>, vector<256x64xbf16>
    tpu.vector_store %arg7[%c0_44, %c512], %34 {strides = array<i32>} : memref<256x576xbf16, #tpu.memory_space<vmem>>, vector<256x64xbf16>,
    %c0_45 = arith.constant 0 : index
    %c0_46 = arith.constant 0 : index
    %44 = vector.load %arg7[%c0_45, %c0_46] : memref<256x576xbf16, #tpu.memory_space<vmem>>, vector<256x576xbf16>
    %c0_47 = arith.constant 0 : index
    %c0_48 = arith.constant 0 : index
    %45 = vector.load %arg3[%c0_47, %c0_48] : memref<576x256xbf16, #tpu.memory_space<vmem>>, vector<576x256xbf16>
    %cst_49 = arith.constant dense<0.000000e+00> : vector<256x256xf32>
    %46 = tpu.matmul %44, %45, %cst_49 {dimension_numbers = #tpu.dot_dimension_numbers<[1], [0], [0], [1], [0, 0, 1, 1], [], []>} : vector<256x576xbf16>, vector<576x256xbf16>, vector<256x256xf32> -> vector<256x256xf32>
    %47 = arith.truncf %46 : vector<256x256xf32> to vector<256x256xbf16>
    %c0_50 = arith.constant 0 : index
    %c0_51 = arith.constant 0 : index
    %c0_52 = arith.constant 0 : index
    %48 = vector.load %arg4[%c0_50, %c0_51, %c0_52] : memref<1x256x256xbf16, #tpu.memory_space<vmem>>, vector<1x256x256xbf16>
    %49 = vector.shape_cast %48 : vector<1x256x256xbf16> to vector<256x256xbf16>
    %50 = vector.shape_cast %47 : vector<256x256xbf16> to vector<1x256x256xbf16>
    tpu.vector_store %arg4[%c0_50, %c0_51, %c0_52], %50 {strides = array<i32>} : memref<1x256x256xbf16, #tpu.memory_space<vmem>>, vector<1x256x256xbf16>,
    return
  }
  func.func @transform_0(%arg0: i32) -> (i32, i32, i32, i32) {
    %c0_i32 = arith.constant 0 : i32
    %c0_i32_0 = arith.constant 0 : i32
    %c0_i32_1 = arith.constant 0 : i32
    %c0_i32_2 = arith.constant 0 : i32
    return %arg0, %c0_i32, %c0_i32_0, %c0_i32_1 : i32, i32, i32, i32
  }
  func.func @transform_1(%arg0: i32) -> (i32, i32, i32) {
    %c0_i32 = arith.constant 0 : i32
    %c0_i32_0 = arith.constant 0 : i32
    %c0_i32_1 = arith.constant 0 : i32
    %c0_i32_2 = arith.constant 0 : i32
    return %c0_i32, %c0_i32_0, %c0_i32_1 : i32, i32, i32
  }
  func.func @transform_2(%arg0: i32) -> (i32, i32) {
    %c0_i32 = arith.constant 0 : i32
    %c0_i32_0 = arith.constant 0 : i32
    %c0_i32_1 = arith.constant 0 : i32
    return %c0_i32, %c0_i32_0 : i32, i32
  }
  func.func @transform_3(%arg0: i32) -> (i32, i32, i32) {
    %c0_i32 = arith.constant 0 : i32
    %c0_i32_0 = arith.constant 0 : i32
    %c0_i32_1 = arith.constant 0 : i32
    return %arg0, %c0_i32, %c0_i32_0 : i32, i32, i32
  }
}

</mosaic_0001>

<llo_original>
// kernel: conv_block_forward.1
$region0: #{conv_block_forward.1}
  #allocation0 [shape = 'u32[]', space=smem, size = 0x4, offset = 0x4, fixed_abs, tag = 'smem constant byte address 0x4 - core index']
  #allocation1 [shape = 'u32[144,128]{1,0:T(1,128)}', space=vmem, size = 0x12000, scoped, tag = 'internal scratch']
  #allocation2 [shape = 'f32[18,18,64]{2,1,0:T(8,128)}', space=vmem, size = 0x36000, scoped, tag = 'scratch operand']
  #allocation3 [shape = 'f32[18,18,64]{2,1,0:T(8,128)}', space=vmem, size = 0x36000, scoped, tag = 'scratch operand']
  #allocation4 [shape = 'bf16[256,576]{1,0:T(16,128)(2,1)}', space=vmem, size = 0x50000, scoped, tag = 'scratch operand']
  %s0 = inlined_call_operand.vmem [shape: f32[2,16,16,64], index: 0, kind: input, shape index: {}]
  %s1 = inlined_call_operand.vmem [shape: bf16[10,576,64], index: 1, kind: input, shape index: {}]
  %s2 = inlined_call_operand.vmem [shape: bf16[576,256], index: 2, kind: input, shape index: {}]
  %s3 = inlined_call_operand.vmem [shape: bf16[2,256,256], index: 3, kind: output, shape index: {}]
  %s4 = sld [smem:[#allocation0]]
  $region52: #{conv_block_forward.1} parent=0
    _
  %s6 = ssub.s32 1, %s4
  %s7 = scalar_select 0, %s6, %s4
  loop: start=0, step=1, limit=4
  $region2: #{conv_block_forward.1} parent=0 // loop_pre_header
    _
  $region3: #{conv_block_forward.1} parent=0 // loop_header
    %s9 = sphi 0, %s13
    %p10 = scmp.ge.s32.totalorder %s9, 4
    %s19 = sphi 0, %s21
    %s22 = sphi 0, %s19
    %s23 = sphi 0, %s22
    %s39 = sphi 0, %s23
    %s43 = sphi 0, %s43
    %s45 = sphi 0, %s43
    %s46 = sphi 0, %s45
    %s60 = sphi 0, %s46
    %s64 = sphi 0, %s64
    %s66 = sphi 0, %s64
    %s67 = sphi 0, %s66
    %s81 = sphi 0, %s67
    %s87 = sphi 0, %s89
    %s90 = sphi 0, %s87
    %s91 = sphi 0, %s90
    %s107 = sphi 0, %s91
  $region4: #{conv_block_forward.1} parent=0 // loop_header_branch
    %12 = sbr.rel (%p10) target = $region8
  $region5: #{conv_block_forward.1} parent=0 // loop_body
    %s14 = ssub.s32 %s9, 1
    %s15 = ssub.s32 %s9, 2
    %s16 = sadd.s32 %s9, 1
    %s17 = ssub.s32 %s9, %s16
    %p18 = scmp.eq.s32.totalorder %s17, 0
    %s20 = sadd.s32 %s19, 1
    %s21 = scalar_select %p18, %s19, %s20
    %p24 = pneg %p18
    %p25 = scmp.eq.s32.totalorder %s9, 1
    %p26 = por %p24, %p25
    %p27 = scmp.ne.s32.totalorder %s19, %s22
    %p28 = scmp.eq.s32.totalorder %s9, 0
    %p29 = por %p27, %p28
    %p30 = scmp.ne.s32.totalorder %s19, %s22
    %p31 = scmp.eq.s32.totalorder %s14, 1
    %p32 = por %p30, %p31
    %p33 = scmp.ne.s32.totalorder %s22, %s23
    %p34 = scmp.eq.s32.totalorder %s14, 0
    %p35 = por %p33, %p34
    %p36 = scmp.ne.s32.totalorder %s22, %s23
    %p37 = scmp.eq.s32.totalorder %s15, 1
    %p38 = por %p36, %p37
    %p40 = scmp.ne.s32.totalorder %s23, %s39
    %p41 = scmp.eq.s32.totalorder %s15, 0
    %p42 = por %p40, %p41
    %s44 = sadd.s32 %s43, 1
    %p47 = scmp.eq.s32.totalorder %s9, 1
    %p48 = scmp.ne.s32.totalorder %s43, %s45
    %p49 = scmp.eq.s32.totalorder %s9, 0
    %p50 = por %p48, %p49
    %p51 = scmp.ne.s32.totalorder %s43, %s45
    %p52 = scmp.eq.s32.totalorder %s14, 1
    %p53 = por %p51, %p52
    %p54 = scmp.ne.s32.totalorder %s45, %s46
    %p55 = scmp.eq.s32.totalorder %s14, 0
    %p56 = por %p54, %p55
    %p57 = scmp.ne.s32.totalorder %s45, %s46
    %p58 = scmp.eq.s32.totalorder %s15, 1
    %p59 = por %p57, %p58
    %p61 = scmp.ne.s32.totalorder %s46, %s60
    %p62 = scmp.eq.s32.totalorder %s15, 0
    %p63 = por %p61, %p62
    %s65 = sadd.s32 %s64, 1
    %p68 = scmp.eq.s32.totalorder %s9, 1
    %p69 = scmp.ne.s32.totalorder %s64, %s66
    %p70 = scmp.eq.s32.totalorder %s9, 0
    %p71 = por %p69, %p70
    %p72 = scmp.ne.s32.totalorder %s64, %s66
    %p73 = scmp.eq.s32.totalorder %s14, 1
    %p74 = por %p72, %p73
    %p75 = scmp.ne.s32.totalorder %s66, %s67
    %p76 = scmp.eq.s32.totalorder %s14, 0
    %p77 = por %p75, %p76
    %p78 = scmp.ne.s32.totalorder %s66, %s67
    %p79 = scmp.eq.s32.totalorder %s15, 1
    %p80 = por %p78, %p79
    %p82 = scmp.ne.s32.totalorder %s67, %s81
    %p83 = scmp.eq.s32.totalorder %s15, 0
    %p84 = por %p82, %p83
    %s85 = ssub.s32 %s9, %s16
    %p86 = scmp.eq.s32.totalorder %s85, 0
    %s88 = sadd.s32 %s87, 1
    %s89 = scalar_select %p86, %s87, %s88
    %p92 = pneg %p86
    %p93 = scmp.eq.s32.totalorder %s9, 1
    %p94 = por %p92, %p93
    %p95 = scmp.ne.s32.totalorder %s87, %s90
    %p96 = scmp.eq.s32.totalorder %s9, 0
    %p97 = por %p95, %p96
    %p98 = scmp.ne.s32.totalorder %s87, %s90
    %p99 = scmp.eq.s32.totalorder %s14, 1
    %p100 = por %p98, %p99
    %p101 = scmp.ne.s32.totalorder %s90, %s91
    %p102 = scmp.eq.s32.totalorder %s14, 0
    %p103 = por %p101, %p102
    %p104 = scmp.ne.s32.totalorder %s90, %s91
    %p105 = scmp.eq.s32.totalorder %s15, 1
    %p106 = por %p104, %p105
    %p108 = scmp.ne.s32.totalorder %s91, %s107
    %p109 = scmp.eq.s32.totalorder %s15, 0
    %p110 = por %p108, %p109
    %p111 = scmp.le.s32.totalorder 1, %s9
    %p112 = scmp.lt.s32.totalorder %s9, 3
    %p113 = pnand %p111, %p112
    %p114 = pneg %p113
    // Predicated region
    $region9: #{conv_block_forward.1} parent=5 // pred_check
      _
    $region10: #{conv_block_forward.1} parent=5 // pred_check_branch
      %116 = sbr.rel (%p113) target = $region12
    $region11: #{conv_block_forward.1} parent=5 // pred_region
      %s117 = ssub.s32 %s9, 1
      // Predicated region
      $region13: #{conv_block_forward.1} parent=11 // pred_check
        %p118 = pneg %p56
      $region14: #{conv_block_forward.1} parent=11 // pred_check_branch
        %120 = sbr.rel (%p118) target = $region16
      $region15: #{conv_block_forward.1} parent=11 // pred_region
        _
      $region16: #{conv_block_forward.1} parent=11 // pred_fallthru
        _
      // Predicated region
      $region17: #{conv_block_forward.1} parent=11 // pred_check
        %p121 = pneg %p77
      $region18: #{conv_block_forward.1} parent=11 // pred_check_branch
        %123 = sbr.rel (%p121) target = $region20
      $region19: #{conv_block_forward.1} parent=11 // pred_region
        _
      $region20: #{conv_block_forward.1} parent=11 // pred_fallthru
        _
    $region12: #{conv_block_forward.1} parent=5 // pred_fallthru
      _
    %p124 = scmp.lt.s32.totalorder %s9, 2
    // Predicated region
    $region21: #{conv_block_forward.1} parent=5 // pred_check
      %p125 = pneg %p124
    $region22: #{conv_block_forward.1} parent=5 // pred_check_branch
      %127 = sbr.rel (%p125) target = $region24
    $region23: #{conv_block_forward.1} parent=5 // pred_region
      // Predicated region
      $region25: #{conv_block_forward.1} parent=23 // pred_check
        %p128 = pneg %p29
      $region26: #{conv_block_forward.1} parent=23 // pred_check_branch
        %130 = sbr.rel (%p128) target = $region28
      $region27: #{conv_block_forward.1} parent=23 // pred_region
        %p131 = scmp.lt.s32.totalorder %s9, 1
        %s132 = scalar_select %p131, %s9, 1
        %s133 = smul.addr %s132, 32
        %s134 = smul.addr %s133, 8
        %s135 = scalar_lea.vmem %s0, %s134
      $region28: #{conv_block_forward.1} parent=23 // pred_fallthru
        _
    $region24: #{conv_block_forward.1} parent=5 // pred_fallthru
      _
    %p136 = scmp.le.s32.totalorder 1, %s9
    %p137 = scmp.lt.s32.totalorder %s9, 3
    %p138 = pnand %p136, %p137
    %p139 = pneg %p138
    // Predicated region
    $region29: #{conv_block_forward.1} parent=5 // pred_check
      _
    $region30: #{conv_block_forward.1} parent=5 // pred_check_branch
      %141 = sbr.rel (%p138) target = $region32
    $region31: #{conv_block_forward.1} parent=5 // pred_region
      %s142 = ssub.s32 %s9, 1
      %p143 = scmp.lt.s32.totalorder %s14, 1
      %s144 = scalar_select %p143, %s14, 1
      %s145 = smul.addr %s144, 32
      %s146 = smul.addr %s145, 8
      %s147 = scalar_lea.vmem %s0, %s146
      %p148 = pneg %p35
      %p149 = pneg %p32
      %p150 = pneg %p56
      %p151 = pneg %p53
      %p152 = pneg %p77
      %p153 = pneg %p74
      %p154 = pneg %p103
      %p155 = pneg %p100
      %p156 = scmp.lt.s32.totalorder %s14, 1
      %s157 = scalar_select %p156, %s14, 1
      %s158 = smul.addr %s157, 64
      %s159 = smul.addr %s158, 4
      %s160 = scalar_lea.vmem %s3, %s159
      %p161 = scmp.lt.s32.totalorder %s14, 1
      %s162 = scalar_select %p161, %s14, 1
      %s163 = smul.addr %s162, 32
      %s164 = smul.addr %s163, 8
      %s165 = scalar_lea.vmem %s0, %s164
      %p166 = scmp.lt.s32.totalorder %s14, 1
      %s167 = scalar_select %p166, %s14, 1
      %s168 = smul.addr %s167, 64
      %s169 = smul.addr %s168, 4
      %s170 = scalar_lea.vmem %s3, %s169
      %vm172 = vcmask 523264
      %173 = vst.msk [vmem:[#allocation2] sm:$0xff] %vm172, 0.0
      %174 = vst.msk [vmem:[#allocation2 + $0x8] sm:$0xff] %vm172, 0.0
      %vm175 = vcmask 517120
      %176 = vst.msk [vmem:[#allocation2 + $0x10] sm:$0x3] %vm175, 0.0
      %177 = vst.msk [vmem:[#allocation2 + $0x18] sm:$0xff] %vm172, 0.0
      %178 = vst.msk [vmem:[#allocation2 + $0x20] sm:$0xff] %vm172, 0.0
      %179 = vst.msk [vmem:[#allocation2 + $0x28] sm:$0x3] %vm175, 0.0
      %180 = vst.msk [vmem:[#allocation2 + $0x30] sm:$0xff] %vm172, 0.0
      %181 = vst.msk [vmem:[#allocation2 + $0x38] sm:$0xff] %vm172, 0.0
      %182 = vst.msk [vmem:[#allocation2 + $0x40] sm:$0x3] %vm175, 0.0
      %183 = vst.msk [vmem:[#allocation2 + $0x48] sm:$0xff] %vm172, 0.0
      %184 = vst.msk [vmem:[#allocation2 + $0x50] sm:$0xff] %vm172, 0.0
      %185 = vst.msk [vmem:[#allocation2 + $0x58] sm:$0x3] %vm175, 0.0
      %186 = vst.msk [vmem:[#allocation2 + $0x60] sm:$0xff] %vm172, 0.0
      %187 = vst.msk [vmem:[#allocation2 + $0x68] sm:$0xff] %vm172, 0.0
      %188 = vst.msk [vmem:[#allocation2 + $0x70] sm:$0x3] %vm175, 0.0
      %189 = vst.msk [vmem:[#allocation2 + $0x78] sm:$0xff] %vm172, 0.0
      %190 = vst.msk [vmem:[#allocation2 + $0x80] sm:$0xff] %vm172, 0.0
      %191 = vst.msk [vmem:[#allocation2 + $0x88] sm:$0x3] %vm175, 0.0
      %192 = vst.msk [vmem:[#allocation2 + $0x90] sm:$0xff] %vm172, 0.0
      %193 = vst.msk [vmem:[#allocation2 + $0x98] sm:$0xff] %vm172, 0.0
      %194 = vst.msk [vmem:[#allocation2 + $0xa0] sm:$0x3] %vm175, 0.0
      %195 = vst.msk [vmem:[#allocation2 + $0xa8] sm:$0xff] %vm172, 0.0
      %196 = vst.msk [vmem:[#allocation2 + $0xb0] sm:$0xff] %vm172, 0.0
      %197 = vst.msk [vmem:[#allocation2 + $0xb8] sm:$0x3] %vm175, 0.0
      %198 = vst.msk [vmem:[#allocation2 + $0xc0] sm:$0xff] %vm172, 0.0
      %199 = vst.msk [vmem:[#allocation2 + $0xc8] sm:$0xff] %vm172, 0.0
      %200 = vst.msk [vmem:[#allocation2 + $0xd0] sm:$0x3] %vm175, 0.0
      %201 = vst.msk [vmem:[#allocation2 + $0xd8] sm:$0xff] %vm172, 0.0
      %202 = vst.msk [vmem:[#allocation2 + $0xe0] sm:$0xff] %vm172, 0.0
      %203 = vst.msk [vmem:[#allocation2 + $0xe8] sm:$0x3] %vm175, 0.0
      %204 = vst.msk [vmem:[#allocation2 + $0xf0] sm:$0xff] %vm172, 0.0
      %205 = vst.msk [vmem:[#allocation2 + $0xf8] sm:$0xff] %vm172, 0.0
      %206 = vst.msk [vmem:[#allocation2 + $0x100] sm:$0x3] %vm175, 0.0
      %207 = vst.msk [vmem:[#allocation2 + $0x108] sm:$0xff] %vm172, 0.0
      %208 = vst.msk [vmem:[#allocation2 + $0x110] sm:$0xff] %vm172, 0.0
      %209 = vst.msk [vmem:[#allocation2 + $0x118] sm:$0x3] %vm175, 0.0
      %210 = vst.msk [vmem:[#allocation2 + $0x120] sm:$0xff] %vm172, 0.0
      %211 = vst.msk [vmem:[#allocation2 + $0x128] sm:$0xff] %vm172, 0.0
      %212 = vst.msk [vmem:[#allocation2 + $0x130] sm:$0x3] %vm175, 0.0
      %213 = vst.msk [vmem:[#allocation2 + $0x138] sm:$0xff] %vm172, 0.0
      %214 = vst.msk [vmem:[#allocation2 + $0x140] sm:$0xff] %vm172, 0.0
      %215 = vst.msk [vmem:[#allocation2 + $0x148] sm:$0x3] %vm175, 0.0
      %216 = vst.msk [vmem:[#allocation2 + $0x150] sm:$0xff] %vm172, 0.0
      %217 = vst.msk [vmem:[#allocation2 + $0x158] sm:$0xff] %vm172, 0.0
      %218 = vst.msk [vmem:[#allocation2 + $0x160] sm:$0x3] %vm175, 0.0
      %219 = vst.msk [vmem:[#allocation2 + $0x168] sm:$0xff] %vm172, 0.0
      %220 = vst.msk [vmem:[#allocation2 + $0x170] sm:$0xff] %vm172, 0.0
      %221 = vst.msk [vmem:[#allocation2 + $0x178] sm:$0x3] %vm175, 0.0
      %222 = vst.msk [vmem:[#allocation2 + $0x180] sm:$0xff] %vm172, 0.0
      %223 = vst.msk [vmem:[#allocation2 + $0x188] sm:$0xff] %vm172, 0.0
      %224 = vst.msk [vmem:[#allocation2 + $0x190] sm:$0x3] %vm175, 0.0
      %225 = vst.msk [vmem:[#allocation2 + $0x198] sm:$0xff] %vm172, 0.0
      %226 = vst.msk [vmem:[#allocation2 + $0x1a0] sm:$0xff] %vm172, 0.0
      %227 = vst.msk [vmem:[#allocation2 + $0x1a8] sm:$0x3] %vm175, 0.0
      %228 = vst.msk [vmem:[#allocation3] sm:$0xff] %vm172, 0.0
      %229 = vst.msk [vmem:[#allocation3 + $0x8] sm:$0xff] %vm172, 0.0
      %230 = vst.msk [vmem:[#allocation3 + $0x10] sm:$0x3] %vm175, 0.0
      %231 = vst.msk [vmem:[#allocation3 + $0x18] sm:$0xff] %vm172, 0.0
      %232 = vst.msk [vmem:[#allocation3 + $0x20] sm:$0xff] %vm172, 0.0
      %233 = vst.msk [vmem:[#allocation3 + $0x28] sm:$0x3] %vm175, 0.0
      %234 = vst.msk [vmem:[#allocation3 + $0x30] sm:$0xff] %vm172, 0.0
      %235 = vst.msk [vmem:[#allocation3 + $0x38] sm:$0xff] %vm172, 0.0
      %236 = vst.msk [vmem:[#allocation3 + $0x40] sm:$0x3] %vm175, 0.0
      %237 = vst.msk [vmem:[#allocation3 + $0x48] sm:$0xff] %vm172, 0.0
      %238 = vst.msk [vmem:[#allocation3 + $0x50] sm:$0xff] %vm172, 0.0
      %239 = vst.msk [vmem:[#allocation3 + $0x58] sm:$0x3] %vm175, 0.0
      %240 = vst.msk [vmem:[#allocation3 + $0x60] sm:$0xff] %vm172, 0.0
      %241 = vst.msk [vmem:[#allocation3 + $0x68] sm:$0xff] %vm172, 0.0
      %242 = vst.msk [vmem:[#allocation3 + $0x70] sm:$0x3] %vm175, 0.0
      %243 = vst.msk [vmem:[#allocation3 + $0x78] sm:$0xff] %vm172, 0.0
      %244 = vst.msk [vmem:[#allocation3 + $0x80] sm:$0xff] %vm172, 0.0
      %245 = vst.msk [vmem:[#allocation3 + $0x88] sm:$0x3] %vm175, 0.0
      %246 = vst.msk [vmem:[#allocation3 + $0x90] sm:$0xff] %vm172, 0.0
      %247 = vst.msk [vmem:[#allocation3 + $0x98] sm:$0xff] %vm172, 0.0
      %248 = vst.msk [vmem:[#allocation3 + $0xa0] sm:$0x3] %vm175, 0.0
      %249 = vst.msk [vmem:[#allocation3 + $0xa8] sm:$0xff] %vm172, 0.0
      %250 = vst.msk [vmem:[#allocation3 + $0xb0] sm:$0xff] %vm172, 0.0
      %251 = vst.msk [vmem:[#allocation3 + $0xb8] sm:$0x3] %vm175, 0.0
      %252 = vst.msk [vmem:[#allocation3 + $0xc0] sm:$0xff] %vm172, 0.0
      %253 = vst.msk [vmem:[#allocation3 + $0xc8] sm:$0xff] %vm172, 0.0
      %254 = vst.msk [vmem:[#allocation3 + $0xd0] sm:$0x3] %vm175, 0.0
      %255 = vst.msk [vmem:[#allocation3 + $0xd8] sm:$0xff] %vm172, 0.0
      %256 = vst.msk [vmem:[#allocation3 + $0xe0] sm:$0xff] %vm172, 0.0
      %257 = vst.msk [vmem:[#allocation3 + $0xe8] sm:$0x3] %vm175, 0.0
      %258 = vst.msk [vmem:[#allocation3 + $0xf0] sm:$0xff] %vm172, 0.0
      %259 = vst.msk [vmem:[#allocation3 + $0xf8] sm:$0xff] %vm172, 0.0
      %260 = vst.msk [vmem:[#allocation3 + $0x100] sm:$0x3] %vm175, 0.0
      %261 = vst.msk [vmem:[#allocation3 + $0x108] sm:$0xff] %vm172, 0.0
      %262 = vst.msk [vmem:[#allocation3 + $0x110] sm:$0xff] %vm172, 0.0
      %263 = vst.msk [vmem:[#allocation3 + $0x118] sm:$0x3] %vm175, 0.0
      %264 = vst.msk [vmem:[#allocation3 + $0x120] sm:$0xff] %vm172, 0.0
      %265 = vst.msk [vmem:[#allocation3 + $0x128] sm:$0xff] %vm172, 0.0
      %266 = vst.msk [vmem:[#allocation3 + $0x130] sm:$0x3] %vm175, 0.0
      %267 = vst.msk [vmem:[#allocation3 + $0x138] sm:$0xff] %vm172, 0.0
      %268 = vst.msk [vmem:[#allocation3 + $0x140] sm:$0xff] %vm172, 0.0
      %269 = vst.msk [vmem:[#allocation3 + $0x148] sm:$0x3] %vm175, 0.0
      %270 = vst.msk [vmem:[#allocation3 + $0x150] sm:$0xff] %vm172, 0.0
      %271 = vst.msk [vmem:[#allocation3 + $0x158] sm:$0xff] %vm172, 0.0
      %272 = vst.msk [vmem:[#allocation3 + $0x160] sm:$0x3] %vm175, 0.0
      %273 = vst.msk [vmem:[#allocation3 + $0x168] sm:$0xff] %vm172, 0.0
      %274 = vst.msk [vmem:[#allocation3 + $0x170] sm:$0xff] %vm172, 0.0
      %275 = vst.msk [vmem:[#allocation3 + $0x178] sm:$0x3] %vm175, 0.0
      %276 = vst.msk [vmem:[#allocation3 + $0x180] sm:$0xff] %vm172, 0.0
      %277 = vst.msk [vmem:[#allocation3 + $0x188] sm:$0xff] %vm172, 0.0
      %278 = vst.msk [vmem:[#allocation3 + $0x190] sm:$0x3] %vm175, 0.0
      %279 = vst.msk [vmem:[#allocation3 + $0x198] sm:$0xff] %vm172, 0.0
      %280 = vst.msk [vmem:[#allocation3 + $0x1a0] sm:$0xff] %vm172, 0.0
      %281 = vst.msk [vmem:[#allocation3 + $0x1a8] sm:$0x3] %vm175, 0.0
      %v282 = vld [vmem:[%s165] sm:$0xff]
      %v283 = vld [vmem:[%s165 + $0x8] sm:$0xff]
      %v284 = vld [vmem:[%s165 + $0x10] sm:$0xff]
      %v285 = vld [vmem:[%s165 + $0x18] sm:$0xff]
      %v286 = vld [vmem:[%s165 + $0x20] sm:$0xff]
      %v287 = vld [vmem:[%s165 + $0x28] sm:$0xff]
      %v288 = vld [vmem:[%s165 + $0x30] sm:$0xff]
      %v289 = vld [vmem:[%s165 + $0x38] sm:$0xff]
      %v290 = vld [vmem:[%s165 + $0x40] sm:$0xff]
      %v291 = vld [vmem:[%s165 + $0x48] sm:$0xff]
      %v292 = vld [vmem:[%s165 + $0x50] sm:$0xff]
      %v293 = vld [vmem:[%s165 + $0x58] sm:$0xff]
      %v294 = vld [vmem:[%s165 + $0x60] sm:$0xff]
      %v295 = vld [vmem:[%s165 + $0x68] sm:$0xff]
      %v296 = vld [vmem:[%s165 + $0x70] sm:$0xff]
      %v297 = vld [vmem:[%s165 + $0x78] sm:$0xff]
      %v298 = vld [vmem:[%s165 + $0x80] sm:$0xff]
      %v299 = vld [vmem:[%s165 + $0x88] sm:$0xff]
      %v300 = vld [vmem:[%s165 + $0x90] sm:$0xff]
      %v301 = vld [vmem:[%s165 + $0x98] sm:$0xff]
      %v302 = vld [vmem:[%s165 + $0xa0] sm:$0xff]
      %v303 = vld [vmem:[%s165 + $0xa8] sm:$0xff]
      %v304 = vld [vmem:[%s165 + $0xb0] sm:$0xff]
      %v305 = vld [vmem:[%s165 + $0xb8] sm:$0xff]
      %v306 = vld [vmem:[%s165 + $0xc0] sm:$0xff]
      %v307 = vld [vmem:[%s165 + $0xc8] sm:$0xff]
      %v308 = vld [vmem:[%s165 + $0xd0] sm:$0xff]
      %v309 = vld [vmem:[%s165 + $0xd8] sm:$0xff]
      %v310 = vld [vmem:[%s165 + $0xe0] sm:$0xff]
      %v311 = vld [vmem:[%s165 + $0xe8] sm:$0xff]
      %v312 = vld [vmem:[%s165 + $0xf0] sm:$0xff]
      %v313 = vld [vmem:[%s165 + $0xf8] sm:$0xff]
      %s314 = scalar_lea.vmem [#allocation2], 24
      %315 = vst.msk [vmem:[%s314 + $0x1] sm:$0xff] %vm172, %v282
      %316 = vst.msk [vmem:[%s314 + $0x9] sm:$0xff] %vm172, %v283
      %317 = vst.msk [vmem:[%s314 + $0x19] sm:$0xff] %vm172, %v284
      %318 = vst.msk [vmem:[%s314 + $0x21] sm:$0xff] %vm172, %v285
      %319 = vst.msk [vmem:[%s314 + $0x31] sm:$0xff] %vm172, %v286
      %320 = vst.msk [vmem:[%s314 + $0x39] sm:$0xff] %vm172, %v287
      %321 = vst.msk [vmem:[%s314 + $0x49] sm:$0xff] %vm172, %v288
      %322 = vst.msk [vmem:[%s314 + $0x51] sm:$0xff] %vm172, %v289
      %323 = vst.msk [vmem:[%s314 + $0x61] sm:$0xff] %vm172, %v290
      %324 = vst.msk [vmem:[%s314 + $0x69] sm:$0xff] %vm172, %v291
      %325 = vst.msk [vmem:[%s314 + $0x79] sm:$0xff] %vm172, %v292
      %326 = vst.msk [vmem:[%s314 + $0x81] sm:$0xff] %vm172, %v293
      %327 = vst.msk [vmem:[%s314 + $0x91] sm:$0xff] %vm172, %v294
      %328 = vst.msk [vmem:[%s314 + $0x99] sm:$0xff] %vm172, %v295
      %329 = vst.msk [vmem:[%s314 + $0xa9] sm:$0xff] %vm172, %v296
      %330 = vst.msk [vmem:[%s314 + $0xb1] sm:$0xff] %vm172, %v297
      %331 = vst.msk [vmem:[%s314 + $0xc1] sm:$0xff] %vm172, %v298
      %332 = vst.msk [vmem:[%s314 + $0xc9] sm:$0xff] %vm172, %v299
      %333 = vst.msk [vmem:[%s314 + $0xd9] sm:$0xff] %vm172, %v300
      %334 = vst.msk [vmem:[%s314 + $0xe1] sm:$0xff] %vm172, %v301
      %335 = vst.msk [vmem:[%s314 + $0xf1] sm:$0xff] %vm172, %v302
      %336 = vst.msk [vmem:[%s314 + $0xf9] sm:$0xff] %vm172, %v303
      %337 = vst.msk [vmem:[%s314 + $0x109] sm:$0xff] %vm172, %v304
      %338 = vst.msk [vmem:[%s314 + $0x111] sm:$0xff] %vm172, %v305
      %339 = vst.msk [vmem:[%s314 + $0x121] sm:$0xff] %vm172, %v306
      %340 = vst.msk [vmem:[%s314 + $0x129] sm:$0xff] %vm172, %v307
      %341 = vst.msk [vmem:[%s314 + $0x139] sm:$0xff] %vm172, %v308
      %342 = vst.msk [vmem:[%s314 + $0x141] sm:$0xff] %vm172, %v309
      %343 = vst.msk [vmem:[%s314 + $0x151] sm:$0xff] %vm172, %v310
      %344 = vst.msk [vmem:[%s314 + $0x159] sm:$0xff] %vm172, %v311
      %345 = vst.msk [vmem:[%s314 + $0x169] sm:$0xff] %vm172, %v312
      %346 = vst.msk [vmem:[%s314 + $0x171] sm:$0xff] %vm172, %v313
      loop: start=0, step=1, limit=5
      $region33: #{conv_block_forward.1} parent=31 // loop_pre_header
        _
      $region34: #{conv_block_forward.1} parent=31 // loop_header
        %s348 = sphi 0, %s352
        %p349 = scmp.ge.s32.totalorder %s348, 5
      $region35: #{conv_block_forward.1} parent=31 // loop_header_branch
        %351 = sbr.rel (%p349) target = $region39
      $region36: #{conv_block_forward.1} parent=31 // loop_body
        %s353 = smul.u32 %s348, 2
        %v354 = vld [vmem:[#allocation2] sm:$0xff]
        %v355 = vld [vmem:[#allocation2 + $0x8] sm:$0xff]
        %v356 = vld [vmem:[#allocation2 + $0x18] sm:$0xff]
        %v357 = vld [vmem:[#allocation2 + $0x20] sm:$0xff]
        %v358 = vld [vmem:[#allocation2 + $0x30] sm:$0xff]
        %v359 = vld [vmem:[#allocation2 + $0x38] sm:$0xff]
        %v360 = vld [vmem:[#allocation2 + $0x48] sm:$0xff]
        %v361 = vld [vmem:[#allocation2 + $0x50] sm:$0xff]
        %v362 = vld [vmem:[#allocation2 + $0x60] sm:$0xff]
        %v363 = vld [vmem:[#allocation2 + $0x68] sm:$0xff]
        %v364 = vld [vmem:[#allocation2 + $0x78] sm:$0xff]
        %v365 = vld [vmem:[#allocation2 + $0x80] sm:$0xff]
        %v366 = vld [vmem:[#allocation2 + $0x90] sm:$0xff]
        %v367 = vld [vmem:[#allocation2 + $0x98] sm:$0xff]
        %v368 = vld [vmem:[#allocation2 + $0xa8] sm:$0xff]
        %v369 = vld [vmem:[#allocation2 + $0xb0] sm:$0xff]
        %v370 = vld [vmem:[#allocation2 + $0xc0] sm:$0xff]
        %v371 = vld [vmem:[#allocation2 + $0xc8] sm:$0xff]
        %v372 = vld [vmem:[#allocation2 + $0xd8] sm:$0xff]
        %v373 = vld [vmem:[#allocation2 + $0xe0] sm:$0xff]
        %v374 = vld [vmem:[#allocation2 + $0xf0] sm:$0xff]
        %v375 = vld [vmem:[#allocation2 + $0xf8] sm:$0xff]
        %v376 = vld [vmem:[#allocation2 + $0x108] sm:$0xff]
        %v377 = vld [vmem:[#allocation2 + $0x110] sm:$0xff]
        %v378 = vld [vmem:[#allocation2 + $0x120] sm:$0xff]
        %v379 = vld [vmem:[#allocation2 + $0x128] sm:$0xff]
        %v380 = vld [vmem:[#allocation2 + $0x138] sm:$0xff]
        %v381 = vld [vmem:[#allocation2 + $0x140] sm:$0xff]
        %v382 = vld [vmem:[#allocation2 + $0x150] sm:$0xff]
        %v383 = vld [vmem:[#allocation2 + $0x158] sm:$0xff]
        %v384 = vld [vmem:[#allocation2 + $0x168] sm:$0xff]
        %v385 = vld [vmem:[#allocation2 + $0x170] sm:$0xff]
        %v386 = vpack.c.bf16 %v355, %v354
        %v387 = vpack.c.bf16 %v357, %v356
        %v388 = vpack.c.bf16 %v359, %v358
        %v389 = vpack.c.bf16 %v361, %v360
        %v390 = vpack.c.bf16 %v363, %v362
        %v391 = vpack.c.bf16 %v365, %v364
        %v392 = vpack.c.bf16 %v367, %v366
        %v393 = vpack.c.bf16 %v369, %v368
        %v394 = vpack.c.bf16 %v371, %v370
        %v395 = vpack.c.bf16 %v373, %v372
        %v396 = vpack.c.bf16 %v375, %v374
        %v397 = vpack.c.bf16 %v377, %v376
        %v398 = vpack.c.bf16 %v379, %v378
        %v399 = vpack.c.bf16 %v381, %v380
        %v400 = vpack.c.bf16 %v383, %v382
        %v401 = vpack.c.bf16 %v385, %v384
        %v402 = vld [vmem:[#allocation2 + $0x1] sm:$0xff]
        %v403 = vld [vmem:[#allocation2 + $0x9] sm:$0xff]
        %v404 = vld [vmem:[#allocation2 + $0x19] sm:$0xff]
        %v405 = vld [vmem:[#allocation2 + $0x21] sm:$0xff]
        %v406 = vld [vmem:[#allocation2 + $0x31] sm:$0xff]
        %v407 = vld [vmem:[#allocation2 + $0x39] sm:$0xff]
        %v408 = vld [vmem:[#allocation2 + $0x49] sm:$0xff]
        %v409 = vld [vmem:[#allocation2 + $0x51] sm:$0xff]
        %v410 = vld [vmem:[#allocation2 + $0x61] sm:$0xff]
        %v411 = vld [vmem:[#allocation2 + $0x69] sm:$0xff]
        %v412 = vld [vmem:[#allocation2 + $0x79] sm:$0xff]
        %v413 = vld [vmem:[#allocation2 + $0x81] sm:$0xff]
        %v414 = vld [vmem:[#allocation2 + $0x91] sm:$0xff]
        %v415 = vld [vmem:[#allocation2 + $0x99] sm:$0xff]
        %v416 = vld [vmem:[#allocation2 + $0xa9] sm:$0xff]
        %v417 = vld [vmem:[#allocation2 + $0xb1] sm:$0xff]
        %v418 = vld [vmem:[#allocation2 + $0xc1] sm:$0xff]
        %v419 = vld [vmem:[#allocation2 + $0xc9] sm:$0xff]
        %v420 = vld [vmem:[#allocation2 + $0xd9] sm:$0xff]
        %v421 = vld [vmem:[#allocation2 + $0xe1] sm:$0xff]
        %v422 = vld [vmem:[#allocation2 + $0xf1] sm:$0xff]
        %v423 = vld [vmem:[#allocation2 + $0xf9] sm:$0xff]
        %v424 = vld [vmem:[#allocation2 + $0x109] sm:$0xff]
        %v425 = vld [vmem:[#allocation2 + $0x111] sm:$0xff]
        %v426 = vld [vmem:[#allocation2 + $0x121] sm:$0xff]
        %v427 = vld [vmem:[#allocation2 + $0x129] sm:$0xff]
        %v428 = vld [vmem:[#allocation2 + $0x139] sm:$0xff]
        %v429 = vld [vmem:[#allocation2 + $0x141] sm:$0xff]
        %v430 = vld [vmem:[#allocation2 + $0x151] sm:$0xff]
        %v431 = vld [vmem:[#allocation2 + $0x159] sm:$0xff]
        %v432 = vld [vmem:[#allocation2 + $0x169] sm:$0xff]
        %v433 = vld [vmem:[#allocation2 + $0x171] sm:$0xff]
        %v434 = vpack.c.bf16 %v403, %v402
        %v435 = vpack.c.bf16 %v405, %v404
        %v436 = vpack.c.bf16 %v407, %v406
        %v437 = vpack.c.bf16 %v409, %v408
        %v438 = vpack.c.bf16 %v411, %v410
        %v439 = vpack.c.bf16 %v413, %v412
        %v440 = vpack.c.bf16 %v415, %v414
        %v441 = vpack.c.bf16 %v417, %v416
        %v442 = vpack.c.bf16 %v419, %v418
        %v443 = vpack.c.bf16 %v421, %v420
        %v444 = vpack.c.bf16 %v423, %v422
        %v445 = vpack.c.bf16 %v425, %v424
        %v446 = vpack.c.bf16 %v427, %v426
        %v447 = vpack.c.bf16 %v429, %v428
        %v448 = vpack.c.bf16 %v431, %v430
        %v449 = vpack.c.bf16 %v433, %v432
        %v450 = vld [vmem:[#allocation2 + $0x2] sm:$0xff]
        %v451 = vld [vmem:[#allocation2 + $0xa] sm:$0xff]
        %v452 = vld [vmem:[#allocation2 + $0x1a] sm:$0xff]
        %v453 = vld [vmem:[#allocation2 + $0x22] sm:$0xff]
        %v454 = vld [vmem:[#allocation2 + $0x32] sm:$0xff]
        %v455 = vld [vmem:[#allocation2 + $0x3a] sm:$0xff]
        %v456 = vld [vmem:[#allocation2 + $0x4a] sm:$0xff]
        %v457 = vld [vmem:[#allocation2 + $0x52] sm:$0xff]
        %v458 = vld [vmem:[#allocation2 + $0x62] sm:$0xff]
        %v459 = vld [vmem:[#allocation2 + $0x6a] sm:$0xff]
        %v460 = vld [vmem:[#allocation2 + $0x7a] sm:$0xff]
        %v461 = vld [vmem:[#allocation2 + $0x82] sm:$0xff]
        %v462 = vld [vmem:[#allocation2 + $0x92] sm:$0xff]
        %v463 = vld [vmem:[#allocation2 + $0x9a] sm:$0xff]
        %v464 = vld [vmem:[#allocation2 + $0xaa] sm:$0xff]
        %v465 = vld [vmem:[#allocation2 + $0xb2] sm:$0xff]
        %v466 = vld [vmem:[#allocation2 + $0xc2] sm:$0xff]
        %v467 = vld [vmem:[#allocation2 + $0xca] sm:$0xff]
        %v468 = vld [vmem:[#allocation2 + $0xda] sm:$0xff]
        %v469 = vld [vmem:[#allocation2 + $0xe2] sm:$0xff]
        %v470 = vld [vmem:[#allocation2 + $0xf2] sm:$0xff]
        %v471 = vld [vmem:[#allocation2 + $0xfa] sm:$0xff]
        %v472 = vld [vmem:[#allocation2 + $0x10a] sm:$0xff]
        %v473 = vld [vmem:[#allocation2 + $0x112] sm:$0xff]
        %v474 = vld [vmem:[#allocation2 + $0x122] sm:$0xff]
        %v475 = vld [vmem:[#allocation2 + $0x12a] sm:$0xff]
        %v476 = vld [vmem:[#allocation2 + $0x13a] sm:$0xff]
        %v477 = vld [vmem:[#allocation2 + $0x142] sm:$0xff]
        %v478 = vld [vmem:[#allocation2 + $0x152] sm:$0xff]
        %v479 = vld [vmem:[#allocation2 + $0x15a] sm:$0xff]
        %v480 = vld [vmem:[#allocation2 + $0x16a] sm:$0xff]
        %v481 = vld [vmem:[#allocation2 + $0x172] sm:$0xff]
        %v482 = vpack.c.bf16 %v451, %v450
        %v483 = vpack.c.bf16 %v453, %v452
        %v484 = vpack.c.bf16 %v455, %v454
        %v485 = vpack.c.bf16 %v457, %v456
        %v486 = vpack.c.bf16 %v459, %v458
        %v487 = vpack.c.bf16 %v461, %v460
        %v488 = vpack.c.bf16 %v463, %v462
        %v489 = vpack.c.bf16 %v465, %v464
        %v490 = vpack.c.bf16 %v467, %v466
        %v491 = vpack.c.bf16 %v469, %v468
        %v492 = vpack.c.bf16 %v471, %v470
        %v493 = vpack.c.bf16 %v473, %v472
        %v494 = vpack.c.bf16 %v475, %v474
        %v495 = vpack.c.bf16 %v477, %v476
        %v496 = vpack.c.bf16 %v479, %v478
        %v497 = vpack.c.bf16 %v481, %v480
        %v498 = vld [vmem:[%s314] sm:$0xff]
        %v499 = vld [vmem:[%s314 + $0x8] sm:$0xff]
        %v500 = vld [vmem:[%s314 + $0x18] sm:$0xff]
        %v501 = vld [vmem:[%s314 + $0x20] sm:$0xff]
        %v502 = vld [vmem:[%s314 + $0x30] sm:$0xff]
        %v503 = vld [vmem:[%s314 + $0x38] sm:$0xff]
        %v504 = vld [vmem:[%s314 + $0x48] sm:$0xff]
        %v505 = vld [vmem:[%s314 + $0x50] sm:$0xff]
        %v506 = vld [vmem:[%s314 + $0x60] sm:$0xff]
        %v507 = vld [vmem:[%s314 + $0x68] sm:$0xff]
        %v508 = vld [vmem:[%s314 + $0x78] sm:$0xff]
        %v509 = vld [vmem:[%s314 + $0x80] sm:$0xff]
        %v510 = vld [vmem:[%s314 + $0x90] sm:$0xff]
        %v511 = vld [vmem:[%s314 + $0x98] sm:$0xff]
        %v512 = vld [vmem:[%s314 + $0xa8] sm:$0xff]
        %v513 = vld [vmem:[%s314 + $0xb0] sm:$0xff]
        %v514 = vld [vmem:[%s314 + $0xc0] sm:$0xff]
        %v515 = vld [vmem:[%s314 + $0xc8] sm:$0xff]
        %v516 = vld [vmem:[%s314 + $0xd8] sm:$0xff]
        %v517 = vld [vmem:[%s314 + $0xe0] sm:$0xff]
        %v518 = vld [vmem:[%s314 + $0xf0] sm:$0xff]
        %v519 = vld [vmem:[%s314 + $0xf8] sm:$0xff]
        %v520 = vld [vmem:[%s314 + $0x108] sm:$0xff]
        %v521 = vld [vmem:[%s314 + $0x110] sm:$0xff]
        %v522 = vld [vmem:[%s314 + $0x120] sm:$0xff]
        %v523 = vld [vmem:[%s314 + $0x128] sm:$0xff]
        %v524 = vld [vmem:[%s314 + $0x138] sm:$0xff]
        %v525 = vld [vmem:[%s314 + $0x140] sm:$0xff]
        %v526 = vld [vmem:[%s314 + $0x150] sm:$0xff]
        %v527 = vld [vmem:[%s314 + $0x158] sm:$0xff]
        %v528 = vld [vmem:[%s314 + $0x168] sm:$0xff]
        %v529 = vld [vmem:[%s314 + $0x170] sm:$0xff]
        %v530 = vpack.c.bf16 %v499, %v498
        %v531 = vpack.c.bf16 %v501, %v500
        %v532 = vpack.c.bf16 %v503, %v502
        %v533 = vpack.c.bf16 %v505, %v504
        %v534 = vpack.c.bf16 %v507, %v506
        %v535 = vpack.c.bf16 %v509, %v508
        %v536 = vpack.c.bf16 %v511, %v510
        %v537 = vpack.c.bf16 %v513, %v512
        %v538 = vpack.c.bf16 %v515, %v514
        %v539 = vpack.c.bf16 %v517, %v516
        %v540 = vpack.c.bf16 %v519, %v518
        %v541 = vpack.c.bf16 %v521, %v520
        %v542 = vpack.c.bf16 %v523, %v522
        %v543 = vpack.c.bf16 %v525, %v524
        %v544 = vpack.c.bf16 %v527, %v526
        %v545 = vpack.c.bf16 %v529, %v528
        %v546 = vld [vmem:[%s314 + $0x1] sm:$0xff]
        %v547 = vld [vmem:[%s314 + $0x9] sm:$0xff]
        %v548 = vld [vmem:[%s314 + $0x19] sm:$0xff]
        %v549 = vld [vmem:[%s314 + $0x21] sm:$0xff]
        %v550 = vld [vmem:[%s314 + $0x31] sm:$0xff]
        %v551 = vld [vmem:[%s314 + $0x39] sm:$0xff]
        %v552 = vld [vmem:[%s314 + $0x49] sm:$0xff]
        %v553 = vld [vmem:[%s314 + $0x51] sm:$0xff]
        %v554 = vld [vmem:[%s314 + $0x61] sm:$0xff]
        %v555 = vld [vmem:[%s314 + $0x69] sm:$0xff]
        %v556 = vld [vmem:[%s314 + $0x79] sm:$0xff]
        %v557 = vld [vmem:[%s314 + $0x81] sm:$0xff]
        %v558 = vld [vmem:[%s314 + $0x91] sm:$0xff]
        %v559 = vld [vmem:[%s314 + $0x99] sm:$0xff]
        %v560 = vld [vmem:[%s314 + $0xa9] sm:$0xff]
        %v561 = vld [vmem:[%s314 + $0xb1] sm:$0xff]
        %v562 = vld [vmem:[%s314 + $0xc1] sm:$0xff]
        %v563 = vld [vmem:[%s314 + $0xc9] sm:$0xff]
        %v564 = vld [vmem:[%s314 + $0xd9] sm:$0xff]
        %v565 = vld [vmem:[%s314 + $0xe1] sm:$0xff]
        %v566 = vld [vmem:[%s314 + $0xf1] sm:$0xff]
        %v567 = vld [vmem:[%s314 + $0xf9] sm:$0xff]
        %v568 = vld [vmem:[%s314 + $0x109] sm:$0xff]
        %v569 = vld [vmem:[%s314 + $0x111] sm:$0xff]
        %v570 = vld [vmem:[%s314 + $0x121] sm:$0xff]
        %v571 = vld [vmem:[%s314 + $0x129] sm:$0xff]
        %v572 = vld [vmem:[%s314 + $0x139] sm:$0xff]
        %v573 = vld [vmem:[%s314 + $0x141] sm:$0xff]
        %v574 = vld [vmem:[%s314 + $0x151] sm:$0xff]
        %v575 = vld [vmem:[%s314 + $0x159] sm:$0xff]
        %v576 = vld [vmem:[%s314 + $0x169] sm:$0xff]
        %v577 = vld [vmem:[%s314 + $0x171] sm:$0xff]
        %v578 = vpack.c.bf16 %v547, %v546
        %v579 = vpack.c.bf16 %v549, %v548
        %v580 = vpack.c.bf16 %v551, %v550
        %v581 = vpack.c.bf16 %v553, %v552
        %v582 = vpack.c.bf16 %v555, %v554
        %v583 = vpack.c.bf16 %v557, %v556
        %v584 = vpack.c.bf16 %v559, %v558
        %v585 = vpack.c.bf16 %v561, %v560
        %v586 = vpack.c.bf16 %v563, %v562
        %v587 = vpack.c.bf16 %v565, %v564
        %v588 = vpack.c.bf16 %v567, %v566
        %v589 = vpack.c.bf16 %v569, %v568
        %v590 = vpack.c.bf16 %v571, %v570
        %v591 = vpack.c.bf16 %v573, %v572
        %v592 = vpack.c.bf16 %v575, %v574
        %v593 = vpack.c.bf16 %v577, %v576
        %v594 = vld [vmem:[%s314 + $0x2] sm:$0xff]
        %v595 = vld [vmem:[%s314 + $0xa] sm:$0xff]
        %v596 = vld [vmem:[%s314 + $0x1a] sm:$0xff]
        %v597 = vld [vmem:[%s314 + $0x22] sm:$0xff]
        %v598 = vld [vmem:[%s314 + $0x32] sm:$0xff]
        %v599 = vld [vmem:[%s314 + $0x3a] sm:$0xff]
        %v600 = vld [vmem:[%s314 + $0x4a] sm:$0xff]
        %v601 = vld [vmem:[%s314 + $0x52] sm:$0xff]
        %v602 = vld [vmem:[%s314 + $0x62] sm:$0xff]
        %v603 = vld [vmem:[%s314 + $0x6a] sm:$0xff]
        %v604 = vld [vmem:[%s314 + $0x7a] sm:$0xff]
        %v605 = vld [vmem:[%s314 + $0x82] sm:$0xff]
        %v606 = vld [vmem:[%s314 + $0x92] sm:$0xff]
        %v607 = vld [vmem:[%s314 + $0x9a] sm:$0xff]
        %v608 = vld [vmem:[%s314 + $0xaa] sm:$0xff]
        %v609 = vld [vmem:[%s314 + $0xb2] sm:$0xff]
        %v610 = vld [vmem:[%s314 + $0xc2] sm:$0xff]
        %v611 = vld [vmem:[%s314 + $0xca] sm:$0xff]
        %v612 = vld [vmem:[%s314 + $0xda] sm:$0xff]
        %v613 = vld [vmem:[%s314 + $0xe2] sm:$0xff]
        %v614 = vld [vmem:[%s314 + $0xf2] sm:$0xff]
        %v615 = vld [vmem:[%s314 + $0xfa] sm:$0xff]
        %v616 = vld [vmem:[%s314 + $0x10a] sm:$0xff]
        %v617 = vld [vmem:[%s314 + $0x112] sm:$0xff]
        %v618 = vld [vmem:[%s314 + $0x122] sm:$0xff]
        %v619 = vld [vmem:[%s314 + $0x12a] sm:$0xff]
        %v620 = vld [vmem:[%s314 + $0x13a] sm:$0xff]
        %v621 = vld [vmem:[%s314 + $0x142] sm:$0xff]
        %v622 = vld [vmem:[%s314 + $0x152] sm:$0xff]
        %v623 = vld [vmem:[%s314 + $0x15a] sm:$0xff]
        %v624 = vld [vmem:[%s314 + $0x16a] sm:$0xff]
        %v625 = vld [vmem:[%s314 + $0x172] sm:$0xff]
        %v626 = vpack.c.bf16 %v595, %v594
        %v627 = vpack.c.bf16 %v597, %v596
        %v628 = vpack.c.bf16 %v599, %v598
        %v629 = vpack.c.bf16 %v601, %v600
        %v630 = vpack.c.bf16 %v603, %v602
        %v631 = vpack.c.bf16 %v605, %v604
        %v632 = vpack.c.bf16 %v607, %v606
        %v633 = vpack.c.bf16 %v609, %v608
        %v634 = vpack.c.bf16 %v611, %v610
        %v635 = vpack.c.bf16 %v613, %v612
        %v636 = vpack.c.bf16 %v615, %v614
        %v637 = vpack.c.bf16 %v617, %v616
        %v638 = vpack.c.bf16 %v619, %v618
        %v639 = vpack.c.bf16 %v621, %v620
        %v640 = vpack.c.bf16 %v623, %v622
        %v641 = vpack.c.bf16 %v625, %v624
        %s642 = scalar_lea.vmem [#allocation2], 48
        %v643 = vld [vmem:[%s642] sm:$0xff]
        %v644 = vld [vmem:[%s642 + $0x8] sm:$0xff]
        %v645 = vld [vmem:[%s642 + $0x18] sm:$0xff]
        %v646 = vld [vmem:[%s642 + $0x20] sm:$0xff]
        %v647 = vld [vmem:[%s642 + $0x30] sm:$0xff]
        %v648 = vld [vmem:[%s642 + $0x38] sm:$0xff]
        %v649 = vld [vmem:[%s642 + $0x48] sm:$0xff]
        %v650 = vld [vmem:[%s642 + $0x50] sm:$0xff]
        %v651 = vld [vmem:[%s642 + $0x60] sm:$0xff]
        %v652 = vld [vmem:[%s642 + $0x68] sm:$0xff]
        %v653 = vld [vmem:[%s642 + $0x78] sm:$0xff]
        %v654 = vld [vmem:[%s642 + $0x80] sm:$0xff]
        %v655 = vld [vmem:[%s642 + $0x90] sm:$0xff]
        %v656 = vld [vmem:[%s642 + $0x98] sm:$0xff]
        %v657 = vld [vmem:[%s642 + $0xa8] sm:$0xff]
        %v658 = vld [vmem:[%s642 + $0xb0] sm:$0xff]
        %v659 = vld [vmem:[%s642 + $0xc0] sm:$0xff]
        %v660 = vld [vmem:[%s642 + $0xc8] sm:$0xff]
        %v661 = vld [vmem:[%s642 + $0xd8] sm:$0xff]
        %v662 = vld [vmem:[%s642 + $0xe0] sm:$0xff]
        %v663 = vld [vmem:[%s642 + $0xf0] sm:$0xff]
        %v664 = vld [vmem:[%s642 + $0xf8] sm:$0xff]
        %v665 = vld [vmem:[%s642 + $0x108] sm:$0xff]
        %v666 = vld [vmem:[%s642 + $0x110] sm:$0xff]
        %v667 = vld [vmem:[%s642 + $0x120] sm:$0xff]
        %v668 = vld [vmem:[%s642 + $0x128] sm:$0xff]
        %v669 = vld [vmem:[%s642 + $0x138] sm:$0xff]
        %v670 = vld [vmem:[%s642 + $0x140] sm:$0xff]
        %v671 = vld [vmem:[%s642 + $0x150] sm:$0xff]
        %v672 = vld [vmem:[%s642 + $0x158] sm:$0xff]
        %v673 = vld [vmem:[%s642 + $0x168] sm:$0xff]
        %v674 = vld [vmem:[%s642 + $0x170] sm:$0xff]
        %v675 = vpack.c.bf16 %v644, %v643
        %v676 = vpack.c.bf16 %v646, %v645
        %v677 = vpack.c.bf16 %v648, %v647
        %v678 = vpack.c.bf16 %v650, %v649
        %v679 = vpack.c.bf16 %v652, %v651
        %v680 = vpack.c.bf16 %v654, %v653
        %v681 = vpack.c.bf16 %v656, %v655
        %v682 = vpack.c.bf16 %v658, %v657
        %v683 = vpack.c.bf16 %v660, %v659
        %v684 = vpack.c.bf16 %v662, %v661
        %v685 = vpack.c.bf16 %v664, %v663
        %v686 = vpack.c.bf16 %v666, %v665
        %v687 = vpack.c.bf16 %v668, %v667
        %v688 = vpack.c.bf16 %v670, %v669
        %v689 = vpack.c.bf16 %v672, %v671
        %v690 = vpack.c.bf16 %v674, %v673
        %v691 = vld [vmem:[%s642 + $0x1] sm:$0xff]
        %v692 = vld [vmem:[%s642 + $0x9] sm:$0xff]
        %v693 = vld [vmem:[%s642 + $0x19] sm:$0xff]
        %v694 = vld [vmem:[%s642 + $0x21] sm:$0xff]
        %v695 = vld [vmem:[%s642 + $0x31] sm:$0xff]
        %v696 = vld [vmem:[%s642 + $0x39] sm:$0xff]
        %v697 = vld [vmem:[%s642 + $0x49] sm:$0xff]
        %v698 = vld [vmem:[%s642 + $0x51] sm:$0xff]
        %v699 = vld [vmem:[%s642 + $0x61] sm:$0xff]
        %v700 = vld [vmem:[%s642 + $0x69] sm:$0xff]
        %v701 = vld [vmem:[%s642 + $0x79] sm:$0xff]
        %v702 = vld [vmem:[%s642 + $0x81] sm:$0xff]
        %v703 = vld [vmem:[%s642 + $0x91] sm:$0xff]
        %v704 = vld [vmem:[%s642 + $0x99] sm:$0xff]
        %v705 = vld [vmem:[%s642 + $0xa9] sm:$0xff]
        %v706 = vld [vmem:[%s642 + $0xb1] sm:$0xff]
        %v707 = vld [vmem:[%s642 + $0xc1] sm:$0xff]
        %v708 = vld [vmem:[%s642 + $0xc9] sm:$0xff]
        %v709 = vld [vmem:[%s642 + $0xd9] sm:$0xff]
        %v710 = vld [vmem:[%s642 + $0xe1] sm:$0xff]
        %v711 = vld [vmem:[%s642 + $0xf1] sm:$0xff]
        %v712 = vld [vmem:[%s642 + $0xf9] sm:$0xff]
        %v713 = vld [vmem:[%s642 + $0x109] sm:$0xff]
        %v714 = vld [vmem:[%s642 + $0x111] sm:$0xff]
        %v715 = vld [vmem:[%s642 + $0x121] sm:$0xff]
        %v716 = vld [vmem:[%s642 + $0x129] sm:$0xff]
        %v717 = vld [vmem:[%s642 + $0x139] sm:$0xff]
        %v718 = vld [vmem:[%s642 + $0x141] sm:$0xff]
        %v719 = vld [vmem:[%s642 + $0x151] sm:$0xff]
        %v720 = vld [vmem:[%s642 + $0x159] sm:$0xff]
        %v721 = vld [vmem:[%s642 + $0x169] sm:$0xff]
        %v722 = vld [vmem:[%s642 + $0x171] sm:$0xff]
        %v723 = vpack.c.bf16 %v692, %v691
        %v724 = vpack.c.bf16 %v694, %v693
        %v725 = vpack.c.bf16 %v696, %v695
        %v726 = vpack.c.bf16 %v698, %v697
        %v727 = vpack.c.bf16 %v700, %v699
        %v728 = vpack.c.bf16 %v702, %v701
        %v729 = vpack.c.bf16 %v704, %v703
        %v730 = vpack.c.bf16 %v706, %v705
        %v731 = vpack.c.bf16 %v708, %v707
        %v732 = vpack.c.bf16 %v710, %v709
        %v733 = vpack.c.bf16 %v712, %v711
        %v734 = vpack.c.bf16 %v714, %v713
        %v735 = vpack.c.bf16 %v716, %v715
        %v736 = vpack.c.bf16 %v718, %v717
        %v737 = vpack.c.bf16 %v720, %v719
        %v738 = vpack.c.bf16 %v722, %v721
        %v739 = vld [vmem:[%s642 + $0x2] sm:$0xff]
        %v740 = vld [vmem:[%s642 + $0xa] sm:$0xff]
        %v741 = vld [vmem:[%s642 + $0x1a] sm:$0xff]
        %v742 = vld [vmem:[%s642 + $0x22] sm:$0xff]
        %v743 = vld [vmem:[%s642 + $0x32] sm:$0xff]
        %v744 = vld [vmem:[%s642 + $0x3a] sm:$0xff]
        %v745 = vld [vmem:[%s642 + $0x4a] sm:$0xff]
        %v746 = vld [vmem:[%s642 + $0x52] sm:$0xff]
        %v747 = vld [vmem:[%s642 + $0x62] sm:$0xff]
        %v748 = vld [vmem:[%s642 + $0x6a] sm:$0xff]
        %v749 = vld [vmem:[%s642 + $0x7a] sm:$0xff]
        %v750 = vld [vmem:[%s642 + $0x82] sm:$0xff]
        %v751 = vld [vmem:[%s642 + $0x92] sm:$0xff]
        %v752 = vld [vmem:[%s642 + $0x9a] sm:$0xff]
        %v753 = vld [vmem:[%s642 + $0xaa] sm:$0xff]
        %v754 = vld [vmem:[%s642 + $0xb2] sm:$0xff]
        %v755 = vld [vmem:[%s642 + $0xc2] sm:$0xff]
        %v756 = vld [vmem:[%s642 + $0xca] sm:$0xff]
        %v757 = vld [vmem:[%s642 + $0xda] sm:$0xff]
        %v758 = vld [vmem:[%s642 + $0xe2] sm:$0xff]
        %v759 = vld [vmem:[%s642 + $0xf2] sm:$0xff]
        %v760 = vld [vmem:[%s642 + $0xfa] sm:$0xff]
        %v761 = vld [vmem:[%s642 + $0x10a] sm:$0xff]
        %v762 = vld [vmem:[%s642 + $0x112] sm:$0xff]
        %v763 = vld [vmem:[%s642 + $0x122] sm:$0xff]
        %v764 = vld [vmem:[%s642 + $0x12a] sm:$0xff]
        %v765 = vld [vmem:[%s642 + $0x13a] sm:$0xff]
        %v766 = vld [vmem:[%s642 + $0x142] sm:$0xff]
        %v767 = vld [vmem:[%s642 + $0x152] sm:$0xff]
        %v768 = vld [vmem:[%s642 + $0x15a] sm:$0xff]
        %v769 = vld [vmem:[%s642 + $0x16a] sm:$0xff]
        %v770 = vld [vmem:[%s642 + $0x172] sm:$0xff]
        %v771 = vpack.c.bf16 %v740, %v739
        %v772 = vpack.c.bf16 %v742, %v741
        %v773 = vpack.c.bf16 %v744, %v743
        %v774 = vpack.c.bf16 %v746, %v745
        %v775 = vpack.c.bf16 %v748, %v747
        %v776 = vpack.c.bf16 %v750, %v749
        %v777 = vpack.c.bf16 %v752, %v751
        %v778 = vpack.c.bf16 %v754, %v753
        %v779 = vpack.c.bf16 %v756, %v755
        %v780 = vpack.c.bf16 %v758, %v757
        %v781 = vpack.c.bf16 %v760, %v759
        %v782 = vpack.c.bf16 %v762, %v761
        %v783 = vpack.c.bf16 %v764, %v763
        %v784 = vpack.c.bf16 %v766, %v765
        %v785 = vpack.c.bf16 %v768, %v767
        %v786 = vpack.c.bf16 %v770, %v769
        %803 = vrot.lane.b32.xlu0 %v434, 64
        %v804 = vpop.permute.xlu0 %803
        %805 = vrot.lane.b32.xlu0 %v435, 64
        %v806 = vpop.permute.xlu0 %805
        %807 = vrot.lane.b32.xlu0 %v436, 64
        %v808 = vpop.permute.xlu0 %807
        %809 = vrot.lane.b32.xlu0 %v437, 64
        %v810 = vpop.permute.xlu0 %809
        %811 = vrot.lane.b32.xlu0 %v438, 64
        %v812 = vpop.permute.xlu0 %811
        %813 = vrot.lane.b32.xlu0 %v439, 64
        %v814 = vpop.permute.xlu0 %813
        %815 = vrot.lane.b32.xlu0 %v440, 64
        %v816 = vpop.permute.xlu0 %815
        %817 = vrot.lane.b32.xlu0 %v441, 64
        %v818 = vpop.permute.xlu0 %817
        %819 = vrot.lane.b32.xlu0 %v442, 64
        %v820 = vpop.permute.xlu0 %819
        %821 = vrot.lane.b32.xlu0 %v443, 64
        %v822 = vpop.permute.xlu0 %821
        %823 = vrot.lane.b32.xlu0 %v444, 64
        %v824 = vpop.permute.xlu0 %823
        %825 = vrot.lane.b32.xlu0 %v445, 64
        %v826 = vpop.permute.xlu0 %825
        %827 = vrot.lane.b32.xlu0 %v446, 64
        %v828 = vpop.permute.xlu0 %827
        %829 = vrot.lane.b32.xlu0 %v447, 64
        %v830 = vpop.permute.xlu0 %829
        %831 = vrot.lane.b32.xlu0 %v448, 64
        %v832 = vpop.permute.xlu0 %831
        %833 = vrot.lane.b32.xlu0 %v449, 64
        %v834 = vpop.permute.xlu0 %833
        %v837 = vsel %vm172, %v386, %v804
        %v841 = vsel %vm172, %v387, %v806
        %v845 = vsel %vm172, %v388, %v808
        %v849 = vsel %vm172, %v389, %v810
        %v853 = vsel %vm172, %v390, %v812
        %v857 = vsel %vm172, %v391, %v814
        %v861 = vsel %vm172, %v392, %v816
        %v865 = vsel %vm172, %v393, %v818
        %v869 = vsel %vm172, %v394, %v820
        %v873 = vsel %vm172, %v395, %v822
        %v877 = vsel %vm172, %v396, %v824
        %v881 = vsel %vm172, %v397, %v826
        %v885 = vsel %vm172, %v398, %v828
        %v889 = vsel %vm172, %v399, %v830
        %v893 = vsel %vm172, %v400, %v832
        %v897 = vsel %vm172, %v401, %v834
        %899 = vst [vmem:[#allocation4] sm:$0xff] %v837
        %900 = vst [vmem:[#allocation4 + $0x28] sm:$0xff] %v841
        %901 = vst [vmem:[#allocation4 + $0x50] sm:$0xff] %v845
        %902 = vst [vmem:[#allocation4 + $0x78] sm:$0xff] %v849
        %903 = vst [vmem:[#allocation4 + $0xa0] sm:$0xff] %v853
        %904 = vst [vmem:[#allocation4 + $0xc8] sm:$0xff] %v857
        %905 = vst [vmem:[#allocation4 + $0xf0] sm:$0xff] %v861
        %906 = vst [vmem:[#allocation4 + $0x118] sm:$0xff] %v865
        %907 = vst [vmem:[#allocation4 + $0x140] sm:$0xff] %v869
        %908 = vst [vmem:[#allocation4 + $0x168] sm:$0xff] %v873
        %909 = vst [vmem:[#allocation4 + $0x190] sm:$0xff] %v877
        %910 = vst [vmem:[#allocation4 + $0x1b8] sm:$0xff] %v881
        %911 = vst [vmem:[#allocation4 + $0x1e0] sm:$0xff] %v885
        %912 = vst [vmem:[#allocation4 + $0x208] sm:$0xff] %v889
        %913 = vst [vmem:[#allocation4 + $0x230] sm:$0xff] %v893
        %914 = vst [vmem:[#allocation4 + $0x258] sm:$0xff] %v897
        %931 = vrot.lane.b32.xlu0 %v530, 64
        %v932 = vpop.permute.xlu0 %931
        %933 = vrot.lane.b32.xlu0 %v531, 64
        %v934 = vpop.permute.xlu0 %933
        %935 = vrot.lane.b32.xlu0 %v532, 64
        %v936 = vpop.permute.xlu0 %935
        %937 = vrot.lane.b32.xlu0 %v533, 64
        %v938 = vpop.permute.xlu0 %937
        %939 = vrot.lane.b32.xlu0 %v534, 64
        %v940 = vpop.permute.xlu0 %939
        %941 = vrot.lane.b32.xlu0 %v535, 64
        %v942 = vpop.permute.xlu0 %941
        %943 = vrot.lane.b32.xlu0 %v536, 64
        %v944 = vpop.permute.xlu0 %943
        %945 = vrot.lane.b32.xlu0 %v537, 64
        %v946 = vpop.permute.xlu0 %945
        %947 = vrot.lane.b32.xlu0 %v538, 64
        %v948 = vpop.permute.xlu0 %947
        %949 = vrot.lane.b32.xlu0 %v539, 64
        %v950 = vpop.permute.xlu0 %949
        %951 = vrot.lane.b32.xlu0 %v540, 64
        %v952 = vpop.permute.xlu0 %951
        %953 = vrot.lane.b32.xlu0 %v541, 64
        %v954 = vpop.permute.xlu0 %953
        %955 = vrot.lane.b32.xlu0 %v542, 64
        %v956 = vpop.permute.xlu0 %955
        %957 = vrot.lane.b32.xlu0 %v543, 64
        %v958 = vpop.permute.xlu0 %957
        %959 = vrot.lane.b32.xlu0 %v544, 64
        %v960 = vpop.permute.xlu0 %959
        %961 = vrot.lane.b32.xlu0 %v545, 64
        %v962 = vpop.permute.xlu0 %961
        %v965 = vsel %vm172, %v482, %v932
        %v969 = vsel %vm172, %v483, %v934
        %v973 = vsel %vm172, %v484, %v936
        %v977 = vsel %vm172, %v485, %v938
        %v981 = vsel %vm172, %v486, %v940
        %v985 = vsel %vm172, %v487, %v942
        %v989 = vsel %vm172, %v488, %v944
        %v993 = vsel %vm172, %v489, %v946
        %v997 = vsel %vm172, %v490, %v948
        %v1001 = vsel %vm172, %v491, %v950
        %v1005 = vsel %vm172, %v492, %v952
        %v1009 = vsel %vm172, %v493, %v954
        %v1013 = vsel %vm172, %v494, %v956
        %v1017 = vsel %vm172, %v495, %v958
        %v1021 = vsel %vm172, %v496, %v960
        %v1025 = vsel %vm172, %v497, %v962
        %1027 = vst [vmem:[#allocation4 + $0x8] sm:$0xff] %v965
        %1028 = vst [vmem:[#allocation4 + $0x30] sm:$0xff] %v969
        %1029 = vst [vmem:[#allocation4 + $0x58] sm:$0xff] %v973
        %1030 = vst [vmem:[#allocation4 + $0x80] sm:$0xff] %v977
        %1031 = vst [vmem:[#allocation4 + $0xa8] sm:$0xff] %v981
        %1032 = vst [vmem:[#allocation4 + $0xd0] sm:$0xff] %v985
        %1033 = vst [vmem:[#allocation4 + $0xf8] sm:$0xff] %v989
        %1034 = vst [vmem:[#allocation4 + $0x120] sm:$0xff] %v993
        %1035 = vst [vmem:[#allocation4 + $0x148] sm:$0xff] %v997
        %1036 = vst [vmem:[#allocation4 + $0x170] sm:$0xff] %v1001
        %1037 = vst [vmem:[#allocation4 + $0x198] sm:$0xff] %v1005
        %1038 = vst [vmem:[#allocation4 + $0x1c0] sm:$0xff] %v1009
        %1039 = vst [vmem:[#allocation4 + $0x1e8] sm:$0xff] %v1013
        %1040 = vst [vmem:[#allocation4 + $0x210] sm:$0xff] %v1017
        %1041 = vst [vmem:[#allocation4 + $0x238] sm:$0xff] %v1021
        %1042 = vst [vmem:[#allocation4 + $0x260] sm:$0xff] %v1025
        %1059 = vrot.lane.b32.xlu0 %v626, 64
        %v1060 = vpop.permute.xlu0 %1059
        %1061 = vrot.lane.b32.xlu0 %v627, 64
        %v1062 = vpop.permute.xlu0 %1061
        %1063 = vrot.lane.b32.xlu0 %v628, 64
        %v1064 = vpop.permute.xlu0 %1063
        %1065 = vrot.lane.b32.xlu0 %v629, 64
        %v1066 = vpop.permute.xlu0 %1065
        %1067 = vrot.lane.b32.xlu0 %v630, 64
        %v1068 = vpop.permute.xlu0 %1067
        %1069 = vrot.lane.b32.xlu0 %v631, 64
        %v1070 = vpop.permute.xlu0 %1069
        %1071 = vrot.lane.b32.xlu0 %v632, 64
        %v1072 = vpop.permute.xlu0 %1071
        %1073 = vrot.lane.b32.xlu0 %v633, 64
        %v1074 = vpop.permute.xlu0 %1073
        %1075 = vrot.lane.b32.xlu0 %v634, 64
        %v1076 = vpop.permute.xlu0 %1075
        %1077 = vrot.lane.b32.xlu0 %v635, 64
        %v1078 = vpop.permute.xlu0 %1077
        %1079 = vrot.lane.b32.xlu0 %v636, 64
        %v1080 = vpop.permute.xlu0 %1079
        %1081 = vrot.lane.b32.xlu0 %v637, 64
        %v1082 = vpop.permute.xlu0 %1081
        %1083 = vrot.lane.b32.xlu0 %v638, 64
        %v1084 = vpop.permute.xlu0 %1083
        %1085 = vrot.lane.b32.xlu0 %v639, 64
        %v1086 = vpop.permute.xlu0 %1085
        %1087 = vrot.lane.b32.xlu0 %v640, 64
        %v1088 = vpop.permute.xlu0 %1087
        %1089 = vrot.lane.b32.xlu0 %v641, 64
        %v1090 = vpop.permute.xlu0 %1089
        %v1093 = vsel %vm172, %v578, %v1060
        %v1097 = vsel %vm172, %v579, %v1062
        %v1101 = vsel %vm172, %v580, %v1064
        %v1105 = vsel %vm172, %v581, %v1066
        %v1109 = vsel %vm172, %v582, %v1068
        %v1113 = vsel %vm172, %v583, %v1070
        %v1117 = vsel %vm172, %v584, %v1072
        %v1121 = vsel %vm172, %v585, %v1074
        %v1125 = vsel %vm172, %v586, %v1076
        %v1129 = vsel %vm172, %v587, %v1078
        %v1133 = vsel %vm172, %v588, %v1080
        %v1137 = vsel %vm172, %v589, %v1082
        %v1141 = vsel %vm172, %v590, %v1084
        %v1145 = vsel %vm172, %v591, %v1086
        %v1149 = vsel %vm172, %v592, %v1088
        %v1153 = vsel %vm172, %v593, %v1090
        %1155 = vst [vmem:[#allocation4 + $0x10] sm:$0xff] %v1093
        %1156 = vst [vmem:[#allocation4 + $0x38] sm:$0xff] %v1097
        %1157 = vst [vmem:[#allocation4 + $0x60] sm:$0xff] %v1101
        %1158 = vst [vmem:[#allocation4 + $0x88] sm:$0xff] %v1105
        %1159 = vst [vmem:[#allocation4 + $0xb0] sm:$0xff] %v1109
        %1160 = vst [vmem:[#allocation4 + $0xd8] sm:$0xff] %v1113
        %1161 = vst [vmem:[#allocation4 + $0x100] sm:$0xff] %v1117
        %1162 = vst [vmem:[#allocation4 + $0x128] sm:$0xff] %v1121
        %1163 = vst [vmem:[#allocation4 + $0x150] sm:$0xff] %v1125
        %1164 = vst [vmem:[#allocation4 + $0x178] sm:$0xff] %v1129
        %1165 = vst [vmem:[#allocation4 + $0x1a0] sm:$0xff] %v1133
        %1166 = vst [vmem:[#allocation4 + $0x1c8] sm:$0xff] %v1137
        %1167 = vst [vmem:[#allocation4 + $0x1f0] sm:$0xff] %v1141
        %1168 = vst [vmem:[#allocation4 + $0x218] sm:$0xff] %v1145
        %1169 = vst [vmem:[#allocation4 + $0x240] sm:$0xff] %v1149
        %1170 = vst [vmem:[#allocation4 + $0x268] sm:$0xff] %v1153
        %1187 = vrot.lane.b32.xlu0 %v723, 64
        %v1188 = vpop.permute.xlu0 %1187
        %1189 = vrot.lane.b32.xlu0 %v724, 64
        %v1190 = vpop.permute.xlu0 %1189
        %1191 = vrot.lane.b32.xlu0 %v725, 64
        %v1192 = vpop.permute.xlu0 %1191
        %1193 = vrot.lane.b32.xlu0 %v726, 64
        %v1194 = vpop.permute.xlu0 %1193
        %1195 = vrot.lane.b32.xlu0 %v727, 64
        %v1196 = vpop.permute.xlu0 %1195
        %1197 = vrot.lane.b32.xlu0 %v728, 64
        %v1198 = vpop.permute.xlu0 %1197
        %1199 = vrot.lane.b32.xlu0 %v729, 64
        %v1200 = vpop.permute.xlu0 %1199
        %1201 = vrot.lane.b32.xlu0 %v730, 64
        %v1202 = vpop.permute.xlu0 %1201
        %1203 = vrot.lane.b32.xlu0 %v731, 64
        %v1204 = vpop.permute.xlu0 %1203
        %1205 = vrot.lane.b32.xlu0 %v732, 64
        %v1206 = vpop.permute.xlu0 %1205
        %1207 = vrot.lane.b32.xlu0 %v733, 64
        %v1208 = vpop.permute.xlu0 %1207
        %1209 = vrot.lane.b32.xlu0 %v734, 64
        %v1210 = vpop.permute.xlu0 %1209
        %1211 = vrot.lane.b32.xlu0 %v735, 64
        %v1212 = vpop.permute.xlu0 %1211
        %1213 = vrot.lane.b32.xlu0 %v736, 64
        %v1214 = vpop.permute.xlu0 %1213
        %1215 = vrot.lane.b32.xlu0 %v737, 64
        %v1216 = vpop.permute.xlu0 %1215
        %1217 = vrot.lane.b32.xlu0 %v738, 64
        %v1218 = vpop.permute.xlu0 %1217
        %v1221 = vsel %vm172, %v675, %v1188
        %v1225 = vsel %vm172, %v676, %v1190
        %v1229 = vsel %vm172, %v677, %v1192
        %v1233 = vsel %vm172, %v678, %v1194
        %v1237 = vsel %vm172, %v679, %v1196
        %v1241 = vsel %vm172, %v680, %v1198
        %v1245 = vsel %vm172, %v681, %v1200
        %v1249 = vsel %vm172, %v682, %v1202
        %v1253 = vsel %vm172, %v683, %v1204
        %v1257 = vsel %vm172, %v684, %v1206
        %v1261 = vsel %vm172, %v685, %v1208
        %v1265 = vsel %vm172, %v686, %v1210
        %v1269 = vsel %vm172, %v687, %v1212
        %v1273 = vsel %vm172, %v688, %v1214
        %v1277 = vsel %vm172, %v689, %v1216
        %v1281 = vsel %vm172, %v690, %v1218
        %1283 = vst [vmem:[#allocation4 + $0x18] sm:$0xff] %v1221
        %1284 = vst [vmem:[#allocation4 + $0x40] sm:$0xff] %v1225
        %1285 = vst [vmem:[#allocation4 + $0x68] sm:$0xff] %v1229
        %1286 = vst [vmem:[#allocation4 + $0x90] sm:$0xff] %v1233
        %1287 = vst [vmem:[#allocation4 + $0xb8] sm:$0xff] %v1237
        %1288 = vst [vmem:[#allocation4 + $0xe0] sm:$0xff] %v1241
        %1289 = vst [vmem:[#allocation4 + $0x108] sm:$0xff] %v1245
        %1290 = vst [vmem:[#allocation4 + $0x130] sm:$0xff] %v1249
        %1291 = vst [vmem:[#allocation4 + $0x158] sm:$0xff] %v1253
        %1292 = vst [vmem:[#allocation4 + $0x180] sm:$0xff] %v1257
        %1293 = vst [vmem:[#allocation4 + $0x1a8] sm:$0xff] %v1261
        %1294 = vst [vmem:[#allocation4 + $0x1d0] sm:$0xff] %v1265
        %1295 = vst [vmem:[#allocation4 + $0x1f8] sm:$0xff] %v1269
        %1296 = vst [vmem:[#allocation4 + $0x220] sm:$0xff] %v1273
        %1297 = vst [vmem:[#allocation4 + $0x248] sm:$0xff] %v1277
        %1298 = vst [vmem:[#allocation4 + $0x270] sm:$0xff] %v1281
        %1299 = vst.msk [vmem:[#allocation4 + $0x20] sm:$0xff] %vm172, %v771
        %1300 = vst.msk [vmem:[#allocation4 + $0x48] sm:$0xff] %vm172, %v772
        %1301 = vst.msk [vmem:[#allocation4 + $0x70] sm:$0xff] %vm172, %v773
        %1302 = vst.msk [vmem:[#allocation4 + $0x98] sm:$0xff] %vm172, %v774
        %1303 = vst.msk [vmem:[#allocation4 + $0xc0] sm:$0xff] %vm172, %v775
        %1304 = vst.msk [vmem:[#allocation4 + $0xe8] sm:$0xff] %vm172, %v776
        %1305 = vst.msk [vmem:[#allocation4 + $0x110] sm:$0xff] %vm172, %v777
        %1306 = vst.msk [vmem:[#allocation4 + $0x138] sm:$0xff] %vm172, %v778
        %1307 = vst.msk [vmem:[#allocation4 + $0x160] sm:$0xff] %vm172, %v779
        %1308 = vst.msk [vmem:[#allocation4 + $0x188] sm:$0xff] %vm172, %v780
        %1309 = vst.msk [vmem:[#allocation4 + $0x1b0] sm:$0xff] %vm172, %v781
        %1310 = vst.msk [vmem:[#allocation4 + $0x1d8] sm:$0xff] %vm172, %v782
        %1311 = vst.msk [vmem:[#allocation4 + $0x200] sm:$0xff] %vm172, %v783
        %1312 = vst.msk [vmem:[#allocation4 + $0x228] sm:$0xff] %vm172, %v784
        %1313 = vst.msk [vmem:[#allocation4 + $0x250] sm:$0xff] %vm172, %v785
        %1314 = vst.msk [vmem:[#allocation4 + $0x278] sm:$0xff] %vm172, %v786
        %v1315 = vld [vmem:[#allocation4] sm:$0xff]
        %v1316 = vld [vmem:[#allocation4 + $0x8] sm:$0xff]
        %v1317 = vld [vmem:[#allocation4 + $0x10] sm:$0xff]
        %v1318 = vld [vmem:[#allocation4 + $0x18] sm:$0xff]
        %v1319 = vld [vmem:[#allocation4 + $0x20] sm:$0xff]
        %v1320 = vld [vmem:[#allocation4 + $0x28] sm:$0xff]
        %v1321 = vld [vmem:[#allocation4 + $0x30] sm:$0xff]
        %v1322 = vld [vmem:[#allocation4 + $0x38] sm:$0xff]
        %v1323 = vld [vmem:[#allocation4 + $0x40] sm:$0xff]
        %v1324 = vld [vmem:[#allocation4 + $0x48] sm:$0xff]
        %v1325 = vld [vmem:[#allocation4 + $0x50] sm:$0xff]
        %v1326 = vld [vmem:[#allocation4 + $0x58] sm:$0xff]
        %v1327 = vld [vmem:[#allocation4 + $0x60] sm:$0xff]
        %v1328 = vld [vmem:[#allocation4 + $0x68] sm:$0xff]
        %v1329 = vld [vmem:[#allocation4 + $0x70] sm:$0xff]
        %v1330 = vld [vmem:[#allocation4 + $0x78] sm:$0xff]
        %v1331 = vld [vmem:[#allocation4 + $0x80] sm:$0xff]
        %v1332 = vld [vmem:[#allocation4 + $0x88] sm:$0xff]
        %v1333 = vld [vmem:[#allocation4 + $0x90] sm:$0xff]
        %v1334 = vld [vmem:[#allocation4 + $0x98] sm:$0xff]
        %v1335 = vld [vmem:[#allocation4 + $0xa0] sm:$0xff]
        %v1336 = vld [vmem:[#allocation4 + $0xa8] sm:$0xff]
        %v1337 = vld [vmem:[#allocation4 + $0xb0] sm:$0xff]
        %v1338 = vld [vmem:[#allocation4 + $0xb8] sm:$0xff]
        %v1339 = vld [vmem:[#allocation4 + $0xc0] sm:$0xff]
        %v1340 = vld [vmem:[#allocation4 + $0xc8] sm:$0xff]
        %v1341 = vld [vmem:[#allocation4 + $0xd0] sm:$0xff]
        %v1342 = vld [vmem:[#allocation4 + $0xd8] sm:$0xff]
        %v1343 = vld [vmem:[#allocation4 + $0xe0] sm:$0xff]
        %v1344 = vld [vmem:[#allocation4 + $0xe8] sm:$0xff]
        %v1345 = vld [vmem:[#allocation4 + $0xf0] sm:$0xff]
        %v1346 = vld [vmem:[#allocation4 + $0xf8] sm:$0xff]
        %v1347 = vld [vmem:[#allocation4 + $0x100] sm:$0xff]
        %v1348 = vld [vmem:[#allocation4 + $0x108] sm:$0xff]
        %v1349 = vld [vmem:[#allocation4 + $0x110] sm:$0xff]
        %v1350 = vld [vmem:[#allocation4 + $0x118] sm:$0xff]
        %v1351 = vld [vmem:[#allocation4 + $0x120] sm:$0xff]
        %v1352 = vld [vmem:[#allocation4 + $0x128] sm:$0xff]
        %v1353 = vld [vmem:[#allocation4 + $0x130] sm:$0xff]
        %v1354 = vld [vmem:[#allocation4 + $0x138] sm:$0xff]
        %v1355 = vld [vmem:[#allocation4 + $0x140] sm:$0xff]
        %v1356 = vld [vmem:[#allocation4 + $0x148] sm:$0xff]
        %v1357 = vld [vmem:[#allocation4 + $0x150] sm:$0xff]
        %v1358 = vld [vmem:[#allocation4 + $0x158] sm:$0xff]
        %v1359 = vld [vmem:[#allocation4 + $0x160] sm:$0xff]
        %v1360 = vld [vmem:[#allocation4 + $0x168] sm:$0xff]
        %v1361 = vld [vmem:[#allocation4 + $0x170] sm:$0xff]
        %v1362 = vld [vmem:[#allocation4 + $0x178] sm:$0xff]
        %v1363 = vld [vmem:[#allocation4 + $0x180] sm:$0xff]
        %v1364 = vld [vmem:[#allocation4 + $0x188] sm:$0xff]
        %v1365 = vld [vmem:[#allocation4 + $0x190] sm:$0xff]
        %v1366 = vld [vmem:[#allocation4 + $0x198] sm:$0xff]
        %v1367 = vld [vmem:[#allocation4 + $0x1a0] sm:$0xff]
        %v1368 = vld [vmem:[#allocation4 + $0x1a8] sm:$0xff]
        %v1369 = vld [vmem:[#allocation4 + $0x1b0] sm:$0xff]
        %v1370 = vld [vmem:[#allocation4 + $0x1b8] sm:$0xff]
        %v1371 = vld [vmem:[#allocation4 + $0x1c0] sm:$0xff]
        %v1372 = vld [vmem:[#allocation4 + $0x1c8] sm:$0xff]
        %v1373 = vld [vmem:[#allocation4 + $0x1d0] sm:$0xff]
        %v1374 = vld [vmem:[#allocation4 + $0x1d8] sm:$0xff]
        %v1375 = vld [vmem:[#allocation4 + $0x1e0] sm:$0xff]
        %v1376 = vld [vmem:[#allocation4 + $0x1e8] sm:$0xff]
        %v1377 = vld [vmem:[#allocation4 + $0x1f0] sm:$0xff]
        %v1378 = vld [vmem:[#allocation4 + $0x1f8] sm:$0xff]
        %v1379 = vld [vmem:[#allocation4 + $0x200] sm:$0xff]
        %v1380 = vld [vmem:[#allocation4 + $0x208] sm:$0xff]
        %v1381 = vld [vmem:[#allocation4 + $0x210] sm:$0xff]
        %v1382 = vld [vmem:[#allocation4 + $0x218] sm:$0xff]
        %v1383 = vld [vmem:[#allocation4 + $0x220] sm:$0xff]
        %v1384 = vld [vmem:[#allocation4 + $0x228] sm:$0xff]
        %v1385 = vld [vmem:[#allocation4 + $0x230] sm:$0xff]
        %v1386 = vld [vmem:[#allocation4 + $0x238] sm:$0xff]
        %v1387 = vld [vmem:[#allocation4 + $0x240] sm:$0xff]
        %v1388 = vld [vmem:[#allocation4 + $0x248] sm:$0xff]
        %v1389 = vld [vmem:[#allocation4 + $0x250] sm:$0xff]
        %v1390 = vld [vmem:[#allocation4 + $0x258] sm:$0xff]
        %v1391 = vld [vmem:[#allocation4 + $0x260] sm:$0xff]
        %v1392 = vld [vmem:[#allocation4 + $0x268] sm:$0xff]
        %v1393 = vld [vmem:[#allocation4 + $0x270] sm:$0xff]
        %v1394 = vld [vmem:[#allocation4 + $0x278] sm:$0xff]
        %s1395 = smul.u32 %s353, 72
        %s1396 = smul.addr %s1395, 4
        %s1397 = scalar_lea.vmem %s1, %s1396
        %v1398 = vld [vmem:[%s1397] sm:$0xf]
        %v1399 = vld [vmem:[%s1397 + $0x4] sm:$0xf]
        %v1400 = vld [vmem:[%s1397 + $0x8] sm:$0xf]
        %v1401 = vld [vmem:[%s1397 + $0xc] sm:$0xf]
        %v1402 = vld [vmem:[%s1397 + $0x10] sm:$0xf]
        %v1403 = vld [vmem:[%s1397 + $0x14] sm:$0xf]
        %v1404 = vld [vmem:[%s1397 + $0x18] sm:$0xf]
        %v1405 = vld [vmem:[%s1397 + $0x1c] sm:$0xf]
        %v1406 = vld [vmem:[%s1397 + $0x20] sm:$0xf]
        %v1407 = vld [vmem:[%s1397 + $0x24] sm:$0xf]
        %v1408 = vld [vmem:[%s1397 + $0x28] sm:$0xf]
        %v1409 = vld [vmem:[%s1397 + $0x2c] sm:$0xf]
        %v1410 = vld [vmem:[%s1397 + $0x30] sm:$0xf]
        %v1411 = vld [vmem:[%s1397 + $0x34] sm:$0xf]
        %v1412 = vld [vmem:[%s1397 + $0x38] sm:$0xf]
        %v1413 = vld [vmem:[%s1397 + $0x3c] sm:$0xf]
        %v1414 = vld [vmem:[%s1397 + $0x40] sm:$0xf]
        %v1415 = vld [vmem:[%s1397 + $0x44] sm:$0xf]
        %v1416 = vld [vmem:[%s1397 + $0x48] sm:$0xf]
        %v1417 = vld [vmem:[%s1397 + $0x4c] sm:$0xf]
        %v1418 = vld [vmem:[%s1397 + $0x50] sm:$0xf]
        %v1419 = vld [vmem:[%s1397 + $0x54] sm:$0xf]
        %v1420 = vld [vmem:[%s1397 + $0x58] sm:$0xf]
        %v1421 = vld [vmem:[%s1397 + $0x5c] sm:$0xf]
        %v1422 = vld [vmem:[%s1397 + $0x60] sm:$0xf]
        %v1423 = vld [vmem:[%s1397 + $0x64] sm:$0xf]
        %v1424 = vld [vmem:[%s1397 + $0x68] sm:$0xf]
        %v1425 = vld [vmem:[%s1397 + $0x6c] sm:$0xf]
        %v1426 = vld [vmem:[%s1397 + $0x70] sm:$0xf]
        %v1427 = vld [vmem:[%s1397 + $0x74] sm:$0xf]
        %v1428 = vld [vmem:[%s1397 + $0x78] sm:$0xf]
        %v1429 = vld [vmem:[%s1397 + $0x7c] sm:$0xf]
        %v1430 = vld [vmem:[%s1397 + $0x80] sm:$0xf]
        %v1431 = vld [vmem:[%s1397 + $0x84] sm:$0xf]
        %v1432 = vld [vmem:[%s1397 + $0x88] sm:$0xf]
        %v1433 = vld [vmem:[%s1397 + $0x8c] sm:$0xf]
        %v1434 = vld [vmem:[%s1397 + $0x90] sm:$0xf]
        %v1435 = vld [vmem:[%s1397 + $0x94] sm:$0xf]
        %v1436 = vld [vmem:[%s1397 + $0x98] sm:$0xf]
        %v1437 = vld [vmem:[%s1397 + $0x9c] sm:$0xf]
        %v1438 = vld [vmem:[%s1397 + $0xa0] sm:$0xf]
        %v1439 = vld [vmem:[%s1397 + $0xa4] sm:$0xf]
        %v1440 = vld [vmem:[%s1397 + $0xa8] sm:$0xf]
        %v1441 = vld [vmem:[%s1397 + $0xac] sm:$0xf]
        %v1442 = vld [vmem:[%s1397 + $0xb0] sm:$0xf]
        %v1443 = vld [vmem:[%s1397 + $0xb4] sm:$0xf]
        %v1444 = vld [vmem:[%s1397 + $0xb8] sm:$0xf]
        %v1445 = vld [vmem:[%s1397 + $0xbc] sm:$0xf]
        %v1446 = vld [vmem:[%s1397 + $0xc0] sm:$0xf]
        %v1447 = vld [vmem:[%s1397 + $0xc4] sm:$0xf]
        %v1448 = vld [vmem:[%s1397 + $0xc8] sm:$0xf]
        %v1449 = vld [vmem:[%s1397 + $0xcc] sm:$0xf]
        %v1450 = vld [vmem:[%s1397 + $0xd0] sm:$0xf]
        %v1451 = vld [vmem:[%s1397 + $0xd4] sm:$0xf]
        %v1452 = vld [vmem:[%s1397 + $0xd8] sm:$0xf]
        %v1453 = vld [vmem:[%s1397 + $0xdc] sm:$0xf]
        %v1454 = vld [vmem:[%s1397 + $0xe0] sm:$0xf]
        %v1455 = vld [vmem:[%s1397 + $0xe4] sm:$0xf]
        %v1456 = vld [vmem:[%s1397 + $0xe8] sm:$0xf]
        %v1457 = vld [vmem:[%s1397 + $0xec] sm:$0xf]
        %v1458 = vld [vmem:[%s1397 + $0xf0] sm:$0xf]
        %v1459 = vld [vmem:[%s1397 + $0xf4] sm:$0xf]
        %v1460 = vld [vmem:[%s1397 + $0xf8] sm:$0xf]
        %v1461 = vld [vmem:[%s1397 + $0xfc] sm:$0xf]
        %v1462 = vld [vmem:[%s1397 + $0x100] sm:$0xf]
        %v1463 = vld [vmem:[%s1397 + $0x104] sm:$0xf]
        %v1464 = vld [vmem:[%s1397 + $0x108] sm:$0xf]
        %v1465 = vld [vmem:[%s1397 + $0x10c] sm:$0xf]
        %v1466 = vld [vmem:[%s1397 + $0x110] sm:$0xf]
        %v1467 = vld [vmem:[%s1397 + $0x114] sm:$0xf]
        %v1468 = vld [vmem:[%s1397 + $0x118] sm:$0xf]
        %v1469 = vld [vmem:[%s1397 + $0x11c] sm:$0xf]
        %v1542 = vunpack.c.l.b16 %v1398
        %v1543 = vunpack.c.l.b16 %v1399
        %v1544 = vunpack.c.l.b16 %v1400
        %v1545 = vunpack.c.l.b16 %v1401
        %v1546 = vunpack.c.l.b16 %v1402
        %v1547 = vunpack.c.l.b16 %v1403
        %v1548 = vunpack.c.l.b16 %v1404
        %v1549 = vunpack.c.l.b16 %v1405
        %v1550 = vunpack.c.l.b16 %v1406
        %v1551 = vunpack.c.l.b16 %v1407
        %v1552 = vunpack.c.l.b16 %v1408
        %v1553 = vunpack.c.l.b16 %v1409
        %v1554 = vunpack.c.l.b16 %v1410
        %v1555 = vunpack.c.l.b16 %v1411
        %v1556 = vunpack.c.l.b16 %v1412
        %v1557 = vunpack.c.l.b16 %v1413
        %v1558 = vunpack.c.l.b16 %v1414
        %v1559 = vunpack.c.l.b16 %v1415
        %v1560 = vunpack.c.l.b16 %v1416
        %v1561 = vunpack.c.l.b16 %v1417
        %v1562 = vunpack.c.l.b16 %v1418
        %v1563 = vunpack.c.l.b16 %v1419
        %v1564 = vunpack.c.l.b16 %v1420
        %v1565 = vunpack.c.l.b16 %v1421
        %v1566 = vunpack.c.l.b16 %v1422
        %v1567 = vunpack.c.l.b16 %v1423
        %v1568 = vunpack.c.l.b16 %v1424
        %v1569 = vunpack.c.l.b16 %v1425
        %v1570 = vunpack.c.l.b16 %v1426
        %v1571 = vunpack.c.l.b16 %v1427
        %v1572 = vunpack.c.l.b16 %v1428
        %v1573 = vunpack.c.l.b16 %v1429
        %v1574 = vunpack.c.l.b16 %v1430
        %v1575 = vunpack.c.l.b16 %v1431
        %v1576 = vunpack.c.l.b16 %v1432
        %v1577 = vunpack.c.l.b16 %v1433
        %v1578 = vunpack.c.l.b16 %v1434
        %v1579 = vunpack.c.l.b16 %v1435
        %v1580 = vunpack.c.l.b16 %v1436
        %v1581 = vunpack.c.l.b16 %v1437
        %v1582 = vunpack.c.l.b16 %v1438
        %v1583 = vunpack.c.l.b16 %v1439
        %v1584 = vunpack.c.l.b16 %v1440
        %v1585 = vunpack.c.l.b16 %v1441
        %v1586 = vunpack.c.l.b16 %v1442
        %v1587 = vunpack.c.l.b16 %v1443
        %v1588 = vunpack.c.l.b16 %v1444
        %v1589 = vunpack.c.l.b16 %v1445
        %v1590 = vunpack.c.l.b16 %v1446
        %v1591 = vunpack.c.l.b16 %v1447
        %v1592 = vunpack.c.l.b16 %v1448
        %v1593 = vunpack.c.l.b16 %v1449
        %v1594 = vunpack.c.l.b16 %v1450
        %v1595 = vunpack.c.l.b16 %v1451
        %v1596 = vunpack.c.l.b16 %v1452
        %v1597 = vunpack.c.l.b16 %v1453
        %v1598 = vunpack.c.l.b16 %v1454
        %v1599 = vunpack.c.l.b16 %v1455
        %v1600 = vunpack.c.l.b16 %v1456
        %v1601 = vunpack.c.l.b16 %v1457
        %v1602 = vunpack.c.l.b16 %v1458
        %v1603 = vunpack.c.l.b16 %v1459
        %v1604 = vunpack.c.l.b16 %v1460
        %v1605 = vunpack.c.l.b16 %v1461
        %v1606 = vunpack.c.l.b16 %v1462
        %v1607 = vunpack.c.l.b16 %v1463
        %v1608 = vunpack.c.l.b16 %v1464
        %v1609 = vunpack.c.l.b16 %v1465
        %v1610 = vunpack.c.l.b16 %v1466
        %v1611 = vunpack.c.l.b16 %v1467
        %v1612 = vunpack.c.l.b16 %v1468
        %v1613 = vunpack.c.l.b16 %v1469
        %v1614 = vpack.c.b16 %v1543, %v1542
        %v1615 = vpack.c.b16 %v1545, %v1544
        %v1616 = vpack.c.b16 %v1547, %v1546
        %v1617 = vpack.c.b16 %v1549, %v1548
        %v1618 = vpack.c.b16 %v1551, %v1550
        %v1619 = vpack.c.b16 %v1553, %v1552
        %v1620 = vpack.c.b16 %v1555, %v1554
        %v1621 = vpack.c.b16 %v1557, %v1556
        %v1622 = vpack.c.b16 %v1559, %v1558
        %v1623 = vpack.c.b16 %v1561, %v1560
        %v1624 = vpack.c.b16 %v1563, %v1562
        %v1625 = vpack.c.b16 %v1565, %v1564
        %v1626 = vpack.c.b16 %v1567, %v1566
        %v1627 = vpack.c.b16 %v1569, %v1568
        %v1628 = vpack.c.b16 %v1571, %v1570
        %v1629 = vpack.c.b16 %v1573, %v1572
        %v1630 = vpack.c.b16 %v1575, %v1574
        %v1631 = vpack.c.b16 %v1577, %v1576
        %v1632 = vpack.c.b16 %v1579, %v1578
        %v1633 = vpack.c.b16 %v1581, %v1580
        %v1634 = vpack.c.b16 %v1583, %v1582
        %v1635 = vpack.c.b16 %v1585, %v1584
        %v1636 = vpack.c.b16 %v1587, %v1586
        %v1637 = vpack.c.b16 %v1589, %v1588
        %v1638 = vpack.c.b16 %v1591, %v1590
        %v1639 = vpack.c.b16 %v1593, %v1592
        %v1640 = vpack.c.b16 %v1595, %v1594
        %v1641 = vpack.c.b16 %v1597, %v1596
        %v1642 = vpack.c.b16 %v1599, %v1598
        %v1643 = vpack.c.b16 %v1601, %v1600
        %v1644 = vpack.c.b16 %v1603, %v1602
        %v1645 = vpack.c.b16 %v1605, %v1604
        %v1646 = vpack.c.b16 %v1607, %v1606
        %v1647 = vpack.c.b16 %v1609, %v1608
        %v1648 = vpack.c.b16 %v1611, %v1610
        %v1649 = vpack.c.b16 %v1613, %v1612
        %v1687 = vsel %vm172, %v1319, 0
        %v1690 = vsel %vm172, %v1324, 0
        %v1693 = vsel %vm172, %v1329, 0
        %v1696 = vsel %vm172, %v1334, 0
        %v1699 = vsel %vm172, %v1339, 0
        %v1702 = vsel %vm172, %v1344, 0
        %v1705 = vsel %vm172, %v1349, 0
        %v1708 = vsel %vm172, %v1354, 0
        %v1711 = vsel %vm172, %v1359, 0
        %v1714 = vsel %vm172, %v1364, 0
        %v1717 = vsel %vm172, %v1369, 0
        %v1720 = vsel %vm172, %v1374, 0
        %v1723 = vsel %vm172, %v1379, 0
        %v1726 = vsel %vm172, %v1384, 0
        %v1729 = vsel %vm172, %v1389, 0
        %v1732 = vsel %vm172, %v1394, 0
        %1734 = vmatprep.subr.bf16.mxu0 0
        %1735 = vmatpush1.bf16.msra.mxu0 %v1614
        %1736 = vmatprep.subr.bf16.mxu0 0
        %1737 = vmatpush1.bf16.msra.mxu0 %v1615
        %1738 = vmatprep.subr.bf16.mxu0 0
        %1739 = vmatpush1.bf16.msra.mxu0 %v1616
        %1740 = vmatprep.subr.bf16.mxu0 0
        %1741 = vmatpush1.bf16.msra.mxu0 %v1617
        %1742 = vmatprep.subr.bf16.mxu0 0
        %1743 = vmatpush1.bf16.msra.mxu0 %v1618
        %1744 = vmatprep.subr.bf16.mxu0 0
        %1745 = vmatpush1.bf16.msra.mxu0 %v1619
        %1746 = vmatprep.subr.bf16.mxu0 0
        %1747 = vmatpush1.bf16.msra.mxu0 %v1620
        %1748 = vmatprep.subr.bf16.mxu0 0
        %1749 = vmatpush1.bf16.msra.mxu0 %v1621
        %1750 = vmatprep.subr.bf16.mxu0 0
        %1751 = vmatpush1.bf16.msra.mxu0 %v1622
        %1752 = vmatprep.subr.bf16.mxu0 0
        %1753 = vmatpush1.bf16.msra.mxu0 %v1623
        %1754 = vmatprep.subr.bf16.mxu0 0
        %1755 = vmatpush1.bf16.msra.mxu0 %v1624
        %1756 = vmatprep.subr.bf16.mxu0 0
        %1757 = vmatpush1.bf16.msra.mxu0 %v1625
        %1758 = vmatprep.subr.bf16.mxu0 0
        %1759 = vmatpush1.bf16.msra.mxu0 %v1626
        %1760 = vmatprep.subr.bf16.mxu0 0
        %1761 = vmatpush1.bf16.msra.mxu0 %v1627
        %1762 = vmatprep.subr.bf16.mxu0 0
        %1763 = vmatpush1.bf16.msra.mxu0 %v1628
        %1764 = vmatprep.subr.bf16.mxu0 0
        %1765 = vmatpush1.bf16.msra.mxu0 %v1629
        %1766 = vmatprep.mubr.bf16.mxu0 %v1316
        %1767 = vmatmul.mubr.bf16.gmra.mrb[0].mxu0 %v1315
        %v1768 = vpop.f32.mrb[0].mxu0
        %v1769 = vadd.f32 0.0, %v1768
        %v1770 = vpop.f32.mrb[0].mxu0
        %v1771 = vpop.f32.mrb[0].mxu0
        %v1772 = vadd.f32 0.0, %v1771
        %v1773 = vpop.f32.mrb[0].mxu0
        %1774 = vmatprep.mubr.bf16.mxu0 %v1321
        %1775 = vmatmul.mubr.bf16.gmra.mrb[0].mxu0 %v1320
        %v1776 = vpop.f32.mrb[0].mxu0
        %v1777 = vadd.f32 0.0, %v1776
        %v1778 = vpop.f32.mrb[0].mxu0
        %v1779 = vpop.f32.mrb[0].mxu0
        %v1780 = vadd.f32 0.0, %v1779
        %v1781 = vpop.f32.mrb[0].mxu0
        %1782 = vmatprep.mubr.bf16.mxu0 %v1326
        %1783 = vmatmul.mubr.bf16.gmra.mrb[0].mxu0 %v1325
        %v1784 = vpop.f32.mrb[0].mxu0
        %v1785 = vadd.f32 0.0, %v1784
        %v1786 = vpop.f32.mrb[0].mxu0
        %v1787 = vpop.f32.mrb[0].mxu0
        %v1788 = vadd.f32 0.0, %v1787
        %v1789 = vpop.f32.mrb[0].mxu0
        %1790 = vmatprep.mubr.bf16.mxu0 %v1331
        %1791 = vmatmul.mubr.bf16.gmra.mrb[0].mxu0 %v1330
        %v1792 = vpop.f32.mrb[0].mxu0
        %v1793 = vadd.f32 0.0, %v1792
        %v1794 = vpop.f32.mrb[0].mxu0
        %v1795 = vpop.f32.mrb[0].mxu0
        %v1796 = vadd.f32 0.0, %v1795
        %v1797 = vpop.f32.mrb[0].mxu0
        %1798 = vmatprep.mubr.bf16.mxu0 %v1336
        %1799 = vmatmul.mubr.bf16.gmra.mrb[0].mxu0 %v1335
        %v1800 = vpop.f32.mrb[0].mxu0
        %v1801 = vadd.f32 0.0, %v1800
        %v1802 = vpop.f32.mrb[0].mxu0
        %v1803 = vpop.f32.mrb[0].mxu0
        %v1804 = vadd.f32 0.0, %v1803
        %v1805 = vpop.f32.mrb[0].mxu0
        %1806 = vmatprep.mubr.bf16.mxu0 %v1341
        %1807 = vmatmul.mubr.bf16.gmra.mrb[0].mxu0 %v1340
        %v1808 = vpop.f32.mrb[0].mxu0
        %v1809 = vadd.f32 0.0, %v1808
        %v1810 = vpop.f32.mrb[0].mxu0
        %v1811 = vpop.f32.mrb[0].mxu0
        %v1812 = vadd.f32 0.0, %v1811
        %v1813 = vpop.f32.mrb[0].mxu0
        %1814 = vmatprep.mubr.bf16.mxu0 %v1346
        %1815 = vmatmul.mubr.bf16.gmra.mrb[0].mxu0 %v1345
        %v1816 = vpop.f32.mrb[0].mxu0
        %v1817 = vadd.f32 0.0, %v1816
        %v1818 = vpop.f32.mrb[0].mxu0
        %v1819 = vpop.f32.mrb[0].mxu0
        %v1820 = vadd.f32 0.0, %v1819
        %v1821 = vpop.f32.mrb[0].mxu0
        %1822 = vmatprep.mubr.bf16.mxu0 %v1351
        %1823 = vmatmul.mubr.bf16.gmra.mrb[0].mxu0 %v1350
        %v1824 = vpop.f32.mrb[0].mxu0
        %v1825 = vadd.f32 0.0, %v1824
        %v1826 = vpop.f32.mrb[0].mxu0
        %v1827 = vpop.f32.mrb[0].mxu0
        %v1828 = vadd.f32 0.0, %v1827
        %v1829 = vpop.f32.mrb[0].mxu0
        %1830 = vmatprep.mubr.bf16.mxu0 %v1356
        %1831 = vmatmul.mubr.bf16.gmra.mrb[0].mxu0 %v1355
        %v1832 = vpop.f32.mrb[0].mxu0
        %v1833 = vadd.f32 0.0, %v1832
        %v1834 = vpop.f32.mrb[0].mxu0
        %v1835 = vpop.f32.mrb[0].mxu0
        %v1836 = vadd.f32 0.0, %v1835
        %v1837 = vpop.f32.mrb[0].mxu0
        %1838 = vmatprep.mubr.bf16.mxu0 %v1361
        %1839 = vmatmul.mubr.bf16.gmra.mrb[0].mxu0 %v1360
        %v1840 = vpop.f32.mrb[0].mxu0
        %v1841 = vadd.f32 0.0, %v1840
        %v1842 = vpop.f32.mrb[0].mxu0
        %v1843 = vpop.f32.mrb[0].mxu0
        %v1844 = vadd.f32 0.0, %v1843
        %v1845 = vpop.f32.mrb[0].mxu0
        %1846 = vmatprep.mubr.bf16.mxu0 %v1366
        %1847 = vmatmul.mubr.bf16.gmra.mrb[0].mxu0 %v1365
        %v1848 = vpop.f32.mrb[0].mxu0
        %v1849 = vadd.f32 0.0, %v1848
        %v1850 = vpop.f32.mrb[0].mxu0
        %v1851 = vpop.f32.mrb[0].mxu0
        %v1852 = vadd.f32 0.0, %v1851
        %v1853 = vpop.f32.mrb[0].mxu0
        %1854 = vmatprep.mubr.bf16.mxu0 %v1371
        %1855 = vmatmul.mubr.bf16.gmra.mrb[0].mxu0 %v1370
        %v1856 = vpop.f32.mrb[0].mxu0
        %v1857 = vadd.f32 0.0, %v1856
        %v1858 = vpop.f32.mrb[0].mxu0
        %v1859 = vpop.f32.mrb[0].mxu0
        %v1860 = vadd.f32 0.0, %v1859
        %v1861 = vpop.f32.mrb[0].mxu0
        %1862 = vmatprep.mubr.bf16.mxu0 %v1376
        %1863 = vmatmul.mubr.bf16.gmra.mrb[0].mxu0 %v1375
        %v1864 = vpop.f32.mrb[0].mxu0
        %v1865 = vadd.f32 0.0, %v1864
        %v1866 = vpop.f32.mrb[0].mxu0
        %v1867 = vpop.f32.mrb[0].mxu0
        %v1868 = vadd.f32 0.0, %v1867
        %v1869 = vpop.f32.mrb[0].mxu0
        %1870 = vmatprep.mubr.bf16.mxu0 %v1381
        %1871 = vmatmul.mubr.bf16.gmra.mrb[0].mxu0 %v1380
        %v1872 = vpop.f32.mrb[0].mxu0
        %v1873 = vadd.f32 0.0, %v1872
        %v1874 = vpop.f32.mrb[0].mxu0
        %v1875 = vpop.f32.mrb[0].mxu0
        %v1876 = vadd.f32 0.0, %v1875
        %v1877 = vpop.f32.mrb[0].mxu0
        %1878 = vmatprep.mubr.bf16.mxu0 %v1386
        %1879 = vmatmul.mubr.bf16.gmra.mrb[0].mxu0 %v1385
        %v1880 = vpop.f32.mrb[0].mxu0
        %v1881 = vadd.f32 0.0, %v1880
        %v1882 = vpop.f32.mrb[0].mxu0
        %v1883 = vpop.f32.mrb[0].mxu0
        %v1884 = vadd.f32 0.0, %v1883
        %v1885 = vpop.f32.mrb[0].mxu0
        %1886 = vmatprep.mubr.bf16.mxu0 %v1391
        %1887 = vmatmul.mubr.bf16.gmra.mrb[0].mxu0 %v1390
        %v1888 = vpop.f32.mrb[0].mxu0
        %v1889 = vadd.f32 0.0, %v1888
        %v1890 = vpop.f32.mrb[0].mxu0
        %v1891 = vpop.f32.mrb[0].mxu0
        %v1892 = vadd.f32 0.0, %v1891
        %v1893 = vpop.f32.mrb[0].mxu0
        %1894 = vdwg.mxu0
        %1895 = vmatprep.subr.bf16.mxu0 0
        %1896 = vmatpush1.bf16.msra.mxu0 %v1630
        %1897 = vmatprep.subr.bf16.mxu0 0
        %1898 = vmatpush1.bf16.msra.mxu0 %v1631
        %1899 = vmatprep.subr.bf16.mxu0 0
        %1900 = vmatpush1.bf16.msra.mxu0 %v1632
        %1901 = vmatprep.subr.bf16.mxu0 0
        %1902 = vmatpush1.bf16.msra.mxu0 %v1633
        %1903 = vmatprep.subr.bf16.mxu0 0
        %1904 = vmatpush1.bf16.msra.mxu0 %v1634
        %1905 = vmatprep.subr.bf16.mxu0 0
        %1906 = vmatpush1.bf16.msra.mxu0 %v1635
        %1907 = vmatprep.subr.bf16.mxu0 0
        %1908 = vmatpush1.bf16.msra.mxu0 %v1636
        %1909 = vmatprep.subr.bf16.mxu0 0
        %1910 = vmatpush1.bf16.msra.mxu0 %v1637
        %1911 = vmatprep.subr.bf16.mxu0 0
        %1912 = vmatpush1.bf16.msra.mxu0 %v1638
        %1913 = vmatprep.subr.bf16.mxu0 0
        %1914 = vmatpush1.bf16.msra.mxu0 %v1639
        %1915 = vmatprep.subr.bf16.mxu0 0
        %1916 = vmatpush1.bf16.msra.mxu0 %v1640
        %1917 = vmatprep.subr.bf16.mxu0 0
        %1918 = vmatpush1.bf16.msra.mxu0 %v1641
        %1919 = vmatprep.subr.bf16.mxu0 0
        %1920 = vmatpush1.bf16.msra.mxu0 %v1642
        %1921 = vmatprep.subr.bf16.mxu0 0
        %1922 = vmatpush1.bf16.msra.mxu0 %v1643
        %1923 = vmatprep.subr.bf16.mxu0 0
        %1924 = vmatpush1.bf16.msra.mxu0 %v1644
        %1925 = vmatprep.subr.bf16.mxu0 0
        %1926 = vmatpush1.bf16.msra.mxu0 %v1645
        %1927 = vmatprep.mubr.bf16.mxu0 %v1318
        %1928 = vmatmul.mubr.bf16.gmra.mrb[0].mxu0 %v1317
        %v1929 = vpop.f32.mrb[0].mxu0
        %v1930 = vadd.f32 %v1769, %v1929
        %v1931 = vpop.f32.mrb[0].mxu0
        %v1932 = vpop.f32.mrb[0].mxu0
        %v1933 = vadd.f32 %v1772, %v1932
        %v1934 = vpop.f32.mrb[0].mxu0
        %1935 = vmatprep.mubr.bf16.mxu0 %v1323
        %1936 = vmatmul.mubr.bf16.gmra.mrb[0].mxu0 %v1322
        %v1937 = vpop.f32.mrb[0].mxu0
        %v1938 = vadd.f32 %v1777, %v1937
        %v1939 = vpop.f32.mrb[0].mxu0
        %v1940 = vpop.f32.mrb[0].mxu0
        %v1941 = vadd.f32 %v1780, %v1940
        %v1942 = vpop.f32.mrb[0].mxu0
        %1943 = vmatprep.mubr.bf16.mxu0 %v1328
        %1944 = vmatmul.mubr.bf16.gmra.mrb[0].mxu0 %v1327
        %v1945 = vpop.f32.mrb[0].mxu0
        %v1946 = vadd.f32 %v1785, %v1945
        %v1947 = vpop.f32.mrb[0].mxu0
        %v1948 = vpop.f32.mrb[0].mxu0
        %v1949 = vadd.f32 %v1788, %v1948
        %v1950 = vpop.f32.mrb[0].mxu0
        %1951 = vmatprep.mubr.bf16.mxu0 %v1333
        %1952 = vmatmul.mubr.bf16.gmra.mrb[0].mxu0 %v1332
        %v1953 = vpop.f32.mrb[0].mxu0
        %v1954 = vadd.f32 %v1793, %v1953
        %v1955 = vpop.f32.mrb[0].mxu0
        %v1956 = vpop.f32.mrb[0].mxu0
        %v1957 = vadd.f32 %v1796, %v1956
        %v1958 = vpop.f32.mrb[0].mxu0
        %1959 = vmatprep.mubr.bf16.mxu0 %v1338
        %1960 = vmatmul.mubr.bf16.gmra.mrb[0].mxu0 %v1337
        %v1961 = vpop.f32.mrb[0].mxu0
        %v1962 = vadd.f32 %v1801, %v1961
        %v1963 = vpop.f32.mrb[0].mxu0
        %v1964 = vpop.f32.mrb[0].mxu0
        %v1965 = vadd.f32 %v1804, %v1964
        %v1966 = vpop.f32.mrb[0].mxu0
        %1967 = vmatprep.mubr.bf16.mxu0 %v1343
        %1968 = vmatmul.mubr.bf16.gmra.mrb[0].mxu0 %v1342
        %v1969 = vpop.f32.mrb[0].mxu0
        %v1970 = vadd.f32 %v1809, %v1969
        %v1971 = vpop.f32.mrb[0].mxu0
        %v1972 = vpop.f32.mrb[0].mxu0
        %v1973 = vadd.f32 %v1812, %v1972
        %v1974 = vpop.f32.mrb[0].mxu0
        %1975 = vmatprep.mubr.bf16.mxu0 %v1348
        %1976 = vmatmul.mubr.bf16.gmra.mrb[0].mxu0 %v1347
        %v1977 = vpop.f32.mrb[0].mxu0
        %v1978 = vadd.f32 %v1817, %v1977
        %v1979 = vpop.f32.mrb[0].mxu0
        %v1980 = vpop.f32.mrb[0].mxu0
        %v1981 = vadd.f32 %v1820, %v1980
        %v1982 = vpop.f32.mrb[0].mxu0
        %1983 = vmatprep.mubr.bf16.mxu0 %v1353
        %1984 = vmatmul.mubr.bf16.gmra.mrb[0].mxu0 %v1352
        %v1985 = vpop.f32.mrb[0].mxu0
        %v1986 = vadd.f32 %v1825, %v1985
        %v1987 = vpop.f32.mrb[0].mxu0
        %v1988 = vpop.f32.mrb[0].mxu0
        %v1989 = vadd.f32 %v1828, %v1988
        %v1990 = vpop.f32.mrb[0].mxu0
        %1991 = vmatprep.mubr.bf16.mxu0 %v1358
        %1992 = vmatmul.mubr.bf16.gmra.mrb[0].mxu0 %v1357
        %v1993 = vpop.f32.mrb[0].mxu0
        %v1994 = vadd.f32 %v1833, %v1993
        %v1995 = vpop.f32.mrb[0].mxu0
        %v1996 = vpop.f32.mrb[0].mxu0
        %v1997 = vadd.f32 %v1836, %v1996
        %v1998 = vpop.f32.mrb[0].mxu0
        %1999 = vmatprep.mubr.bf16.mxu0 %v1363
        %2000 = vmatmul.mubr.bf16.gmra.mrb[0].mxu0 %v1362
        %v2001 = vpop.f32.mrb[0].mxu0
        %v2002 = vadd.f32 %v1841, %v2001
        %v2003 = vpop.f32.mrb[0].mxu0
        %v2004 = vpop.f32.mrb[0].mxu0
        %v2005 = vadd.f32 %v1844, %v2004
        %v2006 = vpop.f32.mrb[0].mxu0
        %2007 = vmatprep.mubr.bf16.mxu0 %v1368
        %2008 = vmatmul.mubr.bf16.gmra.mrb[0].mxu0 %v1367
        %v2009 = vpop.f32.mrb[0].mxu0
        %v2010 = vadd.f32 %v1849, %v2009
        %v2011 = vpop.f32.mrb[0].mxu0
        %v2012 = vpop.f32.mrb[0].mxu0
        %v2013 = vadd.f32 %v1852, %v2012
        %v2014 = vpop.f32.mrb[0].mxu0
        %2015 = vmatprep.mubr.bf16.mxu0 %v1373
        %2016 = vmatmul.mubr.bf16.gmra.mrb[0].mxu0 %v1372
        %v2017 = vpop.f32.mrb[0].mxu0
        %v2018 = vadd.f32 %v1857, %v2017
        %v2019 = vpop.f32.mrb[0].mxu0
        %v2020 = vpop.f32.mrb[0].mxu0
        %v2021 = vadd.f32 %v1860, %v2020
        %v2022 = vpop.f32.mrb[0].mxu0
        %2023 = vmatprep.mubr.bf16.mxu0 %v1378
        %2024 = vmatmul.mubr.bf16.gmra.mrb[0].mxu0 %v1377
        %v2025 = vpop.f32.mrb[0].mxu0
        %v2026 = vadd.f32 %v1865, %v2025
        %v2027 = vpop.f32.mrb[0].mxu0
        %v2028 = vpop.f32.mrb[0].mxu0
        %v2029 = vadd.f32 %v1868, %v2028
        %v2030 = vpop.f32.mrb[0].mxu0
        %2031 = vmatprep.mubr.bf16.mxu0 %v1383
        %2032 = vmatmul.mubr.bf16.gmra.mrb[0].mxu0 %v1382
        %v2033 = vpop.f32.mrb[0].mxu0
        %v2034 = vadd.f32 %v1873, %v2033
        %v2035 = vpop.f32.mrb[0].mxu0
        %v2036 = vpop.f32.mrb[0].mxu0
        %v2037 = vadd.f32 %v1876, %v2036
        %v2038 = vpop.f32.mrb[0].mxu0
        %2039 = vmatprep.mubr.bf16.mxu0 %v1388
        %2040 = vmatmul.mubr.bf16.gmra.mrb[0].mxu0 %v1387
        %v2041 = vpop.f32.mrb[0].mxu0
        %v2042 = vadd.f32 %v1881, %v2041
        %v2043 = vpop.f32.mrb[0].mxu0
        %v2044 = vpop.f32.mrb[0].mxu0
        %v2045 = vadd.f32 %v1884, %v2044
        %v2046 = vpop.f32.mrb[0].mxu0
        %2047 = vmatprep.mubr.bf16.mxu0 %v1393
        %2048 = vmatmul.mubr.bf16.gmra.mrb[0].mxu0 %v1392
        %v2049 = vpop.f32.mrb[0].mxu0
        %v2050 = vadd.f32 %v1889, %v2049
        %v2051 = vpop.f32.mrb[0].mxu0
        %v2052 = vpop.f32.mrb[0].mxu0
        %v2053 = vadd.f32 %v1892, %v2052
        %v2054 = vpop.f32.mrb[0].mxu0
        %2055 = vdwg.mxu0
        %2056 = vmatprep.subr.bf16.mxu0 0
        %2057 = vmatpush1.bf16.msra.mxu0 %v1646
        %2058 = vmatprep.subr.bf16.mxu0 0
        %2059 = vmatpush1.bf16.msra.mxu0 %v1647
        %2060 = vmatprep.subr.bf16.mxu0 0
        %2061 = vmatpush1.bf16.msra.mxu0 %v1648
        %2062 = vmatprep.subr.bf16.mxu0 0
        %2063 = vmatpush1.bf16.msra.mxu0 %v1649
        %2064 = vmatprep.subr.bf16.mxu0 0
        %2065 = vmatpush1.bf16.msra.mxu0 0
        %2066 = vmatprep.subr.bf16.mxu0 0
        %2067 = vmatpush1.bf16.msra.mxu0 0
        %2068 = vmatprep.subr.bf16.mxu0 0
        %2069 = vmatpush1.bf16.msra.mxu0 0
        %2070 = vmatprep.subr.bf16.mxu0 0
        %2071 = vmatpush1.bf16.msra.mxu0 0
        %2072 = vmatprep.subr.bf16.mxu0 0
        %2073 = vmatpush1.bf16.msra.mxu0 0
        %2074 = vmatprep.subr.bf16.mxu0 0
        %2075 = vmatpush1.bf16.msra.mxu0 0
        %2076 = vmatprep.subr.bf16.mxu0 0
        %2077 = vmatpush1.bf16.msra.mxu0 0
        %2078 = vmatprep.subr.bf16.mxu0 0
        %2079 = vmatpush1.bf16.msra.mxu0 0
        %2080 = vmatprep.subr.bf16.mxu0 0
        %2081 = vmatpush1.bf16.msra.mxu0 0
        %2082 = vmatprep.subr.bf16.mxu0 0
        %2083 = vmatpush1.bf16.msra.mxu0 0
        %2084 = vmatprep.subr.bf16.mxu0 0
        %2085 = vmatpush1.bf16.msra.mxu0 0
        %2086 = vmatprep.subr.bf16.mxu0 0
        %2087 = vmatpush1.bf16.msra.mxu0 0
        %2088 = vmatprep.mubr.bf16.mxu0 0
        %2089 = vmatmul.mubr.bf16.gmra.mrb[0].mxu0 %v1687
        %v2090 = vpop.f32.mrb[0].mxu0
        %v2091 = vadd.f32 %v1930, %v2090
        %v2092 = vpop.f32.mrb[0].mxu0
        %v2093 = vpop.f32.mrb[0].mxu0
        %v2094 = vadd.f32 %v1933, %v2093
        %v2095 = vpop.f32.mrb[0].mxu0
        %2096 = vmatprep.mubr.bf16.mxu0 0
        %2097 = vmatmul.mubr.bf16.gmra.mrb[0].mxu0 %v1690
        %v2098 = vpop.f32.mrb[0].mxu0
        %v2099 = vadd.f32 %v1938, %v2098
        %v2100 = vpop.f32.mrb[0].mxu0
        %v2101 = vpop.f32.mrb[0].mxu0
        %v2102 = vadd.f32 %v1941, %v2101
        %v2103 = vpop.f32.mrb[0].mxu0
        %2104 = vmatprep.mubr.bf16.mxu0 0
        %2105 = vmatmul.mubr.bf16.gmra.mrb[0].mxu0 %v1693
        %v2106 = vpop.f32.mrb[0].mxu0
        %v2107 = vadd.f32 %v1946, %v2106
        %v2108 = vpop.f32.mrb[0].mxu0
        %v2109 = vpop.f32.mrb[0].mxu0
        %v2110 = vadd.f32 %v1949, %v2109
        %v2111 = vpop.f32.mrb[0].mxu0
        %2112 = vmatprep.mubr.bf16.mxu0 0
        %2113 = vmatmul.mubr.bf16.gmra.mrb[0].mxu0 %v1696
        %v2114 = vpop.f32.mrb[0].mxu0
        %v2115 = vadd.f32 %v1954, %v2114
        %v2116 = vpop.f32.mrb[0].mxu0
        %v2117 = vpop.f32.mrb[0].mxu0
        %v2118 = vadd.f32 %v1957, %v2117
        %v2119 = vpop.f32.mrb[0].mxu0
        %2120 = vmatprep.mubr.bf16.mxu0 0
        %2121 = vmatmul.mubr.bf16.gmra.mrb[0].mxu0 %v1699
        %v2122 = vpop.f32.mrb[0].mxu0
        %v2123 = vadd.f32 %v1962, %v2122
        %v2124 = vpop.f32.mrb[0].mxu0
        %v2125 = vpop.f32.mrb[0].mxu0
        %v2126 = vadd.f32 %v1965, %v2125
        %v2127 = vpop.f32.mrb[0].mxu0
        %2128 = vmatprep.mubr.bf16.mxu0 0
        %2129 = vmatmul.mubr.bf16.gmra.mrb[0].mxu0 %v1702
        %v2130 = vpop.f32.mrb[0].mxu0
        %v2131 = vadd.f32 %v1970, %v2130
        %v2132 = vpop.f32.mrb[0].mxu0
        %v2133 = vpop.f32.mrb[0].mxu0
        %v2134 = vadd.f32 %v1973, %v2133
        %v2135 = vpop.f32.mrb[0].mxu0
        %2136 = vmatprep.mubr.bf16.mxu0 0
        %2137 = vmatmul.mubr.bf16.gmra.mrb[0].mxu0 %v1705
        %v2138 = vpop.f32.mrb[0].mxu0
        %v2139 = vadd.f32 %v1978, %v2138
        %v2140 = vpop.f32.mrb[0].mxu0
        %v2141 = vpop.f32.mrb[0].mxu0
        %v2142 = vadd.f32 %v1981, %v2141
        %v2143 = vpop.f32.mrb[0].mxu0
        %2144 = vmatprep.mubr.bf16.mxu0 0
        %2145 = vmatmul.mubr.bf16.gmra.mrb[0].mxu0 %v1708
        %v2146 = vpop.f32.mrb[0].mxu0
        %v2147 = vadd.f32 %v1986, %v2146
        %v2148 = vpop.f32.mrb[0].mxu0
        %v2149 = vpop.f32.mrb[0].mxu0
        %v2150 = vadd.f32 %v1989, %v2149
        %v2151 = vpop.f32.mrb[0].mxu0
        %2152 = vmatprep.mubr.bf16.mxu0 0
        %2153 = vmatmul.mubr.bf16.gmra.mrb[0].mxu0 %v1711
        %v2154 = vpop.f32.mrb[0].mxu0
        %v2155 = vadd.f32 %v1994, %v2154
        %v2156 = vpop.f32.mrb[0].mxu0
        %v2157 = vpop.f32.mrb[0].mxu0
        %v2158 = vadd.f32 %v1997, %v2157
        %v2159 = vpop.f32.mrb[0].mxu0
        %2160 = vmatprep.mubr.bf16.mxu0 0
        %2161 = vmatmul.mubr.bf16.gmra.mrb[0].mxu0 %v1714
        %v2162 = vpop.f32.mrb[0].mxu0
        %v2163 = vadd.f32 %v2002, %v2162
        %v2164 = vpop.f32.mrb[0].mxu0
        %v2165 = vpop.f32.mrb[0].mxu0
        %v2166 = vadd.f32 %v2005, %v2165
        %v2167 = vpop.f32.mrb[0].mxu0
        %2168 = vmatprep.mubr.bf16.mxu0 0
        %2169 = vmatmul.mubr.bf16.gmra.mrb[0].mxu0 %v1717
        %v2170 = vpop.f32.mrb[0].mxu0
        %v2171 = vadd.f32 %v2010, %v2170
        %v2172 = vpop.f32.mrb[0].mxu0
        %v2173 = vpop.f32.mrb[0].mxu0
        %v2174 = vadd.f32 %v2013, %v2173
        %v2175 = vpop.f32.mrb[0].mxu0
        %2176 = vmatprep.mubr.bf16.mxu0 0
        %2177 = vmatmul.mubr.bf16.gmra.mrb[0].mxu0 %v1720
        %v2178 = vpop.f32.mrb[0].mxu0
        %v2179 = vadd.f32 %v2018, %v2178
        %v2180 = vpop.f32.mrb[0].mxu0
        %v2181 = vpop.f32.mrb[0].mxu0
        %v2182 = vadd.f32 %v2021, %v2181
        %v2183 = vpop.f32.mrb[0].mxu0
        %2184 = vmatprep.mubr.bf16.mxu0 0
        %2185 = vmatmul.mubr.bf16.gmra.mrb[0].mxu0 %v1723
        %v2186 = vpop.f32.mrb[0].mxu0
        %v2187 = vadd.f32 %v2026, %v2186
        %v2188 = vpop.f32.mrb[0].mxu0
        %v2189 = vpop.f32.mrb[0].mxu0
        %v2190 = vadd.f32 %v2029, %v2189
        %v2191 = vpop.f32.mrb[0].mxu0
        %2192 = vmatprep.mubr.bf16.mxu0 0
        %2193 = vmatmul.mubr.bf16.gmra.mrb[0].mxu0 %v1726
        %v2194 = vpop.f32.mrb[0].mxu0
        %v2195 = vadd.f32 %v2034, %v2194
        %v2196 = vpop.f32.mrb[0].mxu0
        %v2197 = vpop.f32.mrb[0].mxu0
        %v2198 = vadd.f32 %v2037, %v2197
        %v2199 = vpop.f32.mrb[0].mxu0
        %2200 = vmatprep.mubr.bf16.mxu0 0
        %2201 = vmatmul.mubr.bf16.gmra.mrb[0].mxu0 %v1729
        %v2202 = vpop.f32.mrb[0].mxu0
        %v2203 = vadd.f32 %v2042, %v2202
        %v2204 = vpop.f32.mrb[0].mxu0
        %v2205 = vpop.f32.mrb[0].mxu0
        %v2206 = vadd.f32 %v2045, %v2205
        %v2207 = vpop.f32.mrb[0].mxu0
        %2208 = vmatprep.mubr.bf16.mxu0 0
        %2209 = vmatmul.mubr.bf16.gmra.mrb[0].mxu0 %v1732
        %v2210 = vpop.f32.mrb[0].mxu0
        %v2211 = vadd.f32 %v2050, %v2210
        %v2212 = vpop.f32.mrb[0].mxu0
        %v2213 = vpop.f32.mrb[0].mxu0
        %v2214 = vadd.f32 %v2053, %v2213
        %v2215 = vpop.f32.mrb[0].mxu0
        %2216 = vdwg.mxu0
        %vm2217 = vcmp.ge.f32.partialorder %v2091, 0.0
        %vm2218 = vcmp.ge.f32.partialorder %v2094, 0.0
        %vm2219 = vcmp.ge.f32.partialorder %v2099, 0.0
        %vm2220 = vcmp.ge.f32.partialorder %v2102, 0.0
        %vm2221 = vcmp.ge.f32.partialorder %v2107, 0.0
        %vm2222 = vcmp.ge.f32.partialorder %v2110, 0.0
        %vm2223 = vcmp.ge.f32.partialorder %v2115, 0.0
        %vm2224 = vcmp.ge.f32.partialorder %v2118, 0.0
        %vm2225 = vcmp.ge.f32.partialorder %v2123, 0.0
        %vm2226 = vcmp.ge.f32.partialorder %v2126, 0.0
        %vm2227 = vcmp.ge.f32.partialorder %v2131, 0.0
        %vm2228 = vcmp.ge.f32.partialorder %v2134, 0.0
        %vm2229 = vcmp.ge.f32.partialorder %v2139, 0.0
        %vm2230 = vcmp.ge.f32.partialorder %v2142, 0.0
        %vm2231 = vcmp.ge.f32.partialorder %v2147, 0.0
        %vm2232 = vcmp.ge.f32.partialorder %v2150, 0.0
        %vm2233 = vcmp.ge.f32.partialorder %v2155, 0.0
        %vm2234 = vcmp.ge.f32.partialorder %v2158, 0.0
        %vm2235 = vcmp.ge.f32.partialorder %v2163, 0.0
        %vm2236 = vcmp.ge.f32.partialorder %v2166, 0.0
        %vm2237 = vcmp.ge.f32.partialorder %v2171, 0.0
        %vm2238 = vcmp.ge.f32.partialorder %v2174, 0.0
        %vm2239 = vcmp.ge.f32.partialorder %v2179, 0.0
        %vm2240 = vcmp.ge.f32.partialorder %v2182, 0.0
        %vm2241 = vcmp.ge.f32.partialorder %v2187, 0.0
        %vm2242 = vcmp.ge.f32.partialorder %v2190, 0.0
        %vm2243 = vcmp.ge.f32.partialorder %v2195, 0.0
        %vm2244 = vcmp.ge.f32.partialorder %v2198, 0.0
        %vm2245 = vcmp.ge.f32.partialorder %v2203, 0.0
        %vm2246 = vcmp.ge.f32.partialorder %v2206, 0.0
        %vm2247 = vcmp.ge.f32.partialorder %v2211, 0.0
        %vm2248 = vcmp.ge.f32.partialorder %v2214, 0.0
        %v2249 = vmul.f32 %v2091, 0.2
        %v2250 = vmul.f32 %v2094, 0.2
        %v2251 = vmul.f32 %v2099, 0.2
        %v2252 = vmul.f32 %v2102, 0.2
        %v2253 = vmul.f32 %v2107, 0.2
        %v2254 = vmul.f32 %v2110, 0.2
        %v2255 = vmul.f32 %v2115, 0.2
        %v2256 = vmul.f32 %v2118, 0.2
        %v2257 = vmul.f32 %v2123, 0.2
        %v2258 = vmul.f32 %v2126, 0.2
        %v2259 = vmul.f32 %v2131, 0.2
        %v2260 = vmul.f32 %v2134, 0.2
        %v2261 = vmul.f32 %v2139, 0.2
        %v2262 = vmul.f32 %v2142, 0.2
        %v2263 = vmul.f32 %v2147, 0.2
        %v2264 = vmul.f32 %v2150, 0.2
        %v2265 = vmul.f32 %v2155, 0.2
        %v2266 = vmul.f32 %v2158, 0.2
        %v2267 = vmul.f32 %v2163, 0.2
        %v2268 = vmul.f32 %v2166, 0.2
        %v2269 = vmul.f32 %v2171, 0.2
        %v2270 = vmul.f32 %v2174, 0.2
        %v2271 = vmul.f32 %v2179, 0.2
        %v2272 = vmul.f32 %v2182, 0.2
        %v2273 = vmul.f32 %v2187, 0.2
        %v2274 = vmul.f32 %v2190, 0.2
        %v2275 = vmul.f32 %v2195, 0.2
        %v2276 = vmul.f32 %v2198, 0.2
        %v2277 = vmul.f32 %v2203, 0.2
        %v2278 = vmul.f32 %v2206, 0.2
        %v2279 = vmul.f32 %v2211, 0.2
        %v2280 = vmul.f32 %v2214, 0.2
        %v2281 = vsel %vm2217, %v2091, %v2249
        %v2282 = vsel %vm2218, %v2094, %v2250
        %v2283 = vsel %vm2219, %v2099, %v2251
        %v2284 = vsel %vm2220, %v2102, %v2252
        %v2285 = vsel %vm2221, %v2107, %v2253
        %v2286 = vsel %vm2222, %v2110, %v2254
        %v2287 = vsel %vm2223, %v2115, %v2255
        %v2288 = vsel %vm2224, %v2118, %v2256
        %v2289 = vsel %vm2225, %v2123, %v2257
        %v2290 = vsel %vm2226, %v2126, %v2258
        %v2291 = vsel %vm2227, %v2131, %v2259
        %v2292 = vsel %vm2228, %v2134, %v2260
        %v2293 = vsel %vm2229, %v2139, %v2261
        %v2294 = vsel %vm2230, %v2142, %v2262
        %v2295 = vsel %vm2231, %v2147, %v2263
        %v2296 = vsel %vm2232, %v2150, %v2264
        %v2297 = vsel %vm2233, %v2155, %v2265
        %v2298 = vsel %vm2234, %v2158, %v2266
        %v2299 = vsel %vm2235, %v2163, %v2267
        %v2300 = vsel %vm2236, %v2166, %v2268
        %v2301 = vsel %vm2237, %v2171, %v2269
        %v2302 = vsel %vm2238, %v2174, %v2270
        %v2303 = vsel %vm2239, %v2179, %v2271
        %v2304 = vsel %vm2240, %v2182, %v2272
        %v2305 = vsel %vm2241, %v2187, %v2273
        %v2306 = vsel %vm2242, %v2190, %v2274
        %v2307 = vsel %vm2243, %v2195, %v2275
        %v2308 = vsel %vm2244, %v2198, %v2276
        %v2309 = vsel %vm2245, %v2203, %v2277
        %v2310 = vsel %vm2246, %v2206, %v2278
        %v2311 = vsel %vm2247, %v2211, %v2279
        %v2312 = vsel %vm2248, %v2214, %v2280
        %s2313 = scalar_lea.vmem [#allocation3], 24
        %2314 = vst.msk [vmem:[%s2313 + $0x1] sm:$0xff] %vm172, %v2281
        %2315 = vst.msk [vmem:[%s2313 + $0x9] sm:$0xff] %vm172, %v2282
        %2316 = vst.msk [vmem:[%s2313 + $0x19] sm:$0xff] %vm172, %v2283
        %2317 = vst.msk [vmem:[%s2313 + $0x21] sm:$0xff] %vm172, %v2284
        %2318 = vst.msk [vmem:[%s2313 + $0x31] sm:$0xff] %vm172, %v2285
        %2319 = vst.msk [vmem:[%s2313 + $0x39] sm:$0xff] %vm172, %v2286
        %2320 = vst.msk [vmem:[%s2313 + $0x49] sm:$0xff] %vm172, %v2287
        %2321 = vst.msk [vmem:[%s2313 + $0x51] sm:$0xff] %vm172, %v2288
        %2322 = vst.msk [vmem:[%s2313 + $0x61] sm:$0xff] %vm172, %v2289
        %2323 = vst.msk [vmem:[%s2313 + $0x69] sm:$0xff] %vm172, %v2290
        %2324 = vst.msk [vmem:[%s2313 + $0x79] sm:$0xff] %vm172, %v2291
        %2325 = vst.msk [vmem:[%s2313 + $0x81] sm:$0xff] %vm172, %v2292
        %2326 = vst.msk [vmem:[%s2313 + $0x91] sm:$0xff] %vm172, %v2293
        %2327 = vst.msk [vmem:[%s2313 + $0x99] sm:$0xff] %vm172, %v2294
        %2328 = vst.msk [vmem:[%s2313 + $0xa9] sm:$0xff] %vm172, %v2295
        %2329 = vst.msk [vmem:[%s2313 + $0xb1] sm:$0xff] %vm172, %v2296
        %2330 = vst.msk [vmem:[%s2313 + $0xc1] sm:$0xff] %vm172, %v2297
        %2331 = vst.msk [vmem:[%s2313 + $0xc9] sm:$0xff] %vm172, %v2298
        %2332 = vst.msk [vmem:[%s2313 + $0xd9] sm:$0xff] %vm172, %v2299
        %2333 = vst.msk [vmem:[%s2313 + $0xe1] sm:$0xff] %vm172, %v2300
        %2334 = vst.msk [vmem:[%s2313 + $0xf1] sm:$0xff] %vm172, %v2301
        %2335 = vst.msk [vmem:[%s2313 + $0xf9] sm:$0xff] %vm172, %v2302
        %2336 = vst.msk [vmem:[%s2313 + $0x109] sm:$0xff] %vm172, %v2303
        %2337 = vst.msk [vmem:[%s2313 + $0x111] sm:$0xff] %vm172, %v2304
        %2338 = vst.msk [vmem:[%s2313 + $0x121] sm:$0xff] %vm172, %v2305
        %2339 = vst.msk [vmem:[%s2313 + $0x129] sm:$0xff] %vm172, %v2306
        %2340 = vst.msk [vmem:[%s2313 + $0x139] sm:$0xff] %vm172, %v2307
        %2341 = vst.msk [vmem:[%s2313 + $0x141] sm:$0xff] %vm172, %v2308
        %2342 = vst.msk [vmem:[%s2313 + $0x151] sm:$0xff] %vm172, %v2309
        %2343 = vst.msk [vmem:[%s2313 + $0x159] sm:$0xff] %vm172, %v2310
        %2344 = vst.msk [vmem:[%s2313 + $0x169] sm:$0xff] %vm172, %v2311
        %2345 = vst.msk [vmem:[%s2313 + $0x171] sm:$0xff] %vm172, %v2312
        %s2346 = sadd.s32 %s353, 1
        %v2347 = vld [vmem:[#allocation3] sm:$0xff]
        %v2348 = vld [vmem:[#allocation3 + $0x8] sm:$0xff]
        %v2349 = vld [vmem:[#allocation3 + $0x18] sm:$0xff]
        %v2350 = vld [vmem:[#allocation3 + $0x20] sm:$0xff]
        %v2351 = vld [vmem:[#allocation3 + $0x30] sm:$0xff]
        %v2352 = vld [vmem:[#allocation3 + $0x38] sm:$0xff]
        %v2353 = vld [vmem:[#allocation3 + $0x48] sm:$0xff]
        %v2354 = vld [vmem:[#allocation3 + $0x50] sm:$0xff]
        %v2355 = vld [vmem:[#allocation3 + $0x60] sm:$0xff]
        %v2356 = vld [vmem:[#allocation3 + $0x68] sm:$0xff]
        %v2357 = vld [vmem:[#allocation3 + $0x78] sm:$0xff]
        %v2358 = vld [vmem:[#allocation3 + $0x80] sm:$0xff]
        %v2359 = vld [vmem:[#allocation3 + $0x90] sm:$0xff]
        %v2360 = vld [vmem:[#allocation3 + $0x98] sm:$0xff]
        %v2361 = vld [vmem:[#allocation3 + $0xa8] sm:$0xff]
        %v2362 = vld [vmem:[#allocation3 + $0xb0] sm:$0xff]
        %v2363 = vld [vmem:[#allocation3 + $0xc0] sm:$0xff]
        %v2364 = vld [vmem:[#allocation3 + $0xc8] sm:$0xff]
        %v2365 = vld [vmem:[#allocation3 + $0xd8] sm:$0xff]
        %v2366 = vld [vmem:[#allocation3 + $0xe0] sm:$0xff]
        %v2367 = vld [vmem:[#allocation3 + $0xf0] sm:$0xff]
        %v2368 = vld [vmem:[#allocation3 + $0xf8] sm:$0xff]
        %v2369 = vld [vmem:[#allocation3 + $0x108] sm:$0xff]
        %v2370 = vld [vmem:[#allocation3 + $0x110] sm:$0xff]
        %v2371 = vld [vmem:[#allocation3 + $0x120] sm:$0xff]
        %v2372 = vld [vmem:[#allocation3 + $0x128] sm:$0xff]
        %v2373 = vld [vmem:[#allocation3 + $0x138] sm:$0xff]
        %v2374 = vld [vmem:[#allocation3 + $0x140] sm:$0xff]
        %v2375 = vld [vmem:[#allocation3 + $0x150] sm:$0xff]
        %v2376 = vld [vmem:[#allocation3 + $0x158] sm:$0xff]
        %v2377 = vld [vmem:[#allocation3 + $0x168] sm:$0xff]
        %v2378 = vld [vmem:[#allocation3 + $0x170] sm:$0xff]
        %v2379 = vpack.c.bf16 %v2348, %v2347
        %v2380 = vpack.c.bf16 %v2350, %v2349
        %v2381 = vpack.c.bf16 %v2352, %v2351
        %v2382 = vpack.c.bf16 %v2354, %v2353
        %v2383 = vpack.c.bf16 %v2356, %v2355
        %v2384 = vpack.c.bf16 %v2358, %v2357
        %v2385 = vpack.c.bf16 %v2360, %v2359
        %v2386 = vpack.c.bf16 %v2362, %v2361
        %v2387 = vpack.c.bf16 %v2364, %v2363
        %v2388 = vpack.c.bf16 %v2366, %v2365
        %v2389 = vpack.c.bf16 %v2368, %v2367
        %v2390 = vpack.c.bf16 %v2370, %v2369
        %v2391 = vpack.c.bf16 %v2372, %v2371
        %v2392 = vpack.c.bf16 %v2374, %v2373
        %v2393 = vpack.c.bf16 %v2376, %v2375
        %v2394 = vpack.c.bf16 %v2378, %v2377
        %v2395 = vld [vmem:[#allocation3 + $0x1] sm:$0xff]
        %v2396 = vld [vmem:[#allocation3 + $0x9] sm:$0xff]
        %v2397 = vld [vmem:[#allocation3 + $0x19] sm:$0xff]
        %v2398 = vld [vmem:[#allocation3 + $0x21] sm:$0xff]
        %v2399 = vld [vmem:[#allocation3 + $0x31] sm:$0xff]
        %v2400 = vld [vmem:[#allocation3 + $0x39] sm:$0xff]
        %v2401 = vld [vmem:[#allocation3 + $0x49] sm:$0xff]
        %v2402 = vld [vmem:[#allocation3 + $0x51] sm:$0xff]
        %v2403 = vld [vmem:[#allocation3 + $0x61] sm:$0xff]
        %v2404 = vld [vmem:[#allocation3 + $0x69] sm:$0xff]
        %v2405 = vld [vmem:[#allocation3 + $0x79] sm:$0xff]
        %v2406 = vld [vmem:[#allocation3 + $0x81] sm:$0xff]
        %v2407 = vld [vmem:[#allocation3 + $0x91] sm:$0xff]
        %v2408 = vld [vmem:[#allocation3 + $0x99] sm:$0xff]
        %v2409 = vld [vmem:[#allocation3 + $0xa9] sm:$0xff]
        %v2410 = vld [vmem:[#allocation3 + $0xb1] sm:$0xff]
        %v2411 = vld [vmem:[#allocation3 + $0xc1] sm:$0xff]
        %v2412 = vld [vmem:[#allocation3 + $0xc9] sm:$0xff]
        %v2413 = vld [vmem:[#allocation3 + $0xd9] sm:$0xff]
        %v2414 = vld [vmem:[#allocation3 + $0xe1] sm:$0xff]
        %v2415 = vld [vmem:[#allocation3 + $0xf1] sm:$0xff]
        %v2416 = vld [vmem:[#allocation3 + $0xf9] sm:$0xff]
        %v2417 = vld [vmem:[#allocation3 + $0x109] sm:$0xff]
        %v2418 = vld [vmem:[#allocation3 + $0x111] sm:$0xff]
        %v2419 = vld [vmem:[#allocation3 + $0x121] sm:$0xff]
        %v2420 = vld [vmem:[#allocation3 + $0x129] sm:$0xff]
        %v2421 = vld [vmem:[#allocation3 + $0x139] sm:$0xff]
        %v2422 = vld [vmem:[#allocation3 + $0x141] sm:$0xff]
        %v2423 = vld [vmem:[#allocation3 + $0x151] sm:$0xff]
        %v2424 = vld [vmem:[#allocation3 + $0x159] sm:$0xff]
        %v2425 = vld [vmem:[#allocation3 + $0x169] sm:$0xff]
        %v2426 = vld [vmem:[#allocation3 + $0x171] sm:$0xff]
        %v2427 = vpack.c.bf16 %v2396, %v2395
        %v2428 = vpack.c.bf16 %v2398, %v2397
        %v2429 = vpack.c.bf16 %v2400, %v2399
        %v2430 = vpack.c.bf16 %v2402, %v2401
        %v2431 = vpack.c.bf16 %v2404, %v2403
        %v2432 = vpack.c.bf16 %v2406, %v2405
        %v2433 = vpack.c.bf16 %v2408, %v2407
        %v2434 = vpack.c.bf16 %v2410, %v2409
        %v2435 = vpack.c.bf16 %v2412, %v2411
        %v2436 = vpack.c.bf16 %v2414, %v2413
        %v2437 = vpack.c.bf16 %v2416, %v2415
        %v2438 = vpack.c.bf16 %v2418, %v2417
        %v2439 = vpack.c.bf16 %v2420, %v2419
        %v2440 = vpack.c.bf16 %v2422, %v2421
        %v2441 = vpack.c.bf16 %v2424, %v2423
        %v2442 = vpack.c.bf16 %v2426, %v2425
        %v2443 = vld [vmem:[#allocation3 + $0x2] sm:$0xff]
        %v2444 = vld [vmem:[#allocation3 + $0xa] sm:$0xff]
        %v2445 = vld [vmem:[#allocation3 + $0x1a] sm:$0xff]
        %v2446 = vld [vmem:[#allocation3 + $0x22] sm:$0xff]
        %v2447 = vld [vmem:[#allocation3 + $0x32] sm:$0xff]
        %v2448 = vld [vmem:[#allocation3 + $0x3a] sm:$0xff]
        %v2449 = vld [vmem:[#allocation3 + $0x4a] sm:$0xff]
        %v2450 = vld [vmem:[#allocation3 + $0x52] sm:$0xff]
        %v2451 = vld [vmem:[#allocation3 + $0x62] sm:$0xff]
        %v2452 = vld [vmem:[#allocation3 + $0x6a] sm:$0xff]
        %v2453 = vld [vmem:[#allocation3 + $0x7a] sm:$0xff]
        %v2454 = vld [vmem:[#allocation3 + $0x82] sm:$0xff]
        %v2455 = vld [vmem:[#allocation3 + $0x92] sm:$0xff]
        %v2456 = vld [vmem:[#allocation3 + $0x9a] sm:$0xff]
        %v2457 = vld [vmem:[#allocation3 + $0xaa] sm:$0xff]
        %v2458 = vld [vmem:[#allocation3 + $0xb2] sm:$0xff]
        %v2459 = vld [vmem:[#allocation3 + $0xc2] sm:$0xff]
        %v2460 = vld [vmem:[#allocation3 + $0xca] sm:$0xff]
        %v2461 = vld [vmem:[#allocation3 + $0xda] sm:$0xff]
        %v2462 = vld [vmem:[#allocation3 + $0xe2] sm:$0xff]
        %v2463 = vld [vmem:[#allocation3 + $0xf2] sm:$0xff]
        %v2464 = vld [vmem:[#allocation3 + $0xfa] sm:$0xff]
        %v2465 = vld [vmem:[#allocation3 + $0x10a] sm:$0xff]
        %v2466 = vld [vmem:[#allocation3 + $0x112] sm:$0xff]
        %v2467 = vld [vmem:[#allocation3 + $0x122] sm:$0xff]
        %v2468 = vld [vmem:[#allocation3 + $0x12a] sm:$0xff]
        %v2469 = vld [vmem:[#allocation3 + $0x13a] sm:$0xff]
        %v2470 = vld [vmem:[#allocation3 + $0x142] sm:$0xff]
        %v2471 = vld [vmem:[#allocation3 + $0x152] sm:$0xff]
        %v2472 = vld [vmem:[#allocation3 + $0x15a] sm:$0xff]
        %v2473 = vld [vmem:[#allocation3 + $0x16a] sm:$0xff]
        %v2474 = vld [vmem:[#allocation3 + $0x172] sm:$0xff]
        %v2475 = vpack.c.bf16 %v2444, %v2443
        %v2476 = vpack.c.bf16 %v2446, %v2445
        %v2477 = vpack.c.bf16 %v2448, %v2447
        %v2478 = vpack.c.bf16 %v2450, %v2449
        %v2479 = vpack.c.bf16 %v2452, %v2451
        %v2480 = vpack.c.bf16 %v2454, %v2453
        %v2481 = vpack.c.bf16 %v2456, %v2455
        %v2482 = vpack.c.bf16 %v2458, %v2457
        %v2483 = vpack.c.bf16 %v2460, %v2459
        %v2484 = vpack.c.bf16 %v2462, %v2461
        %v2485 = vpack.c.bf16 %v2464, %v2463
        %v2486 = vpack.c.bf16 %v2466, %v2465
        %v2487 = vpack.c.bf16 %v2468, %v2467
        %v2488 = vpack.c.bf16 %v2470, %v2469
        %v2489 = vpack.c.bf16 %v2472, %v2471
        %v2490 = vpack.c.bf16 %v2474, %v2473
        %v2491 = vld [vmem:[%s2313] sm:$0xff]
        %v2492 = vld [vmem:[%s2313 + $0x8] sm:$0xff]
        %v2493 = vld [vmem:[%s2313 + $0x18] sm:$0xff]
        %v2494 = vld [vmem:[%s2313 + $0x20] sm:$0xff]
        %v2495 = vld [vmem:[%s2313 + $0x30] sm:$0xff]
        %v2496 = vld [vmem:[%s2313 + $0x38] sm:$0xff]
        %v2497 = vld [vmem:[%s2313 + $0x48] sm:$0xff]
        %v2498 = vld [vmem:[%s2313 + $0x50] sm:$0xff]
        %v2499 = vld [vmem:[%s2313 + $0x60] sm:$0xff]
        %v2500 = vld [vmem:[%s2313 + $0x68] sm:$0xff]
        %v2501 = vld [vmem:[%s2313 + $0x78] sm:$0xff]
        %v2502 = vld [vmem:[%s2313 + $0x80] sm:$0xff]
        %v2503 = vld [vmem:[%s2313 + $0x90] sm:$0xff]
        %v2504 = vld [vmem:[%s2313 + $0x98] sm:$0xff]
        %v2505 = vld [vmem:[%s2313 + $0xa8] sm:$0xff]
        %v2506 = vld [vmem:[%s2313 + $0xb0] sm:$0xff]
        %v2507 = vld [vmem:[%s2313 + $0xc0] sm:$0xff]
        %v2508 = vld [vmem:[%s2313 + $0xc8] sm:$0xff]
        %v2509 = vld [vmem:[%s2313 + $0xd8] sm:$0xff]
        %v2510 = vld [vmem:[%s2313 + $0xe0] sm:$0xff]
        %v2511 = vld [vmem:[%s2313 + $0xf0] sm:$0xff]
        %v2512 = vld [vmem:[%s2313 + $0xf8] sm:$0xff]
        %v2513 = vld [vmem:[%s2313 + $0x108] sm:$0xff]
        %v2514 = vld [vmem:[%s2313 + $0x110] sm:$0xff]
        %v2515 = vld [vmem:[%s2313 + $0x120] sm:$0xff]
        %v2516 = vld [vmem:[%s2313 + $0x128] sm:$0xff]
        %v2517 = vld [vmem:[%s2313 + $0x138] sm:$0xff]
        %v2518 = vld [vmem:[%s2313 + $0x140] sm:$0xff]
        %v2519 = vld [vmem:[%s2313 + $0x150] sm:$0xff]
        %v2520 = vld [vmem:[%s2313 + $0x158] sm:$0xff]
        %v2521 = vld [vmem:[%s2313 + $0x168] sm:$0xff]
        %v2522 = vld [vmem:[%s2313 + $0x170] sm:$0xff]
        %v2523 = vpack.c.bf16 %v2492, %v2491
        %v2524 = vpack.c.bf16 %v2494, %v2493
        %v2525 = vpack.c.bf16 %v2496, %v2495
        %v2526 = vpack.c.bf16 %v2498, %v2497
        %v2527 = vpack.c.bf16 %v2500, %v2499
        %v2528 = vpack.c.bf16 %v2502, %v2501
        %v2529 = vpack.c.bf16 %v2504, %v2503
        %v2530 = vpack.c.bf16 %v2506, %v2505
        %v2531 = vpack.c.bf16 %v2508, %v2507
        %v2532 = vpack.c.bf16 %v2510, %v2509
        %v2533 = vpack.c.bf16 %v2512, %v2511
        %v2534 = vpack.c.bf16 %v2514, %v2513
        %v2535 = vpack.c.bf16 %v2516, %v2515
        %v2536 = vpack.c.bf16 %v2518, %v2517
        %v2537 = vpack.c.bf16 %v2520, %v2519
        %v2538 = vpack.c.bf16 %v2522, %v2521
        %v2539 = vld [vmem:[%s2313 + $0x1] sm:$0xff]
        %v2540 = vld [vmem:[%s2313 + $0x9] sm:$0xff]
        %v2541 = vld [vmem:[%s2313 + $0x19] sm:$0xff]
        %v2542 = vld [vmem:[%s2313 + $0x21] sm:$0xff]
        %v2543 = vld [vmem:[%s2313 + $0x31] sm:$0xff]
        %v2544 = vld [vmem:[%s2313 + $0x39] sm:$0xff]
        %v2545 = vld [vmem:[%s2313 + $0x49] sm:$0xff]
        %v2546 = vld [vmem:[%s2313 + $0x51] sm:$0xff]
        %v2547 = vld [vmem:[%s2313 + $0x61] sm:$0xff]
        %v2548 = vld [vmem:[%s2313 + $0x69] sm:$0xff]
        %v2549 = vld [vmem:[%s2313 + $0x79] sm:$0xff]
        %v2550 = vld [vmem:[%s2313 + $0x81] sm:$0xff]
        %v2551 = vld [vmem:[%s2313 + $0x91] sm:$0xff]
        %v2552 = vld [vmem:[%s2313 + $0x99] sm:$0xff]
        %v2553 = vld [vmem:[%s2313 + $0xa9] sm:$0xff]
        %v2554 = vld [vmem:[%s2313 + $0xb1] sm:$0xff]
        %v2555 = vld [vmem:[%s2313 + $0xc1] sm:$0xff]
        %v2556 = vld [vmem:[%s2313 + $0xc9] sm:$0xff]
        %v2557 = vld [vmem:[%s2313 + $0xd9] sm:$0xff]
        %v2558 = vld [vmem:[%s2313 + $0xe1] sm:$0xff]
        %v2559 = vld [vmem:[%s2313 + $0xf1] sm:$0xff]
        %v2560 = vld [vmem:[%s2313 + $0xf9] sm:$0xff]
        %v2561 = vld [vmem:[%s2313 + $0x109] sm:$0xff]
        %v2562 = vld [vmem:[%s2313 + $0x111] sm:$0xff]
        %v2563 = vld [vmem:[%s2313 + $0x121] sm:$0xff]
        %v2564 = vld [vmem:[%s2313 + $0x129] sm:$0xff]
        %v2565 = vld [vmem:[%s2313 + $0x139] sm:$0xff]
        %v2566 = vld [vmem:[%s2313 + $0x141] sm:$0xff]
        %v2567 = vld [vmem:[%s2313 + $0x151] sm:$0xff]
        %v2568 = vld [vmem:[%s2313 + $0x159] sm:$0xff]
        %v2569 = vld [vmem:[%s2313 + $0x169] sm:$0xff]
        %v2570 = vld [vmem:[%s2313 + $0x171] sm:$0xff]
        %v2571 = vpack.c.bf16 %v2540, %v2539
        %v2572 = vpack.c.bf16 %v2542, %v2541
        %v2573 = vpack.c.bf16 %v2544, %v2543
        %v2574 = vpack.c.bf16 %v2546, %v2545
        %v2575 = vpack.c.bf16 %v2548, %v2547
        %v2576 = vpack.c.bf16 %v2550, %v2549
        %v2577 = vpack.c.bf16 %v2552, %v2551
        %v2578 = vpack.c.bf16 %v2554, %v2553
        %v2579 = vpack.c.bf16 %v2556, %v2555
        %v2580 = vpack.c.bf16 %v2558, %v2557
        %v2581 = vpack.c.bf16 %v2560, %v2559
        %v2582 = vpack.c.bf16 %v2562, %v2561
        %v2583 = vpack.c.bf16 %v2564, %v2563
        %v2584 = vpack.c.bf16 %v2566, %v2565
        %v2585 = vpack.c.bf16 %v2568, %v2567
        %v2586 = vpack.c.bf16 %v2570, %v2569
        %v2587 = vld [vmem:[%s2313 + $0x2] sm:$0xff]
        %v2588 = vld [vmem:[%s2313 + $0xa] sm:$0xff]
        %v2589 = vld [vmem:[%s2313 + $0x1a] sm:$0xff]
        %v2590 = vld [vmem:[%s2313 + $0x22] sm:$0xff]
        %v2591 = vld [vmem:[%s2313 + $0x32] sm:$0xff]
        %v2592 = vld [vmem:[%s2313 + $0x3a] sm:$0xff]
        %v2593 = vld [vmem:[%s2313 + $0x4a] sm:$0xff]
        %v2594 = vld [vmem:[%s2313 + $0x52] sm:$0xff]
        %v2595 = vld [vmem:[%s2313 + $0x62] sm:$0xff]
        %v2596 = vld [vmem:[%s2313 + $0x6a] sm:$0xff]
        %v2597 = vld [vmem:[%s2313 + $0x7a] sm:$0xff]
        %v2598 = vld [vmem:[%s2313 + $0x82] sm:$0xff]
        %v2599 = vld [vmem:[%s2313 + $0x92] sm:$0xff]
        %v2600 = vld [vmem:[%s2313 + $0x9a] sm:$0xff]
        %v2601 = vld [vmem:[%s2313 + $0xaa] sm:$0xff]
        %v2602 = vld [vmem:[%s2313 + $0xb2] sm:$0xff]
        %v2603 = vld [vmem:[%s2313 + $0xc2] sm:$0xff]
        %v2604 = vld [vmem:[%s2313 + $0xca] sm:$0xff]
        %v2605 = vld [vmem:[%s2313 + $0xda] sm:$0xff]
        %v2606 = vld [vmem:[%s2313 + $0xe2] sm:$0xff]
        %v2607 = vld [vmem:[%s2313 + $0xf2] sm:$0xff]
        %v2608 = vld [vmem:[%s2313 + $0xfa] sm:$0xff]
        %v2609 = vld [vmem:[%s2313 + $0x10a] sm:$0xff]
        %v2610 = vld [vmem:[%s2313 + $0x112] sm:$0xff]
        %v2611 = vld [vmem:[%s2313 + $0x122] sm:$0xff]
        %v2612 = vld [vmem:[%s2313 + $0x12a] sm:$0xff]
        %v2613 = vld [vmem:[%s2313 + $0x13a] sm:$0xff]
        %v2614 = vld [vmem:[%s2313 + $0x142] sm:$0xff]
        %v2615 = vld [vmem:[%s2313 + $0x152] sm:$0xff]
        %v2616 = vld [vmem:[%s2313 + $0x15a] sm:$0xff]
        %v2617 = vld [vmem:[%s2313 + $0x16a] sm:$0xff]
        %v2618 = vld [vmem:[%s2313 + $0x172] sm:$0xff]
        %v2619 = vpack.c.bf16 %v2588, %v2587
        %v2620 = vpack.c.bf16 %v2590, %v2589
        %v2621 = vpack.c.bf16 %v2592, %v2591
        %v2622 = vpack.c.bf16 %v2594, %v2593
        %v2623 = vpack.c.bf16 %v2596, %v2595
        %v2624 = vpack.c.bf16 %v2598, %v2597
        %v2625 = vpack.c.bf16 %v2600, %v2599
        %v2626 = vpack.c.bf16 %v2602, %v2601
        %v2627 = vpack.c.bf16 %v2604, %v2603
        %v2628 = vpack.c.bf16 %v2606, %v2605
        %v2629 = vpack.c.bf16 %v2608, %v2607
        %v2630 = vpack.c.bf16 %v2610, %v2609
        %v2631 = vpack.c.bf16 %v2612, %v2611
        %v2632 = vpack.c.bf16 %v2614, %v2613
        %v2633 = vpack.c.bf16 %v2616, %v2615
        %v2634 = vpack.c.bf16 %v2618, %v2617
        %s2635 = scalar_lea.vmem [#allocation3], 48
        %v2636 = vld [vmem:[%s2635] sm:$0xff]
        %v2637 = vld [vmem:[%s2635 + $0x8] sm:$0xff]
        %v2638 = vld [vmem:[%s2635 + $0x18] sm:$0xff]
        %v2639 = vld [vmem:[%s2635 + $0x20] sm:$0xff]
        %v2640 = vld [vmem:[%s2635 + $0x30] sm:$0xff]
        %v2641 = vld [vmem:[%s2635 + $0x38] sm:$0xff]
        %v2642 = vld [vmem:[%s2635 + $0x48] sm:$0xff]
        %v2643 = vld [vmem:[%s2635 + $0x50] sm:$0xff]
        %v2644 = vld [vmem:[%s2635 + $0x60] sm:$0xff]
        %v2645 = vld [vmem:[%s2635 + $0x68] sm:$0xff]
        %v2646 = vld [vmem:[%s2635 + $0x78] sm:$0xff]
        %v2647 = vld [vmem:[%s2635 + $0x80] sm:$0xff]
        %v2648 = vld [vmem:[%s2635 + $0x90] sm:$0xff]
        %v2649 = vld [vmem:[%s2635 + $0x98] sm:$0xff]
        %v2650 = vld [vmem:[%s2635 + $0xa8] sm:$0xff]
        %v2651 = vld [vmem:[%s2635 + $0xb0] sm:$0xff]
        %v2652 = vld [vmem:[%s2635 + $0xc0] sm:$0xff]
        %v2653 = vld [vmem:[%s2635 + $0xc8] sm:$0xff]
        %v2654 = vld [vmem:[%s2635 + $0xd8] sm:$0xff]
        %v2655 = vld [vmem:[%s2635 + $0xe0] sm:$0xff]
        %v2656 = vld [vmem:[%s2635 + $0xf0] sm:$0xff]
        %v2657 = vld [vmem:[%s2635 + $0xf8] sm:$0xff]
        %v2658 = vld [vmem:[%s2635 + $0x108] sm:$0xff]
        %v2659 = vld [vmem:[%s2635 + $0x110] sm:$0xff]
        %v2660 = vld [vmem:[%s2635 + $0x120] sm:$0xff]
        %v2661 = vld [vmem:[%s2635 + $0x128] sm:$0xff]
        %v2662 = vld [vmem:[%s2635 + $0x138] sm:$0xff]
        %v2663 = vld [vmem:[%s2635 + $0x140] sm:$0xff]
        %v2664 = vld [vmem:[%s2635 + $0x150] sm:$0xff]
        %v2665 = vld [vmem:[%s2635 + $0x158] sm:$0xff]
        %v2666 = vld [vmem:[%s2635 + $0x168] sm:$0xff]
        %v2667 = vld [vmem:[%s2635 + $0x170] sm:$0xff]
        %v2668 = vpack.c.bf16 %v2637, %v2636
        %v2669 = vpack.c.bf16 %v2639, %v2638
        %v2670 = vpack.c.bf16 %v2641, %v2640
        %v2671 = vpack.c.bf16 %v2643, %v2642
        %v2672 = vpack.c.bf16 %v2645, %v2644
        %v2673 = vpack.c.bf16 %v2647, %v2646
        %v2674 = vpack.c.bf16 %v2649, %v2648
        %v2675 = vpack.c.bf16 %v2651, %v2650
        %v2676 = vpack.c.bf16 %v2653, %v2652
        %v2677 = vpack.c.bf16 %v2655, %v2654
        %v2678 = vpack.c.bf16 %v2657, %v2656
        %v2679 = vpack.c.bf16 %v2659, %v2658
        %v2680 = vpack.c.bf16 %v2661, %v2660
        %v2681 = vpack.c.bf16 %v2663, %v2662
        %v2682 = vpack.c.bf16 %v2665, %v2664
        %v2683 = vpack.c.bf16 %v2667, %v2666
        %v2684 = vld [vmem:[%s2635 + $0x1] sm:$0xff]
        %v2685 = vld [vmem:[%s2635 + $0x9] sm:$0xff]
        %v2686 = vld [vmem:[%s2635 + $0x19] sm:$0xff]
        %v2687 = vld [vmem:[%s2635 + $0x21] sm:$0xff]
        %v2688 = vld [vmem:[%s2635 + $0x31] sm:$0xff]
        %v2689 = vld [vmem:[%s2635 + $0x39] sm:$0xff]
        %v2690 = vld [vmem:[%s2635 + $0x49] sm:$0xff]
        %v2691 = vld [vmem:[%s2635 + $0x51] sm:$0xff]
        %v2692 = vld [vmem:[%s2635 + $0x61] sm:$0xff]
        %v2693 = vld [vmem:[%s2635 + $0x69] sm:$0xff]
        %v2694 = vld [vmem:[%s2635 + $0x79] sm:$0xff]
        %v2695 = vld [vmem:[%s2635 + $0x81] sm:$0xff]
        %v2696 = vld [vmem:[%s2635 + $0x91] sm:$0xff]
        %v2697 = vld [vmem:[%s2635 + $0x99] sm:$0xff]
        %v2698 = vld [vmem:[%s2635 + $0xa9] sm:$0xff]
        %v2699 = vld [vmem:[%s2635 + $0xb1] sm:$0xff]
        %v2700 = vld [vmem:[%s2635 + $0xc1] sm:$0xff]
        %v2701 = vld [vmem:[%s2635 + $0xc9] sm:$0xff]
        %v2702 = vld [vmem:[%s2635 + $0xd9] sm:$0xff]
        %v2703 = vld [vmem:[%s2635 + $0xe1] sm:$0xff]
        %v2704 = vld [vmem:[%s2635 + $0xf1] sm:$0xff]
        %v2705 = vld [vmem:[%s2635 + $0xf9] sm:$0xff]
        %v2706 = vld [vmem:[%s2635 + $0x109] sm:$0xff]
        %v2707 = vld [vmem:[%s2635 + $0x111] sm:$0xff]
        %v2708 = vld [vmem:[%s2635 + $0x121] sm:$0xff]
        %v2709 = vld [vmem:[%s2635 + $0x129] sm:$0xff]
        %v2710 = vld [vmem:[%s2635 + $0x139] sm:$0xff]
        %v2711 = vld [vmem:[%s2635 + $0x141] sm:$0xff]
        %v2712 = vld [vmem:[%s2635 + $0x151] sm:$0xff]
        %v2713 = vld [vmem:[%s2635 + $0x159] sm:$0xff]
        %v2714 = vld [vmem:[%s2635 + $0x169] sm:$0xff]
        %v2715 = vld [vmem:[%s2635 + $0x171] sm:$0xff]
        %v2716 = vpack.c.bf16 %v2685, %v2684
        %v2717 = vpack.c.bf16 %v2687, %v2686
        %v2718 = vpack.c.bf16 %v2689, %v2688
        %v2719 = vpack.c.bf16 %v2691, %v2690
        %v2720 = vpack.c.bf16 %v2693, %v2692
        %v2721 = vpack.c.bf16 %v2695, %v2694
        %v2722 = vpack.c.bf16 %v2697, %v2696
        %v2723 = vpack.c.bf16 %v2699, %v2698
        %v2724 = vpack.c.bf16 %v2701, %v2700
        %v2725 = vpack.c.bf16 %v2703, %v2702
        %v2726 = vpack.c.bf16 %v2705, %v2704
        %v2727 = vpack.c.bf16 %v2707, %v2706
        %v2728 = vpack.c.bf16 %v2709, %v2708
        %v2729 = vpack.c.bf16 %v2711, %v2710
        %v2730 = vpack.c.bf16 %v2713, %v2712
        %v2731 = vpack.c.bf16 %v2715, %v2714
        %v2732 = vld [vmem:[%s2635 + $0x2] sm:$0xff]
        %v2733 = vld [vmem:[%s2635 + $0xa] sm:$0xff]
        %v2734 = vld [vmem:[%s2635 + $0x1a] sm:$0xff]
        %v2735 = vld [vmem:[%s2635 + $0x22] sm:$0xff]
        %v2736 = vld [vmem:[%s2635 + $0x32] sm:$0xff]
        %v2737 = vld [vmem:[%s2635 + $0x3a] sm:$0xff]
        %v2738 = vld [vmem:[%s2635 + $0x4a] sm:$0xff]
        %v2739 = vld [vmem:[%s2635 + $0x52] sm:$0xff]
        %v2740 = vld [vmem:[%s2635 + $0x62] sm:$0xff]
        %v2741 = vld [vmem:[%s2635 + $0x6a] sm:$0xff]
        %v2742 = vld [vmem:[%s2635 + $0x7a] sm:$0xff]
        %v2743 = vld [vmem:[%s2635 + $0x82] sm:$0xff]
        %v2744 = vld [vmem:[%s2635 + $0x92] sm:$0xff]
        %v2745 = vld [vmem:[%s2635 + $0x9a] sm:$0xff]
        %v2746 = vld [vmem:[%s2635 + $0xaa] sm:$0xff]
        %v2747 = vld [vmem:[%s2635 + $0xb2] sm:$0xff]
        %v2748 = vld [vmem:[%s2635 + $0xc2] sm:$0xff]
        %v2749 = vld [vmem:[%s2635 + $0xca] sm:$0xff]
        %v2750 = vld [vmem:[%s2635 + $0xda] sm:$0xff]
        %v2751 = vld [vmem:[%s2635 + $0xe2] sm:$0xff]
        %v2752 = vld [vmem:[%s2635 + $0xf2] sm:$0xff]
        %v2753 = vld [vmem:[%s2635 + $0xfa] sm:$0xff]
        %v2754 = vld [vmem:[%s2635 + $0x10a] sm:$0xff]
        %v2755 = vld [vmem:[%s2635 + $0x112] sm:$0xff]
        %v2756 = vld [vmem:[%s2635 + $0x122] sm:$0xff]
        %v2757 = vld [vmem:[%s2635 + $0x12a] sm:$0xff]
        %v2758 = vld [vmem:[%s2635 + $0x13a] sm:$0xff]
        %v2759 = vld [vmem:[%s2635 + $0x142] sm:$0xff]
        %v2760 = vld [vmem:[%s2635 + $0x152] sm:$0xff]
        %v2761 = vld [vmem:[%s2635 + $0x15a] sm:$0xff]
        %v2762 = vld [vmem:[%s2635 + $0x16a] sm:$0xff]
        %v2763 = vld [vmem:[%s2635 + $0x172] sm:$0xff]
        %v2764 = vpack.c.bf16 %v2733, %v2732
        %v2765 = vpack.c.bf16 %v2735, %v2734
        %v2766 = vpack.c.bf16 %v2737, %v2736
        %v2767 = vpack.c.bf16 %v2739, %v2738
        %v2768 = vpack.c.bf16 %v2741, %v2740
        %v2769 = vpack.c.bf16 %v2743, %v2742
        %v2770 = vpack.c.bf16 %v2745, %v2744
        %v2771 = vpack.c.bf16 %v2747, %v2746
        %v2772 = vpack.c.bf16 %v2749, %v2748
        %v2773 = vpack.c.bf16 %v2751, %v2750
        %v2774 = vpack.c.bf16 %v2753, %v2752
        %v2775 = vpack.c.bf16 %v2755, %v2754
        %v2776 = vpack.c.bf16 %v2757, %v2756
        %v2777 = vpack.c.bf16 %v2759, %v2758
        %v2778 = vpack.c.bf16 %v2761, %v2760
        %v2779 = vpack.c.bf16 %v2763, %v2762
        %2796 = vrot.lane.b32.xlu0 %v2427, 64
        %v2797 = vpop.permute.xlu0 %2796
        %2798 = vrot.lane.b32.xlu0 %v2428, 64
        %v2799 = vpop.permute.xlu0 %2798
        %2800 = vrot.lane.b32.xlu0 %v2429, 64
        %v2801 = vpop.permute.xlu0 %2800
        %2802 = vrot.lane.b32.xlu0 %v2430, 64
        %v2803 = vpop.permute.xlu0 %2802
        %2804 = vrot.lane.b32.xlu0 %v2431, 64
        %v2805 = vpop.permute.xlu0 %2804
        %2806 = vrot.lane.b32.xlu0 %v2432, 64
        %v2807 = vpop.permute.xlu0 %2806
        %2808 = vrot.lane.b32.xlu0 %v2433, 64
        %v2809 = vpop.permute.xlu0 %2808
        %2810 = vrot.lane.b32.xlu0 %v2434, 64
        %v2811 = vpop.permute.xlu0 %2810
        %2812 = vrot.lane.b32.xlu0 %v2435, 64
        %v2813 = vpop.permute.xlu0 %2812
        %2814 = vrot.lane.b32.xlu0 %v2436, 64
        %v2815 = vpop.permute.xlu0 %2814
        %2816 = vrot.lane.b32.xlu0 %v2437, 64
        %v2817 = vpop.permute.xlu0 %2816
        %2818 = vrot.lane.b32.xlu0 %v2438, 64
        %v2819 = vpop.permute.xlu0 %2818
        %2820 = vrot.lane.b32.xlu0 %v2439, 64
        %v2821 = vpop.permute.xlu0 %2820
        %2822 = vrot.lane.b32.xlu0 %v2440, 64
        %v2823 = vpop.permute.xlu0 %2822
        %2824 = vrot.lane.b32.xlu0 %v2441, 64
        %v2825 = vpop.permute.xlu0 %2824
        %2826 = vrot.lane.b32.xlu0 %v2442, 64
        %v2827 = vpop.permute.xlu0 %2826
        %v2830 = vsel %vm172, %v2379, %v2797
        %v2834 = vsel %vm172, %v2380, %v2799
        %v2838 = vsel %vm172, %v2381, %v2801
        %v2842 = vsel %vm172, %v2382, %v2803
        %v2846 = vsel %vm172, %v2383, %v2805
        %v2850 = vsel %vm172, %v2384, %v2807
        %v2854 = vsel %vm172, %v2385, %v2809
        %v2858 = vsel %vm172, %v2386, %v2811
        %v2862 = vsel %vm172, %v2387, %v2813
        %v2866 = vsel %vm172, %v2388, %v2815
        %v2870 = vsel %vm172, %v2389, %v2817
        %v2874 = vsel %vm172, %v2390, %v2819
        %v2878 = vsel %vm172, %v2391, %v2821
        %v2882 = vsel %vm172, %v2392, %v2823
        %v2886 = vsel %vm172, %v2393, %v2825
        %v2890 = vsel %vm172, %v2394, %v2827
        %2892 = vst [vmem:[#allocation4] sm:$0xff] %v2830
        %2893 = vst [vmem:[#allocation4 + $0x28] sm:$0xff] %v2834
        %2894 = vst [vmem:[#allocation4 + $0x50] sm:$0xff] %v2838
        %2895 = vst [vmem:[#allocation4 + $0x78] sm:$0xff] %v2842
        %2896 = vst [vmem:[#allocation4 + $0xa0] sm:$0xff] %v2846
        %2897 = vst [vmem:[#allocation4 + $0xc8] sm:$0xff] %v2850
        %2898 = vst [vmem:[#allocation4 + $0xf0] sm:$0xff] %v2854
        %2899 = vst [vmem:[#allocation4 + $0x118] sm:$0xff] %v2858
        %2900 = vst [vmem:[#allocation4 + $0x140] sm:$0xff] %v2862
        %2901 = vst [vmem:[#allocation4 + $0x168] sm:$0xff] %v2866
        %2902 = vst [vmem:[#allocation4 + $0x190] sm:$0xff] %v2870
        %2903 = vst [vmem:[#allocation4 + $0x1b8] sm:$0xff] %v2874
        %2904 = vst [vmem:[#allocation4 + $0x1e0] sm:$0xff] %v2878
        %2905 = vst [vmem:[#allocation4 + $0x208] sm:$0xff] %v2882
        %2906 = vst [vmem:[#allocation4 + $0x230] sm:$0xff] %v2886
        %2907 = vst [vmem:[#allocation4 + $0x258] sm:$0xff] %v2890
        %2924 = vrot.lane.b32.xlu0 %v2523, 64
        %v2925 = vpop.permute.xlu0 %2924
        %2926 = vrot.lane.b32.xlu0 %v2524, 64
        %v2927 = vpop.permute.xlu0 %2926
        %2928 = vrot.lane.b32.xlu0 %v2525, 64
        %v2929 = vpop.permute.xlu0 %2928
        %2930 = vrot.lane.b32.xlu0 %v2526, 64
        %v2931 = vpop.permute.xlu0 %2930
        %2932 = vrot.lane.b32.xlu0 %v2527, 64
        %v2933 = vpop.permute.xlu0 %2932
        %2934 = vrot.lane.b32.xlu0 %v2528, 64
        %v2935 = vpop.permute.xlu0 %2934
        %2936 = vrot.lane.b32.xlu0 %v2529, 64
        %v2937 = vpop.permute.xlu0 %2936
        %2938 = vrot.lane.b32.xlu0 %v2530, 64
        %v2939 = vpop.permute.xlu0 %2938
        %2940 = vrot.lane.b32.xlu0 %v2531, 64
        %v2941 = vpop.permute.xlu0 %2940
        %2942 = vrot.lane.b32.xlu0 %v2532, 64
        %v2943 = vpop.permute.xlu0 %2942
        %2944 = vrot.lane.b32.xlu0 %v2533, 64
        %v2945 = vpop.permute.xlu0 %2944
        %2946 = vrot.lane.b32.xlu0 %v2534, 64
        %v2947 = vpop.permute.xlu0 %2946
        %2948 = vrot.lane.b32.xlu0 %v2535, 64
        %v2949 = vpop.permute.xlu0 %2948
        %2950 = vrot.lane.b32.xlu0 %v2536, 64
        %v2951 = vpop.permute.xlu0 %2950
        %2952 = vrot.lane.b32.xlu0 %v2537, 64
        %v2953 = vpop.permute.xlu0 %2952
        %2954 = vrot.lane.b32.xlu0 %v2538, 64
        %v2955 = vpop.permute.xlu0 %2954
        %v2958 = vsel %vm172, %v2475, %v2925
        %v2962 = vsel %vm172, %v2476, %v2927
        %v2966 = vsel %vm172, %v2477, %v2929
        %v2970 = vsel %vm172, %v2478, %v2931
        %v2974 = vsel %vm172, %v2479, %v2933
        %v2978 = vsel %vm172, %v2480, %v2935
        %v2982 = vsel %vm172, %v2481, %v2937
        %v2986 = vsel %vm172, %v2482, %v2939
        %v2990 = vsel %vm172, %v2483, %v2941
        %v2994 = vsel %vm172, %v2484, %v2943
        %v2998 = vsel %vm172, %v2485, %v2945
        %v3002 = vsel %vm172, %v2486, %v2947
        %v3006 = vsel %vm172, %v2487, %v2949
        %v3010 = vsel %vm172, %v2488, %v2951
        %v3014 = vsel %vm172, %v2489, %v2953
        %v3018 = vsel %vm172, %v2490, %v2955
        %3020 = vst [vmem:[#allocation4 + $0x8] sm:$0xff] %v2958
        %3021 = vst [vmem:[#allocation4 + $0x30] sm:$0xff] %v2962
        %3022 = vst [vmem:[#allocation4 + $0x58] sm:$0xff] %v2966
        %3023 = vst [vmem:[#allocation4 + $0x80] sm:$0xff] %v2970
        %3024 = vst [vmem:[#allocation4 + $0xa8] sm:$0xff] %v2974
        %3025 = vst [vmem:[#allocation4 + $0xd0] sm:$0xff] %v2978
        %3026 = vst [vmem:[#allocation4 + $0xf8] sm:$0xff] %v2982
        %3027 = vst [vmem:[#allocation4 + $0x120] sm:$0xff] %v2986
        %3028 = vst [vmem:[#allocation4 + $0x148] sm:$0xff] %v2990
        %3029 = vst [vmem:[#allocation4 + $0x170] sm:$0xff] %v2994
        %3030 = vst [vmem:[#allocation4 + $0x198] sm:$0xff] %v2998
        %3031 = vst [vmem:[#allocation4 + $0x1c0] sm:$0xff] %v3002
        %3032 = vst [vmem:[#allocation4 + $0x1e8] sm:$0xff] %v3006
        %3033 = vst [vmem:[#allocation4 + $0x210] sm:$0xff] %v3010
        %3034 = vst [vmem:[#allocation4 + $0x238] sm:$0xff] %v3014
        %3035 = vst [vmem:[#allocation4 + $0x260] sm:$0xff] %v3018
        %3052 = vrot.lane.b32.xlu0 %v2619, 64
        %v3053 = vpop.permute.xlu0 %3052
        %3054 = vrot.lane.b32.xlu0 %v2620, 64
        %v3055 = vpop.permute.xlu0 %3054
        %3056 = vrot.lane.b32.xlu0 %v2621, 64
        %v3057 = vpop.permute.xlu0 %3056
        %3058 = vrot.lane.b32.xlu0 %v2622, 64
        %v3059 = vpop.permute.xlu0 %3058
        %3060 = vrot.lane.b32.xlu0 %v2623, 64
        %v3061 = vpop.permute.xlu0 %3060
        %3062 = vrot.lane.b32.xlu0 %v2624, 64
        %v3063 = vpop.permute.xlu0 %3062
        %3064 = vrot.lane.b32.xlu0 %v2625, 64
        %v3065 = vpop.permute.xlu0 %3064
        %3066 = vrot.lane.b32.xlu0 %v2626, 64
        %v3067 = vpop.permute.xlu0 %3066
        %3068 = vrot.lane.b32.xlu0 %v2627, 64
        %v3069 = vpop.permute.xlu0 %3068
        %3070 = vrot.lane.b32.xlu0 %v2628, 64
        %v3071 = vpop.permute.xlu0 %3070
        %3072 = vrot.lane.b32.xlu0 %v2629, 64
        %v3073 = vpop.permute.xlu0 %3072
        %3074 = vrot.lane.b32.xlu0 %v2630, 64
        %v3075 = vpop.permute.xlu0 %3074
        %3076 = vrot.lane.b32.xlu0 %v2631, 64
        %v3077 = vpop.permute.xlu0 %3076
        %3078 = vrot.lane.b32.xlu0 %v2632, 64
        %v3079 = vpop.permute.xlu0 %3078
        %3080 = vrot.lane.b32.xlu0 %v2633, 64
        %v3081 = vpop.permute.xlu0 %3080
        %3082 = vrot.lane.b32.xlu0 %v2634, 64
        %v3083 = vpop.permute.xlu0 %3082
        %v3086 = vsel %vm172, %v2571, %v3053
        %v3090 = vsel %vm172, %v2572, %v3055
        %v3094 = vsel %vm172, %v2573, %v3057
        %v3098 = vsel %vm172, %v2574, %v3059
        %v3102 = vsel %vm172, %v2575, %v3061
        %v3106 = vsel %vm172, %v2576, %v3063
        %v3110 = vsel %vm172, %v2577, %v3065
        %v3114 = vsel %vm172, %v2578, %v3067
        %v3118 = vsel %vm172, %v2579, %v3069
        %v3122 = vsel %vm172, %v2580, %v3071
        %v3126 = vsel %vm172, %v2581, %v3073
        %v3130 = vsel %vm172, %v2582, %v3075
        %v3134 = vsel %vm172, %v2583, %v3077
        %v3138 = vsel %vm172, %v2584, %v3079
        %v3142 = vsel %vm172, %v2585, %v3081
        %v3146 = vsel %vm172, %v2586, %v3083
        %3148 = vst [vmem:[#allocation4 + $0x10] sm:$0xff] %v3086
        %3149 = vst [vmem:[#allocation4 + $0x38] sm:$0xff] %v3090
        %3150 = vst [vmem:[#allocation4 + $0x60] sm:$0xff] %v3094
        %3151 = vst [vmem:[#allocation4 + $0x88] sm:$0xff] %v3098
        %3152 = vst [vmem:[#allocation4 + $0xb0] sm:$0xff] %v3102
        %3153 = vst [vmem:[#allocation4 + $0xd8] sm:$0xff] %v3106
        %3154 = vst [vmem:[#allocation4 + $0x100] sm:$0xff] %v3110
        %3155 = vst [vmem:[#allocation4 + $0x128] sm:$0xff] %v3114
        %3156 = vst [vmem:[#allocation4 + $0x150] sm:$0xff] %v3118
        %3157 = vst [vmem:[#allocation4 + $0x178] sm:$0xff] %v3122
        %3158 = vst [vmem:[#allocation4 + $0x1a0] sm:$0xff] %v3126
        %3159 = vst [vmem:[#allocation4 + $0x1c8] sm:$0xff] %v3130
        %3160 = vst [vmem:[#allocation4 + $0x1f0] sm:$0xff] %v3134
        %3161 = vst [vmem:[#allocation4 + $0x218] sm:$0xff] %v3138
        %3162 = vst [vmem:[#allocation4 + $0x240] sm:$0xff] %v3142
        %3163 = vst [vmem:[#allocation4 + $0x268] sm:$0xff] %v3146
        %3180 = vrot.lane.b32.xlu0 %v2716, 64
        %v3181 = vpop.permute.xlu0 %3180
        %3182 = vrot.lane.b32.xlu0 %v2717, 64
        %v3183 = vpop.permute.xlu0 %3182
        %3184 = vrot.lane.b32.xlu0 %v2718, 64
        %v3185 = vpop.permute.xlu0 %3184
        %3186 = vrot.lane.b32.xlu0 %v2719, 64
        %v3187 = vpop.permute.xlu0 %3186
        %3188 = vrot.lane.b32.xlu0 %v2720, 64
        %v3189 = vpop.permute.xlu0 %3188
        %3190 = vrot.lane.b32.xlu0 %v2721, 64
        %v3191 = vpop.permute.xlu0 %3190
        %3192 = vrot.lane.b32.xlu0 %v2722, 64
        %v3193 = vpop.permute.xlu0 %3192
        %3194 = vrot.lane.b32.xlu0 %v2723, 64
        %v3195 = vpop.permute.xlu0 %3194
        %3196 = vrot.lane.b32.xlu0 %v2724, 64
        %v3197 = vpop.permute.xlu0 %3196
        %3198 = vrot.lane.b32.xlu0 %v2725, 64
        %v3199 = vpop.permute.xlu0 %3198
        %3200 = vrot.lane.b32.xlu0 %v2726, 64
        %v3201 = vpop.permute.xlu0 %3200
        %3202 = vrot.lane.b32.xlu0 %v2727, 64
        %v3203 = vpop.permute.xlu0 %3202
        %3204 = vrot.lane.b32.xlu0 %v2728, 64
        %v3205 = vpop.permute.xlu0 %3204
        %3206 = vrot.lane.b32.xlu0 %v2729, 64
        %v3207 = vpop.permute.xlu0 %3206
        %3208 = vrot.lane.b32.xlu0 %v2730, 64
        %v3209 = vpop.permute.xlu0 %3208
        %3210 = vrot.lane.b32.xlu0 %v2731, 64
        %v3211 = vpop.permute.xlu0 %3210
        %v3214 = vsel %vm172, %v2668, %v3181
        %v3218 = vsel %vm172, %v2669, %v3183
        %v3222 = vsel %vm172, %v2670, %v3185
        %v3226 = vsel %vm172, %v2671, %v3187
        %v3230 = vsel %vm172, %v2672, %v3189
        %v3234 = vsel %vm172, %v2673, %v3191
        %v3238 = vsel %vm172, %v2674, %v3193
        %v3242 = vsel %vm172, %v2675, %v3195
        %v3246 = vsel %vm172, %v2676, %v3197
        %v3250 = vsel %vm172, %v2677, %v3199
        %v3254 = vsel %vm172, %v2678, %v3201
        %v3258 = vsel %vm172, %v2679, %v3203
        %v3262 = vsel %vm172, %v2680, %v3205
        %v3266 = vsel %vm172, %v2681, %v3207
        %v3270 = vsel %vm172, %v2682, %v3209
        %v3274 = vsel %vm172, %v2683, %v3211
        %3276 = vst [vmem:[#allocation4 + $0x18] sm:$0xff] %v3214
        %3277 = vst [vmem:[#allocation4 + $0x40] sm:$0xff] %v3218
        %3278 = vst [vmem:[#allocation4 + $0x68] sm:$0xff] %v3222
        %3279 = vst [vmem:[#allocation4 + $0x90] sm:$0xff] %v3226
        %3280 = vst [vmem:[#allocation4 + $0xb8] sm:$0xff] %v3230
        %3281 = vst [vmem:[#allocation4 + $0xe0] sm:$0xff] %v3234
        %3282 = vst [vmem:[#allocation4 + $0x108] sm:$0xff] %v3238
        %3283 = vst [vmem:[#allocation4 + $0x130] sm:$0xff] %v3242
        %3284 = vst [vmem:[#allocation4 + $0x158] sm:$0xff] %v3246
        %3285 = vst [vmem:[#allocation4 + $0x180] sm:$0xff] %v3250
        %3286 = vst [vmem:[#allocation4 + $0x1a8] sm:$0xff] %v3254
        %3287 = vst [vmem:[#allocation4 + $0x1d0] sm:$0xff] %v3258
        %3288 = vst [vmem:[#allocation4 + $0x1f8] sm:$0xff] %v3262
        %3289 = vst [vmem:[#allocation4 + $0x220] sm:$0xff] %v3266
        %3290 = vst [vmem:[#allocation4 + $0x248] sm:$0xff] %v3270
        %3291 = vst [vmem:[#allocation4 + $0x270] sm:$0xff] %v3274
        %3292 = vst.msk [vmem:[#allocation4 + $0x20] sm:$0xff] %vm172, %v2764
        %3293 = vst.msk [vmem:[#allocation4 + $0x48] sm:$0xff] %vm172, %v2765
        %3294 = vst.msk [vmem:[#allocation4 + $0x70] sm:$0xff] %vm172, %v2766
        %3295 = vst.msk [vmem:[#allocation4 + $0x98] sm:$0xff] %vm172, %v2767
        %3296 = vst.msk [vmem:[#allocation4 + $0xc0] sm:$0xff] %vm172, %v2768
        %3297 = vst.msk [vmem:[#allocation4 + $0xe8] sm:$0xff] %vm172, %v2769
        %3298 = vst.msk [vmem:[#allocation4 + $0x110] sm:$0xff] %vm172, %v2770
        %3299 = vst.msk [vmem:[#allocation4 + $0x138] sm:$0xff] %vm172, %v2771
        %3300 = vst.msk [vmem:[#allocation4 + $0x160] sm:$0xff] %vm172, %v2772
        %3301 = vst.msk [vmem:[#allocation4 + $0x188] sm:$0xff] %vm172, %v2773
        %3302 = vst.msk [vmem:[#allocation4 + $0x1b0] sm:$0xff] %vm172, %v2774
        %3303 = vst.msk [vmem:[#allocation4 + $0x1d8] sm:$0xff] %vm172, %v2775
        %3304 = vst.msk [vmem:[#allocation4 + $0x200] sm:$0xff] %vm172, %v2776
        %3305 = vst.msk [vmem:[#allocation4 + $0x228] sm:$0xff] %vm172, %v2777
        %3306 = vst.msk [vmem:[#allocation4 + $0x250] sm:$0xff] %vm172, %v2778
        %3307 = vst.msk [vmem:[#allocation4 + $0x278] sm:$0xff] %vm172, %v2779
        %v3308 = vld [vmem:[#allocation4] sm:$0xff]
        %v3309 = vld [vmem:[#allocation4 + $0x8] sm:$0xff]
        %v3310 = vld [vmem:[#allocation4 + $0x10] sm:$0xff]
        %v3311 = vld [vmem:[#allocation4 + $0x18] sm:$0xff]
        %v3312 = vld [vmem:[#allocation4 + $0x20] sm:$0xff]
        %v3313 = vld [vmem:[#allocation4 + $0x28] sm:$0xff]
        %v3314 = vld [vmem:[#allocation4 + $0x30] sm:$0xff]
        %v3315 = vld [vmem:[#allocation4 + $0x38] sm:$0xff]
        %v3316 = vld [vmem:[#allocation4 + $0x40] sm:$0xff]
        %v3317 = vld [vmem:[#allocation4 + $0x48] sm:$0xff]
        %v3318 = vld [vmem:[#allocation4 + $0x50] sm:$0xff]
        %v3319 = vld [vmem:[#allocation4 + $0x58] sm:$0xff]
        %v3320 = vld [vmem:[#allocation4 + $0x60] sm:$0xff]
        %v3321 = vld [vmem:[#allocation4 + $0x68] sm:$0xff]
        %v3322 = vld [vmem:[#allocation4 + $0x70] sm:$0xff]
        %v3323 = vld [vmem:[#allocation4 + $0x78] sm:$0xff]
        %v3324 = vld [vmem:[#allocation4 + $0x80] sm:$0xff]
        %v3325 = vld [vmem:[#allocation4 + $0x88] sm:$0xff]
        %v3326 = vld [vmem:[#allocation4 + $0x90] sm:$0xff]
        %v3327 = vld [vmem:[#allocation4 + $0x98] sm:$0xff]
        %v3328 = vld [vmem:[#allocation4 + $0xa0] sm:$0xff]
        %v3329 = vld [vmem:[#allocation4 + $0xa8] sm:$0xff]
        %v3330 = vld [vmem:[#allocation4 + $0xb0] sm:$0xff]
        %v3331 = vld [vmem:[#allocation4 + $0xb8] sm:$0xff]
        %v3332 = vld [vmem:[#allocation4 + $0xc0] sm:$0xff]
        %v3333 = vld [vmem:[#allocation4 + $0xc8] sm:$0xff]
        %v3334 = vld [vmem:[#allocation4 + $0xd0] sm:$0xff]
        %v3335 = vld [vmem:[#allocation4 + $0xd8] sm:$0xff]
        %v3336 = vld [vmem:[#allocation4 + $0xe0] sm:$0xff]
        %v3337 = vld [vmem:[#allocation4 + $0xe8] sm:$0xff]
        %v3338 = vld [vmem:[#allocation4 + $0xf0] sm:$0xff]
        %v3339 = vld [vmem:[#allocation4 + $0xf8] sm:$0xff]
        %v3340 = vld [vmem:[#allocation4 + $0x100] sm:$0xff]
        %v3341 = vld [vmem:[#allocation4 + $0x108] sm:$0xff]
        %v3342 = vld [vmem:[#allocation4 + $0x110] sm:$0xff]
        %v3343 = vld [vmem:[#allocation4 + $0x118] sm:$0xff]
        %v3344 = vld [vmem:[#allocation4 + $0x120] sm:$0xff]
        %v3345 = vld [vmem:[#allocation4 + $0x128] sm:$0xff]
        %v3346 = vld [vmem:[#allocation4 + $0x130] sm:$0xff]
        %v3347 = vld [vmem:[#allocation4 + $0x138] sm:$0xff]
        %v3348 = vld [vmem:[#allocation4 + $0x140] sm:$0xff]
        %v3349 = vld [vmem:[#allocation4 + $0x148] sm:$0xff]
        %v3350 = vld [vmem:[#allocation4 + $0x150] sm:$0xff]
        %v3351 = vld [vmem:[#allocation4 + $0x158] sm:$0xff]
        %v3352 = vld [vmem:[#allocation4 + $0x160] sm:$0xff]
        %v3353 = vld [vmem:[#allocation4 + $0x168] sm:$0xff]
        %v3354 = vld [vmem:[#allocation4 + $0x170] sm:$0xff]
        %v3355 = vld [vmem:[#allocation4 + $0x178] sm:$0xff]
        %v3356 = vld [vmem:[#allocation4 + $0x180] sm:$0xff]
        %v3357 = vld [vmem:[#allocation4 + $0x188] sm:$0xff]
        %v3358 = vld [vmem:[#allocation4 + $0x190] sm:$0xff]
        %v3359 = vld [vmem:[#allocation4 + $0x198] sm:$0xff]
        %v3360 = vld [vmem:[#allocation4 + $0x1a0] sm:$0xff]
        %v3361 = vld [vmem:[#allocation4 + $0x1a8] sm:$0xff]
        %v3362 = vld [vmem:[#allocation4 + $0x1b0] sm:$0xff]
        %v3363 = vld [vmem:[#allocation4 + $0x1b8] sm:$0xff]
        %v3364 = vld [vmem:[#allocation4 + $0x1c0] sm:$0xff]
        %v3365 = vld [vmem:[#allocation4 + $0x1c8] sm:$0xff]
        %v3366 = vld [vmem:[#allocation4 + $0x1d0] sm:$0xff]
        %v3367 = vld [vmem:[#allocation4 + $0x1d8] sm:$0xff]
        %v3368 = vld [vmem:[#allocation4 + $0x1e0] sm:$0xff]
        %v3369 = vld [vmem:[#allocation4 + $0x1e8] sm:$0xff]
        %v3370 = vld [vmem:[#allocation4 + $0x1f0] sm:$0xff]
        %v3371 = vld [vmem:[#allocation4 + $0x1f8] sm:$0xff]
        %v3372 = vld [vmem:[#allocation4 + $0x200] sm:$0xff]
        %v3373 = vld [vmem:[#allocation4 + $0x208] sm:$0xff]
        %v3374 = vld [vmem:[#allocation4 + $0x210] sm:$0xff]
        %v3375 = vld [vmem:[#allocation4 + $0x218] sm:$0xff]
        %v3376 = vld [vmem:[#allocation4 + $0x220] sm:$0xff]
        %v3377 = vld [vmem:[#allocation4 + $0x228] sm:$0xff]
        %v3378 = vld [vmem:[#allocation4 + $0x230] sm:$0xff]
        %v3379 = vld [vmem:[#allocation4 + $0x238] sm:$0xff]
        %v3380 = vld [vmem:[#allocation4 + $0x240] sm:$0xff]
        %v3381 = vld [vmem:[#allocation4 + $0x248] sm:$0xff]
        %v3382 = vld [vmem:[#allocation4 + $0x250] sm:$0xff]
        %v3383 = vld [vmem:[#allocation4 + $0x258] sm:$0xff]
        %v3384 = vld [vmem:[#allocation4 + $0x260] sm:$0xff]
        %v3385 = vld [vmem:[#allocation4 + $0x268] sm:$0xff]
        %v3386 = vld [vmem:[#allocation4 + $0x270] sm:$0xff]
        %v3387 = vld [vmem:[#allocation4 + $0x278] sm:$0xff]
        %s3388 = smul.u32 %s2346, 72
        %s3389 = smul.addr %s3388, 4
        %s3390 = scalar_lea.vmem %s1, %s3389
        %v3391 = vld [vmem:[%s3390] sm:$0xf]
        %v3392 = vld [vmem:[%s3390 + $0x4] sm:$0xf]
        %v3393 = vld [vmem:[%s3390 + $0x8] sm:$0xf]
        %v3394 = vld [vmem:[%s3390 + $0xc] sm:$0xf]
        %v3395 = vld [vmem:[%s3390 + $0x10] sm:$0xf]
        %v3396 = vld [vmem:[%s3390 + $0x14] sm:$0xf]
        %v3397 = vld [vmem:[%s3390 + $0x18] sm:$0xf]
        %v3398 = vld [vmem:[%s3390 + $0x1c] sm:$0xf]
        %v3399 = vld [vmem:[%s3390 + $0x20] sm:$0xf]
        %v3400 = vld [vmem:[%s3390 + $0x24] sm:$0xf]
        %v3401 = vld [vmem:[%s3390 + $0x28] sm:$0xf]
        %v3402 = vld [vmem:[%s3390 + $0x2c] sm:$0xf]
        %v3403 = vld [vmem:[%s3390 + $0x30] sm:$0xf]
        %v3404 = vld [vmem:[%s3390 + $0x34] sm:$0xf]
        %v3405 = vld [vmem:[%s3390 + $0x38] sm:$0xf]
        %v3406 = vld [vmem:[%s3390 + $0x3c] sm:$0xf]
        %v3407 = vld [vmem:[%s3390 + $0x40] sm:$0xf]
        %v3408 = vld [vmem:[%s3390 + $0x44] sm:$0xf]
        %v3409 = vld [vmem:[%s3390 + $0x48] sm:$0xf]
        %v3410 = vld [vmem:[%s3390 + $0x4c] sm:$0xf]
        %v3411 = vld [vmem:[%s3390 + $0x50] sm:$0xf]
        %v3412 = vld [vmem:[%s3390 + $0x54] sm:$0xf]
        %v3413 = vld [vmem:[%s3390 + $0x58] sm:$0xf]
        %v3414 = vld [vmem:[%s3390 + $0x5c] sm:$0xf]
        %v3415 = vld [vmem:[%s3390 + $0x60] sm:$0xf]
        %v3416 = vld [vmem:[%s3390 + $0x64] sm:$0xf]
        %v3417 = vld [vmem:[%s3390 + $0x68] sm:$0xf]
        %v3418 = vld [vmem:[%s3390 + $0x6c] sm:$0xf]
        %v3419 = vld [vmem:[%s3390 + $0x70] sm:$0xf]
        %v3420 = vld [vmem:[%s3390 + $0x74] sm:$0xf]
        %v3421 = vld [vmem:[%s3390 + $0x78] sm:$0xf]
        %v3422 = vld [vmem:[%s3390 + $0x7c] sm:$0xf]
        %v3423 = vld [vmem:[%s3390 + $0x80] sm:$0xf]
        %v3424 = vld [vmem:[%s3390 + $0x84] sm:$0xf]
        %v3425 = vld [vmem:[%s3390 + $0x88] sm:$0xf]
        %v3426 = vld [vmem:[%s3390 + $0x8c] sm:$0xf]
        %v3427 = vld [vmem:[%s3390 + $0x90] sm:$0xf]
        %v3428 = vld [vmem:[%s3390 + $0x94] sm:$0xf]
        %v3429 = vld [vmem:[%s3390 + $0x98] sm:$0xf]
        %v3430 = vld [vmem:[%s3390 + $0x9c] sm:$0xf]
        %v3431 = vld [vmem:[%s3390 + $0xa0] sm:$0xf]
        %v3432 = vld [vmem:[%s3390 + $0xa4] sm:$0xf]
        %v3433 = vld [vmem:[%s3390 + $0xa8] sm:$0xf]
        %v3434 = vld [vmem:[%s3390 + $0xac] sm:$0xf]
        %v3435 = vld [vmem:[%s3390 + $0xb0] sm:$0xf]
        %v3436 = vld [vmem:[%s3390 + $0xb4] sm:$0xf]
        %v3437 = vld [vmem:[%s3390 + $0xb8] sm:$0xf]
        %v3438 = vld [vmem:[%s3390 + $0xbc] sm:$0xf]
        %v3439 = vld [vmem:[%s3390 + $0xc0] sm:$0xf]
        %v3440 = vld [vmem:[%s3390 + $0xc4] sm:$0xf]
        %v3441 = vld [vmem:[%s3390 + $0xc8] sm:$0xf]
        %v3442 = vld [vmem:[%s3390 + $0xcc] sm:$0xf]
        %v3443 = vld [vmem:[%s3390 + $0xd0] sm:$0xf]
        %v3444 = vld [vmem:[%s3390 + $0xd4] sm:$0xf]
        %v3445 = vld [vmem:[%s3390 + $0xd8] sm:$0xf]
        %v3446 = vld [vmem:[%s3390 + $0xdc] sm:$0xf]
        %v3447 = vld [vmem:[%s3390 + $0xe0] sm:$0xf]
        %v3448 = vld [vmem:[%s3390 + $0xe4] sm:$0xf]
        %v3449 = vld [vmem:[%s3390 + $0xe8] sm:$0xf]
        %v3450 = vld [vmem:[%s3390 + $0xec] sm:$0xf]
        %v3451 = vld [vmem:[%s3390 + $0xf0] sm:$0xf]
        %v3452 = vld [vmem:[%s3390 + $0xf4] sm:$0xf]
        %v3453 = vld [vmem:[%s3390 + $0xf8] sm:$0xf]
        %v3454 = vld [vmem:[%s3390 + $0xfc] sm:$0xf]
        %v3455 = vld [vmem:[%s3390 + $0x100] sm:$0xf]
        %v3456 = vld [vmem:[%s3390 + $0x104] sm:$0xf]
        %v3457 = vld [vmem:[%s3390 + $0x108] sm:$0xf]
        %v3458 = vld [vmem:[%s3390 + $0x10c] sm:$0xf]
        %v3459 = vld [vmem:[%s3390 + $0x110] sm:$0xf]
        %v3460 = vld [vmem:[%s3390 + $0x114] sm:$0xf]
        %v3461 = vld [vmem:[%s3390 + $0x118] sm:$0xf]
        %v3462 = vld [vmem:[%s3390 + $0x11c] sm:$0xf]
        %v3535 = vunpack.c.l.b16 %v3391
        %v3536 = vunpack.c.l.b16 %v3392
        %v3537 = vunpack.c.l.b16 %v3393
        %v3538 = vunpack.c.l.b16 %v3394
        %v3539 = vunpack.c.l.b16 %v3395
        %v3540 = vunpack.c.l.b16 %v3396
        %v3541 = vunpack.c.l.b16 %v3397
        %v3542 = vunpack.c.l.b16 %v3398
        %v3543 = vunpack.c.l.b16 %v3399
        %v3544 = vunpack.c.l.b16 %v3400
        %v3545 = vunpack.c.l.b16 %v3401
        %v3546 = vunpack.c.l.b16 %v3402
        %v3547 = vunpack.c.l.b16 %v3403
        %v3548 = vunpack.c.l.b16 %v3404
        %v3549 = vunpack.c.l.b16 %v3405
        %v3550 = vunpack.c.l.b16 %v3406
        %v3551 = vunpack.c.l.b16 %v3407
        %v3552 = vunpack.c.l.b16 %v3408
        %v3553 = vunpack.c.l.b16 %v3409
        %v3554 = vunpack.c.l.b16 %v3410
        %v3555 = vunpack.c.l.b16 %v3411
        %v3556 = vunpack.c.l.b16 %v3412
        %v3557 = vunpack.c.l.b16 %v3413
        %v3558 = vunpack.c.l.b16 %v3414
        %v3559 = vunpack.c.l.b16 %v3415
        %v3560 = vunpack.c.l.b16 %v3416
        %v3561 = vunpack.c.l.b16 %v3417
        %v3562 = vunpack.c.l.b16 %v3418
        %v3563 = vunpack.c.l.b16 %v3419
        %v3564 = vunpack.c.l.b16 %v3420
        %v3565 = vunpack.c.l.b16 %v3421
        %v3566 = vunpack.c.l.b16 %v3422
        %v3567 = vunpack.c.l.b16 %v3423
        %v3568 = vunpack.c.l.b16 %v3424
        %v3569 = vunpack.c.l.b16 %v3425
        %v3570 = vunpack.c.l.b16 %v3426
        %v3571 = vunpack.c.l.b16 %v3427
        %v3572 = vunpack.c.l.b16 %v3428
        %v3573 = vunpack.c.l.b16 %v3429
        %v3574 = vunpack.c.l.b16 %v3430
        %v3575 = vunpack.c.l.b16 %v3431
        %v3576 = vunpack.c.l.b16 %v3432
        %v3577 = vunpack.c.l.b16 %v3433
        %v3578 = vunpack.c.l.b16 %v3434
        %v3579 = vunpack.c.l.b16 %v3435
        %v3580 = vunpack.c.l.b16 %v3436
        %v3581 = vunpack.c.l.b16 %v3437
        %v3582 = vunpack.c.l.b16 %v3438
        %v3583 = vunpack.c.l.b16 %v3439
        %v3584 = vunpack.c.l.b16 %v3440
        %v3585 = vunpack.c.l.b16 %v3441
        %v3586 = vunpack.c.l.b16 %v3442
        %v3587 = vunpack.c.l.b16 %v3443
        %v3588 = vunpack.c.l.b16 %v3444
        %v3589 = vunpack.c.l.b16 %v3445
        %v3590 = vunpack.c.l.b16 %v3446
        %v3591 = vunpack.c.l.b16 %v3447
        %v3592 = vunpack.c.l.b16 %v3448
        %v3593 = vunpack.c.l.b16 %v3449
        %v3594 = vunpack.c.l.b16 %v3450
        %v3595 = vunpack.c.l.b16 %v3451
        %v3596 = vunpack.c.l.b16 %v3452
        %v3597 = vunpack.c.l.b16 %v3453
        %v3598 = vunpack.c.l.b16 %v3454
        %v3599 = vunpack.c.l.b16 %v3455
        %v3600 = vunpack.c.l.b16 %v3456
        %v3601 = vunpack.c.l.b16 %v3457
        %v3602 = vunpack.c.l.b16 %v3458
        %v3603 = vunpack.c.l.b16 %v3459
        %v3604 = vunpack.c.l.b16 %v3460
        %v3605 = vunpack.c.l.b16 %v3461
        %v3606 = vunpack.c.l.b16 %v3462
        %v3607 = vpack.c.b16 %v3536, %v3535
        %v3608 = vpack.c.b16 %v3538, %v3537
        %v3609 = vpack.c.b16 %v3540, %v3539
        %v3610 = vpack.c.b16 %v3542, %v3541
        %v3611 = vpack.c.b16 %v3544, %v3543
        %v3612 = vpack.c.b16 %v3546, %v3545
        %v3613 = vpack.c.b16 %v3548, %v3547
        %v3614 = vpack.c.b16 %v3550, %v3549
        %v3615 = vpack.c.b16 %v3552, %v3551
        %v3616 = vpack.c.b16 %v3554, %v3553
        %v3617 = vpack.c.b16 %v3556, %v3555
        %v3618 = vpack.c.b16 %v3558, %v3557
        %v3619 = vpack.c.b16 %v3560, %v3559
        %v3620 = vpack.c.b16 %v3562, %v3561
        %v3621 = vpack.c.b16 %v3564, %v3563
        %v3622 = vpack.c.b16 %v3566, %v3565
        %v3623 = vpack.c.b16 %v3568, %v3567
        %v3624 = vpack.c.b16 %v3570, %v3569
        %v3625 = vpack.c.b16 %v3572, %v3571
        %v3626 = vpack.c.b16 %v3574, %v3573
        %v3627 = vpack.c.b16 %v3576, %v3575
        %v3628 = vpack.c.b16 %v3578, %v3577
        %v3629 = vpack.c.b16 %v3580, %v3579
        %v3630 = vpack.c.b16 %v3582, %v3581
        %v3631 = vpack.c.b16 %v3584, %v3583
        %v3632 = vpack.c.b16 %v3586, %v3585
        %v3633 = vpack.c.b16 %v3588, %v3587
        %v3634 = vpack.c.b16 %v3590, %v3589
        %v3635 = vpack.c.b16 %v3592, %v3591
        %v3636 = vpack.c.b16 %v3594, %v3593
        %v3637 = vpack.c.b16 %v3596, %v3595
        %v3638 = vpack.c.b16 %v3598, %v3597
        %v3639 = vpack.c.b16 %v3600, %v3599
        %v3640 = vpack.c.b16 %v3602, %v3601
        %v3641 = vpack.c.b16 %v3604, %v3603
        %v3642 = vpack.c.b16 %v3606, %v3605
        %v3680 = vsel %vm172, %v3312, 0
        %v3683 = vsel %vm172, %v3317, 0
        %v3686 = vsel %vm172, %v3322, 0
        %v3689 = vsel %vm172, %v3327, 0
        %v3692 = vsel %vm172, %v3332, 0
        %v3695 = vsel %vm172, %v3337, 0
        %v3698 = vsel %vm172, %v3342, 0
        %v3701 = vsel %vm172, %v3347, 0
        %v3704 = vsel %vm172, %v3352, 0
        %v3707 = vsel %vm172, %v3357, 0
        %v3710 = vsel %vm172, %v3362, 0
        %v3713 = vsel %vm172, %v3367, 0
        %v3716 = vsel %vm172, %v3372, 0
        %v3719 = vsel %vm172, %v3377, 0
        %v3722 = vsel %vm172, %v3382, 0
        %v3725 = vsel %vm172, %v3387, 0
        %3727 = vmatprep.subr.bf16.mxu0 0
        %3728 = vmatpush1.bf16.msra.mxu0 %v3607
        %3729 = vmatprep.subr.bf16.mxu0 0
        %3730 = vmatpush1.bf16.msra.mxu0 %v3608
        %3731 = vmatprep.subr.bf16.mxu0 0
        %3732 = vmatpush1.bf16.msra.mxu0 %v3609
        %3733 = vmatprep.subr.bf16.mxu0 0
        %3734 = vmatpush1.bf16.msra.mxu0 %v3610
        %3735 = vmatprep.subr.bf16.mxu0 0
        %3736 = vmatpush1.bf16.msra.mxu0 %v3611
        %3737 = vmatprep.subr.bf16.mxu0 0
        %3738 = vmatpush1.bf16.msra.mxu0 %v3612
        %3739 = vmatprep.subr.bf16.mxu0 0
        %3740 = vmatpush1.bf16.msra.mxu0 %v3613
        %3741 = vmatprep.subr.bf16.mxu0 0
        %3742 = vmatpush1.bf16.msra.mxu0 %v3614
        %3743 = vmatprep.subr.bf16.mxu0 0
        %3744 = vmatpush1.bf16.msra.mxu0 %v3615
        %3745 = vmatprep.subr.bf16.mxu0 0
        %3746 = vmatpush1.bf16.msra.mxu0 %v3616
        %3747 = vmatprep.subr.bf16.mxu0 0
        %3748 = vmatpush1.bf16.msra.mxu0 %v3617
        %3749 = vmatprep.subr.bf16.mxu0 0
        %3750 = vmatpush1.bf16.msra.mxu0 %v3618
        %3751 = vmatprep.subr.bf16.mxu0 0
        %3752 = vmatpush1.bf16.msra.mxu0 %v3619
        %3753 = vmatprep.subr.bf16.mxu0 0
        %3754 = vmatpush1.bf16.msra.mxu0 %v3620
        %3755 = vmatprep.subr.bf16.mxu0 0
        %3756 = vmatpush1.bf16.msra.mxu0 %v3621
        %3757 = vmatprep.subr.bf16.mxu0 0
        %3758 = vmatpush1.bf16.msra.mxu0 %v3622
        %3759 = vmatprep.mubr.bf16.mxu0 %v3309
        %3760 = vmatmul.mubr.bf16.gmra.mrb[0].mxu0 %v3308
        %v3761 = vpop.f32.mrb[0].mxu0
        %v3762 = vadd.f32 0.0, %v3761
        %v3763 = vpop.f32.mrb[0].mxu0
        %v3764 = vpop.f32.mrb[0].mxu0
        %v3765 = vadd.f32 0.0, %v3764
        %v3766 = vpop.f32.mrb[0].mxu0
        %3767 = vmatprep.mubr.bf16.mxu0 %v3314
        %3768 = vmatmul.mubr.bf16.gmra.mrb[0].mxu0 %v3313
        %v3769 = vpop.f32.mrb[0].mxu0
        %v3770 = vadd.f32 0.0, %v3769
        %v3771 = vpop.f32.mrb[0].mxu0
        %v3772 = vpop.f32.mrb[0].mxu0
        %v3773 = vadd.f32 0.0, %v3772
        %v3774 = vpop.f32.mrb[0].mxu0
        %3775 = vmatprep.mubr.bf16.mxu0 %v3319
        %3776 = vmatmul.mubr.bf16.gmra.mrb[0].mxu0 %v3318
        %v3777 = vpop.f32.mrb[0].mxu0
        %v3778 = vadd.f32 0.0, %v3777
        %v3779 = vpop.f32.mrb[0].mxu0
        %v3780 = vpop.f32.mrb[0].mxu0
        %v3781 = vadd.f32 0.0, %v3780
        %v3782 = vpop.f32.mrb[0].mxu0
        %3783 = vmatprep.mubr.bf16.mxu0 %v3324
        %3784 = vmatmul.mubr.bf16.gmra.mrb[0].mxu0 %v3323
        %v3785 = vpop.f32.mrb[0].mxu0
        %v3786 = vadd.f32 0.0, %v3785
        %v3787 = vpop.f32.mrb[0].mxu0
        %v3788 = vpop.f32.mrb[0].mxu0
        %v3789 = vadd.f32 0.0, %v3788
        %v3790 = vpop.f32.mrb[0].mxu0
        %3791 = vmatprep.mubr.bf16.mxu0 %v3329
        %3792 = vmatmul.mubr.bf16.gmra.mrb[0].mxu0 %v3328
        %v3793 = vpop.f32.mrb[0].mxu0
        %v3794 = vadd.f32 0.0, %v3793
        %v3795 = vpop.f32.mrb[0].mxu0
        %v3796 = vpop.f32.mrb[0].mxu0
        %v3797 = vadd.f32 0.0, %v3796
        %v3798 = vpop.f32.mrb[0].mxu0
        %3799 = vmatprep.mubr.bf16.mxu0 %v3334
        %3800 = vmatmul.mubr.bf16.gmra.mrb[0].mxu0 %v3333
        %v3801 = vpop.f32.mrb[0].mxu0
        %v3802 = vadd.f32 0.0, %v3801
        %v3803 = vpop.f32.mrb[0].mxu0
        %v3804 = vpop.f32.mrb[0].mxu0
        %v3805 = vadd.f32 0.0, %v3804
        %v3806 = vpop.f32.mrb[0].mxu0
        %3807 = vmatprep.mubr.bf16.mxu0 %v3339
        %3808 = vmatmul.mubr.bf16.gmra.mrb[0].mxu0 %v3338
        %v3809 = vpop.f32.mrb[0].mxu0
        %v3810 = vadd.f32 0.0, %v3809
        %v3811 = vpop.f32.mrb[0].mxu0
        %v3812 = vpop.f32.mrb[0].mxu0
        %v3813 = vadd.f32 0.0, %v3812
        %v3814 = vpop.f32.mrb[0].mxu0
        %3815 = vmatprep.mubr.bf16.mxu0 %v3344
        %3816 = vmatmul.mubr.bf16.gmra.mrb[0].mxu0 %v3343
        %v3817 = vpop.f32.mrb[0].mxu0
        %v3818 = vadd.f32 0.0, %v3817
        %v3819 = vpop.f32.mrb[0].mxu0
        %v3820 = vpop.f32.mrb[0].mxu0
        %v3821 = vadd.f32 0.0, %v3820
        %v3822 = vpop.f32.mrb[0].mxu0
        %3823 = vmatprep.mubr.bf16.mxu0 %v3349
        %3824 = vmatmul.mubr.bf16.gmra.mrb[0].mxu0 %v3348
        %v3825 = vpop.f32.mrb[0].mxu0
        %v3826 = vadd.f32 0.0, %v3825
        %v3827 = vpop.f32.mrb[0].mxu0
        %v3828 = vpop.f32.mrb[0].mxu0
        %v3829 = vadd.f32 0.0, %v3828
        %v3830 = vpop.f32.mrb[0].mxu0
        %3831 = vmatprep.mubr.bf16.mxu0 %v3354
        %3832 = vmatmul.mubr.bf16.gmra.mrb[0].mxu0 %v3353
        %v3833 = vpop.f32.mrb[0].mxu0
        %v3834 = vadd.f32 0.0, %v3833
        %v3835 = vpop.f32.mrb[0].mxu0
        %v3836 = vpop.f32.mrb[0].mxu0
        %v3837 = vadd.f32 0.0, %v3836
        %v3838 = vpop.f32.mrb[0].mxu0
        %3839 = vmatprep.mubr.bf16.mxu0 %v3359
        %3840 = vmatmul.mubr.bf16.gmra.mrb[0].mxu0 %v3358
        %v3841 = vpop.f32.mrb[0].mxu0
        %v3842 = vadd.f32 0.0, %v3841
        %v3843 = vpop.f32.mrb[0].mxu0
        %v3844 = vpop.f32.mrb[0].mxu0
        %v3845 = vadd.f32 0.0, %v3844
        %v3846 = vpop.f32.mrb[0].mxu0
        %3847 = vmatprep.mubr.bf16.mxu0 %v3364
        %3848 = vmatmul.mubr.bf16.gmra.mrb[0].mxu0 %v3363
        %v3849 = vpop.f32.mrb[0].mxu0
        %v3850 = vadd.f32 0.0, %v3849
        %v3851 = vpop.f32.mrb[0].mxu0
        %v3852 = vpop.f32.mrb[0].mxu0
        %v3853 = vadd.f32 0.0, %v3852
        %v3854 = vpop.f32.mrb[0].mxu0
        %3855 = vmatprep.mubr.bf16.mxu0 %v3369
        %3856 = vmatmul.mubr.bf16.gmra.mrb[0].mxu0 %v3368
        %v3857 = vpop.f32.mrb[0].mxu0
        %v3858 = vadd.f32 0.0, %v3857
        %v3859 = vpop.f32.mrb[0].mxu0
        %v3860 = vpop.f32.mrb[0].mxu0
        %v3861 = vadd.f32 0.0, %v3860
        %v3862 = vpop.f32.mrb[0].mxu0
        %3863 = vmatprep.mubr.bf16.mxu0 %v3374
        %3864 = vmatmul.mubr.bf16.gmra.mrb[0].mxu0 %v3373
        %v3865 = vpop.f32.mrb[0].mxu0
        %v3866 = vadd.f32 0.0, %v3865
        %v3867 = vpop.f32.mrb[0].mxu0
        %v3868 = vpop.f32.mrb[0].mxu0
        %v3869 = vadd.f32 0.0, %v3868
        %v3870 = vpop.f32.mrb[0].mxu0
        %3871 = vmatprep.mubr.bf16.mxu0 %v3379
        %3872 = vmatmul.mubr.bf16.gmra.mrb[0].mxu0 %v3378
        %v3873 = vpop.f32.mrb[0].mxu0
        %v3874 = vadd.f32 0.0, %v3873
        %v3875 = vpop.f32.mrb[0].mxu0
        %v3876 = vpop.f32.mrb[0].mxu0
        %v3877 = vadd.f32 0.0, %v3876
        %v3878 = vpop.f32.mrb[0].mxu0
        %3879 = vmatprep.mubr.bf16.mxu0 %v3384
        %3880 = vmatmul.mubr.bf16.gmra.mrb[0].mxu0 %v3383
        %v3881 = vpop.f32.mrb[0].mxu0
        %v3882 = vadd.f32 0.0, %v3881
        %v3883 = vpop.f32.mrb[0].mxu0
        %v3884 = vpop.f32.mrb[0].mxu0
        %v3885 = vadd.f32 0.0, %v3884
        %v3886 = vpop.f32.mrb[0].mxu0
        %3887 = vdwg.mxu0
        %3888 = vmatprep.subr.bf16.mxu0 0
        %3889 = vmatpush1.bf16.msra.mxu0 %v3623
        %3890 = vmatprep.subr.bf16.mxu0 0
        %3891 = vmatpush1.bf16.msra.mxu0 %v3624
        %3892 = vmatprep.subr.bf16.mxu0 0
        %3893 = vmatpush1.bf16.msra.mxu0 %v3625
        %3894 = vmatprep.subr.bf16.mxu0 0
        %3895 = vmatpush1.bf16.msra.mxu0 %v3626
        %3896 = vmatprep.subr.bf16.mxu0 0
        %3897 = vmatpush1.bf16.msra.mxu0 %v3627
        %3898 = vmatprep.subr.bf16.mxu0 0
        %3899 = vmatpush1.bf16.msra.mxu0 %v3628
        %3900 = vmatprep.subr.bf16.mxu0 0
        %3901 = vmatpush1.bf16.msra.mxu0 %v3629
        %3902 = vmatprep.subr.bf16.mxu0 0
        %3903 = vmatpush1.bf16.msra.mxu0 %v3630
        %3904 = vmatprep.subr.bf16.mxu0 0
        %3905 = vmatpush1.bf16.msra.mxu0 %v3631
        %3906 = vmatprep.subr.bf16.mxu0 0
        %3907 = vmatpush1.bf16.msra.mxu0 %v3632
        %3908 = vmatprep.subr.bf16.mxu0 0
        %3909 = vmatpush1.bf16.msra.mxu0 %v3633
        %3910 = vmatprep.subr.bf16.mxu0 0
        %3911 = vmatpush1.bf16.msra.mxu0 %v3634
        %3912 = vmatprep.subr.bf16.mxu0 0
        %3913 = vmatpush1.bf16.msra.mxu0 %v3635
        %3914 = vmatprep.subr.bf16.mxu0 0
        %3915 = vmatpush1.bf16.msra.mxu0 %v3636
        %3916 = vmatprep.subr.bf16.mxu0 0
        %3917 = vmatpush1.bf16.msra.mxu0 %v3637
        %3918 = vmatprep.subr.bf16.mxu0 0
        %3919 = vmatpush1.bf16.msra.mxu0 %v3638
        %3920 = vmatprep.mubr.bf16.mxu0 %v3311
        %3921 = vmatmul.mubr.bf16.gmra.mrb[0].mxu0 %v3310
        %v3922 = vpop.f32.mrb[0].mxu0
        %v3923 = vadd.f32 %v3762, %v3922
        %v3924 = vpop.f32.mrb[0].mxu0
        %v3925 = vpop.f32.mrb[0].mxu0
        %v3926 = vadd.f32 %v3765, %v3925
        %v3927 = vpop.f32.mrb[0].mxu0
        %3928 = vmatprep.mubr.bf16.mxu0 %v3316
        %3929 = vmatmul.mubr.bf16.gmra.mrb[0].mxu0 %v3315
        %v3930 = vpop.f32.mrb[0].mxu0
        %v3931 = vadd.f32 %v3770, %v3930
        %v3932 = vpop.f32.mrb[0].mxu0
        %v3933 = vpop.f32.mrb[0].mxu0
        %v3934 = vadd.f32 %v3773, %v3933
        %v3935 = vpop.f32.mrb[0].mxu0
        %3936 = vmatprep.mubr.bf16.mxu0 %v3321
        %3937 = vmatmul.mubr.bf16.gmra.mrb[0].mxu0 %v3320
        %v3938 = vpop.f32.mrb[0].mxu0
        %v3939 = vadd.f32 %v3778, %v3938
        %v3940 = vpop.f32.mrb[0].mxu0
        %v3941 = vpop.f32.mrb[0].mxu0
        %v3942 = vadd.f32 %v3781, %v3941
        %v3943 = vpop.f32.mrb[0].mxu0
        %3944 = vmatprep.mubr.bf16.mxu0 %v3326
        %3945 = vmatmul.mubr.bf16.gmra.mrb[0].mxu0 %v3325
        %v3946 = vpop.f32.mrb[0].mxu0
        %v3947 = vadd.f32 %v3786, %v3946
        %v3948 = vpop.f32.mrb[0].mxu0
        %v3949 = vpop.f32.mrb[0].mxu0
        %v3950 = vadd.f32 %v3789, %v3949
        %v3951 = vpop.f32.mrb[0].mxu0
        %3952 = vmatprep.mubr.bf16.mxu0 %v3331
        %3953 = vmatmul.mubr.bf16.gmra.mrb[0].mxu0 %v3330
        %v3954 = vpop.f32.mrb[0].mxu0
        %v3955 = vadd.f32 %v3794, %v3954
        %v3956 = vpop.f32.mrb[0].mxu0
        %v3957 = vpop.f32.mrb[0].mxu0
        %v3958 = vadd.f32 %v3797, %v3957
        %v3959 = vpop.f32.mrb[0].mxu0
        %3960 = vmatprep.mubr.bf16.mxu0 %v3336
        %3961 = vmatmul.mubr.bf16.gmra.mrb[0].mxu0 %v3335
        %v3962 = vpop.f32.mrb[0].mxu0
        %v3963 = vadd.f32 %v3802, %v3962
        %v3964 = vpop.f32.mrb[0].mxu0
        %v3965 = vpop.f32.mrb[0].mxu0
        %v3966 = vadd.f32 %v3805, %v3965
        %v3967 = vpop.f32.mrb[0].mxu0
        %3968 = vmatprep.mubr.bf16.mxu0 %v3341
        %3969 = vmatmul.mubr.bf16.gmra.mrb[0].mxu0 %v3340
        %v3970 = vpop.f32.mrb[0].mxu0
        %v3971 = vadd.f32 %v3810, %v3970
        %v3972 = vpop.f32.mrb[0].mxu0
        %v3973 = vpop.f32.mrb[0].mxu0
        %v3974 = vadd.f32 %v3813, %v3973
        %v3975 = vpop.f32.mrb[0].mxu0
        %3976 = vmatprep.mubr.bf16.mxu0 %v3346
        %3977 = vmatmul.mubr.bf16.gmra.mrb[0].mxu0 %v3345
        %v3978 = vpop.f32.mrb[0].mxu0
        %v3979 = vadd.f32 %v3818, %v3978
        %v3980 = vpop.f32.mrb[0].mxu0
        %v3981 = vpop.f32.mrb[0].mxu0
        %v3982 = vadd.f32 %v3821, %v3981
        %v3983 = vpop.f32.mrb[0].mxu0
        %3984 = vmatprep.mubr.bf16.mxu0 %v3351
        %3985 = vmatmul.mubr.bf16.gmra.mrb[0].mxu0 %v3350
        %v3986 = vpop.f32.mrb[0].mxu0
        %v3987 = vadd.f32 %v3826, %v3986
        %v3988 = vpop.f32.mrb[0].mxu0
        %v3989 = vpop.f32.mrb[0].mxu0
        %v3990 = vadd.f32 %v3829, %v3989
        %v3991 = vpop.f32.mrb[0].mxu0
        %3992 = vmatprep.mubr.bf16.mxu0 %v3356
        %3993 = vmatmul.mubr.bf16.gmra.mrb[0].mxu0 %v3355
        %v3994 = vpop.f32.mrb[0].mxu0
        %v3995 = vadd.f32 %v3834, %v3994
        %v3996 = vpop.f32.mrb[0].mxu0
        %v3997 = vpop.f32.mrb[0].mxu0
        %v3998 = vadd.f32 %v3837, %v3997
        %v3999 = vpop.f32.mrb[0].mxu0
        %4000 = vmatprep.mubr.bf16.mxu0 %v3361
        %4001 = vmatmul.mubr.bf16.gmra.mrb[0].mxu0 %v3360
        %v4002 = vpop.f32.mrb[0].mxu0
        %v4003 = vadd.f32 %v3842, %v4002
        %v4004 = vpop.f32.mrb[0].mxu0
        %v4005 = vpop.f32.mrb[0].mxu0
        %v4006 = vadd.f32 %v3845, %v4005
        %v4007 = vpop.f32.mrb[0].mxu0
        %4008 = vmatprep.mubr.bf16.mxu0 %v3366
        %4009 = vmatmul.mubr.bf16.gmra.mrb[0].mxu0 %v3365
        %v4010 = vpop.f32.mrb[0].mxu0
        %v4011 = vadd.f32 %v3850, %v4010
        %v4012 = vpop.f32.mrb[0].mxu0
        %v4013 = vpop.f32.mrb[0].mxu0
        %v4014 = vadd.f32 %v3853, %v4013
        %v4015 = vpop.f32.mrb[0].mxu0
        %4016 = vmatprep.mubr.bf16.mxu0 %v3371
        %4017 = vmatmul.mubr.bf16.gmra.mrb[0].mxu0 %v3370
        %v4018 = vpop.f32.mrb[0].mxu0
        %v4019 = vadd.f32 %v3858, %v4018
        %v4020 = vpop.f32.mrb[0].mxu0
        %v4021 = vpop.f32.mrb[0].mxu0
        %v4022 = vadd.f32 %v3861, %v4021
        %v4023 = vpop.f32.mrb[0].mxu0
        %4024 = vmatprep.mubr.bf16.mxu0 %v3376
        %4025 = vmatmul.mubr.bf16.gmra.mrb[0].mxu0 %v3375
        %v4026 = vpop.f32.mrb[0].mxu0
        %v4027 = vadd.f32 %v3866, %v4026
        %v4028 = vpop.f32.mrb[0].mxu0
        %v4029 = vpop.f32.mrb[0].mxu0
        %v4030 = vadd.f32 %v3869, %v4029
        %v4031 = vpop.f32.mrb[0].mxu0
        %4032 = vmatprep.mubr.bf16.mxu0 %v3381
        %4033 = vmatmul.mubr.bf16.gmra.mrb[0].mxu0 %v3380
        %v4034 = vpop.f32.mrb[0].mxu0
        %v4035 = vadd.f32 %v3874, %v4034
        %v4036 = vpop.f32.mrb[0].mxu0
        %v4037 = vpop.f32.mrb[0].mxu0
        %v4038 = vadd.f32 %v3877, %v4037
        %v4039 = vpop.f32.mrb[0].mxu0
        %4040 = vmatprep.mubr.bf16.mxu0 %v3386
        %4041 = vmatmul.mubr.bf16.gmra.mrb[0].mxu0 %v3385
        %v4042 = vpop.f32.mrb[0].mxu0
        %v4043 = vadd.f32 %v3882, %v4042
        %v4044 = vpop.f32.mrb[0].mxu0
        %v4045 = vpop.f32.mrb[0].mxu0
        %v4046 = vadd.f32 %v3885, %v4045
        %v4047 = vpop.f32.mrb[0].mxu0
        %4048 = vdwg.mxu0
        %4049 = vmatprep.subr.bf16.mxu0 0
        %4050 = vmatpush1.bf16.msra.mxu0 %v3639
        %4051 = vmatprep.subr.bf16.mxu0 0
        %4052 = vmatpush1.bf16.msra.mxu0 %v3640
        %4053 = vmatprep.subr.bf16.mxu0 0
        %4054 = vmatpush1.bf16.msra.mxu0 %v3641
        %4055 = vmatprep.subr.bf16.mxu0 0
        %4056 = vmatpush1.bf16.msra.mxu0 %v3642
        %4057 = vmatprep.subr.bf16.mxu0 0
        %4058 = vmatpush1.bf16.msra.mxu0 0
        %4059 = vmatprep.subr.bf16.mxu0 0
        %4060 = vmatpush1.bf16.msra.mxu0 0
        %4061 = vmatprep.subr.bf16.mxu0 0
        %4062 = vmatpush1.bf16.msra.mxu0 0
        %4063 = vmatprep.subr.bf16.mxu0 0
        %4064 = vmatpush1.bf16.msra.mxu0 0
        %4065 = vmatprep.subr.bf16.mxu0 0
        %4066 = vmatpush1.bf16.msra.mxu0 0
        %4067 = vmatprep.subr.bf16.mxu0 0
        %4068 = vmatpush1.bf16.msra.mxu0 0
        %4069 = vmatprep.subr.bf16.mxu0 0
        %4070 = vmatpush1.bf16.msra.mxu0 0
        %4071 = vmatprep.subr.bf16.mxu0 0
        %4072 = vmatpush1.bf16.msra.mxu0 0
        %4073 = vmatprep.subr.bf16.mxu0 0
        %4074 = vmatpush1.bf16.msra.mxu0 0
        %4075 = vmatprep.subr.bf16.mxu0 0
        %4076 = vmatpush1.bf16.msra.mxu0 0
        %4077 = vmatprep.subr.bf16.mxu0 0
        %4078 = vmatpush1.bf16.msra.mxu0 0
        %4079 = vmatprep.subr.bf16.mxu0 0
        %4080 = vmatpush1.bf16.msra.mxu0 0
        %4081 = vmatprep.mubr.bf16.mxu0 0
        %4082 = vmatmul.mubr.bf16.gmra.mrb[0].mxu0 %v3680
        %v4083 = vpop.f32.mrb[0].mxu0
        %v4084 = vadd.f32 %v3923, %v4083
        %v4085 = vpop.f32.mrb[0].mxu0
        %v4086 = vpop.f32.mrb[0].mxu0
        %v4087 = vadd.f32 %v3926, %v4086
        %v4088 = vpop.f32.mrb[0].mxu0
        %4089 = vmatprep.mubr.bf16.mxu0 0
        %4090 = vmatmul.mubr.bf16.gmra.mrb[0].mxu0 %v3683
        %v4091 = vpop.f32.mrb[0].mxu0
        %v4092 = vadd.f32 %v3931, %v4091
        %v4093 = vpop.f32.mrb[0].mxu0
        %v4094 = vpop.f32.mrb[0].mxu0
        %v4095 = vadd.f32 %v3934, %v4094
        %v4096 = vpop.f32.mrb[0].mxu0
        %4097 = vmatprep.mubr.bf16.mxu0 0
        %4098 = vmatmul.mubr.bf16.gmra.mrb[0].mxu0 %v3686
        %v4099 = vpop.f32.mrb[0].mxu0
        %v4100 = vadd.f32 %v3939, %v4099
        %v4101 = vpop.f32.mrb[0].mxu0
        %v4102 = vpop.f32.mrb[0].mxu0
        %v4103 = vadd.f32 %v3942, %v4102
        %v4104 = vpop.f32.mrb[0].mxu0
        %4105 = vmatprep.mubr.bf16.mxu0 0
        %4106 = vmatmul.mubr.bf16.gmra.mrb[0].mxu0 %v3689
        %v4107 = vpop.f32.mrb[0].mxu0
        %v4108 = vadd.f32 %v3947, %v4107
        %v4109 = vpop.f32.mrb[0].mxu0
        %v4110 = vpop.f32.mrb[0].mxu0
        %v4111 = vadd.f32 %v3950, %v4110
        %v4112 = vpop.f32.mrb[0].mxu0
        %4113 = vmatprep.mubr.bf16.mxu0 0
        %4114 = vmatmul.mubr.bf16.gmra.mrb[0].mxu0 %v3692
        %v4115 = vpop.f32.mrb[0].mxu0
        %v4116 = vadd.f32 %v3955, %v4115
        %v4117 = vpop.f32.mrb[0].mxu0
        %v4118 = vpop.f32.mrb[0].mxu0
        %v4119 = vadd.f32 %v3958, %v4118
        %v4120 = vpop.f32.mrb[0].mxu0
        %4121 = vmatprep.mubr.bf16.mxu0 0
        %4122 = vmatmul.mubr.bf16.gmra.mrb[0].mxu0 %v3695
        %v4123 = vpop.f32.mrb[0].mxu0
        %v4124 = vadd.f32 %v3963, %v4123
        %v4125 = vpop.f32.mrb[0].mxu0
        %v4126 = vpop.f32.mrb[0].mxu0
        %v4127 = vadd.f32 %v3966, %v4126
        %v4128 = vpop.f32.mrb[0].mxu0
        %4129 = vmatprep.mubr.bf16.mxu0 0
        %4130 = vmatmul.mubr.bf16.gmra.mrb[0].mxu0 %v3698
        %v4131 = vpop.f32.mrb[0].mxu0
        %v4132 = vadd.f32 %v3971, %v4131
        %v4133 = vpop.f32.mrb[0].mxu0
        %v4134 = vpop.f32.mrb[0].mxu0
        %v4135 = vadd.f32 %v3974, %v4134
        %v4136 = vpop.f32.mrb[0].mxu0
        %4137 = vmatprep.mubr.bf16.mxu0 0
        %4138 = vmatmul.mubr.bf16.gmra.mrb[0].mxu0 %v3701
        %v4139 = vpop.f32.mrb[0].mxu0
        %v4140 = vadd.f32 %v3979, %v4139
        %v4141 = vpop.f32.mrb[0].mxu0
        %v4142 = vpop.f32.mrb[0].mxu0
        %v4143 = vadd.f32 %v3982, %v4142
        %v4144 = vpop.f32.mrb[0].mxu0
        %4145 = vmatprep.mubr.bf16.mxu0 0
        %4146 = vmatmul.mubr.bf16.gmra.mrb[0].mxu0 %v3704
        %v4147 = vpop.f32.mrb[0].mxu0
        %v4148 = vadd.f32 %v3987, %v4147
        %v4149 = vpop.f32.mrb[0].mxu0
        %v4150 = vpop.f32.mrb[0].mxu0
        %v4151 = vadd.f32 %v3990, %v4150
        %v4152 = vpop.f32.mrb[0].mxu0
        %4153 = vmatprep.mubr.bf16.mxu0 0
        %4154 = vmatmul.mubr.bf16.gmra.mrb[0].mxu0 %v3707
        %v4155 = vpop.f32.mrb[0].mxu0
        %v4156 = vadd.f32 %v3995, %v4155
        %v4157 = vpop.f32.mrb[0].mxu0
        %v4158 = vpop.f32.mrb[0].mxu0
        %v4159 = vadd.f32 %v3998, %v4158
        %v4160 = vpop.f32.mrb[0].mxu0
        %4161 = vmatprep.mubr.bf16.mxu0 0
        %4162 = vmatmul.mubr.bf16.gmra.mrb[0].mxu0 %v3710
        %v4163 = vpop.f32.mrb[0].mxu0
        %v4164 = vadd.f32 %v4003, %v4163
        %v4165 = vpop.f32.mrb[0].mxu0
        %v4166 = vpop.f32.mrb[0].mxu0
        %v4167 = vadd.f32 %v4006, %v4166
        %v4168 = vpop.f32.mrb[0].mxu0
        %4169 = vmatprep.mubr.bf16.mxu0 0
        %4170 = vmatmul.mubr.bf16.gmra.mrb[0].mxu0 %v3713
        %v4171 = vpop.f32.mrb[0].mxu0
        %v4172 = vadd.f32 %v4011, %v4171
        %v4173 = vpop.f32.mrb[0].mxu0
        %v4174 = vpop.f32.mrb[0].mxu0
        %v4175 = vadd.f32 %v4014, %v4174
        %v4176 = vpop.f32.mrb[0].mxu0
        %4177 = vmatprep.mubr.bf16.mxu0 0
        %4178 = vmatmul.mubr.bf16.gmra.mrb[0].mxu0 %v3716
        %v4179 = vpop.f32.mrb[0].mxu0
        %v4180 = vadd.f32 %v4019, %v4179
        %v4181 = vpop.f32.mrb[0].mxu0
        %v4182 = vpop.f32.mrb[0].mxu0
        %v4183 = vadd.f32 %v4022, %v4182
        %v4184 = vpop.f32.mrb[0].mxu0
        %4185 = vmatprep.mubr.bf16.mxu0 0
        %4186 = vmatmul.mubr.bf16.gmra.mrb[0].mxu0 %v3719
        %v4187 = vpop.f32.mrb[0].mxu0
        %v4188 = vadd.f32 %v4027, %v4187
        %v4189 = vpop.f32.mrb[0].mxu0
        %v4190 = vpop.f32.mrb[0].mxu0
        %v4191 = vadd.f32 %v4030, %v4190
        %v4192 = vpop.f32.mrb[0].mxu0
        %4193 = vmatprep.mubr.bf16.mxu0 0
        %4194 = vmatmul.mubr.bf16.gmra.mrb[0].mxu0 %v3722
        %v4195 = vpop.f32.mrb[0].mxu0
        %v4196 = vadd.f32 %v4035, %v4195
        %v4197 = vpop.f32.mrb[0].mxu0
        %v4198 = vpop.f32.mrb[0].mxu0
        %v4199 = vadd.f32 %v4038, %v4198
        %v4200 = vpop.f32.mrb[0].mxu0
        %4201 = vmatprep.mubr.bf16.mxu0 0
        %4202 = vmatmul.mubr.bf16.gmra.mrb[0].mxu0 %v3725
        %v4203 = vpop.f32.mrb[0].mxu0
        %v4204 = vadd.f32 %v4043, %v4203
        %v4205 = vpop.f32.mrb[0].mxu0
        %v4206 = vpop.f32.mrb[0].mxu0
        %v4207 = vadd.f32 %v4046, %v4206
        %v4208 = vpop.f32.mrb[0].mxu0
        %4209 = vdwg.mxu0
        %vm4210 = vcmp.ge.f32.partialorder %v4084, 0.0
        %vm4211 = vcmp.ge.f32.partialorder %v4087, 0.0
        %vm4212 = vcmp.ge.f32.partialorder %v4092, 0.0
        %vm4213 = vcmp.ge.f32.partialorder %v4095, 0.0
        %vm4214 = vcmp.ge.f32.partialorder %v4100, 0.0
        %vm4215 = vcmp.ge.f32.partialorder %v4103, 0.0
        %vm4216 = vcmp.ge.f32.partialorder %v4108, 0.0
        %vm4217 = vcmp.ge.f32.partialorder %v4111, 0.0
        %vm4218 = vcmp.ge.f32.partialorder %v4116, 0.0
        %vm4219 = vcmp.ge.f32.partialorder %v4119, 0.0
        %vm4220 = vcmp.ge.f32.partialorder %v4124, 0.0
        %vm4221 = vcmp.ge.f32.partialorder %v4127, 0.0
        %vm4222 = vcmp.ge.f32.partialorder %v4132, 0.0
        %vm4223 = vcmp.ge.f32.partialorder %v4135, 0.0
        %vm4224 = vcmp.ge.f32.partialorder %v4140, 0.0
        %vm4225 = vcmp.ge.f32.partialorder %v4143, 0.0
        %vm4226 = vcmp.ge.f32.partialorder %v4148, 0.0
        %vm4227 = vcmp.ge.f32.partialorder %v4151, 0.0
        %vm4228 = vcmp.ge.f32.partialorder %v4156, 0.0
        %vm4229 = vcmp.ge.f32.partialorder %v4159, 0.0
        %vm4230 = vcmp.ge.f32.partialorder %v4164, 0.0
        %vm4231 = vcmp.ge.f32.partialorder %v4167, 0.0
        %vm4232 = vcmp.ge.f32.partialorder %v4172, 0.0
        %vm4233 = vcmp.ge.f32.partialorder %v4175, 0.0
        %vm4234 = vcmp.ge.f32.partialorder %v4180, 0.0
        %vm4235 = vcmp.ge.f32.partialorder %v4183, 0.0
        %vm4236 = vcmp.ge.f32.partialorder %v4188, 0.0
        %vm4237 = vcmp.ge.f32.partialorder %v4191, 0.0
        %vm4238 = vcmp.ge.f32.partialorder %v4196, 0.0
        %vm4239 = vcmp.ge.f32.partialorder %v4199, 0.0
        %vm4240 = vcmp.ge.f32.partialorder %v4204, 0.0
        %vm4241 = vcmp.ge.f32.partialorder %v4207, 0.0
        %v4242 = vmul.f32 %v4084, 0.2
        %v4243 = vmul.f32 %v4087, 0.2
        %v4244 = vmul.f32 %v4092, 0.2
        %v4245 = vmul.f32 %v4095, 0.2
        %v4246 = vmul.f32 %v4100, 0.2
        %v4247 = vmul.f32 %v4103, 0.2
        %v4248 = vmul.f32 %v4108, 0.2
        %v4249 = vmul.f32 %v4111, 0.2
        %v4250 = vmul.f32 %v4116, 0.2
        %v4251 = vmul.f32 %v4119, 0.2
        %v4252 = vmul.f32 %v4124, 0.2
        %v4253 = vmul.f32 %v4127, 0.2
        %v4254 = vmul.f32 %v4132, 0.2
        %v4255 = vmul.f32 %v4135, 0.2
        %v4256 = vmul.f32 %v4140, 0.2
        %v4257 = vmul.f32 %v4143, 0.2
        %v4258 = vmul.f32 %v4148, 0.2
        %v4259 = vmul.f32 %v4151, 0.2
        %v4260 = vmul.f32 %v4156, 0.2
        %v4261 = vmul.f32 %v4159, 0.2
        %v4262 = vmul.f32 %v4164, 0.2
        %v4263 = vmul.f32 %v4167, 0.2
        %v4264 = vmul.f32 %v4172, 0.2
        %v4265 = vmul.f32 %v4175, 0.2
        %v4266 = vmul.f32 %v4180, 0.2
        %v4267 = vmul.f32 %v4183, 0.2
        %v4268 = vmul.f32 %v4188, 0.2
        %v4269 = vmul.f32 %v4191, 0.2
        %v4270 = vmul.f32 %v4196, 0.2
        %v4271 = vmul.f32 %v4199, 0.2
        %v4272 = vmul.f32 %v4204, 0.2
        %v4273 = vmul.f32 %v4207, 0.2
        %v4274 = vsel %vm4210, %v4084, %v4242
        %v4275 = vsel %vm4211, %v4087, %v4243
        %v4276 = vsel %vm4212, %v4092, %v4244
        %v4277 = vsel %vm4213, %v4095, %v4245
        %v4278 = vsel %vm4214, %v4100, %v4246
        %v4279 = vsel %vm4215, %v4103, %v4247
        %v4280 = vsel %vm4216, %v4108, %v4248
        %v4281 = vsel %vm4217, %v4111, %v4249
        %v4282 = vsel %vm4218, %v4116, %v4250
        %v4283 = vsel %vm4219, %v4119, %v4251
        %v4284 = vsel %vm4220, %v4124, %v4252
        %v4285 = vsel %vm4221, %v4127, %v4253
        %v4286 = vsel %vm4222, %v4132, %v4254
        %v4287 = vsel %vm4223, %v4135, %v4255
        %v4288 = vsel %vm4224, %v4140, %v4256
        %v4289 = vsel %vm4225, %v4143, %v4257
        %v4290 = vsel %vm4226, %v4148, %v4258
        %v4291 = vsel %vm4227, %v4151, %v4259
        %v4292 = vsel %vm4228, %v4156, %v4260
        %v4293 = vsel %vm4229, %v4159, %v4261
        %v4294 = vsel %vm4230, %v4164, %v4262
        %v4295 = vsel %vm4231, %v4167, %v4263
        %v4296 = vsel %vm4232, %v4172, %v4264
        %v4297 = vsel %vm4233, %v4175, %v4265
        %v4298 = vsel %vm4234, %v4180, %v4266
        %v4299 = vsel %vm4235, %v4183, %v4267
        %v4300 = vsel %vm4236, %v4188, %v4268
        %v4301 = vsel %vm4237, %v4191, %v4269
        %v4302 = vsel %vm4238, %v4196, %v4270
        %v4303 = vsel %vm4239, %v4199, %v4271
        %v4304 = vsel %vm4240, %v4204, %v4272
        %v4305 = vsel %vm4241, %v4207, %v4273
        %4306 = vst.msk [vmem:[%s314 + $0x1] sm:$0xff] %vm172, %v4274
        %4307 = vst.msk [vmem:[%s314 + $0x9] sm:$0xff] %vm172, %v4275
        %4308 = vst.msk [vmem:[%s314 + $0x19] sm:$0xff] %vm172, %v4276
        %4309 = vst.msk [vmem:[%s314 + $0x21] sm:$0xff] %vm172, %v4277
        %4310 = vst.msk [vmem:[%s314 + $0x31] sm:$0xff] %vm172, %v4278
        %4311 = vst.msk [vmem:[%s314 + $0x39] sm:$0xff] %vm172, %v4279
        %4312 = vst.msk [vmem:[%s314 + $0x49] sm:$0xff] %vm172, %v4280
        %4313 = vst.msk [vmem:[%s314 + $0x51] sm:$0xff] %vm172, %v4281
        %4314 = vst.msk [vmem:[%s314 + $0x61] sm:$0xff] %vm172, %v4282
        %4315 = vst.msk [vmem:[%s314 + $0x69] sm:$0xff] %vm172, %v4283
        %4316 = vst.msk [vmem:[%s314 + $0x79] sm:$0xff] %vm172, %v4284
        %4317 = vst.msk [vmem:[%s314 + $0x81] sm:$0xff] %vm172, %v4285
        %4318 = vst.msk [vmem:[%s314 + $0x91] sm:$0xff] %vm172, %v4286
        %4319 = vst.msk [vmem:[%s314 + $0x99] sm:$0xff] %vm172, %v4287
        %4320 = vst.msk [vmem:[%s314 + $0xa9] sm:$0xff] %vm172, %v4288
        %4321 = vst.msk [vmem:[%s314 + $0xb1] sm:$0xff] %vm172, %v4289
        %4322 = vst.msk [vmem:[%s314 + $0xc1] sm:$0xff] %vm172, %v4290
        %4323 = vst.msk [vmem:[%s314 + $0xc9] sm:$0xff] %vm172, %v4291
        %4324 = vst.msk [vmem:[%s314 + $0xd9] sm:$0xff] %vm172, %v4292
        %4325 = vst.msk [vmem:[%s314 + $0xe1] sm:$0xff] %vm172, %v4293
        %4326 = vst.msk [vmem:[%s314 + $0xf1] sm:$0xff] %vm172, %v4294
        %4327 = vst.msk [vmem:[%s314 + $0xf9] sm:$0xff] %vm172, %v4295
        %4328 = vst.msk [vmem:[%s314 + $0x109] sm:$0xff] %vm172, %v4296
        %4329 = vst.msk [vmem:[%s314 + $0x111] sm:$0xff] %vm172, %v4297
        %4330 = vst.msk [vmem:[%s314 + $0x121] sm:$0xff] %vm172, %v4298
        %4331 = vst.msk [vmem:[%s314 + $0x129] sm:$0xff] %vm172, %v4299
        %4332 = vst.msk [vmem:[%s314 + $0x139] sm:$0xff] %vm172, %v4300
        %4333 = vst.msk [vmem:[%s314 + $0x141] sm:$0xff] %vm172, %v4301
        %4334 = vst.msk [vmem:[%s314 + $0x151] sm:$0xff] %vm172, %v4302
        %4335 = vst.msk [vmem:[%s314 + $0x159] sm:$0xff] %vm172, %v4303
        %4336 = vst.msk [vmem:[%s314 + $0x169] sm:$0xff] %vm172, %v4304
        %4337 = vst.msk [vmem:[%s314 + $0x171] sm:$0xff] %vm172, %v4305
      $region37: #{conv_block_forward.1} parent=31 // loop_footer
        %s352 = sadd.s32 1, %s348
      $region38: #{conv_block_forward.1} parent=31 // loop_footer_branch
        %347 = sbr.rel target = $region34
      $region39: #{conv_block_forward.1} parent=31 // loop_exit
        _
      %v4338 = vld [vmem:[#allocation2] sm:$0xff]
      %v4339 = vld [vmem:[#allocation2 + $0x8] sm:$0xff]
      %v4340 = vld [vmem:[#allocation2 + $0x18] sm:$0xff]
      %v4341 = vld [vmem:[#allocation2 + $0x20] sm:$0xff]
      %v4342 = vld [vmem:[#allocation2 + $0x30] sm:$0xff]
      %v4343 = vld [vmem:[#allocation2 + $0x38] sm:$0xff]
      %v4344 = vld [vmem:[#allocation2 + $0x48] sm:$0xff]
      %v4345 = vld [vmem:[#allocation2 + $0x50] sm:$0xff]
      %v4346 = vld [vmem:[#allocation2 + $0x60] sm:$0xff]
      %v4347 = vld [vmem:[#allocation2 + $0x68] sm:$0xff]
      %v4348 = vld [vmem:[#allocation2 + $0x78] sm:$0xff]
      %v4349 = vld [vmem:[#allocation2 + $0x80] sm:$0xff]
      %v4350 = vld [vmem:[#allocation2 + $0x90] sm:$0xff]
      %v4351 = vld [vmem:[#allocation2 + $0x98] sm:$0xff]
      %v4352 = vld [vmem:[#allocation2 + $0xa8] sm:$0xff]
      %v4353 = vld [vmem:[#allocation2 + $0xb0] sm:$0xff]
      %v4354 = vld [vmem:[#allocation2 + $0xc0] sm:$0xff]
      %v4355 = vld [vmem:[#allocation2 + $0xc8] sm:$0xff]
      %v4356 = vld [vmem:[#allocation2 + $0xd8] sm:$0xff]
      %v4357 = vld [vmem:[#allocation2 + $0xe0] sm:$0xff]
      %v4358 = vld [vmem:[#allocation2 + $0xf0] sm:$0xff]
      %v4359 = vld [vmem:[#allocation2 + $0xf8] sm:$0xff]
      %v4360 = vld [vmem:[#allocation2 + $0x108] sm:$0xff]
      %v4361 = vld [vmem:[#allocation2 + $0x110] sm:$0xff]
      %v4362 = vld [vmem:[#allocation2 + $0x120] sm:$0xff]
      %v4363 = vld [vmem:[#allocation2 + $0x128] sm:$0xff]
      %v4364 = vld [vmem:[#allocation2 + $0x138] sm:$0xff]
      %v4365 = vld [vmem:[#allocation2 + $0x140] sm:$0xff]
      %v4366 = vld [vmem:[#allocation2 + $0x150] sm:$0xff]
      %v4367 = vld [vmem:[#allocation2 + $0x158] sm:$0xff]
      %v4368 = vld [vmem:[#allocation2 + $0x168] sm:$0xff]
      %v4369 = vld [vmem:[#allocation2 + $0x170] sm:$0xff]
      %v4370 = vpack.c.bf16 %v4339, %v4338
      %v4371 = vpack.c.bf16 %v4341, %v4340
      %v4372 = vpack.c.bf16 %v4343, %v4342
      %v4373 = vpack.c.bf16 %v4345, %v4344
      %v4374 = vpack.c.bf16 %v4347, %v4346
      %v4375 = vpack.c.bf16 %v4349, %v4348
      %v4376 = vpack.c.bf16 %v4351, %v4350
      %v4377 = vpack.c.bf16 %v4353, %v4352
      %v4378 = vpack.c.bf16 %v4355, %v4354
      %v4379 = vpack.c.bf16 %v4357, %v4356
      %v4380 = vpack.c.bf16 %v4359, %v4358
      %v4381 = vpack.c.bf16 %v4361, %v4360
      %v4382 = vpack.c.bf16 %v4363, %v4362
      %v4383 = vpack.c.bf16 %v4365, %v4364
      %v4384 = vpack.c.bf16 %v4367, %v4366
      %v4385 = vpack.c.bf16 %v4369, %v4368
      %v4386 = vld [vmem:[#allocation2 + $0x1] sm:$0xff]
      %v4387 = vld [vmem:[#allocation2 + $0x9] sm:$0xff]
      %v4388 = vld [vmem:[#allocation2 + $0x19] sm:$0xff]
      %v4389 = vld [vmem:[#allocation2 + $0x21] sm:$0xff]
      %v4390 = vld [vmem:[#allocation2 + $0x31] sm:$0xff]
      %v4391 = vld [vmem:[#allocation2 + $0x39] sm:$0xff]
      %v4392 = vld [vmem:[#allocation2 + $0x49] sm:$0xff]
      %v4393 = vld [vmem:[#allocation2 + $0x51] sm:$0xff]
      %v4394 = vld [vmem:[#allocation2 + $0x61] sm:$0xff]
      %v4395 = vld [vmem:[#allocation2 + $0x69] sm:$0xff]
      %v4396 = vld [vmem:[#allocation2 + $0x79] sm:$0xff]
      %v4397 = vld [vmem:[#allocation2 + $0x81] sm:$0xff]
      %v4398 = vld [vmem:[#allocation2 + $0x91] sm:$0xff]
      %v4399 = vld [vmem:[#allocation2 + $0x99] sm:$0xff]
      %v4400 = vld [vmem:[#allocation2 + $0xa9] sm:$0xff]
      %v4401 = vld [vmem:[#allocation2 + $0xb1] sm:$0xff]
      %v4402 = vld [vmem:[#allocation2 + $0xc1] sm:$0xff]
      %v4403 = vld [vmem:[#allocation2 + $0xc9] sm:$0xff]
      %v4404 = vld [vmem:[#allocation2 + $0xd9] sm:$0xff]
      %v4405 = vld [vmem:[#allocation2 + $0xe1] sm:$0xff]
      %v4406 = vld [vmem:[#allocation2 + $0xf1] sm:$0xff]
      %v4407 = vld [vmem:[#allocation2 + $0xf9] sm:$0xff]
      %v4408 = vld [vmem:[#allocation2 + $0x109] sm:$0xff]
      %v4409 = vld [vmem:[#allocation2 + $0x111] sm:$0xff]
      %v4410 = vld [vmem:[#allocation2 + $0x121] sm:$0xff]
      %v4411 = vld [vmem:[#allocation2 + $0x129] sm:$0xff]
      %v4412 = vld [vmem:[#allocation2 + $0x139] sm:$0xff]
      %v4413 = vld [vmem:[#allocation2 + $0x141] sm:$0xff]
      %v4414 = vld [vmem:[#allocation2 + $0x151] sm:$0xff]
      %v4415 = vld [vmem:[#allocation2 + $0x159] sm:$0xff]
      %v4416 = vld [vmem:[#allocation2 + $0x169] sm:$0xff]
      %v4417 = vld [vmem:[#allocation2 + $0x171] sm:$0xff]
      %v4418 = vpack.c.bf16 %v4387, %v4386
      %v4419 = vpack.c.bf16 %v4389, %v4388
      %v4420 = vpack.c.bf16 %v4391, %v4390
      %v4421 = vpack.c.bf16 %v4393, %v4392
      %v4422 = vpack.c.bf16 %v4395, %v4394
      %v4423 = vpack.c.bf16 %v4397, %v4396
      %v4424 = vpack.c.bf16 %v4399, %v4398
      %v4425 = vpack.c.bf16 %v4401, %v4400
      %v4426 = vpack.c.bf16 %v4403, %v4402
      %v4427 = vpack.c.bf16 %v4405, %v4404
      %v4428 = vpack.c.bf16 %v4407, %v4406
      %v4429 = vpack.c.bf16 %v4409, %v4408
      %v4430 = vpack.c.bf16 %v4411, %v4410
      %v4431 = vpack.c.bf16 %v4413, %v4412
      %v4432 = vpack.c.bf16 %v4415, %v4414
      %v4433 = vpack.c.bf16 %v4417, %v4416
      %v4434 = vld [vmem:[#allocation2 + $0x2] sm:$0xff]
      %v4435 = vld [vmem:[#allocation2 + $0xa] sm:$0xff]
      %v4436 = vld [vmem:[#allocation2 + $0x1a] sm:$0xff]
      %v4437 = vld [vmem:[#allocation2 + $0x22] sm:$0xff]
      %v4438 = vld [vmem:[#allocation2 + $0x32] sm:$0xff]
      %v4439 = vld [vmem:[#allocation2 + $0x3a] sm:$0xff]
      %v4440 = vld [vmem:[#allocation2 + $0x4a] sm:$0xff]
      %v4441 = vld [vmem:[#allocation2 + $0x52] sm:$0xff]
      %v4442 = vld [vmem:[#allocation2 + $0x62] sm:$0xff]
      %v4443 = vld [vmem:[#allocation2 + $0x6a] sm:$0xff]
      %v4444 = vld [vmem:[#allocation2 + $0x7a] sm:$0xff]
      %v4445 = vld [vmem:[#allocation2 + $0x82] sm:$0xff]
      %v4446 = vld [vmem:[#allocation2 + $0x92] sm:$0xff]
      %v4447 = vld [vmem:[#allocation2 + $0x9a] sm:$0xff]
      %v4448 = vld [vmem:[#allocation2 + $0xaa] sm:$0xff]
      %v4449 = vld [vmem:[#allocation2 + $0xb2] sm:$0xff]
      %v4450 = vld [vmem:[#allocation2 + $0xc2] sm:$0xff]
      %v4451 = vld [vmem:[#allocation2 + $0xca] sm:$0xff]
      %v4452 = vld [vmem:[#allocation2 + $0xda] sm:$0xff]
      %v4453 = vld [vmem:[#allocation2 + $0xe2] sm:$0xff]
      %v4454 = vld [vmem:[#allocation2 + $0xf2] sm:$0xff]
      %v4455 = vld [vmem:[#allocation2 + $0xfa] sm:$0xff]
      %v4456 = vld [vmem:[#allocation2 + $0x10a] sm:$0xff]
      %v4457 = vld [vmem:[#allocation2 + $0x112] sm:$0xff]
      %v4458 = vld [vmem:[#allocation2 + $0x122] sm:$0xff]
      %v4459 = vld [vmem:[#allocation2 + $0x12a] sm:$0xff]
      %v4460 = vld [vmem:[#allocation2 + $0x13a] sm:$0xff]
      %v4461 = vld [vmem:[#allocation2 + $0x142] sm:$0xff]
      %v4462 = vld [vmem:[#allocation2 + $0x152] sm:$0xff]
      %v4463 = vld [vmem:[#allocation2 + $0x15a] sm:$0xff]
      %v4464 = vld [vmem:[#allocation2 + $0x16a] sm:$0xff]
      %v4465 = vld [vmem:[#allocation2 + $0x172] sm:$0xff]
      %v4466 = vpack.c.bf16 %v4435, %v4434
      %v4467 = vpack.c.bf16 %v4437, %v4436
      %v4468 = vpack.c.bf16 %v4439, %v4438
      %v4469 = vpack.c.bf16 %v4441, %v4440
      %v4470 = vpack.c.bf16 %v4443, %v4442
      %v4471 = vpack.c.bf16 %v4445, %v4444
      %v4472 = vpack.c.bf16 %v4447, %v4446
      %v4473 = vpack.c.bf16 %v4449, %v4448
      %v4474 = vpack.c.bf16 %v4451, %v4450
      %v4475 = vpack.c.bf16 %v4453, %v4452
      %v4476 = vpack.c.bf16 %v4455, %v4454
      %v4477 = vpack.c.bf16 %v4457, %v4456
      %v4478 = vpack.c.bf16 %v4459, %v4458
      %v4479 = vpack.c.bf16 %v4461, %v4460
      %v4480 = vpack.c.bf16 %v4463, %v4462
      %v4481 = vpack.c.bf16 %v4465, %v4464
      %v4482 = vld [vmem:[%s314] sm:$0xff]
      %v4483 = vld [vmem:[%s314 + $0x8] sm:$0xff]
      %v4484 = vld [vmem:[%s314 + $0x18] sm:$0xff]
      %v4485 = vld [vmem:[%s314 + $0x20] sm:$0xff]
      %v4486 = vld [vmem:[%s314 + $0x30] sm:$0xff]
      %v4487 = vld [vmem:[%s314 + $0x38] sm:$0xff]
      %v4488 = vld [vmem:[%s314 + $0x48] sm:$0xff]
      %v4489 = vld [vmem:[%s314 + $0x50] sm:$0xff]
      %v4490 = vld [vmem:[%s314 + $0x60] sm:$0xff]
      %v4491 = vld [vmem:[%s314 + $0x68] sm:$0xff]
      %v4492 = vld [vmem:[%s314 + $0x78] sm:$0xff]
      %v4493 = vld [vmem:[%s314 + $0x80] sm:$0xff]
      %v4494 = vld [vmem:[%s314 + $0x90] sm:$0xff]
      %v4495 = vld [vmem:[%s314 + $0x98] sm:$0xff]
      %v4496 = vld [vmem:[%s314 + $0xa8] sm:$0xff]
      %v4497 = vld [vmem:[%s314 + $0xb0] sm:$0xff]
      %v4498 = vld [vmem:[%s314 + $0xc0] sm:$0xff]
      %v4499 = vld [vmem:[%s314 + $0xc8] sm:$0xff]
      %v4500 = vld [vmem:[%s314 + $0xd8] sm:$0xff]
      %v4501 = vld [vmem:[%s314 + $0xe0] sm:$0xff]
      %v4502 = vld [vmem:[%s314 + $0xf0] sm:$0xff]
      %v4503 = vld [vmem:[%s314 + $0xf8] sm:$0xff]
      %v4504 = vld [vmem:[%s314 + $0x108] sm:$0xff]
      %v4505 = vld [vmem:[%s314 + $0x110] sm:$0xff]
      %v4506 = vld [vmem:[%s314 + $0x120] sm:$0xff]
      %v4507 = vld [vmem:[%s314 + $0x128] sm:$0xff]
      %v4508 = vld [vmem:[%s314 + $0x138] sm:$0xff]
      %v4509 = vld [vmem:[%s314 + $0x140] sm:$0xff]
      %v4510 = vld [vmem:[%s314 + $0x150] sm:$0xff]
      %v4511 = vld [vmem:[%s314 + $0x158] sm:$0xff]
      %v4512 = vld [vmem:[%s314 + $0x168] sm:$0xff]
      %v4513 = vld [vmem:[%s314 + $0x170] sm:$0xff]
      %v4514 = vpack.c.bf16 %v4483, %v4482
      %v4515 = vpack.c.bf16 %v4485, %v4484
      %v4516 = vpack.c.bf16 %v4487, %v4486
      %v4517 = vpack.c.bf16 %v4489, %v4488
      %v4518 = vpack.c.bf16 %v4491, %v4490
      %v4519 = vpack.c.bf16 %v4493, %v4492
      %v4520 = vpack.c.bf16 %v4495, %v4494
      %v4521 = vpack.c.bf16 %v4497, %v4496
      %v4522 = vpack.c.bf16 %v4499, %v4498
      %v4523 = vpack.c.bf16 %v4501, %v4500
      %v4524 = vpack.c.bf16 %v4503, %v4502
      %v4525 = vpack.c.bf16 %v4505, %v4504
      %v4526 = vpack.c.bf16 %v4507, %v4506
      %v4527 = vpack.c.bf16 %v4509, %v4508
      %v4528 = vpack.c.bf16 %v4511, %v4510
      %v4529 = vpack.c.bf16 %v4513, %v4512
      %v4530 = vld [vmem:[%s314 + $0x1] sm:$0xff]
      %v4531 = vld [vmem:[%s314 + $0x9] sm:$0xff]
      %v4532 = vld [vmem:[%s314 + $0x19] sm:$0xff]
      %v4533 = vld [vmem:[%s314 + $0x21] sm:$0xff]
      %v4534 = vld [vmem:[%s314 + $0x31] sm:$0xff]
      %v4535 = vld [vmem:[%s314 + $0x39] sm:$0xff]
      %v4536 = vld [vmem:[%s314 + $0x49] sm:$0xff]
      %v4537 = vld [vmem:[%s314 + $0x51] sm:$0xff]
      %v4538 = vld [vmem:[%s314 + $0x61] sm:$0xff]
      %v4539 = vld [vmem:[%s314 + $0x69] sm:$0xff]
      %v4540 = vld [vmem:[%s314 + $0x79] sm:$0xff]
      %v4541 = vld [vmem:[%s314 + $0x81] sm:$0xff]
      %v4542 = vld [vmem:[%s314 + $0x91] sm:$0xff]
      %v4543 = vld [vmem:[%s314 + $0x99] sm:$0xff]
      %v4544 = vld [vmem:[%s314 + $0xa9] sm:$0xff]
      %v4545 = vld [vmem:[%s314 + $0xb1] sm:$0xff]
      %v4546 = vld [vmem:[%s314 + $0xc1] sm:$0xff]
      %v4547 = vld [vmem:[%s314 + $0xc9] sm:$0xff]
      %v4548 = vld [vmem:[%s314 + $0xd9] sm:$0xff]
      %v4549 = vld [vmem:[%s314 + $0xe1] sm:$0xff]
      %v4550 = vld [vmem:[%s314 + $0xf1] sm:$0xff]
      %v4551 = vld [vmem:[%s314 + $0xf9] sm:$0xff]
      %v4552 = vld [vmem:[%s314 + $0x109] sm:$0xff]
      %v4553 = vld [vmem:[%s314 + $0x111] sm:$0xff]
      %v4554 = vld [vmem:[%s314 + $0x121] sm:$0xff]
      %v4555 = vld [vmem:[%s314 + $0x129] sm:$0xff]
      %v4556 = vld [vmem:[%s314 + $0x139] sm:$0xff]
      %v4557 = vld [vmem:[%s314 + $0x141] sm:$0xff]
      %v4558 = vld [vmem:[%s314 + $0x151] sm:$0xff]
      %v4559 = vld [vmem:[%s314 + $0x159] sm:$0xff]
      %v4560 = vld [vmem:[%s314 + $0x169] sm:$0xff]
      %v4561 = vld [vmem:[%s314 + $0x171] sm:$0xff]
      %v4562 = vpack.c.bf16 %v4531, %v4530
      %v4563 = vpack.c.bf16 %v4533, %v4532
      %v4564 = vpack.c.bf16 %v4535, %v4534
      %v4565 = vpack.c.bf16 %v4537, %v4536
      %v4566 = vpack.c.bf16 %v4539, %v4538
      %v4567 = vpack.c.bf16 %v4541, %v4540
      %v4568 = vpack.c.bf16 %v4543, %v4542
      %v4569 = vpack.c.bf16 %v4545, %v4544
      %v4570 = vpack.c.bf16 %v4547, %v4546
      %v4571 = vpack.c.bf16 %v4549, %v4548
      %v4572 = vpack.c.bf16 %v4551, %v4550
      %v4573 = vpack.c.bf16 %v4553, %v4552
      %v4574 = vpack.c.bf16 %v4555, %v4554
      %v4575 = vpack.c.bf16 %v4557, %v4556
      %v4576 = vpack.c.bf16 %v4559, %v4558
      %v4577 = vpack.c.bf16 %v4561, %v4560
      %v4578 = vld [vmem:[%s314 + $0x2] sm:$0xff]
      %v4579 = vld [vmem:[%s314 + $0xa] sm:$0xff]
      %v4580 = vld [vmem:[%s314 + $0x1a] sm:$0xff]
      %v4581 = vld [vmem:[%s314 + $0x22] sm:$0xff]
      %v4582 = vld [vmem:[%s314 + $0x32] sm:$0xff]
      %v4583 = vld [vmem:[%s314 + $0x3a] sm:$0xff]
      %v4584 = vld [vmem:[%s314 + $0x4a] sm:$0xff]
      %v4585 = vld [vmem:[%s314 + $0x52] sm:$0xff]
      %v4586 = vld [vmem:[%s314 + $0x62] sm:$0xff]
      %v4587 = vld [vmem:[%s314 + $0x6a] sm:$0xff]
      %v4588 = vld [vmem:[%s314 + $0x7a] sm:$0xff]
      %v4589 = vld [vmem:[%s314 + $0x82] sm:$0xff]
      %v4590 = vld [vmem:[%s314 + $0x92] sm:$0xff]
      %v4591 = vld [vmem:[%s314 + $0x9a] sm:$0xff]
      %v4592 = vld [vmem:[%s314 + $0xaa] sm:$0xff]
      %v4593 = vld [vmem:[%s314 + $0xb2] sm:$0xff]
      %v4594 = vld [vmem:[%s314 + $0xc2] sm:$0xff]
      %v4595 = vld [vmem:[%s314 + $0xca] sm:$0xff]
      %v4596 = vld [vmem:[%s314 + $0xda] sm:$0xff]
      %v4597 = vld [vmem:[%s314 + $0xe2] sm:$0xff]
      %v4598 = vld [vmem:[%s314 + $0xf2] sm:$0xff]
      %v4599 = vld [vmem:[%s314 + $0xfa] sm:$0xff]
      %v4600 = vld [vmem:[%s314 + $0x10a] sm:$0xff]
      %v4601 = vld [vmem:[%s314 + $0x112] sm:$0xff]
      %v4602 = vld [vmem:[%s314 + $0x122] sm:$0xff]
      %v4603 = vld [vmem:[%s314 + $0x12a] sm:$0xff]
      %v4604 = vld [vmem:[%s314 + $0x13a] sm:$0xff]
      %v4605 = vld [vmem:[%s314 + $0x142] sm:$0xff]
      %v4606 = vld [vmem:[%s314 + $0x152] sm:$0xff]
      %v4607 = vld [vmem:[%s314 + $0x15a] sm:$0xff]
      %v4608 = vld [vmem:[%s314 + $0x16a] sm:$0xff]
      %v4609 = vld [vmem:[%s314 + $0x172] sm:$0xff]
      %v4610 = vpack.c.bf16 %v4579, %v4578
      %v4611 = vpack.c.bf16 %v4581, %v4580
      %v4612 = vpack.c.bf16 %v4583, %v4582
      %v4613 = vpack.c.bf16 %v4585, %v4584
      %v4614 = vpack.c.bf16 %v4587, %v4586
      %v4615 = vpack.c.bf16 %v4589, %v4588
      %v4616 = vpack.c.bf16 %v4591, %v4590
      %v4617 = vpack.c.bf16 %v4593, %v4592
      %v4618 = vpack.c.bf16 %v4595, %v4594
      %v4619 = vpack.c.bf16 %v4597, %v4596
      %v4620 = vpack.c.bf16 %v4599, %v4598
      %v4621 = vpack.c.bf16 %v4601, %v4600
      %v4622 = vpack.c.bf16 %v4603, %v4602
      %v4623 = vpack.c.bf16 %v4605, %v4604
      %v4624 = vpack.c.bf16 %v4607, %v4606
      %v4625 = vpack.c.bf16 %v4609, %v4608
      %s4626 = scalar_lea.vmem [#allocation2], 48
      %v4627 = vld [vmem:[%s4626] sm:$0xff]
      %v4628 = vld [vmem:[%s4626 + $0x8] sm:$0xff]
      %v4629 = vld [vmem:[%s4626 + $0x18] sm:$0xff]
      %v4630 = vld [vmem:[%s4626 + $0x20] sm:$0xff]
      %v4631 = vld [vmem:[%s4626 + $0x30] sm:$0xff]
      %v4632 = vld [vmem:[%s4626 + $0x38] sm:$0xff]
      %v4633 = vld [vmem:[%s4626 + $0x48] sm:$0xff]
      %v4634 = vld [vmem:[%s4626 + $0x50] sm:$0xff]
      %v4635 = vld [vmem:[%s4626 + $0x60] sm:$0xff]
      %v4636 = vld [vmem:[%s4626 + $0x68] sm:$0xff]
      %v4637 = vld [vmem:[%s4626 + $0x78] sm:$0xff]
      %v4638 = vld [vmem:[%s4626 + $0x80] sm:$0xff]
      %v4639 = vld [vmem:[%s4626 + $0x90] sm:$0xff]
      %v4640 = vld [vmem:[%s4626 + $0x98] sm:$0xff]
      %v4641 = vld [vmem:[%s4626 + $0xa8] sm:$0xff]
      %v4642 = vld [vmem:[%s4626 + $0xb0] sm:$0xff]
      %v4643 = vld [vmem:[%s4626 + $0xc0] sm:$0xff]
      %v4644 = vld [vmem:[%s4626 + $0xc8] sm:$0xff]
      %v4645 = vld [vmem:[%s4626 + $0xd8] sm:$0xff]
      %v4646 = vld [vmem:[%s4626 + $0xe0] sm:$0xff]
      %v4647 = vld [vmem:[%s4626 + $0xf0] sm:$0xff]
      %v4648 = vld [vmem:[%s4626 + $0xf8] sm:$0xff]
      %v4649 = vld [vmem:[%s4626 + $0x108] sm:$0xff]
      %v4650 = vld [vmem:[%s4626 + $0x110] sm:$0xff]
      %v4651 = vld [vmem:[%s4626 + $0x120] sm:$0xff]
      %v4652 = vld [vmem:[%s4626 + $0x128] sm:$0xff]
      %v4653 = vld [vmem:[%s4626 + $0x138] sm:$0xff]
      %v4654 = vld [vmem:[%s4626 + $0x140] sm:$0xff]
      %v4655 = vld [vmem:[%s4626 + $0x150] sm:$0xff]
      %v4656 = vld [vmem:[%s4626 + $0x158] sm:$0xff]
      %v4657 = vld [vmem:[%s4626 + $0x168] sm:$0xff]
      %v4658 = vld [vmem:[%s4626 + $0x170] sm:$0xff]
      %v4659 = vpack.c.bf16 %v4628, %v4627
      %v4660 = vpack.c.bf16 %v4630, %v4629
      %v4661 = vpack.c.bf16 %v4632, %v4631
      %v4662 = vpack.c.bf16 %v4634, %v4633
      %v4663 = vpack.c.bf16 %v4636, %v4635
      %v4664 = vpack.c.bf16 %v4638, %v4637
      %v4665 = vpack.c.bf16 %v4640, %v4639
      %v4666 = vpack.c.bf16 %v4642, %v4641
      %v4667 = vpack.c.bf16 %v4644, %v4643
      %v4668 = vpack.c.bf16 %v4646, %v4645
      %v4669 = vpack.c.bf16 %v4648, %v4647
      %v4670 = vpack.c.bf16 %v4650, %v4649
      %v4671 = vpack.c.bf16 %v4652, %v4651
      %v4672 = vpack.c.bf16 %v4654, %v4653
      %v4673 = vpack.c.bf16 %v4656, %v4655
      %v4674 = vpack.c.bf16 %v4658, %v4657
      %v4675 = vld [vmem:[%s4626 + $0x1] sm:$0xff]
      %v4676 = vld [vmem:[%s4626 + $0x9] sm:$0xff]
      %v4677 = vld [vmem:[%s4626 + $0x19] sm:$0xff]
      %v4678 = vld [vmem:[%s4626 + $0x21] sm:$0xff]
      %v4679 = vld [vmem:[%s4626 + $0x31] sm:$0xff]
      %v4680 = vld [vmem:[%s4626 + $0x39] sm:$0xff]
      %v4681 = vld [vmem:[%s4626 + $0x49] sm:$0xff]
      %v4682 = vld [vmem:[%s4626 + $0x51] sm:$0xff]
      %v4683 = vld [vmem:[%s4626 + $0x61] sm:$0xff]
      %v4684 = vld [vmem:[%s4626 + $0x69] sm:$0xff]
      %v4685 = vld [vmem:[%s4626 + $0x79] sm:$0xff]
      %v4686 = vld [vmem:[%s4626 + $0x81] sm:$0xff]
      %v4687 = vld [vmem:[%s4626 + $0x91] sm:$0xff]
      %v4688 = vld [vmem:[%s4626 + $0x99] sm:$0xff]
      %v4689 = vld [vmem:[%s4626 + $0xa9] sm:$0xff]
      %v4690 = vld [vmem:[%s4626 + $0xb1] sm:$0xff]
      %v4691 = vld [vmem:[%s4626 + $0xc1] sm:$0xff]
      %v4692 = vld [vmem:[%s4626 + $0xc9] sm:$0xff]
      %v4693 = vld [vmem:[%s4626 + $0xd9] sm:$0xff]
      %v4694 = vld [vmem:[%s4626 + $0xe1] sm:$0xff]
      %v4695 = vld [vmem:[%s4626 + $0xf1] sm:$0xff]
      %v4696 = vld [vmem:[%s4626 + $0xf9] sm:$0xff]
      %v4697 = vld [vmem:[%s4626 + $0x109] sm:$0xff]
      %v4698 = vld [vmem:[%s4626 + $0x111] sm:$0xff]
      %v4699 = vld [vmem:[%s4626 + $0x121] sm:$0xff]
      %v4700 = vld [vmem:[%s4626 + $0x129] sm:$0xff]
      %v4701 = vld [vmem:[%s4626 + $0x139] sm:$0xff]
      %v4702 = vld [vmem:[%s4626 + $0x141] sm:$0xff]
      %v4703 = vld [vmem:[%s4626 + $0x151] sm:$0xff]
      %v4704 = vld [vmem:[%s4626 + $0x159] sm:$0xff]
      %v4705 = vld [vmem:[%s4626 + $0x169] sm:$0xff]
      %v4706 = vld [vmem:[%s4626 + $0x171] sm:$0xff]
      %v4707 = vpack.c.bf16 %v4676, %v4675
      %v4708 = vpack.c.bf16 %v4678, %v4677
      %v4709 = vpack.c.bf16 %v4680, %v4679
      %v4710 = vpack.c.bf16 %v4682, %v4681
      %v4711 = vpack.c.bf16 %v4684, %v4683
      %v4712 = vpack.c.bf16 %v4686, %v4685
      %v4713 = vpack.c.bf16 %v4688, %v4687
      %v4714 = vpack.c.bf16 %v4690, %v4689
      %v4715 = vpack.c.bf16 %v4692, %v4691
      %v4716 = vpack.c.bf16 %v4694, %v4693
      %v4717 = vpack.c.bf16 %v4696, %v4695
      %v4718 = vpack.c.bf16 %v4698, %v4697
      %v4719 = vpack.c.bf16 %v4700, %v4699
      %v4720 = vpack.c.bf16 %v4702, %v4701
      %v4721 = vpack.c.bf16 %v4704, %v4703
      %v4722 = vpack.c.bf16 %v4706, %v4705
      %v4723 = vld [vmem:[%s4626 + $0x2] sm:$0xff]
      %v4724 = vld [vmem:[%s4626 + $0xa] sm:$0xff]
      %v4725 = vld [vmem:[%s4626 + $0x1a] sm:$0xff]
      %v4726 = vld [vmem:[%s4626 + $0x22] sm:$0xff]
      %v4727 = vld [vmem:[%s4626 + $0x32] sm:$0xff]
      %v4728 = vld [vmem:[%s4626 + $0x3a] sm:$0xff]
      %v4729 = vld [vmem:[%s4626 + $0x4a] sm:$0xff]
      %v4730 = vld [vmem:[%s4626 + $0x52] sm:$0xff]
      %v4731 = vld [vmem:[%s4626 + $0x62] sm:$0xff]
      %v4732 = vld [vmem:[%s4626 + $0x6a] sm:$0xff]
      %v4733 = vld [vmem:[%s4626 + $0x7a] sm:$0xff]
      %v4734 = vld [vmem:[%s4626 + $0x82] sm:$0xff]
      %v4735 = vld [vmem:[%s4626 + $0x92] sm:$0xff]
      %v4736 = vld [vmem:[%s4626 + $0x9a] sm:$0xff]
      %v4737 = vld [vmem:[%s4626 + $0xaa] sm:$0xff]
      %v4738 = vld [vmem:[%s4626 + $0xb2] sm:$0xff]
      %v4739 = vld [vmem:[%s4626 + $0xc2] sm:$0xff]
      %v4740 = vld [vmem:[%s4626 + $0xca] sm:$0xff]
      %v4741 = vld [vmem:[%s4626 + $0xda] sm:$0xff]
      %v4742 = vld [vmem:[%s4626 + $0xe2] sm:$0xff]
      %v4743 = vld [vmem:[%s4626 + $0xf2] sm:$0xff]
      %v4744 = vld [vmem:[%s4626 + $0xfa] sm:$0xff]
      %v4745 = vld [vmem:[%s4626 + $0x10a] sm:$0xff]
      %v4746 = vld [vmem:[%s4626 + $0x112] sm:$0xff]
      %v4747 = vld [vmem:[%s4626 + $0x122] sm:$0xff]
      %v4748 = vld [vmem:[%s4626 + $0x12a] sm:$0xff]
      %v4749 = vld [vmem:[%s4626 + $0x13a] sm:$0xff]
      %v4750 = vld [vmem:[%s4626 + $0x142] sm:$0xff]
      %v4751 = vld [vmem:[%s4626 + $0x152] sm:$0xff]
      %v4752 = vld [vmem:[%s4626 + $0x15a] sm:$0xff]
      %v4753 = vld [vmem:[%s4626 + $0x16a] sm:$0xff]
      %v4754 = vld [vmem:[%s4626 + $0x172] sm:$0xff]
      %v4755 = vpack.c.bf16 %v4724, %v4723
      %v4756 = vpack.c.bf16 %v4726, %v4725
      %v4757 = vpack.c.bf16 %v4728, %v4727
      %v4758 = vpack.c.bf16 %v4730, %v4729
      %v4759 = vpack.c.bf16 %v4732, %v4731
      %v4760 = vpack.c.bf16 %v4734, %v4733
      %v4761 = vpack.c.bf16 %v4736, %v4735
      %v4762 = vpack.c.bf16 %v4738, %v4737
      %v4763 = vpack.c.bf16 %v4740, %v4739
      %v4764 = vpack.c.bf16 %v4742, %v4741
      %v4765 = vpack.c.bf16 %v4744, %v4743
      %v4766 = vpack.c.bf16 %v4746, %v4745
      %v4767 = vpack.c.bf16 %v4748, %v4747
      %v4768 = vpack.c.bf16 %v4750, %v4749
      %v4769 = vpack.c.bf16 %v4752, %v4751
      %v4770 = vpack.c.bf16 %v4754, %v4753
      %4787 = vrot.lane.b32.xlu0 %v4418, 64
      %v4788 = vpop.permute.xlu0 %4787
      %4789 = vrot.lane.b32.xlu0 %v4419, 64
      %v4790 = vpop.permute.xlu0 %4789
      %4791 = vrot.lane.b32.xlu0 %v4420, 64
      %v4792 = vpop.permute.xlu0 %4791
      %4793 = vrot.lane.b32.xlu0 %v4421, 64
      %v4794 = vpop.permute.xlu0 %4793
      %4795 = vrot.lane.b32.xlu0 %v4422, 64
      %v4796 = vpop.permute.xlu0 %4795
      %4797 = vrot.lane.b32.xlu0 %v4423, 64
      %v4798 = vpop.permute.xlu0 %4797
      %4799 = vrot.lane.b32.xlu0 %v4424, 64
      %v4800 = vpop.permute.xlu0 %4799
      %4801 = vrot.lane.b32.xlu0 %v4425, 64
      %v4802 = vpop.permute.xlu0 %4801
      %4803 = vrot.lane.b32.xlu0 %v4426, 64
      %v4804 = vpop.permute.xlu0 %4803
      %4805 = vrot.lane.b32.xlu0 %v4427, 64
      %v4806 = vpop.permute.xlu0 %4805
      %4807 = vrot.lane.b32.xlu0 %v4428, 64
      %v4808 = vpop.permute.xlu0 %4807
      %4809 = vrot.lane.b32.xlu0 %v4429, 64
      %v4810 = vpop.permute.xlu0 %4809
      %4811 = vrot.lane.b32.xlu0 %v4430, 64
      %v4812 = vpop.permute.xlu0 %4811
      %4813 = vrot.lane.b32.xlu0 %v4431, 64
      %v4814 = vpop.permute.xlu0 %4813
      %4815 = vrot.lane.b32.xlu0 %v4432, 64
      %v4816 = vpop.permute.xlu0 %4815
      %4817 = vrot.lane.b32.xlu0 %v4433, 64
      %v4818 = vpop.permute.xlu0 %4817
      %v4821 = vsel %vm172, %v4370, %v4788
      %v4825 = vsel %vm172, %v4371, %v4790
      %v4829 = vsel %vm172, %v4372, %v4792
      %v4833 = vsel %vm172, %v4373, %v4794
      %v4837 = vsel %vm172, %v4374, %v4796
      %v4841 = vsel %vm172, %v4375, %v4798
      %v4845 = vsel %vm172, %v4376, %v4800
      %v4849 = vsel %vm172, %v4377, %v4802
      %v4853 = vsel %vm172, %v4378, %v4804
      %v4857 = vsel %vm172, %v4379, %v4806
      %v4861 = vsel %vm172, %v4380, %v4808
      %v4865 = vsel %vm172, %v4381, %v4810
      %v4869 = vsel %vm172, %v4382, %v4812
      %v4873 = vsel %vm172, %v4383, %v4814
      %v4877 = vsel %vm172, %v4384, %v4816
      %v4881 = vsel %vm172, %v4385, %v4818
      %4883 = vst [vmem:[#allocation4] sm:$0xff] %v4821
      %4884 = vst [vmem:[#allocation4 + $0x28] sm:$0xff] %v4825
      %4885 = vst [vmem:[#allocation4 + $0x50] sm:$0xff] %v4829
      %4886 = vst [vmem:[#allocation4 + $0x78] sm:$0xff] %v4833
      %4887 = vst [vmem:[#allocation4 + $0xa0] sm:$0xff] %v4837
      %4888 = vst [vmem:[#allocation4 + $0xc8] sm:$0xff] %v4841
      %4889 = vst [vmem:[#allocation4 + $0xf0] sm:$0xff] %v4845
      %4890 = vst [vmem:[#allocation4 + $0x118] sm:$0xff] %v4849
      %4891 = vst [vmem:[#allocation4 + $0x140] sm:$0xff] %v4853
      %4892 = vst [vmem:[#allocation4 + $0x168] sm:$0xff] %v4857
      %4893 = vst [vmem:[#allocation4 + $0x190] sm:$0xff] %v4861
      %4894 = vst [vmem:[#allocation4 + $0x1b8] sm:$0xff] %v4865
      %4895 = vst [vmem:[#allocation4 + $0x1e0] sm:$0xff] %v4869
      %4896 = vst [vmem:[#allocation4 + $0x208] sm:$0xff] %v4873
      %4897 = vst [vmem:[#allocation4 + $0x230] sm:$0xff] %v4877
      %4898 = vst [vmem:[#allocation4 + $0x258] sm:$0xff] %v4881
      %4915 = vrot.lane.b32.xlu0 %v4514, 64
      %v4916 = vpop.permute.xlu0 %4915
      %4917 = vrot.lane.b32.xlu0 %v4515, 64
      %v4918 = vpop.permute.xlu0 %4917
      %4919 = vrot.lane.b32.xlu0 %v4516, 64
      %v4920 = vpop.permute.xlu0 %4919
      %4921 = vrot.lane.b32.xlu0 %v4517, 64
      %v4922 = vpop.permute.xlu0 %4921
      %4923 = vrot.lane.b32.xlu0 %v4518, 64
      %v4924 = vpop.permute.xlu0 %4923
      %4925 = vrot.lane.b32.xlu0 %v4519, 64
      %v4926 = vpop.permute.xlu0 %4925
      %4927 = vrot.lane.b32.xlu0 %v4520, 64
      %v4928 = vpop.permute.xlu0 %4927
      %4929 = vrot.lane.b32.xlu0 %v4521, 64
      %v4930 = vpop.permute.xlu0 %4929
      %4931 = vrot.lane.b32.xlu0 %v4522, 64
      %v4932 = vpop.permute.xlu0 %4931
      %4933 = vrot.lane.b32.xlu0 %v4523, 64
      %v4934 = vpop.permute.xlu0 %4933
      %4935 = vrot.lane.b32.xlu0 %v4524, 64
      %v4936 = vpop.permute.xlu0 %4935
      %4937 = vrot.lane.b32.xlu0 %v4525, 64
      %v4938 = vpop.permute.xlu0 %4937
      %4939 = vrot.lane.b32.xlu0 %v4526, 64
      %v4940 = vpop.permute.xlu0 %4939
      %4941 = vrot.lane.b32.xlu0 %v4527, 64
      %v4942 = vpop.permute.xlu0 %4941
      %4943 = vrot.lane.b32.xlu0 %v4528, 64
      %v4944 = vpop.permute.xlu0 %4943
      %4945 = vrot.lane.b32.xlu0 %v4529, 64
      %v4946 = vpop.permute.xlu0 %4945
      %v4949 = vsel %vm172, %v4466, %v4916
      %v4953 = vsel %vm172, %v4467, %v4918
      %v4957 = vsel %vm172, %v4468, %v4920
      %v4961 = vsel %vm172, %v4469, %v4922
      %v4965 = vsel %vm172, %v4470, %v4924
      %v4969 = vsel %vm172, %v4471, %v4926
      %v4973 = vsel %vm172, %v4472, %v4928
      %v4977 = vsel %vm172, %v4473, %v4930
      %v4981 = vsel %vm172, %v4474, %v4932
      %v4985 = vsel %vm172, %v4475, %v4934
      %v4989 = vsel %vm172, %v4476, %v4936
      %v4993 = vsel %vm172, %v4477, %v4938
      %v4997 = vsel %vm172, %v4478, %v4940
      %v5001 = vsel %vm172, %v4479, %v4942
      %v5005 = vsel %vm172, %v4480, %v4944
      %v5009 = vsel %vm172, %v4481, %v4946
      %5011 = vst [vmem:[#allocation4 + $0x8] sm:$0xff] %v4949
      %5012 = vst [vmem:[#allocation4 + $0x30] sm:$0xff] %v4953
      %5013 = vst [vmem:[#allocation4 + $0x58] sm:$0xff] %v4957
      %5014 = vst [vmem:[#allocation4 + $0x80] sm:$0xff] %v4961
      %5015 = vst [vmem:[#allocation4 + $0xa8] sm:$0xff] %v4965
      %5016 = vst [vmem:[#allocation4 + $0xd0] sm:$0xff] %v4969
      %5017 = vst [vmem:[#allocation4 + $0xf8] sm:$0xff] %v4973
      %5018 = vst [vmem:[#allocation4 + $0x120] sm:$0xff] %v4977
      %5019 = vst [vmem:[#allocation4 + $0x148] sm:$0xff] %v4981
      %5020 = vst [vmem:[#allocation4 + $0x170] sm:$0xff] %v4985
      %5021 = vst [vmem:[#allocation4 + $0x198] sm:$0xff] %v4989
      %5022 = vst [vmem:[#allocation4 + $0x1c0] sm:$0xff] %v4993
      %5023 = vst [vmem:[#allocation4 + $0x1e8] sm:$0xff] %v4997
      %5024 = vst [vmem:[#allocation4 + $0x210] sm:$0xff] %v5001
      %5025 = vst [vmem:[#allocation4 + $0x238] sm:$0xff] %v5005
      %5026 = vst [vmem:[#allocation4 + $0x260] sm:$0xff] %v5009
      %5043 = vrot.lane.b32.xlu0 %v4610, 64
      %v5044 = vpop.permute.xlu0 %5043
      %5045 = vrot.lane.b32.xlu0 %v4611, 64
      %v5046 = vpop.permute.xlu0 %5045
      %5047 = vrot.lane.b32.xlu0 %v4612, 64
      %v5048 = vpop.permute.xlu0 %5047
      %5049 = vrot.lane.b32.xlu0 %v4613, 64
      %v5050 = vpop.permute.xlu0 %5049
      %5051 = vrot.lane.b32.xlu0 %v4614, 64
      %v5052 = vpop.permute.xlu0 %5051
      %5053 = vrot.lane.b32.xlu0 %v4615, 64
      %v5054 = vpop.permute.xlu0 %5053
      %5055 = vrot.lane.b32.xlu0 %v4616, 64
      %v5056 = vpop.permute.xlu0 %5055
      %5057 = vrot.lane.b32.xlu0 %v4617, 64
      %v5058 = vpop.permute.xlu0 %5057
      %5059 = vrot.lane.b32.xlu0 %v4618, 64
      %v5060 = vpop.permute.xlu0 %5059
      %5061 = vrot.lane.b32.xlu0 %v4619, 64
      %v5062 = vpop.permute.xlu0 %5061
      %5063 = vrot.lane.b32.xlu0 %v4620, 64
      %v5064 = vpop.permute.xlu0 %5063
      %5065 = vrot.lane.b32.xlu0 %v4621, 64
      %v5066 = vpop.permute.xlu0 %5065
      %5067 = vrot.lane.b32.xlu0 %v4622, 64
      %v5068 = vpop.permute.xlu0 %5067
      %5069 = vrot.lane.b32.xlu0 %v4623, 64
      %v5070 = vpop.permute.xlu0 %5069
      %5071 = vrot.lane.b32.xlu0 %v4624, 64
      %v5072 = vpop.permute.xlu0 %5071
      %5073 = vrot.lane.b32.xlu0 %v4625, 64
      %v5074 = vpop.permute.xlu0 %5073
      %v5077 = vsel %vm172, %v4562, %v5044
      %v5081 = vsel %vm172, %v4563, %v5046
      %v5085 = vsel %vm172, %v4564, %v5048
      %v5089 = vsel %vm172, %v4565, %v5050
      %v5093 = vsel %vm172, %v4566, %v5052
      %v5097 = vsel %vm172, %v4567, %v5054
      %v5101 = vsel %vm172, %v4568, %v5056
      %v5105 = vsel %vm172, %v4569, %v5058
      %v5109 = vsel %vm172, %v4570, %v5060
      %v5113 = vsel %vm172, %v4571, %v5062
      %v5117 = vsel %vm172, %v4572, %v5064
      %v5121 = vsel %vm172, %v4573, %v5066
      %v5125 = vsel %vm172, %v4574, %v5068
      %v5129 = vsel %vm172, %v4575, %v5070
      %v5133 = vsel %vm172, %v4576, %v5072
      %v5137 = vsel %vm172, %v4577, %v5074
      %5139 = vst [vmem:[#allocation4 + $0x10] sm:$0xff] %v5077
      %5140 = vst [vmem:[#allocation4 + $0x38] sm:$0xff] %v5081
      %5141 = vst [vmem:[#allocation4 + $0x60] sm:$0xff] %v5085
      %5142 = vst [vmem:[#allocation4 + $0x88] sm:$0xff] %v5089
      %5143 = vst [vmem:[#allocation4 + $0xb0] sm:$0xff] %v5093
      %5144 = vst [vmem:[#allocation4 + $0xd8] sm:$0xff] %v5097
      %5145 = vst [vmem:[#allocation4 + $0x100] sm:$0xff] %v5101
      %5146 = vst [vmem:[#allocation4 + $0x128] sm:$0xff] %v5105
      %5147 = vst [vmem:[#allocation4 + $0x150] sm:$0xff] %v5109
      %5148 = vst [vmem:[#allocation4 + $0x178] sm:$0xff] %v5113
      %5149 = vst [vmem:[#allocation4 + $0x1a0] sm:$0xff] %v5117
      %5150 = vst [vmem:[#allocation4 + $0x1c8] sm:$0xff] %v5121
      %5151 = vst [vmem:[#allocation4 + $0x1f0] sm:$0xff] %v5125
      %5152 = vst [vmem:[#allocation4 + $0x218] sm:$0xff] %v5129
      %5153 = vst [vmem:[#allocation4 + $0x240] sm:$0xff] %v5133
      %5154 = vst [vmem:[#allocation4 + $0x268] sm:$0xff] %v5137
      %5171 = vrot.lane.b32.xlu0 %v4707, 64
      %v5172 = vpop.permute.xlu0 %5171
      %5173 = vrot.lane.b32.xlu0 %v4708, 64
      %v5174 = vpop.permute.xlu0 %5173
      %5175 = vrot.lane.b32.xlu0 %v4709, 64
      %v5176 = vpop.permute.xlu0 %5175
      %5177 = vrot.lane.b32.xlu0 %v4710, 64
      %v5178 = vpop.permute.xlu0 %5177
      %5179 = vrot.lane.b32.xlu0 %v4711, 64
      %v5180 = vpop.permute.xlu0 %5179
      %5181 = vrot.lane.b32.xlu0 %v4712, 64
      %v5182 = vpop.permute.xlu0 %5181
      %5183 = vrot.lane.b32.xlu0 %v4713, 64
      %v5184 = vpop.permute.xlu0 %5183
      %5185 = vrot.lane.b32.xlu0 %v4714, 64
      %v5186 = vpop.permute.xlu0 %5185
      %5187 = vrot.lane.b32.xlu0 %v4715, 64
      %v5188 = vpop.permute.xlu0 %5187
      %5189 = vrot.lane.b32.xlu0 %v4716, 64
      %v5190 = vpop.permute.xlu0 %5189
      %5191 = vrot.lane.b32.xlu0 %v4717, 64
      %v5192 = vpop.permute.xlu0 %5191
      %5193 = vrot.lane.b32.xlu0 %v4718, 64
      %v5194 = vpop.permute.xlu0 %5193
      %5195 = vrot.lane.b32.xlu0 %v4719, 64
      %v5196 = vpop.permute.xlu0 %5195
      %5197 = vrot.lane.b32.xlu0 %v4720, 64
      %v5198 = vpop.permute.xlu0 %5197
      %5199 = vrot.lane.b32.xlu0 %v4721, 64
      %v5200 = vpop.permute.xlu0 %5199
      %5201 = vrot.lane.b32.xlu0 %v4722, 64
      %v5202 = vpop.permute.xlu0 %5201
      %v5205 = vsel %vm172, %v4659, %v5172
      %v5209 = vsel %vm172, %v4660, %v5174
      %v5213 = vsel %vm172, %v4661, %v5176
      %v5217 = vsel %vm172, %v4662, %v5178
      %v5221 = vsel %vm172, %v4663, %v5180
      %v5225 = vsel %vm172, %v4664, %v5182
      %v5229 = vsel %vm172, %v4665, %v5184
      %v5233 = vsel %vm172, %v4666, %v5186
      %v5237 = vsel %vm172, %v4667, %v5188
      %v5241 = vsel %vm172, %v4668, %v5190
      %v5245 = vsel %vm172, %v4669, %v5192
      %v5249 = vsel %vm172, %v4670, %v5194
      %v5253 = vsel %vm172, %v4671, %v5196
      %v5257 = vsel %vm172, %v4672, %v5198
      %v5261 = vsel %vm172, %v4673, %v5200
      %v5265 = vsel %vm172, %v4674, %v5202
      %5267 = vst [vmem:[#allocation4 + $0x18] sm:$0xff] %v5205
      %5268 = vst [vmem:[#allocation4 + $0x40] sm:$0xff] %v5209
      %5269 = vst [vmem:[#allocation4 + $0x68] sm:$0xff] %v5213
      %5270 = vst [vmem:[#allocation4 + $0x90] sm:$0xff] %v5217
      %5271 = vst [vmem:[#allocation4 + $0xb8] sm:$0xff] %v5221
      %5272 = vst [vmem:[#allocation4 + $0xe0] sm:$0xff] %v5225
      %5273 = vst [vmem:[#allocation4 + $0x108] sm:$0xff] %v5229
      %5274 = vst [vmem:[#allocation4 + $0x130] sm:$0xff] %v5233
      %5275 = vst [vmem:[#allocation4 + $0x158] sm:$0xff] %v5237
      %5276 = vst [vmem:[#allocation4 + $0x180] sm:$0xff] %v5241
      %5277 = vst [vmem:[#allocation4 + $0x1a8] sm:$0xff] %v5245
      %5278 = vst [vmem:[#allocation4 + $0x1d0] sm:$0xff] %v5249
      %5279 = vst [vmem:[#allocation4 + $0x1f8] sm:$0xff] %v5253
      %5280 = vst [vmem:[#allocation4 + $0x220] sm:$0xff] %v5257
      %5281 = vst [vmem:[#allocation4 + $0x248] sm:$0xff] %v5261
      %5282 = vst [vmem:[#allocation4 + $0x270] sm:$0xff] %v5265
      %5283 = vst.msk [vmem:[#allocation4 + $0x20] sm:$0xff] %vm172, %v4755
      %5284 = vst.msk [vmem:[#allocation4 + $0x48] sm:$0xff] %vm172, %v4756
      %5285 = vst.msk [vmem:[#allocation4 + $0x70] sm:$0xff] %vm172, %v4757
      %5286 = vst.msk [vmem:[#allocation4 + $0x98] sm:$0xff] %vm172, %v4758
      %5287 = vst.msk [vmem:[#allocation4 + $0xc0] sm:$0xff] %vm172, %v4759
      %5288 = vst.msk [vmem:[#allocation4 + $0xe8] sm:$0xff] %vm172, %v4760
      %5289 = vst.msk [vmem:[#allocation4 + $0x110] sm:$0xff] %vm172, %v4761
      %5290 = vst.msk [vmem:[#allocation4 + $0x138] sm:$0xff] %vm172, %v4762
      %5291 = vst.msk [vmem:[#allocation4 + $0x160] sm:$0xff] %vm172, %v4763
      %5292 = vst.msk [vmem:[#allocation4 + $0x188] sm:$0xff] %vm172, %v4764
      %5293 = vst.msk [vmem:[#allocation4 + $0x1b0] sm:$0xff] %vm172, %v4765
      %5294 = vst.msk [vmem:[#allocation4 + $0x1d8] sm:$0xff] %vm172, %v4766
      %5295 = vst.msk [vmem:[#allocation4 + $0x200] sm:$0xff] %vm172, %v4767
      %5296 = vst.msk [vmem:[#allocation4 + $0x228] sm:$0xff] %vm172, %v4768
      %5297 = vst.msk [vmem:[#allocation4 + $0x250] sm:$0xff] %vm172, %v4769
      %5298 = vst.msk [vmem:[#allocation4 + $0x278] sm:$0xff] %vm172, %v4770
      %v5299 = vld [vmem:[#allocation4] sm:$0xff]
      %v5300 = vld [vmem:[#allocation4 + $0x8] sm:$0xff]
      %v5301 = vld [vmem:[#allocation4 + $0x10] sm:$0xff]
      %v5302 = vld [vmem:[#allocation4 + $0x18] sm:$0xff]
      %v5303 = vld [vmem:[#allocation4 + $0x20] sm:$0xff]
      %v5304 = vld [vmem:[#allocation4 + $0x28] sm:$0xff]
      %v5305 = vld [vmem:[#allocation4 + $0x30] sm:$0xff]
      %v5306 = vld [vmem:[#allocation4 + $0x38] sm:$0xff]
      %v5307 = vld [vmem:[#allocation4 + $0x40] sm:$0xff]
      %v5308 = vld [vmem:[#allocation4 + $0x48] sm:$0xff]
      %v5309 = vld [vmem:[#allocation4 + $0x50] sm:$0xff]
      %v5310 = vld [vmem:[#allocation4 + $0x58] sm:$0xff]
      %v5311 = vld [vmem:[#allocation4 + $0x60] sm:$0xff]
      %v5312 = vld [vmem:[#allocation4 + $0x68] sm:$0xff]
      %v5313 = vld [vmem:[#allocation4 + $0x70] sm:$0xff]
      %v5314 = vld [vmem:[#allocation4 + $0x78] sm:$0xff]
      %v5315 = vld [vmem:[#allocation4 + $0x80] sm:$0xff]
      %v5316 = vld [vmem:[#allocation4 + $0x88] sm:$0xff]
      %v5317 = vld [vmem:[#allocation4 + $0x90] sm:$0xff]
      %v5318 = vld [vmem:[#allocation4 + $0x98] sm:$0xff]
      %v5319 = vld [vmem:[#allocation4 + $0xa0] sm:$0xff]
      %v5320 = vld [vmem:[#allocation4 + $0xa8] sm:$0xff]
      %v5321 = vld [vmem:[#allocation4 + $0xb0] sm:$0xff]
      %v5322 = vld [vmem:[#allocation4 + $0xb8] sm:$0xff]
      %v5323 = vld [vmem:[#allocation4 + $0xc0] sm:$0xff]
      %v5324 = vld [vmem:[#allocation4 + $0xc8] sm:$0xff]
      %v5325 = vld [vmem:[#allocation4 + $0xd0] sm:$0xff]
      %v5326 = vld [vmem:[#allocation4 + $0xd8] sm:$0xff]
      %v5327 = vld [vmem:[#allocation4 + $0xe0] sm:$0xff]
      %v5328 = vld [vmem:[#allocation4 + $0xe8] sm:$0xff]
      %v5329 = vld [vmem:[#allocation4 + $0xf0] sm:$0xff]
      %v5330 = vld [vmem:[#allocation4 + $0xf8] sm:$0xff]
      %v5331 = vld [vmem:[#allocation4 + $0x100] sm:$0xff]
      %v5332 = vld [vmem:[#allocation4 + $0x108] sm:$0xff]
      %v5333 = vld [vmem:[#allocation4 + $0x110] sm:$0xff]
      %v5334 = vld [vmem:[#allocation4 + $0x118] sm:$0xff]
      %v5335 = vld [vmem:[#allocation4 + $0x120] sm:$0xff]
      %v5336 = vld [vmem:[#allocation4 + $0x128] sm:$0xff]
      %v5337 = vld [vmem:[#allocation4 + $0x130] sm:$0xff]
      %v5338 = vld [vmem:[#allocation4 + $0x138] sm:$0xff]
      %v5339 = vld [vmem:[#allocation4 + $0x140] sm:$0xff]
      %v5340 = vld [vmem:[#allocation4 + $0x148] sm:$0xff]
      %v5341 = vld [vmem:[#allocation4 + $0x150] sm:$0xff]
      %v5342 = vld [vmem:[#allocation4 + $0x158] sm:$0xff]
      %v5343 = vld [vmem:[#allocation4 + $0x160] sm:$0xff]
      %v5344 = vld [vmem:[#allocation4 + $0x168] sm:$0xff]
      %v5345 = vld [vmem:[#allocation4 + $0x170] sm:$0xff]
      %v5346 = vld [vmem:[#allocation4 + $0x178] sm:$0xff]
      %v5347 = vld [vmem:[#allocation4 + $0x180] sm:$0xff]
      %v5348 = vld [vmem:[#allocation4 + $0x188] sm:$0xff]
      %v5349 = vld [vmem:[#allocation4 + $0x190] sm:$0xff]
      %v5350 = vld [vmem:[#allocation4 + $0x198] sm:$0xff]
      %v5351 = vld [vmem:[#allocation4 + $0x1a0] sm:$0xff]
      %v5352 = vld [vmem:[#allocation4 + $0x1a8] sm:$0xff]
      %v5353 = vld [vmem:[#allocation4 + $0x1b0] sm:$0xff]
      %v5354 = vld [vmem:[#allocation4 + $0x1b8] sm:$0xff]
      %v5355 = vld [vmem:[#allocation4 + $0x1c0] sm:$0xff]
      %v5356 = vld [vmem:[#allocation4 + $0x1c8] sm:$0xff]
      %v5357 = vld [vmem:[#allocation4 + $0x1d0] sm:$0xff]
      %v5358 = vld [vmem:[#allocation4 + $0x1d8] sm:$0xff]
      %v5359 = vld [vmem:[#allocation4 + $0x1e0] sm:$0xff]
      %v5360 = vld [vmem:[#allocation4 + $0x1e8] sm:$0xff]
      %v5361 = vld [vmem:[#allocation4 + $0x1f0] sm:$0xff]
      %v5362 = vld [vmem:[#allocation4 + $0x1f8] sm:$0xff]
      %v5363 = vld [vmem:[#allocation4 + $0x200] sm:$0xff]
      %v5364 = vld [vmem:[#allocation4 + $0x208] sm:$0xff]
      %v5365 = vld [vmem:[#allocation4 + $0x210] sm:$0xff]
      %v5366 = vld [vmem:[#allocation4 + $0x218] sm:$0xff]
      %v5367 = vld [vmem:[#allocation4 + $0x220] sm:$0xff]
      %v5368 = vld [vmem:[#allocation4 + $0x228] sm:$0xff]
      %v5369 = vld [vmem:[#allocation4 + $0x230] sm:$0xff]
      %v5370 = vld [vmem:[#allocation4 + $0x238] sm:$0xff]
      %v5371 = vld [vmem:[#allocation4 + $0x240] sm:$0xff]
      %v5372 = vld [vmem:[#allocation4 + $0x248] sm:$0xff]
      %v5373 = vld [vmem:[#allocation4 + $0x250] sm:$0xff]
      %v5374 = vld [vmem:[#allocation4 + $0x258] sm:$0xff]
      %v5375 = vld [vmem:[#allocation4 + $0x260] sm:$0xff]
      %v5376 = vld [vmem:[#allocation4 + $0x268] sm:$0xff]
      %v5377 = vld [vmem:[#allocation4 + $0x270] sm:$0xff]
      %v5378 = vld [vmem:[#allocation4 + $0x278] sm:$0xff]
      %v5379 = vld [vmem:[%s2] sm:$0xff]
      %v5380 = vld [vmem:[%s2 + $0x8] sm:$0xff]
      %v5381 = vld [vmem:[%s2 + $0x10] sm:$0xff]
      %v5382 = vld [vmem:[%s2 + $0x18] sm:$0xff]
      %v5383 = vld [vmem:[%s2 + $0x20] sm:$0xff]
      %v5384 = vld [vmem:[%s2 + $0x28] sm:$0xff]
      %v5385 = vld [vmem:[%s2 + $0x30] sm:$0xff]
      %v5386 = vld [vmem:[%s2 + $0x38] sm:$0xff]
      %v5387 = vld [vmem:[%s2 + $0x40] sm:$0xff]
      %v5388 = vld [vmem:[%s2 + $0x48] sm:$0xff]
      %v5389 = vld [vmem:[%s2 + $0x50] sm:$0xff]
      %v5390 = vld [vmem:[%s2 + $0x58] sm:$0xff]
      %v5391 = vld [vmem:[%s2 + $0x60] sm:$0xff]
      %v5392 = vld [vmem:[%s2 + $0x68] sm:$0xff]
      %v5393 = vld [vmem:[%s2 + $0x70] sm:$0xff]
      %v5394 = vld [vmem:[%s2 + $0x78] sm:$0xff]
      %v5395 = vld [vmem:[%s2 + $0x80] sm:$0xff]
      %v5396 = vld [vmem:[%s2 + $0x88] sm:$0xff]
      %v5397 = vld [vmem:[%s2 + $0x90] sm:$0xff]
      %v5398 = vld [vmem:[%s2 + $0x98] sm:$0xff]
      %v5399 = vld [vmem:[%s2 + $0xa0] sm:$0xff]
      %v5400 = vld [vmem:[%s2 + $0xa8] sm:$0xff]
      %v5401 = vld [vmem:[%s2 + $0xb0] sm:$0xff]
      %v5402 = vld [vmem:[%s2 + $0xb8] sm:$0xff]
      %v5403 = vld [vmem:[%s2 + $0xc0] sm:$0xff]
      %v5404 = vld [vmem:[%s2 + $0xc8] sm:$0xff]
      %v5405 = vld [vmem:[%s2 + $0xd0] sm:$0xff]
      %v5406 = vld [vmem:[%s2 + $0xd8] sm:$0xff]
      %v5407 = vld [vmem:[%s2 + $0xe0] sm:$0xff]
      %v5408 = vld [vmem:[%s2 + $0xe8] sm:$0xff]
      %v5409 = vld [vmem:[%s2 + $0xf0] sm:$0xff]
      %v5410 = vld [vmem:[%s2 + $0xf8] sm:$0xff]
      %v5411 = vld [vmem:[%s2 + $0x100] sm:$0xff]
      %v5412 = vld [vmem:[%s2 + $0x108] sm:$0xff]
      %v5413 = vld [vmem:[%s2 + $0x110] sm:$0xff]
      %v5414 = vld [vmem:[%s2 + $0x118] sm:$0xff]
      %v5415 = vld [vmem:[%s2 + $0x120] sm:$0xff]
      %v5416 = vld [vmem:[%s2 + $0x128] sm:$0xff]
      %v5417 = vld [vmem:[%s2 + $0x130] sm:$0xff]
      %v5418 = vld [vmem:[%s2 + $0x138] sm:$0xff]
      %v5419 = vld [vmem:[%s2 + $0x140] sm:$0xff]
      %v5420 = vld [vmem:[%s2 + $0x148] sm:$0xff]
      %v5421 = vld [vmem:[%s2 + $0x150] sm:$0xff]
      %v5422 = vld [vmem:[%s2 + $0x158] sm:$0xff]
      %v5423 = vld [vmem:[%s2 + $0x160] sm:$0xff]
      %v5424 = vld [vmem:[%s2 + $0x168] sm:$0xff]
      %v5425 = vld [vmem:[%s2 + $0x170] sm:$0xff]
      %v5426 = vld [vmem:[%s2 + $0x178] sm:$0xff]
      %v5427 = vld [vmem:[%s2 + $0x180] sm:$0xff]
      %v5428 = vld [vmem:[%s2 + $0x188] sm:$0xff]
      %v5429 = vld [vmem:[%s2 + $0x190] sm:$0xff]
      %v5430 = vld [vmem:[%s2 + $0x198] sm:$0xff]
      %v5431 = vld [vmem:[%s2 + $0x1a0] sm:$0xff]
      %v5432 = vld [vmem:[%s2 + $0x1a8] sm:$0xff]
      %v5433 = vld [vmem:[%s2 + $0x1b0] sm:$0xff]
      %v5434 = vld [vmem:[%s2 + $0x1b8] sm:$0xff]
      %v5435 = vld [vmem:[%s2 + $0x1c0] sm:$0xff]
      %v5436 = vld [vmem:[%s2 + $0x1c8] sm:$0xff]
      %v5437 = vld [vmem:[%s2 + $0x1d0] sm:$0xff]
      %v5438 = vld [vmem:[%s2 + $0x1d8] sm:$0xff]
      %v5439 = vld [vmem:[%s2 + $0x1e0] sm:$0xff]
      %v5440 = vld [vmem:[%s2 + $0x1e8] sm:$0xff]
      %v5441 = vld [vmem:[%s2 + $0x1f0] sm:$0xff]
      %v5442 = vld [vmem:[%s2 + $0x1f8] sm:$0xff]
      %v5443 = vld [vmem:[%s2 + $0x200] sm:$0xff]
      %v5444 = vld [vmem:[%s2 + $0x208] sm:$0xff]
      %v5445 = vld [vmem:[%s2 + $0x210] sm:$0xff]
      %v5446 = vld [vmem:[%s2 + $0x218] sm:$0xff]
      %v5447 = vld [vmem:[%s2 + $0x220] sm:$0xff]
      %v5448 = vld [vmem:[%s2 + $0x228] sm:$0xff]
      %v5449 = vld [vmem:[%s2 + $0x230] sm:$0xff]
      %v5450 = vld [vmem:[%s2 + $0x238] sm:$0xff]
      %v5523 = vunpack.c.l.b16 %v5379
      %v5524 = vunpack.c.h.b16 %v5379
      %v5525 = vunpack.c.l.b16 %v5380
      %v5526 = vunpack.c.h.b16 %v5380
      %v5527 = vunpack.c.l.b16 %v5381
      %v5528 = vunpack.c.h.b16 %v5381
      %v5529 = vunpack.c.l.b16 %v5382
      %v5530 = vunpack.c.h.b16 %v5382
      %v5531 = vunpack.c.l.b16 %v5383
      %v5532 = vunpack.c.h.b16 %v5383
      %v5533 = vunpack.c.l.b16 %v5384
      %v5534 = vunpack.c.h.b16 %v5384
      %v5535 = vunpack.c.l.b16 %v5385
      %v5536 = vunpack.c.h.b16 %v5385
      %v5537 = vunpack.c.l.b16 %v5386
      %v5538 = vunpack.c.h.b16 %v5386
      %v5539 = vunpack.c.l.b16 %v5387
      %v5540 = vunpack.c.h.b16 %v5387
      %v5541 = vunpack.c.l.b16 %v5388
      %v5542 = vunpack.c.h.b16 %v5388
      %v5543 = vunpack.c.l.b16 %v5389
      %v5544 = vunpack.c.h.b16 %v5389
      %v5545 = vunpack.c.l.b16 %v5390
      %v5546 = vunpack.c.h.b16 %v5390
      %v5547 = vunpack.c.l.b16 %v5391
      %v5548 = vunpack.c.h.b16 %v5391
      %v5549 = vunpack.c.l.b16 %v5392
      %v5550 = vunpack.c.h.b16 %v5392
      %v5551 = vunpack.c.l.b16 %v5393
      %v5552 = vunpack.c.h.b16 %v5393
      %v5553 = vunpack.c.l.b16 %v5394
      %v5554 = vunpack.c.h.b16 %v5394
      %v5555 = vunpack.c.l.b16 %v5395
      %v5556 = vunpack.c.h.b16 %v5395
      %v5557 = vunpack.c.l.b16 %v5396
      %v5558 = vunpack.c.h.b16 %v5396
      %v5559 = vunpack.c.l.b16 %v5397
      %v5560 = vunpack.c.h.b16 %v5397
      %v5561 = vunpack.c.l.b16 %v5398
      %v5562 = vunpack.c.h.b16 %v5398
      %v5563 = vunpack.c.l.b16 %v5399
      %v5564 = vunpack.c.h.b16 %v5399
      %v5565 = vunpack.c.l.b16 %v5400
      %v5566 = vunpack.c.h.b16 %v5400
      %v5567 = vunpack.c.l.b16 %v5401
      %v5568 = vunpack.c.h.b16 %v5401
      %v5569 = vunpack.c.l.b16 %v5402
      %v5570 = vunpack.c.h.b16 %v5402
      %v5571 = vunpack.c.l.b16 %v5403
      %v5572 = vunpack.c.h.b16 %v5403
      %v5573 = vunpack.c.l.b16 %v5404
      %v5574 = vunpack.c.h.b16 %v5404
      %v5575 = vunpack.c.l.b16 %v5405
      %v5576 = vunpack.c.h.b16 %v5405
      %v5577 = vunpack.c.l.b16 %v5406
      %v5578 = vunpack.c.h.b16 %v5406
      %v5579 = vunpack.c.l.b16 %v5407
      %v5580 = vunpack.c.h.b16 %v5407
      %v5581 = vunpack.c.l.b16 %v5408
      %v5582 = vunpack.c.h.b16 %v5408
      %v5583 = vunpack.c.l.b16 %v5409
      %v5584 = vunpack.c.h.b16 %v5409
      %v5585 = vunpack.c.l.b16 %v5410
      %v5586 = vunpack.c.h.b16 %v5410
      %v5587 = vunpack.c.l.b16 %v5411
      %v5588 = vunpack.c.h.b16 %v5411
      %v5589 = vunpack.c.l.b16 %v5412
      %v5590 = vunpack.c.h.b16 %v5412
      %v5591 = vunpack.c.l.b16 %v5413
      %v5592 = vunpack.c.h.b16 %v5413
      %v5593 = vunpack.c.l.b16 %v5414
      %v5594 = vunpack.c.h.b16 %v5414
      %v5595 = vunpack.c.l.b16 %v5415
      %v5596 = vunpack.c.h.b16 %v5415
      %v5597 = vunpack.c.l.b16 %v5416
      %v5598 = vunpack.c.h.b16 %v5416
      %v5599 = vunpack.c.l.b16 %v5417
      %v5600 = vunpack.c.h.b16 %v5417
      %v5601 = vunpack.c.l.b16 %v5418
      %v5602 = vunpack.c.h.b16 %v5418
      %v5603 = vunpack.c.l.b16 %v5419
      %v5604 = vunpack.c.h.b16 %v5419
      %v5605 = vunpack.c.l.b16 %v5420
      %v5606 = vunpack.c.h.b16 %v5420
      %v5607 = vunpack.c.l.b16 %v5421
      %v5608 = vunpack.c.h.b16 %v5421
      %v5609 = vunpack.c.l.b16 %v5422
      %v5610 = vunpack.c.h.b16 %v5422
      %v5611 = vunpack.c.l.b16 %v5423
      %v5612 = vunpack.c.h.b16 %v5423
      %v5613 = vunpack.c.l.b16 %v5424
      %v5614 = vunpack.c.h.b16 %v5424
      %v5615 = vunpack.c.l.b16 %v5425
      %v5616 = vunpack.c.h.b16 %v5425
      %v5617 = vunpack.c.l.b16 %v5426
      %v5618 = vunpack.c.h.b16 %v5426
      %v5619 = vunpack.c.l.b16 %v5427
      %v5620 = vunpack.c.h.b16 %v5427
      %v5621 = vunpack.c.l.b16 %v5428
      %v5622 = vunpack.c.h.b16 %v5428
      %v5623 = vunpack.c.l.b16 %v5429
      %v5624 = vunpack.c.h.b16 %v5429
      %v5625 = vunpack.c.l.b16 %v5430
      %v5626 = vunpack.c.h.b16 %v5430
      %v5627 = vunpack.c.l.b16 %v5431
      %v5628 = vunpack.c.h.b16 %v5431
      %v5629 = vunpack.c.l.b16 %v5432
      %v5630 = vunpack.c.h.b16 %v5432
      %v5631 = vunpack.c.l.b16 %v5433
      %v5632 = vunpack.c.h.b16 %v5433
      %v5633 = vunpack.c.l.b16 %v5434
      %v5634 = vunpack.c.h.b16 %v5434
      %v5635 = vunpack.c.l.b16 %v5435
      %v5636 = vunpack.c.h.b16 %v5435
      %v5637 = vunpack.c.l.b16 %v5436
      %v5638 = vunpack.c.h.b16 %v5436
      %v5639 = vunpack.c.l.b16 %v5437
      %v5640 = vunpack.c.h.b16 %v5437
      %v5641 = vunpack.c.l.b16 %v5438
      %v5642 = vunpack.c.h.b16 %v5438
      %v5643 = vunpack.c.l.b16 %v5439
      %v5644 = vunpack.c.h.b16 %v5439
      %v5645 = vunpack.c.l.b16 %v5440
      %v5646 = vunpack.c.h.b16 %v5440
      %v5647 = vunpack.c.l.b16 %v5441
      %v5648 = vunpack.c.h.b16 %v5441
      %v5649 = vunpack.c.l.b16 %v5442
      %v5650 = vunpack.c.h.b16 %v5442
      %v5651 = vunpack.c.l.b16 %v5443
      %v5652 = vunpack.c.h.b16 %v5443
      %v5653 = vunpack.c.l.b16 %v5444
      %v5654 = vunpack.c.h.b16 %v5444
      %v5655 = vunpack.c.l.b16 %v5445
      %v5656 = vunpack.c.h.b16 %v5445
      %v5657 = vunpack.c.l.b16 %v5446
      %v5658 = vunpack.c.h.b16 %v5446
      %v5659 = vunpack.c.l.b16 %v5447
      %v5660 = vunpack.c.h.b16 %v5447
      %v5661 = vunpack.c.l.b16 %v5448
      %v5662 = vunpack.c.h.b16 %v5448
      %v5663 = vunpack.c.l.b16 %v5449
      %v5664 = vunpack.c.h.b16 %v5449
      %v5665 = vunpack.c.l.b16 %v5450
      %v5666 = vunpack.c.h.b16 %v5450
      %v5667 = vpack.c.b16 %v5525, %v5523
      %v5668 = vpack.c.b16 %v5526, %v5524
      %v5669 = vpack.c.b16 %v5529, %v5527
      %v5670 = vpack.c.b16 %v5530, %v5528
      %v5671 = vpack.c.b16 %v5533, %v5531
      %v5672 = vpack.c.b16 %v5534, %v5532
      %v5673 = vpack.c.b16 %v5537, %v5535
      %v5674 = vpack.c.b16 %v5538, %v5536
      %v5675 = vpack.c.b16 %v5541, %v5539
      %v5676 = vpack.c.b16 %v5542, %v5540
      %v5677 = vpack.c.b16 %v5545, %v5543
      %v5678 = vpack.c.b16 %v5546, %v5544
      %v5679 = vpack.c.b16 %v5549, %v5547
      %v5680 = vpack.c.b16 %v5550, %v5548
      %v5681 = vpack.c.b16 %v5553, %v5551
      %v5682 = vpack.c.b16 %v5554, %v5552
      %v5683 = vpack.c.b16 %v5557, %v5555
      %v5684 = vpack.c.b16 %v5558, %v5556
      %v5685 = vpack.c.b16 %v5561, %v5559
      %v5686 = vpack.c.b16 %v5562, %v5560
      %v5687 = vpack.c.b16 %v5565, %v5563
      %v5688 = vpack.c.b16 %v5566, %v5564
      %v5689 = vpack.c.b16 %v5569, %v5567
      %v5690 = vpack.c.b16 %v5570, %v5568
      %v5691 = vpack.c.b16 %v5573, %v5571
      %v5692 = vpack.c.b16 %v5574, %v5572
      %v5693 = vpack.c.b16 %v5577, %v5575
      %v5694 = vpack.c.b16 %v5578, %v5576
      %v5695 = vpack.c.b16 %v5581, %v5579
      %v5696 = vpack.c.b16 %v5582, %v5580
      %v5697 = vpack.c.b16 %v5585, %v5583
      %v5698 = vpack.c.b16 %v5586, %v5584
      %v5699 = vpack.c.b16 %v5589, %v5587
      %v5700 = vpack.c.b16 %v5590, %v5588
      %v5701 = vpack.c.b16 %v5593, %v5591
      %v5702 = vpack.c.b16 %v5594, %v5592
      %v5703 = vpack.c.b16 %v5597, %v5595
      %v5704 = vpack.c.b16 %v5598, %v5596
      %v5705 = vpack.c.b16 %v5601, %v5599
      %v5706 = vpack.c.b16 %v5602, %v5600
      %v5707 = vpack.c.b16 %v5605, %v5603
      %v5708 = vpack.c.b16 %v5606, %v5604
      %v5709 = vpack.c.b16 %v5609, %v5607
      %v5710 = vpack.c.b16 %v5610, %v5608
      %v5711 = vpack.c.b16 %v5613, %v5611
      %v5712 = vpack.c.b16 %v5614, %v5612
      %v5713 = vpack.c.b16 %v5617, %v5615
      %v5714 = vpack.c.b16 %v5618, %v5616
      %v5715 = vpack.c.b16 %v5621, %v5619
      %v5716 = vpack.c.b16 %v5622, %v5620
      %v5717 = vpack.c.b16 %v5625, %v5623
      %v5718 = vpack.c.b16 %v5626, %v5624
      %v5719 = vpack.c.b16 %v5629, %v5627
      %v5720 = vpack.c.b16 %v5630, %v5628
      %v5721 = vpack.c.b16 %v5633, %v5631
      %v5722 = vpack.c.b16 %v5634, %v5632
      %v5723 = vpack.c.b16 %v5637, %v5635
      %v5724 = vpack.c.b16 %v5638, %v5636
      %v5725 = vpack.c.b16 %v5641, %v5639
      %v5726 = vpack.c.b16 %v5642, %v5640
      %v5727 = vpack.c.b16 %v5645, %v5643
      %v5728 = vpack.c.b16 %v5646, %v5644
      %v5729 = vpack.c.b16 %v5649, %v5647
      %v5730 = vpack.c.b16 %v5650, %v5648
      %v5731 = vpack.c.b16 %v5653, %v5651
      %v5732 = vpack.c.b16 %v5654, %v5652
      %v5733 = vpack.c.b16 %v5657, %v5655
      %v5734 = vpack.c.b16 %v5658, %v5656
      %v5735 = vpack.c.b16 %v5661, %v5659
      %v5736 = vpack.c.b16 %v5662, %v5660
      %v5737 = vpack.c.b16 %v5665, %v5663
      %v5738 = vpack.c.b16 %v5666, %v5664
      %v5812 = vsel %vm172, %v5303, 0
      %v5815 = vsel %vm172, %v5308, 0
      %v5818 = vsel %vm172, %v5313, 0
      %v5821 = vsel %vm172, %v5318, 0
      %v5824 = vsel %vm172, %v5323, 0
      %v5827 = vsel %vm172, %v5328, 0
      %v5830 = vsel %vm172, %v5333, 0
      %v5833 = vsel %vm172, %v5338, 0
      %v5836 = vsel %vm172, %v5343, 0
      %v5839 = vsel %vm172, %v5348, 0
      %v5842 = vsel %vm172, %v5353, 0
      %v5845 = vsel %vm172, %v5358, 0
      %v5848 = vsel %vm172, %v5363, 0
      %v5851 = vsel %vm172, %v5368, 0
      %v5854 = vsel %vm172, %v5373, 0
      %v5857 = vsel %vm172, %v5378, 0
      %5859 = vmatprep.subr.bf16.mxu0 %v5668
      %5860 = vmatpush1.bf16.msra.mxu0 %v5667
      %5861 = vmatprep.subr.bf16.mxu0 %v5670
      %5862 = vmatpush1.bf16.msra.mxu0 %v5669
      %5863 = vmatprep.subr.bf16.mxu0 %v5672
      %5864 = vmatpush1.bf16.msra.mxu0 %v5671
      %5865 = vmatprep.subr.bf16.mxu0 %v5674
      %5866 = vmatpush1.bf16.msra.mxu0 %v5673
      %5867 = vmatprep.subr.bf16.mxu0 %v5676
      %5868 = vmatpush1.bf16.msra.mxu0 %v5675
      %5869 = vmatprep.subr.bf16.mxu0 %v5678
      %5870 = vmatpush1.bf16.msra.mxu0 %v5677
      %5871 = vmatprep.subr.bf16.mxu0 %v5680
      %5872 = vmatpush1.bf16.msra.mxu0 %v5679
      %5873 = vmatprep.subr.bf16.mxu0 %v5682
      %5874 = vmatpush1.bf16.msra.mxu0 %v5681
      %5875 = vmatprep.subr.bf16.mxu0 %v5684
      %5876 = vmatpush1.bf16.msra.mxu0 %v5683
      %5877 = vmatprep.subr.bf16.mxu0 %v5686
      %5878 = vmatpush1.bf16.msra.mxu0 %v5685
      %5879 = vmatprep.subr.bf16.mxu0 %v5688
      %5880 = vmatpush1.bf16.msra.mxu0 %v5687
      %5881 = vmatprep.subr.bf16.mxu0 %v5690
      %5882 = vmatpush1.bf16.msra.mxu0 %v5689
      %5883 = vmatprep.subr.bf16.mxu0 %v5692
      %5884 = vmatpush1.bf16.msra.mxu0 %v5691
      %5885 = vmatprep.subr.bf16.mxu0 %v5694
      %5886 = vmatpush1.bf16.msra.mxu0 %v5693
      %5887 = vmatprep.subr.bf16.mxu0 %v5696
      %5888 = vmatpush1.bf16.msra.mxu0 %v5695
      %5889 = vmatprep.subr.bf16.mxu0 %v5698
      %5890 = vmatpush1.bf16.msra.mxu0 %v5697
      %5891 = vmatprep.mubr.bf16.mxu0 %v5300
      %5892 = vmatmul.mubr.bf16.gmra.mrb[0].mxu0 %v5299
      %v5893 = vpop.f32.mrb[0].mxu0
      %v5894 = vadd.f32 0.0, %v5893
      %v5895 = vpop.f32.mrb[0].mxu0
      %v5896 = vadd.f32 0.0, %v5895
      %v5897 = vpop.f32.mrb[0].mxu0
      %v5898 = vadd.f32 0.0, %v5897
      %v5899 = vpop.f32.mrb[0].mxu0
      %v5900 = vadd.f32 0.0, %v5899
      %5901 = vmatprep.mubr.bf16.mxu0 %v5305
      %5902 = vmatmul.mubr.bf16.gmra.mrb[0].mxu0 %v5304
      %v5903 = vpop.f32.mrb[0].mxu0
      %v5904 = vadd.f32 0.0, %v5903
      %v5905 = vpop.f32.mrb[0].mxu0
      %v5906 = vadd.f32 0.0, %v5905
      %v5907 = vpop.f32.mrb[0].mxu0
      %v5908 = vadd.f32 0.0, %v5907
      %v5909 = vpop.f32.mrb[0].mxu0
      %v5910 = vadd.f32 0.0, %v5909
      %5911 = vmatprep.mubr.bf16.mxu0 %v5310
      %5912 = vmatmul.mubr.bf16.gmra.mrb[0].mxu0 %v5309
      %v5913 = vpop.f32.mrb[0].mxu0
      %v5914 = vadd.f32 0.0, %v5913
      %v5915 = vpop.f32.mrb[0].mxu0
      %v5916 = vadd.f32 0.0, %v5915
      %v5917 = vpop.f32.mrb[0].mxu0
      %v5918 = vadd.f32 0.0, %v5917
      %v5919 = vpop.f32.mrb[0].mxu0
      %v5920 = vadd.f32 0.0, %v5919
      %5921 = vmatprep.mubr.bf16.mxu0 %v5315
      %5922 = vmatmul.mubr.bf16.gmra.mrb[0].mxu0 %v5314
      %v5923 = vpop.f32.mrb[0].mxu0
      %v5924 = vadd.f32 0.0, %v5923
      %v5925 = vpop.f32.mrb[0].mxu0
      %v5926 = vadd.f32 0.0, %v5925
      %v5927 = vpop.f32.mrb[0].mxu0
      %v5928 = vadd.f32 0.0, %v5927
      %v5929 = vpop.f32.mrb[0].mxu0
      %v5930 = vadd.f32 0.0, %v5929
      %5931 = vmatprep.mubr.bf16.mxu0 %v5320
      %5932 = vmatmul.mubr.bf16.gmra.mrb[0].mxu0 %v5319
      %v5933 = vpop.f32.mrb[0].mxu0
      %v5934 = vadd.f32 0.0, %v5933
      %v5935 = vpop.f32.mrb[0].mxu0
      %v5936 = vadd.f32 0.0, %v5935
      %v5937 = vpop.f32.mrb[0].mxu0
      %v5938 = vadd.f32 0.0, %v5937
      %v5939 = vpop.f32.mrb[0].mxu0
      %v5940 = vadd.f32 0.0, %v5939
      %5941 = vmatprep.mubr.bf16.mxu0 %v5325
      %5942 = vmatmul.mubr.bf16.gmra.mrb[0].mxu0 %v5324
      %v5943 = vpop.f32.mrb[0].mxu0
      %v5944 = vadd.f32 0.0, %v5943
      %v5945 = vpop.f32.mrb[0].mxu0
      %v5946 = vadd.f32 0.0, %v5945
      %v5947 = vpop.f32.mrb[0].mxu0
      %v5948 = vadd.f32 0.0, %v5947
      %v5949 = vpop.f32.mrb[0].mxu0
      %v5950 = vadd.f32 0.0, %v5949
      %5951 = vmatprep.mubr.bf16.mxu0 %v5330
      %5952 = vmatmul.mubr.bf16.gmra.mrb[0].mxu0 %v5329
      %v5953 = vpop.f32.mrb[0].mxu0
      %v5954 = vadd.f32 0.0, %v5953
      %v5955 = vpop.f32.mrb[0].mxu0
      %v5956 = vadd.f32 0.0, %v5955
      %v5957 = vpop.f32.mrb[0].mxu0
      %v5958 = vadd.f32 0.0, %v5957
      %v5959 = vpop.f32.mrb[0].mxu0
      %v5960 = vadd.f32 0.0, %v5959
      %5961 = vmatprep.mubr.bf16.mxu0 %v5335
      %5962 = vmatmul.mubr.bf16.gmra.mrb[0].mxu0 %v5334
      %v5963 = vpop.f32.mrb[0].mxu0
      %v5964 = vadd.f32 0.0, %v5963
      %v5965 = vpop.f32.mrb[0].mxu0
      %v5966 = vadd.f32 0.0, %v5965
      %v5967 = vpop.f32.mrb[0].mxu0
      %v5968 = vadd.f32 0.0, %v5967
      %v5969 = vpop.f32.mrb[0].mxu0
      %v5970 = vadd.f32 0.0, %v5969
      %5971 = vmatprep.mubr.bf16.mxu0 %v5340
      %5972 = vmatmul.mubr.bf16.gmra.mrb[0].mxu0 %v5339
      %v5973 = vpop.f32.mrb[0].mxu0
      %v5974 = vadd.f32 0.0, %v5973
      %v5975 = vpop.f32.mrb[0].mxu0
      %v5976 = vadd.f32 0.0, %v5975
      %v5977 = vpop.f32.mrb[0].mxu0
      %v5978 = vadd.f32 0.0, %v5977
      %v5979 = vpop.f32.mrb[0].mxu0
      %v5980 = vadd.f32 0.0, %v5979
      %5981 = vmatprep.mubr.bf16.mxu0 %v5345
      %5982 = vmatmul.mubr.bf16.gmra.mrb[0].mxu0 %v5344
      %v5983 = vpop.f32.mrb[0].mxu0
      %v5984 = vadd.f32 0.0, %v5983
      %v5985 = vpop.f32.mrb[0].mxu0
      %v5986 = vadd.f32 0.0, %v5985
      %v5987 = vpop.f32.mrb[0].mxu0
      %v5988 = vadd.f32 0.0, %v5987
      %v5989 = vpop.f32.mrb[0].mxu0
      %v5990 = vadd.f32 0.0, %v5989
      %5991 = vmatprep.mubr.bf16.mxu0 %v5350
      %5992 = vmatmul.mubr.bf16.gmra.mrb[0].mxu0 %v5349
      %v5993 = vpop.f32.mrb[0].mxu0
      %v5994 = vadd.f32 0.0, %v5993
      %v5995 = vpop.f32.mrb[0].mxu0
      %v5996 = vadd.f32 0.0, %v5995
      %v5997 = vpop.f32.mrb[0].mxu0
      %v5998 = vadd.f32 0.0, %v5997
      %v5999 = vpop.f32.mrb[0].mxu0
      %v6000 = vadd.f32 0.0, %v5999
      %6001 = vmatprep.mubr.bf16.mxu0 %v5355
      %6002 = vmatmul.mubr.bf16.gmra.mrb[0].mxu0 %v5354
      %v6003 = vpop.f32.mrb[0].mxu0
      %v6004 = vadd.f32 0.0, %v6003
      %v6005 = vpop.f32.mrb[0].mxu0
      %v6006 = vadd.f32 0.0, %v6005
      %v6007 = vpop.f32.mrb[0].mxu0
      %v6008 = vadd.f32 0.0, %v6007
      %v6009 = vpop.f32.mrb[0].mxu0
      %v6010 = vadd.f32 0.0, %v6009
      %6011 = vmatprep.mubr.bf16.mxu0 %v5360
      %6012 = vmatmul.mubr.bf16.gmra.mrb[0].mxu0 %v5359
      %v6013 = vpop.f32.mrb[0].mxu0
      %v6014 = vadd.f32 0.0, %v6013
      %v6015 = vpop.f32.mrb[0].mxu0
      %v6016 = vadd.f32 0.0, %v6015
      %v6017 = vpop.f32.mrb[0].mxu0
      %v6018 = vadd.f32 0.0, %v6017
      %v6019 = vpop.f32.mrb[0].mxu0
      %v6020 = vadd.f32 0.0, %v6019
      %6021 = vmatprep.mubr.bf16.mxu0 %v5365
      %6022 = vmatmul.mubr.bf16.gmra.mrb[0].mxu0 %v5364
      %v6023 = vpop.f32.mrb[0].mxu0
      %v6024 = vadd.f32 0.0, %v6023
      %v6025 = vpop.f32.mrb[0].mxu0
      %v6026 = vadd.f32 0.0, %v6025
      %v6027 = vpop.f32.mrb[0].mxu0
      %v6028 = vadd.f32 0.0, %v6027
      %v6029 = vpop.f32.mrb[0].mxu0
      %v6030 = vadd.f32 0.0, %v6029
      %6031 = vmatprep.mubr.bf16.mxu0 %v5370
      %6032 = vmatmul.mubr.bf16.gmra.mrb[0].mxu0 %v5369
      %v6033 = vpop.f32.mrb[0].mxu0
      %v6034 = vadd.f32 0.0, %v6033
      %v6035 = vpop.f32.mrb[0].mxu0
      %v6036 = vadd.f32 0.0, %v6035
      %v6037 = vpop.f32.mrb[0].mxu0
      %v6038 = vadd.f32 0.0, %v6037
      %v6039 = vpop.f32.mrb[0].mxu0
      %v6040 = vadd.f32 0.0, %v6039
      %6041 = vmatprep.mubr.bf16.mxu0 %v5375
      %6042 = vmatmul.mubr.bf16.gmra.mrb[0].mxu0 %v5374
      %v6043 = vpop.f32.mrb[0].mxu0
      %v6044 = vadd.f32 0.0, %v6043
      %v6045 = vpop.f32.mrb[0].mxu0
      %v6046 = vadd.f32 0.0, %v6045
      %v6047 = vpop.f32.mrb[0].mxu0
      %v6048 = vadd.f32 0.0, %v6047
      %v6049 = vpop.f32.mrb[0].mxu0
      %v6050 = vadd.f32 0.0, %v6049
      %6051 = vdwg.mxu0
      %6052 = vmatprep.subr.bf16.mxu0 %v5700
      %6053 = vmatpush1.bf16.msra.mxu0 %v5699
      %6054 = vmatprep.subr.bf16.mxu0 %v5702
      %6055 = vmatpush1.bf16.msra.mxu0 %v5701
      %6056 = vmatprep.subr.bf16.mxu0 %v5704
      %6057 = vmatpush1.bf16.msra.mxu0 %v5703
      %6058 = vmatprep.subr.bf16.mxu0 %v5706
      %6059 = vmatpush1.bf16.msra.mxu0 %v5705
      %6060 = vmatprep.subr.bf16.mxu0 %v5708
      %6061 = vmatpush1.bf16.msra.mxu0 %v5707
      %6062 = vmatprep.subr.bf16.mxu0 %v5710
      %6063 = vmatpush1.bf16.msra.mxu0 %v5709
      %6064 = vmatprep.subr.bf16.mxu0 %v5712
      %6065 = vmatpush1.bf16.msra.mxu0 %v5711
      %6066 = vmatprep.subr.bf16.mxu0 %v5714
      %6067 = vmatpush1.bf16.msra.mxu0 %v5713
      %6068 = vmatprep.subr.bf16.mxu0 %v5716
      %6069 = vmatpush1.bf16.msra.mxu0 %v5715
      %6070 = vmatprep.subr.bf16.mxu0 %v5718
      %6071 = vmatpush1.bf16.msra.mxu0 %v5717
      %6072 = vmatprep.subr.bf16.mxu0 %v5720
      %6073 = vmatpush1.bf16.msra.mxu0 %v5719
      %6074 = vmatprep.subr.bf16.mxu0 %v5722
      %6075 = vmatpush1.bf16.msra.mxu0 %v5721
      %6076 = vmatprep.subr.bf16.mxu0 %v5724
      %6077 = vmatpush1.bf16.msra.mxu0 %v5723
      %6078 = vmatprep.subr.bf16.mxu0 %v5726
      %6079 = vmatpush1.bf16.msra.mxu0 %v5725
      %6080 = vmatprep.subr.bf16.mxu0 %v5728
      %6081 = vmatpush1.bf16.msra.mxu0 %v5727
      %6082 = vmatprep.subr.bf16.mxu0 %v5730
      %6083 = vmatpush1.bf16.msra.mxu0 %v5729
      %6084 = vmatprep.mubr.bf16.mxu0 %v5302
      %6085 = vmatmul.mubr.bf16.gmra.mrb[0].mxu0 %v5301
      %v6086 = vpop.f32.mrb[0].mxu0
      %v6087 = vadd.f32 %v5894, %v6086
      %v6088 = vpop.f32.mrb[0].mxu0
      %v6089 = vadd.f32 %v5896, %v6088
      %v6090 = vpop.f32.mrb[0].mxu0
      %v6091 = vadd.f32 %v5898, %v6090
      %v6092 = vpop.f32.mrb[0].mxu0
      %v6093 = vadd.f32 %v5900, %v6092
      %6094 = vmatprep.mubr.bf16.mxu0 %v5307
      %6095 = vmatmul.mubr.bf16.gmra.mrb[0].mxu0 %v5306
      %v6096 = vpop.f32.mrb[0].mxu0
      %v6097 = vadd.f32 %v5904, %v6096
      %v6098 = vpop.f32.mrb[0].mxu0
      %v6099 = vadd.f32 %v5906, %v6098
      %v6100 = vpop.f32.mrb[0].mxu0
      %v6101 = vadd.f32 %v5908, %v6100
      %v6102 = vpop.f32.mrb[0].mxu0
      %v6103 = vadd.f32 %v5910, %v6102
      %6104 = vmatprep.mubr.bf16.mxu0 %v5312
      %6105 = vmatmul.mubr.bf16.gmra.mrb[0].mxu0 %v5311
      %v6106 = vpop.f32.mrb[0].mxu0
      %v6107 = vadd.f32 %v5914, %v6106
      %v6108 = vpop.f32.mrb[0].mxu0
      %v6109 = vadd.f32 %v5916, %v6108
      %v6110 = vpop.f32.mrb[0].mxu0
      %v6111 = vadd.f32 %v5918, %v6110
      %v6112 = vpop.f32.mrb[0].mxu0
      %v6113 = vadd.f32 %v5920, %v6112
      %6114 = vmatprep.mubr.bf16.mxu0 %v5317
      %6115 = vmatmul.mubr.bf16.gmra.mrb[0].mxu0 %v5316
      %v6116 = vpop.f32.mrb[0].mxu0
      %v6117 = vadd.f32 %v5924, %v6116
      %v6118 = vpop.f32.mrb[0].mxu0
      %v6119 = vadd.f32 %v5926, %v6118
      %v6120 = vpop.f32.mrb[0].mxu0
      %v6121 = vadd.f32 %v5928, %v6120
      %v6122 = vpop.f32.mrb[0].mxu0
      %v6123 = vadd.f32 %v5930, %v6122
      %6124 = vmatprep.mubr.bf16.mxu0 %v5322
      %6125 = vmatmul.mubr.bf16.gmra.mrb[0].mxu0 %v5321
      %v6126 = vpop.f32.mrb[0].mxu0
      %v6127 = vadd.f32 %v5934, %v6126
      %v6128 = vpop.f32.mrb[0].mxu0
      %v6129 = vadd.f32 %v5936, %v6128
      %v6130 = vpop.f32.mrb[0].mxu0
      %v6131 = vadd.f32 %v5938, %v6130
      %v6132 = vpop.f32.mrb[0].mxu0
      %v6133 = vadd.f32 %v5940, %v6132
      %6134 = vmatprep.mubr.bf16.mxu0 %v5327
      %6135 = vmatmul.mubr.bf16.gmra.mrb[0].mxu0 %v5326
      %v6136 = vpop.f32.mrb[0].mxu0
      %v6137 = vadd.f32 %v5944, %v6136
      %v6138 = vpop.f32.mrb[0].mxu0
      %v6139 = vadd.f32 %v5946, %v6138
      %v6140 = vpop.f32.mrb[0].mxu0
      %v6141 = vadd.f32 %v5948, %v6140
      %v6142 = vpop.f32.mrb[0].mxu0
      %v6143 = vadd.f32 %v5950, %v6142
      %6144 = vmatprep.mubr.bf16.mxu0 %v5332
      %6145 = vmatmul.mubr.bf16.gmra.mrb[0].mxu0 %v5331
      %v6146 = vpop.f32.mrb[0].mxu0
      %v6147 = vadd.f32 %v5954, %v6146
      %v6148 = vpop.f32.mrb[0].mxu0
      %v6149 = vadd.f32 %v5956, %v6148
      %v6150 = vpop.f32.mrb[0].mxu0
      %v6151 = vadd.f32 %v5958, %v6150
      %v6152 = vpop.f32.mrb[0].mxu0
      %v6153 = vadd.f32 %v5960, %v6152
      %6154 = vmatprep.mubr.bf16.mxu0 %v5337
      %6155 = vmatmul.mubr.bf16.gmra.mrb[0].mxu0 %v5336
      %v6156 = vpop.f32.mrb[0].mxu0
      %v6157 = vadd.f32 %v5964, %v6156
      %v6158 = vpop.f32.mrb[0].mxu0
      %v6159 = vadd.f32 %v5966, %v6158
      %v6160 = vpop.f32.mrb[0].mxu0
      %v6161 = vadd.f32 %v5968, %v6160
      %v6162 = vpop.f32.mrb[0].mxu0
      %v6163 = vadd.f32 %v5970, %v6162
      %6164 = vmatprep.mubr.bf16.mxu0 %v5342
      %6165 = vmatmul.mubr.bf16.gmra.mrb[0].mxu0 %v5341
      %v6166 = vpop.f32.mrb[0].mxu0
      %v6167 = vadd.f32 %v5974, %v6166
      %v6168 = vpop.f32.mrb[0].mxu0
      %v6169 = vadd.f32 %v5976, %v6168
      %v6170 = vpop.f32.mrb[0].mxu0
      %v6171 = vadd.f32 %v5978, %v6170
      %v6172 = vpop.f32.mrb[0].mxu0
      %v6173 = vadd.f32 %v5980, %v6172
      %6174 = vmatprep.mubr.bf16.mxu0 %v5347
      %6175 = vmatmul.mubr.bf16.gmra.mrb[0].mxu0 %v5346
      %v6176 = vpop.f32.mrb[0].mxu0
      %v6177 = vadd.f32 %v5984, %v6176
      %v6178 = vpop.f32.mrb[0].mxu0
      %v6179 = vadd.f32 %v5986, %v6178
      %v6180 = vpop.f32.mrb[0].mxu0
      %v6181 = vadd.f32 %v5988, %v6180
      %v6182 = vpop.f32.mrb[0].mxu0
      %v6183 = vadd.f32 %v5990, %v6182
      %6184 = vmatprep.mubr.bf16.mxu0 %v5352
      %6185 = vmatmul.mubr.bf16.gmra.mrb[0].mxu0 %v5351
      %v6186 = vpop.f32.mrb[0].mxu0
      %v6187 = vadd.f32 %v5994, %v6186
      %v6188 = vpop.f32.mrb[0].mxu0
      %v6189 = vadd.f32 %v5996, %v6188
      %v6190 = vpop.f32.mrb[0].mxu0
      %v6191 = vadd.f32 %v5998, %v6190
      %v6192 = vpop.f32.mrb[0].mxu0
      %v6193 = vadd.f32 %v6000, %v6192
      %6194 = vmatprep.mubr.bf16.mxu0 %v5357
      %6195 = vmatmul.mubr.bf16.gmra.mrb[0].mxu0 %v5356
      %v6196 = vpop.f32.mrb[0].mxu0
      %v6197 = vadd.f32 %v6004, %v6196
      %v6198 = vpop.f32.mrb[0].mxu0
      %v6199 = vadd.f32 %v6006, %v6198
      %v6200 = vpop.f32.mrb[0].mxu0
      %v6201 = vadd.f32 %v6008, %v6200
      %v6202 = vpop.f32.mrb[0].mxu0
      %v6203 = vadd.f32 %v6010, %v6202
      %6204 = vmatprep.mubr.bf16.mxu0 %v5362
      %6205 = vmatmul.mubr.bf16.gmra.mrb[0].mxu0 %v5361
      %v6206 = vpop.f32.mrb[0].mxu0
      %v6207 = vadd.f32 %v6014, %v6206
      %v6208 = vpop.f32.mrb[0].mxu0
      %v6209 = vadd.f32 %v6016, %v6208
      %v6210 = vpop.f32.mrb[0].mxu0
      %v6211 = vadd.f32 %v6018, %v6210
      %v6212 = vpop.f32.mrb[0].mxu0
      %v6213 = vadd.f32 %v6020, %v6212
      %6214 = vmatprep.mubr.bf16.mxu0 %v5367
      %6215 = vmatmul.mubr.bf16.gmra.mrb[0].mxu0 %v5366
      %v6216 = vpop.f32.mrb[0].mxu0
      %v6217 = vadd.f32 %v6024, %v6216
      %v6218 = vpop.f32.mrb[0].mxu0
      %v6219 = vadd.f32 %v6026, %v6218
      %v6220 = vpop.f32.mrb[0].mxu0
      %v6221 = vadd.f32 %v6028, %v6220
      %v6222 = vpop.f32.mrb[0].mxu0
      %v6223 = vadd.f32 %v6030, %v6222
      %6224 = vmatprep.mubr.bf16.mxu0 %v5372
      %6225 = vmatmul.mubr.bf16.gmra.mrb[0].mxu0 %v5371
      %v6226 = vpop.f32.mrb[0].mxu0
      %v6227 = vadd.f32 %v6034, %v6226
      %v6228 = vpop.f32.mrb[0].mxu0
      %v6229 = vadd.f32 %v6036, %v6228
      %v6230 = vpop.f32.mrb[0].mxu0
      %v6231 = vadd.f32 %v6038, %v6230
      %v6232 = vpop.f32.mrb[0].mxu0
      %v6233 = vadd.f32 %v6040, %v6232
      %6234 = vmatprep.mubr.bf16.mxu0 %v5377
      %6235 = vmatmul.mubr.bf16.gmra.mrb[0].mxu0 %v5376
      %v6236 = vpop.f32.mrb[0].mxu0
      %v6237 = vadd.f32 %v6044, %v6236
      %v6238 = vpop.f32.mrb[0].mxu0
      %v6239 = vadd.f32 %v6046, %v6238
      %v6240 = vpop.f32.mrb[0].mxu0
      %v6241 = vadd.f32 %v6048, %v6240
      %v6242 = vpop.f32.mrb[0].mxu0
      %v6243 = vadd.f32 %v6050, %v6242
      %6244 = vdwg.mxu0
      %6245 = vmatprep.subr.bf16.mxu0 %v5732
      %6246 = vmatpush1.bf16.msra.mxu0 %v5731
      %6247 = vmatprep.subr.bf16.mxu0 %v5734
      %6248 = vmatpush1.bf16.msra.mxu0 %v5733
      %6249 = vmatprep.subr.bf16.mxu0 %v5736
      %6250 = vmatpush1.bf16.msra.mxu0 %v5735
      %6251 = vmatprep.subr.bf16.mxu0 %v5738
      %6252 = vmatpush1.bf16.msra.mxu0 %v5737
      %6253 = vmatprep.subr.bf16.mxu0 0
      %6254 = vmatpush1.bf16.msra.mxu0 0
      %6255 = vmatprep.subr.bf16.mxu0 0
      %6256 = vmatpush1.bf16.msra.mxu0 0
      %6257 = vmatprep.subr.bf16.mxu0 0
      %6258 = vmatpush1.bf16.msra.mxu0 0
      %6259 = vmatprep.subr.bf16.mxu0 0
      %6260 = vmatpush1.bf16.msra.mxu0 0
      %6261 = vmatprep.subr.bf16.mxu0 0
      %6262 = vmatpush1.bf16.msra.mxu0 0
      %6263 = vmatprep.subr.bf16.mxu0 0
      %6264 = vmatpush1.bf16.msra.mxu0 0
      %6265 = vmatprep.subr.bf16.mxu0 0
      %6266 = vmatpush1.bf16.msra.mxu0 0
      %6267 = vmatprep.subr.bf16.mxu0 0
      %6268 = vmatpush1.bf16.msra.mxu0 0
      %6269 = vmatprep.subr.bf16.mxu0 0
      %6270 = vmatpush1.bf16.msra.mxu0 0
      %6271 = vmatprep.subr.bf16.mxu0 0
      %6272 = vmatpush1.bf16.msra.mxu0 0
      %6273 = vmatprep.subr.bf16.mxu0 0
      %6274 = vmatpush1.bf16.msra.mxu0 0
      %6275 = vmatprep.subr.bf16.mxu0 0
      %6276 = vmatpush1.bf16.msra.mxu0 0
      %6277 = vmatprep.mubr.bf16.mxu0 0
      %6278 = vmatmul.mubr.bf16.gmra.mrb[0].mxu0 %v5812
      %v6279 = vpop.f32.mrb[0].mxu0
      %v6280 = vadd.f32 %v6087, %v6279
      %v6281 = vpop.f32.mrb[0].mxu0
      %v6282 = vadd.f32 %v6089, %v6281
      %v6283 = vpop.f32.mrb[0].mxu0
      %v6284 = vadd.f32 %v6091, %v6283
      %v6285 = vpop.f32.mrb[0].mxu0
      %v6286 = vadd.f32 %v6093, %v6285
      %6287 = vmatprep.mubr.bf16.mxu0 0
      %6288 = vmatmul.mubr.bf16.gmra.mrb[0].mxu0 %v5815
      %v6289 = vpop.f32.mrb[0].mxu0
      %v6290 = vadd.f32 %v6097, %v6289
      %v6291 = vpop.f32.mrb[0].mxu0
      %v6292 = vadd.f32 %v6099, %v6291
      %v6293 = vpop.f32.mrb[0].mxu0
      %v6294 = vadd.f32 %v6101, %v6293
      %v6295 = vpop.f32.mrb[0].mxu0
      %v6296 = vadd.f32 %v6103, %v6295
      %6297 = vmatprep.mubr.bf16.mxu0 0
      %6298 = vmatmul.mubr.bf16.gmra.mrb[0].mxu0 %v5818
      %v6299 = vpop.f32.mrb[0].mxu0
      %v6300 = vadd.f32 %v6107, %v6299
      %v6301 = vpop.f32.mrb[0].mxu0
      %v6302 = vadd.f32 %v6109, %v6301
      %v6303 = vpop.f32.mrb[0].mxu0
      %v6304 = vadd.f32 %v6111, %v6303
      %v6305 = vpop.f32.mrb[0].mxu0
      %v6306 = vadd.f32 %v6113, %v6305
      %6307 = vmatprep.mubr.bf16.mxu0 0
      %6308 = vmatmul.mubr.bf16.gmra.mrb[0].mxu0 %v5821
      %v6309 = vpop.f32.mrb[0].mxu0
      %v6310 = vadd.f32 %v6117, %v6309
      %v6311 = vpop.f32.mrb[0].mxu0
      %v6312 = vadd.f32 %v6119, %v6311
      %v6313 = vpop.f32.mrb[0].mxu0
      %v6314 = vadd.f32 %v6121, %v6313
      %v6315 = vpop.f32.mrb[0].mxu0
      %v6316 = vadd.f32 %v6123, %v6315
      %6317 = vmatprep.mubr.bf16.mxu0 0
      %6318 = vmatmul.mubr.bf16.gmra.mrb[0].mxu0 %v5824
      %v6319 = vpop.f32.mrb[0].mxu0
      %v6320 = vadd.f32 %v6127, %v6319
      %v6321 = vpop.f32.mrb[0].mxu0
      %v6322 = vadd.f32 %v6129, %v6321
      %v6323 = vpop.f32.mrb[0].mxu0
      %v6324 = vadd.f32 %v6131, %v6323
      %v6325 = vpop.f32.mrb[0].mxu0
      %v6326 = vadd.f32 %v6133, %v6325
      %6327 = vmatprep.mubr.bf16.mxu0 0
      %6328 = vmatmul.mubr.bf16.gmra.mrb[0].mxu0 %v5827
      %v6329 = vpop.f32.mrb[0].mxu0
      %v6330 = vadd.f32 %v6137, %v6329
      %v6331 = vpop.f32.mrb[0].mxu0
      %v6332 = vadd.f32 %v6139, %v6331
      %v6333 = vpop.f32.mrb[0].mxu0
      %v6334 = vadd.f32 %v6141, %v6333
      %v6335 = vpop.f32.mrb[0].mxu0
      %v6336 = vadd.f32 %v6143, %v6335
      %6337 = vmatprep.mubr.bf16.mxu0 0
      %6338 = vmatmul.mubr.bf16.gmra.mrb[0].mxu0 %v5830
      %v6339 = vpop.f32.mrb[0].mxu0
      %v6340 = vadd.f32 %v6147, %v6339
      %v6341 = vpop.f32.mrb[0].mxu0
      %v6342 = vadd.f32 %v6149, %v6341
      %v6343 = vpop.f32.mrb[0].mxu0
      %v6344 = vadd.f32 %v6151, %v6343
      %v6345 = vpop.f32.mrb[0].mxu0
      %v6346 = vadd.f32 %v6153, %v6345
      %6347 = vmatprep.mubr.bf16.mxu0 0
      %6348 = vmatmul.mubr.bf16.gmra.mrb[0].mxu0 %v5833
      %v6349 = vpop.f32.mrb[0].mxu0
      %v6350 = vadd.f32 %v6157, %v6349
      %v6351 = vpop.f32.mrb[0].mxu0
      %v6352 = vadd.f32 %v6159, %v6351
      %v6353 = vpop.f32.mrb[0].mxu0
      %v6354 = vadd.f32 %v6161, %v6353
      %v6355 = vpop.f32.mrb[0].mxu0
      %v6356 = vadd.f32 %v6163, %v6355
      %6357 = vmatprep.mubr.bf16.mxu0 0
      %6358 = vmatmul.mubr.bf16.gmra.mrb[0].mxu0 %v5836
      %v6359 = vpop.f32.mrb[0].mxu0
      %v6360 = vadd.f32 %v6167, %v6359
      %v6361 = vpop.f32.mrb[0].mxu0
      %v6362 = vadd.f32 %v6169, %v6361
      %v6363 = vpop.f32.mrb[0].mxu0
      %v6364 = vadd.f32 %v6171, %v6363
      %v6365 = vpop.f32.mrb[0].mxu0
      %v6366 = vadd.f32 %v6173, %v6365
      %6367 = vmatprep.mubr.bf16.mxu0 0
      %6368 = vmatmul.mubr.bf16.gmra.mrb[0].mxu0 %v5839
      %v6369 = vpop.f32.mrb[0].mxu0
      %v6370 = vadd.f32 %v6177, %v6369
      %v6371 = vpop.f32.mrb[0].mxu0
      %v6372 = vadd.f32 %v6179, %v6371
      %v6373 = vpop.f32.mrb[0].mxu0
      %v6374 = vadd.f32 %v6181, %v6373
      %v6375 = vpop.f32.mrb[0].mxu0
      %v6376 = vadd.f32 %v6183, %v6375
      %6377 = vmatprep.mubr.bf16.mxu0 0
      %6378 = vmatmul.mubr.bf16.gmra.mrb[0].mxu0 %v5842
      %v6379 = vpop.f32.mrb[0].mxu0
      %v6380 = vadd.f32 %v6187, %v6379
      %v6381 = vpop.f32.mrb[0].mxu0
      %v6382 = vadd.f32 %v6189, %v6381
      %v6383 = vpop.f32.mrb[0].mxu0
      %v6384 = vadd.f32 %v6191, %v6383
      %v6385 = vpop.f32.mrb[0].mxu0
      %v6386 = vadd.f32 %v6193, %v6385
      %6387 = vmatprep.mubr.bf16.mxu0 0
      %6388 = vmatmul.mubr.bf16.gmra.mrb[0].mxu0 %v5845
      %v6389 = vpop.f32.mrb[0].mxu0
      %v6390 = vadd.f32 %v6197, %v6389
      %v6391 = vpop.f32.mrb[0].mxu0
      %v6392 = vadd.f32 %v6199, %v6391
      %v6393 = vpop.f32.mrb[0].mxu0
      %v6394 = vadd.f32 %v6201, %v6393
      %v6395 = vpop.f32.mrb[0].mxu0
      %v6396 = vadd.f32 %v6203, %v6395
      %6397 = vmatprep.mubr.bf16.mxu0 0
      %6398 = vmatmul.mubr.bf16.gmra.mrb[0].mxu0 %v5848
      %v6399 = vpop.f32.mrb[0].mxu0
      %v6400 = vadd.f32 %v6207, %v6399
      %v6401 = vpop.f32.mrb[0].mxu0
      %v6402 = vadd.f32 %v6209, %v6401
      %v6403 = vpop.f32.mrb[0].mxu0
      %v6404 = vadd.f32 %v6211, %v6403
      %v6405 = vpop.f32.mrb[0].mxu0
      %v6406 = vadd.f32 %v6213, %v6405
      %6407 = vmatprep.mubr.bf16.mxu0 0
      %6408 = vmatmul.mubr.bf16.gmra.mrb[0].mxu0 %v5851
      %v6409 = vpop.f32.mrb[0].mxu0
      %v6410 = vadd.f32 %v6217, %v6409
      %v6411 = vpop.f32.mrb[0].mxu0
      %v6412 = vadd.f32 %v6219, %v6411
      %v6413 = vpop.f32.mrb[0].mxu0
      %v6414 = vadd.f32 %v6221, %v6413
      %v6415 = vpop.f32.mrb[0].mxu0
      %v6416 = vadd.f32 %v6223, %v6415
      %6417 = vmatprep.mubr.bf16.mxu0 0
      %6418 = vmatmul.mubr.bf16.gmra.mrb[0].mxu0 %v5854
      %v6419 = vpop.f32.mrb[0].mxu0
      %v6420 = vadd.f32 %v6227, %v6419
      %v6421 = vpop.f32.mrb[0].mxu0
      %v6422 = vadd.f32 %v6229, %v6421
      %v6423 = vpop.f32.mrb[0].mxu0
      %v6424 = vadd.f32 %v6231, %v6423
      %v6425 = vpop.f32.mrb[0].mxu0
      %v6426 = vadd.f32 %v6233, %v6425
      %6427 = vmatprep.mubr.bf16.mxu0 0
      %6428 = vmatmul.mubr.bf16.gmra.mrb[0].mxu0 %v5857
      %v6429 = vpop.f32.mrb[0].mxu0
      %v6430 = vadd.f32 %v6237, %v6429
      %v6431 = vpop.f32.mrb[0].mxu0
      %v6432 = vadd.f32 %v6239, %v6431
      %v6433 = vpop.f32.mrb[0].mxu0
      %v6434 = vadd.f32 %v6241, %v6433
      %v6435 = vpop.f32.mrb[0].mxu0
      %v6436 = vadd.f32 %v6243, %v6435
      %6437 = vdwg.mxu0
      %v6438 = vpack.c.bf16 %v6284, %v6280
      %v6439 = vpack.c.bf16 %v6286, %v6282
      %v6440 = vpack.c.bf16 %v6294, %v6290
      %v6441 = vpack.c.bf16 %v6296, %v6292
      %v6442 = vpack.c.bf16 %v6304, %v6300
      %v6443 = vpack.c.bf16 %v6306, %v6302
      %v6444 = vpack.c.bf16 %v6314, %v6310
      %v6445 = vpack.c.bf16 %v6316, %v6312
      %v6446 = vpack.c.bf16 %v6324, %v6320
      %v6447 = vpack.c.bf16 %v6326, %v6322
      %v6448 = vpack.c.bf16 %v6334, %v6330
      %v6449 = vpack.c.bf16 %v6336, %v6332
      %v6450 = vpack.c.bf16 %v6344, %v6340
      %v6451 = vpack.c.bf16 %v6346, %v6342
      %v6452 = vpack.c.bf16 %v6354, %v6350
      %v6453 = vpack.c.bf16 %v6356, %v6352
      %v6454 = vpack.c.bf16 %v6364, %v6360
      %v6455 = vpack.c.bf16 %v6366, %v6362
      %v6456 = vpack.c.bf16 %v6374, %v6370
      %v6457 = vpack.c.bf16 %v6376, %v6372
      %v6458 = vpack.c.bf16 %v6384, %v6380
      %v6459 = vpack.c.bf16 %v6386, %v6382
      %v6460 = vpack.c.bf16 %v6394, %v6390
      %v6461 = vpack.c.bf16 %v6396, %v6392
      %v6462 = vpack.c.bf16 %v6404, %v6400
      %v6463 = vpack.c.bf16 %v6406, %v6402
      %v6464 = vpack.c.bf16 %v6414, %v6410
      %v6465 = vpack.c.bf16 %v6416, %v6412
      %v6466 = vpack.c.bf16 %v6424, %v6420
      %v6467 = vpack.c.bf16 %v6426, %v6422
      %v6468 = vpack.c.bf16 %v6434, %v6430
      %v6469 = vpack.c.bf16 %v6436, %v6432
      %v6502 = vunpack.c.l.b16 %v6438
      %v6503 = vunpack.c.l.b16 %v6439
      %v6504 = vunpack.c.h.b16 %v6438
      %v6505 = vunpack.c.h.b16 %v6439
      %v6506 = vunpack.c.l.b16 %v6440
      %v6507 = vunpack.c.l.b16 %v6441
      %v6508 = vunpack.c.h.b16 %v6440
      %v6509 = vunpack.c.h.b16 %v6441
      %v6510 = vunpack.c.l.b16 %v6442
      %v6511 = vunpack.c.l.b16 %v6443
      %v6512 = vunpack.c.h.b16 %v6442
      %v6513 = vunpack.c.h.b16 %v6443
      %v6514 = vunpack.c.l.b16 %v6444
      %v6515 = vunpack.c.l.b16 %v6445
      %v6516 = vunpack.c.h.b16 %v6444
      %v6517 = vunpack.c.h.b16 %v6445
      %v6518 = vunpack.c.l.b16 %v6446
      %v6519 = vunpack.c.l.b16 %v6447
      %v6520 = vunpack.c.h.b16 %v6446
      %v6521 = vunpack.c.h.b16 %v6447
      %v6522 = vunpack.c.l.b16 %v6448
      %v6523 = vunpack.c.l.b16 %v6449
      %v6524 = vunpack.c.h.b16 %v6448
      %v6525 = vunpack.c.h.b16 %v6449
      %v6526 = vunpack.c.l.b16 %v6450
      %v6527 = vunpack.c.l.b16 %v6451
      %v6528 = vunpack.c.h.b16 %v6450
      %v6529 = vunpack.c.h.b16 %v6451
      %v6530 = vunpack.c.l.b16 %v6452
      %v6531 = vunpack.c.l.b16 %v6453
      %v6532 = vunpack.c.h.b16 %v6452
      %v6533 = vunpack.c.h.b16 %v6453
      %v6534 = vunpack.c.l.b16 %v6454
      %v6535 = vunpack.c.l.b16 %v6455
      %v6536 = vunpack.c.h.b16 %v6454
      %v6537 = vunpack.c.h.b16 %v6455
      %v6538 = vunpack.c.l.b16 %v6456
      %v6539 = vunpack.c.l.b16 %v6457
      %v6540 = vunpack.c.h.b16 %v6456
      %v6541 = vunpack.c.h.b16 %v6457
      %v6542 = vunpack.c.l.b16 %v6458
      %v6543 = vunpack.c.l.b16 %v6459
      %v6544 = vunpack.c.h.b16 %v6458
      %v6545 = vunpack.c.h.b16 %v6459
      %v6546 = vunpack.c.l.b16 %v6460
      %v6547 = vunpack.c.l.b16 %v6461
      %v6548 = vunpack.c.h.b16 %v6460
      %v6549 = vunpack.c.h.b16 %v6461
      %v6550 = vunpack.c.l.b16 %v6462
      %v6551 = vunpack.c.l.b16 %v6463
      %v6552 = vunpack.c.h.b16 %v6462
      %v6553 = vunpack.c.h.b16 %v6463
      %v6554 = vunpack.c.l.b16 %v6464
      %v6555 = vunpack.c.l.b16 %v6465
      %v6556 = vunpack.c.h.b16 %v6464
      %v6557 = vunpack.c.h.b16 %v6465
      %v6558 = vunpack.c.l.b16 %v6466
      %v6559 = vunpack.c.l.b16 %v6467
      %v6560 = vunpack.c.h.b16 %v6466
      %v6561 = vunpack.c.h.b16 %v6467
      %v6562 = vunpack.c.l.b16 %v6468
      %v6563 = vunpack.c.l.b16 %v6469
      %v6564 = vunpack.c.h.b16 %v6468
      %v6565 = vunpack.c.h.b16 %v6469
      %v6566 = vpack.c.b16 %v6503, %v6502
      %v6567 = vpack.c.b16 %v6505, %v6504
      %v6568 = vpack.c.b16 %v6507, %v6506
      %v6569 = vpack.c.b16 %v6509, %v6508
      %v6570 = vpack.c.b16 %v6511, %v6510
      %v6571 = vpack.c.b16 %v6513, %v6512
      %v6572 = vpack.c.b16 %v6515, %v6514
      %v6573 = vpack.c.b16 %v6517, %v6516
      %v6574 = vpack.c.b16 %v6519, %v6518
      %v6575 = vpack.c.b16 %v6521, %v6520
      %v6576 = vpack.c.b16 %v6523, %v6522
      %v6577 = vpack.c.b16 %v6525, %v6524
      %v6578 = vpack.c.b16 %v6527, %v6526
      %v6579 = vpack.c.b16 %v6529, %v6528
      %v6580 = vpack.c.b16 %v6531, %v6530
      %v6581 = vpack.c.b16 %v6533, %v6532
      %v6582 = vpack.c.b16 %v6535, %v6534
      %v6583 = vpack.c.b16 %v6537, %v6536
      %v6584 = vpack.c.b16 %v6539, %v6538
      %v6585 = vpack.c.b16 %v6541, %v6540
      %v6586 = vpack.c.b16 %v6543, %v6542
      %v6587 = vpack.c.b16 %v6545, %v6544
      %v6588 = vpack.c.b16 %v6547, %v6546
      %v6589 = vpack.c.b16 %v6549, %v6548
      %v6590 = vpack.c.b16 %v6551, %v6550
      %v6591 = vpack.c.b16 %v6553, %v6552
      %v6592 = vpack.c.b16 %v6555, %v6554
      %v6593 = vpack.c.b16 %v6557, %v6556
      %v6594 = vpack.c.b16 %v6559, %v6558
      %v6595 = vpack.c.b16 %v6561, %v6560
      %v6596 = vpack.c.b16 %v6563, %v6562
      %v6597 = vpack.c.b16 %v6565, %v6564
      %6630 = vst [vmem:[%s170] sm:$0xff] %v6566
      %6631 = vst [vmem:[%s170 + $0x8] sm:$0xff] %v6567
      %6632 = vst [vmem:[%s170 + $0x10] sm:$0xff] %v6568
      %6633 = vst [vmem:[%s170 + $0x18] sm:$0xff] %v6569
      %6634 = vst [vmem:[%s170 + $0x20] sm:$0xff] %v6570
      %6635 = vst [vmem:[%s170 + $0x28] sm:$0xff] %v6571
      %6636 = vst [vmem:[%s170 + $0x30] sm:$0xff] %v6572
      %6637 = vst [vmem:[%s170 + $0x38] sm:$0xff] %v6573
      %6638 = vst [vmem:[%s170 + $0x40] sm:$0xff] %v6574
      %6639 = vst [vmem:[%s170 + $0x48] sm:$0xff] %v6575
      %6640 = vst [vmem:[%s170 + $0x50] sm:$0xff] %v6576
      %6641 = vst [vmem:[%s170 + $0x58] sm:$0xff] %v6577
      %6642 = vst [vmem:[%s170 + $0x60] sm:$0xff] %v6578
      %6643 = vst [vmem:[%s170 + $0x68] sm:$0xff] %v6579
      %6644 = vst [vmem:[%s170 + $0x70] sm:$0xff] %v6580
      %6645 = vst [vmem:[%s170 + $0x78] sm:$0xff] %v6581
      %6646 = vst [vmem:[%s170 + $0x80] sm:$0xff] %v6582
      %6647 = vst [vmem:[%s170 + $0x88] sm:$0xff] %v6583
      %6648 = vst [vmem:[%s170 + $0x90] sm:$0xff] %v6584
      %6649 = vst [vmem:[%s170 + $0x98] sm:$0xff] %v6585
      %6650 = vst [vmem:[%s170 + $0xa0] sm:$0xff] %v6586
      %6651 = vst [vmem:[%s170 + $0xa8] sm:$0xff] %v6587
      %6652 = vst [vmem:[%s170 + $0xb0] sm:$0xff] %v6588
      %6653 = vst [vmem:[%s170 + $0xb8] sm:$0xff] %v6589
      %6654 = vst [vmem:[%s170 + $0xc0] sm:$0xff] %v6590
      %6655 = vst [vmem:[%s170 + $0xc8] sm:$0xff] %v6591
      %6656 = vst [vmem:[%s170 + $0xd0] sm:$0xff] %v6592
      %6657 = vst [vmem:[%s170 + $0xd8] sm:$0xff] %v6593
      %6658 = vst [vmem:[%s170 + $0xe0] sm:$0xff] %v6594
      %6659 = vst [vmem:[%s170 + $0xe8] sm:$0xff] %v6595
      %6660 = vst [vmem:[%s170 + $0xf0] sm:$0xff] %v6596
      %6661 = vst [vmem:[%s170 + $0xf8] sm:$0xff] %v6597
      %p6662 = scmp.lt.s32.totalorder %s14, 1
      %s6663 = scalar_select %p6662, %s14, 1
      %s6664 = smul.addr %s6663, 64
      %s6665 = smul.addr %s6664, 4
      %s6666 = scalar_lea.vmem %s3, %s6665
      // Predicated region
      $region40: #{conv_block_forward.1} parent=31 // pred_check
        %p6667 = pneg %p100
      $region41: #{conv_block_forward.1} parent=31 // pred_check_branch
        %6669 = sbr.rel (%p6667) target = $region43
      $region42: #{conv_block_forward.1} parent=31 // pred_region
        _
      $region43: #{conv_block_forward.1} parent=31 // pred_fallthru
        _
    $region32: #{conv_block_forward.1} parent=5 // pred_fallthru
      _
    %p6670 = scmp.le.s32.totalorder 2, %s9
    // Predicated region
    $region44: #{conv_block_forward.1} parent=5 // pred_check
      %p6671 = pneg %p6670
    $region45: #{conv_block_forward.1} parent=5 // pred_check_branch
      %6673 = sbr.rel (%p6671) target = $region47
    $region46: #{conv_block_forward.1} parent=5 // pred_region
      %s6674 = ssub.s32 %s9, 2
      // Predicated region
      $region48: #{conv_block_forward.1} parent=46 // pred_check
        %p6675 = pneg %p106
      $region49: #{conv_block_forward.1} parent=46 // pred_check_branch
        %6677 = sbr.rel (%p6675) target = $region51
      $region50: #{conv_block_forward.1} parent=46 // pred_region
        %p6678 = scmp.lt.s32.totalorder %s15, 1
        %s6679 = scalar_select %p6678, %s15, 1
        %s6680 = smul.addr %s6679, 64
        %s6681 = smul.addr %s6680, 4
        %s6682 = scalar_lea.vmem %s3, %s6681
      $region51: #{conv_block_forward.1} parent=46 // pred_fallthru
        _
    $region47: #{conv_block_forward.1} parent=5 // pred_fallthru
      _
  $region6: #{conv_block_forward.1} parent=0 // loop_footer
    %s13 = sadd.s32 1, %s9
  $region7: #{conv_block_forward.1} parent=0 // loop_footer_branch
    %8 = sbr.rel target = $region3
  $region8: #{conv_block_forward.1} parent=0 // loop_exit
    _

</llo_original>
